<compile_context>
chip_gen: v7x
topology: tpu7x:2x2x1
jax: 0.10.0
libtpu: 0.0.40
codegen_flags: <defaults>
</compile_context>

<pallas_src>
import jax
import jax.numpy as jnp
from jax.experimental import pallas as pl
from jax.experimental.pallas import tpu as pltpu

# ---------------- model hyper-parameters (from the PyTorch module) ----------
IN_FEATURES = 3 * 112 * 112          # 37632
FC1_OUT = 64
FC3_OUT = 128
FC4_OUT = 256
NUM_LAYERS = 2                        # num_of_layers
NUM_CLASS = 10                        # config['testing']['NUM_CLASS'] (synthetic)
BN_EPS = 1e-5

TK = 12544                            # fc1 K tile: 37632 = 3 * 12544, 12544 % 128 == 0

# packed-parameter layout -----------------------------------------------------
PACK_W = 256                          # widest layer (fc4 out) -> common lane width
# Packed vector rows (biases of BN'd layers dropped -- exactly cancelled by the
# batch-mean subtraction): g1,be1, g2,be2, g3,be3, g4,be4, g6,be6, b5
VEC_ROWS = 11
W2_OFF, W3_OFF, W4_OFF, W6_OFF, W5_OFF = 0, 64, 128, 256, 512
MAT_ROWS = 640                        # 64 + 64 + 128 + 256 + 128


def _bn_relu(h, gamma, beta):
    """BatchNorm1d (training mode, biased batch stats) + ReLU, one-pass variance."""
    mean = jnp.mean(h, axis=0, keepdims=True)
    # Clamp: E[h^2] - mean^2 can go slightly negative from f32 cancellation.
    var = jnp.maximum(jnp.mean(h * h, axis=0, keepdims=True) - mean * mean, 0.0)
    scale = gamma * jax.lax.rsqrt(var + BN_EPS)
    y = h * scale + (beta - mean * scale)
    return jnp.maximum(y, 0.0)


def mlp_kernel(x_ref, w1_ref, vecs_ref, mats_ref, out_ref, acc_ref):
    k = pl.program_id(0)

    @pl.when(k == 0)
    def _():
        acc_ref[...] = jnp.zeros_like(acc_ref)

    # fc1 partial matmul over this K tile (hot path; everything else is epilogue).
    # bf16 x bf16 on the MXU, f32 accumulation.
    x_bf16 = x_ref[...].astype(jnp.bfloat16)
    acc_ref[...] += jnp.dot(x_bf16, w1_ref[...],
                            preferred_element_type=jnp.float32)

    @pl.when(k == pl.num_programs(0) - 1)
    def _():
        vecs = vecs_ref[...]                         # (11, 256), single tiny load

        def vec(row, width):
            return vecs[row:row + 1, :width]         # (1, width)

        # fc1 + BN + ReLU (fc1 bias omitted: cancelled by batch-mean subtraction)
        h = _bn_relu(acc_ref[...], vec(0, FC1_OUT), vec(1, FC1_OUT))

        # fc2 block repeated num_of_layers times (same weights, as in PyTorch)
        w2 = mats_ref[W2_OFF:W2_OFF + FC1_OUT, :FC1_OUT]
        g2, be2 = vec(2, FC1_OUT), vec(3, FC1_OUT)
        for _ in range(NUM_LAYERS):
            h = _bn_relu(jnp.dot(h, w2, preferred_element_type=jnp.float32),
                         g2, be2)

        # fc3
        w3 = mats_ref[W3_OFF:W3_OFF + FC1_OUT, :FC3_OUT]
        h = _bn_relu(jnp.dot(h, w3, preferred_element_type=jnp.float32),
                     vec(4, FC3_OUT), vec(5, FC3_OUT))

        # fc4
        w4 = mats_ref[W4_OFF:W4_OFF + FC3_OUT, :FC4_OUT]
        h = _bn_relu(jnp.dot(h, w4, preferred_element_type=jnp.float32),
                     vec(6, FC4_OUT), vec(7, FC4_OUT))

        # fc6
        w6 = mats_ref[W6_OFF:W6_OFF + FC4_OUT, :FC3_OUT]
        h = _bn_relu(jnp.dot(h, w6, preferred_element_type=jnp.float32),
                     vec(8, FC3_OUT), vec(9, FC3_OUT))

        # fc5 (no BN / activation).  w5 cols are zero-padded 10 -> 128, so the
        # lane-aligned matmul is exact; slice the first NUM_CLASS cols.
        w5 = mats_ref[W5_OFF:W5_OFF + FC3_OUT, :FC3_OUT]
        logits = jnp.dot(h, w5, preferred_element_type=jnp.float32) + vec(10, FC3_OUT)
        out_ref[...] = logits[:, :NUM_CLASS].astype(out_ref.dtype)


def pack_params(params):
    """Pack the small params into two f32 slabs; cast w1 (dominant stream) to bf16."""
    def pad_cols(a):
        return jnp.pad(a, ((0, 0), (0, PACK_W - a.shape[1])))

    vec_names = ("g1", "be1", "g2", "be2", "g3", "be3", "g4", "be4",
                 "g6", "be6", "b5")
    vecs = jnp.concatenate([pad_cols(params[n]) for n in vec_names], axis=0)
    mats = jnp.concatenate([pad_cols(params["w2"]),
                            pad_cols(params["w3"]),
                            pad_cols(params["w4"]),
                            pad_cols(params["w6"]),
                            pad_cols(params["w5"])], axis=0)
    assert vecs.shape == (VEC_ROWS, PACK_W) and mats.shape == (MAT_ROWS, PACK_W)
    w1_bf16 = params["w1"].astype(jnp.bfloat16)      # halves dominant HBM traffic
    return w1_bf16, vecs, mats


@jax.jit
def model_forward(x_nchw, w1_bf16, vecs, mats):
    B = x_nchw.shape[0]
    x = x_nchw.reshape(B, IN_FEATURES)            # == X.view(-1, 3*112*112)

    grid = (IN_FEATURES // TK,)                   # 3 K steps (keep >= 3; see header)

    in_specs = [
        pl.BlockSpec((B, TK), lambda k: (0, k)),             # x K-tile (f32 in HBM)
        pl.BlockSpec((TK, FC1_OUT), lambda k: (k, 0)),       # w1 K-tile (bf16 in HBM)
        pl.BlockSpec((VEC_ROWS, PACK_W), lambda k: (0, 0)),  # packed vectors
        pl.BlockSpec((MAT_ROWS, PACK_W), lambda k: (0, 0)),  # packed small matrices
    ]
    out_spec = pl.BlockSpec((B, NUM_CLASS), lambda k: (0, 0))

    return pl.pallas_call(
        mlp_kernel,
        out_shape=jax.ShapeDtypeStruct((B, NUM_CLASS), jnp.float32),
        grid_spec=pltpu.PrefetchScalarGridSpec(
            num_scalar_prefetch=0,
            grid=grid,
            in_specs=in_specs,
            out_specs=out_spec,
            scratch_shapes=[pltpu.VMEM((B, FC1_OUT), jnp.float32)],
        ),
        compiler_params=pltpu.CompilerParams(
            dimension_semantics=("arbitrary",),
            # Keep explicit: the double-buffered, lane-padded bf16 w1 tile is
            # ~6.4 MB; v5e's scoped-VMEM default is 16 MiB.  48 MiB also leaves
            # headroom under v7x's 64 MiB physical VMEM.
            vmem_limit_bytes=48 * 1024 * 1024,
        ),
    )(x, w1_bf16, vecs, mats)


def reference_forward(x_nchw, params, *, quantize_fc1=False):
    """Pure-JAX reference matching the PyTorch forward (BN in training mode).

    quantize_fc1=True rounds x / w1 to bf16 first, matching the kernel's
    intentional fc1 quantization (so a tight tolerance can be used).
    """
    def bn_relu_ref(h, gamma, beta):
        mean = jnp.mean(h, axis=0, keepdims=True)
        var = jnp.mean((h - mean) ** 2, axis=0, keepdims=True)
        y = (h - mean) * jax.lax.rsqrt(var + BN_EPS) * gamma + beta
        return jnp.maximum(y, 0.0)

    B = x_nchw.shape[0]
    h = x_nchw.reshape(B, IN_FEATURES)
    w1 = params["w1"]
    if quantize_fc1:
        h = h.astype(jnp.bfloat16).astype(jnp.float32)
        w1 = w1.astype(jnp.bfloat16).astype(jnp.float32)
    h = h @ w1 + params["b1"]
    h = bn_relu_ref(h, params["g1"], params["be1"])
    for _ in range(NUM_LAYERS):
        h = h @ params["w2"] + params["b2"]
        h = bn_relu_ref(h, params["g2"], params["be2"])
    h = h @ params["w3"] + params["b3"]
    h = bn_relu_ref(h, params["g3"], params["be3"])
    h = h @ params["w4"] + params["b4"]
    h = bn_relu_ref(h, params["g4"], params["be4"])
    h = h @ params["w6"] + params["b6"]
    h = bn_relu_ref(h, params["g6"], params["be6"])
    return h @ params["w5"] + params["b5"]


def init_params(key):
    """Deterministic synthetic init. Linear weights stored as (in, out)."""
    params = {}

    def linear(key, fan_in, fan_out, idx):
        kw, kb = jax.random.split(key)
        bound = 1.0 / jnp.sqrt(fan_in)
        params[f"w{idx}"] = jax.random.uniform(
            kw, (fan_in, fan_out), jnp.float32, -bound, bound)
        params[f"b{idx}"] = jax.random.uniform(
            kb, (1, fan_out), jnp.float32, -bound, bound)

    def bn(fan, idx):
        params[f"g{idx}"] = jnp.ones((1, fan), jnp.float32)
        params[f"be{idx}"] = jnp.zeros((1, fan), jnp.float32)

    keys = jax.random.split(key, 6)
    linear(keys[0], IN_FEATURES, FC1_OUT, 1); bn(FC1_OUT, 1)
    linear(keys[1], FC1_OUT, FC1_OUT, 2);     bn(FC1_OUT, 2)
    linear(keys[2], FC1_OUT, FC3_OUT, 3);     bn(FC3_OUT, 3)
    linear(keys[3], FC3_OUT, FC4_OUT, 4);     bn(FC4_OUT, 4)
    linear(keys[4], FC4_OUT, FC3_OUT, 6);     bn(FC3_OUT, 6)
    linear(keys[5], FC3_OUT, NUM_CLASS, 5)
    return params


if __name__ == "__main__":
    key = jax.random.PRNGKey(0)
    kx, kp = jax.random.split(key)

    B = 4
    x = jax.random.normal(kx, (B, 3, 112, 112), jnp.float32)   # NCHW input
    params = init_params(kp)
    w1_bf16, vecs, mats = pack_params(params)                  # packed once, outside jit

    out = jax.block_until_ready(model_forward(x, w1_bf16, vecs, mats))
    assert out.shape == (B, NUM_CLASS)

    # Tight check against a reference that applies the same bf16 fc1 rounding.
    ref_q = reference_forward(x, params, quantize_fc1=True)
    err_q = float(jnp.max(jnp.abs(out - ref_q)))
    assert jnp.allclose(out, ref_q, atol=3e-2, rtol=3e-2), err_q

    # Loose check against the full-f32 PyTorch-equivalent reference
    # (difference is the intentional bf16 quantization of the fc1 stream).
    ref = reference_forward(x, params, quantize_fc1=False)
    err = float(jnp.max(jnp.abs(out - ref)))
    assert jnp.allclose(out, ref, atol=1e-1, rtol=1e-1), err

    print("KERNEL_OK")
</pallas_src>

<mosaic_0001>
module attributes {stable_mosaic.version = 11 : i64} {
  func.func @mlp_kernel(%arg0: i32, %arg1: memref<4x12544xf32, #tpu.memory_space<vmem>>, %arg2: memref<12544x64xbf16, #tpu.memory_space<vmem>>, %arg3: memref<11x256xf32, #tpu.memory_space<vmem>>, %arg4: memref<640x256xf32, #tpu.memory_space<vmem>>, %arg5: memref<4x10xf32, #tpu.memory_space<vmem>>, %arg6: memref<4x64xf32, #tpu.memory_space<vmem>>) attributes {dimension_semantics = [#tpu.dimension_semantics<arbitrary>], iteration_bounds = array<i64: 3>, scalar_prefetch = 0 : i64, scratch_operands = 1 : i64, tpu.core_type = #tpu.core_type<tc>, window_params = [{transform_indices = @transform_0, window_bounds = array<i64: 4, 12544>}, {transform_indices = @transform_1, window_bounds = array<i64: 12544, 64>}, {pipeline_mode = #tpu.pipeline_mode<synchronous>, transform_indices = @transform_2, window_bounds = array<i64: 11, 256>}, {pipeline_mode = #tpu.pipeline_mode<synchronous>, transform_indices = @transform_3, window_bounds = array<i64: 640, 256>}, {pipeline_mode = #tpu.pipeline_mode<synchronous>, transform_indices = @transform_4, window_bounds = array<i64: 4, 10>}]} {
    %c0_i32 = arith.constant 0 : i32
    %0 = arith.cmpi eq, %arg0, %c0_i32 : i32
    %1 = arith.extui %0 : i1 to i32
    %c0_i32_0 = arith.constant 0 : i32
    %2 = arith.cmpi ne, %1, %c0_i32_0 : i32
    scf.if %2 {
      %cst_9 = arith.constant 0.000000e+00 : f32
      %13 = vector.broadcast %cst_9 : f32 to vector<4x64xf32>
      %c0_10 = arith.constant 0 : index
      %c0_11 = arith.constant 0 : index
      %14 = vector.load %arg6[%c0_10, %c0_11] : memref<4x64xf32, #tpu.memory_space<vmem>>, vector<4x64xf32>
      tpu.vector_store %arg6[%c0_10, %c0_11], %13 {strides = array<i32>} : memref<4x64xf32, #tpu.memory_space<vmem>>, vector<4x64xf32>,
    } else {
    }
    %c0 = arith.constant 0 : index
    %c0_1 = arith.constant 0 : index
    %3 = vector.load %arg1[%c0, %c0_1] : memref<4x12544xf32, #tpu.memory_space<vmem>>, vector<4x12544xf32>
    %4 = arith.truncf %3 : vector<4x12544xf32> to vector<4x12544xbf16>
    %c0_2 = arith.constant 0 : index
    %c0_3 = arith.constant 0 : index
    %5 = vector.load %arg6[%c0_2, %c0_3] : memref<4x64xf32, #tpu.memory_space<vmem>>, vector<4x64xf32>
    %c0_4 = arith.constant 0 : index
    %c0_5 = arith.constant 0 : index
    %6 = vector.load %arg2[%c0_4, %c0_5] : memref<12544x64xbf16, #tpu.memory_space<vmem>>, vector<12544x64xbf16>
    %cst = arith.constant dense<0.000000e+00> : vector<4x64xf32>
    %7 = tpu.matmul %4, %6, %cst {dimension_numbers = #tpu.dot_dimension_numbers<[1], [0], [0], [1], [0, 0, 1, 1], [], []>} : vector<4x12544xbf16>, vector<12544x64xbf16>, vector<4x64xf32> -> vector<4x64xf32>
    %8 = arith.addf %5, %7 : vector<4x64xf32>
    %c0_6 = arith.constant 0 : index
    %c0_7 = arith.constant 0 : index
    %9 = vector.load %arg6[%c0_6, %c0_7] : memref<4x64xf32, #tpu.memory_space<vmem>>, vector<4x64xf32>
    tpu.vector_store %arg6[%c0_6, %c0_7], %8 {strides = array<i32>} : memref<4x64xf32, #tpu.memory_space<vmem>>, vector<4x64xf32>,
    %c2_i32 = arith.constant 2 : i32
    %10 = arith.cmpi eq, %arg0, %c2_i32 : i32
    %11 = arith.extui %10 : i1 to i32
    %c0_i32_8 = arith.constant 0 : i32
    %12 = arith.cmpi ne, %11, %c0_i32_8 : i32
    scf.if %12 {
      %c0_9 = arith.constant 0 : index
      %c0_10 = arith.constant 0 : index
      %13 = vector.load %arg3[%c0_9, %c0_10] : memref<11x256xf32, #tpu.memory_space<vmem>>, vector<11x256xf32>
      %c0_11 = arith.constant 0 : index
      %c0_12 = arith.constant 0 : index
      %14 = vector.load %arg6[%c0_11, %c0_12] : memref<4x64xf32, #tpu.memory_space<vmem>>, vector<4x64xf32>
      %15 = vector.extract_strided_slice %13 {offsets = [0, 0], sizes = [1, 64], strides = [1, 1]} : vector<11x256xf32> to vector<1x64xf32>
      %16 = vector.extract_strided_slice %13 {offsets = [1, 0], sizes = [1, 64], strides = [1, 1]} : vector<11x256xf32> to vector<1x64xf32>
      %cst_13 = arith.constant dense<0.000000e+00> : vector<64xf32>
      %17 = vector.multi_reduction <add>, %14, %cst_13 [0] : vector<4x64xf32> to vector<64xf32>
      %18 = vector.shape_cast %17 : vector<64xf32> to vector<1x64xf32>
      %cst_14 = arith.constant 4.000000e+00 : f32
      %19 = vector.broadcast %cst_14 : f32 to vector<1x64xf32>
      %20 = arith.divf %18, %19 : vector<1x64xf32>
      %21 = arith.mulf %14, %14 : vector<4x64xf32>
      %cst_15 = arith.constant dense<0.000000e+00> : vector<64xf32>
      %22 = vector.multi_reduction <add>, %21, %cst_15 [0] : vector<4x64xf32> to vector<64xf32>
      %23 = vector.shape_cast %22 : vector<64xf32> to vector<1x64xf32>
      %cst_16 = arith.constant 4.000000e+00 : f32
      %24 = vector.broadcast %cst_16 : f32 to vector<1x64xf32>
      %25 = arith.divf %23, %24 : vector<1x64xf32>
      %26 = arith.mulf %20, %20 : vector<1x64xf32>
      %27 = arith.subf %25, %26 : vector<1x64xf32>
      %cst_17 = arith.constant 0.000000e+00 : f32
      %28 = vector.broadcast %cst_17 : f32 to vector<1x64xf32>
      %29 = arith.maximumf %27, %28 : vector<1x64xf32>
      %cst_18 = arith.constant 9.99999974E-6 : f32
      %30 = vector.broadcast %cst_18 : f32 to vector<1x64xf32>
      %31 = arith.addf %29, %30 : vector<1x64xf32>
      %32 = math.rsqrt %31 : vector<1x64xf32>
      %33 = arith.mulf %15, %32 : vector<1x64xf32>
      %34 = vector.broadcast %33 : vector<1x64xf32> to vector<4x64xf32>
      %35 = arith.mulf %14, %34 : vector<4x64xf32>
      %36 = arith.mulf %20, %33 : vector<1x64xf32>
      %37 = arith.subf %16, %36 : vector<1x64xf32>
      %38 = vector.broadcast %37 : vector<1x64xf32> to vector<4x64xf32>
      %39 = arith.addf %35, %38 : vector<4x64xf32>
      %cst_19 = arith.constant 0.000000e+00 : f32
      %40 = vector.broadcast %cst_19 : f32 to vector<4x64xf32>
      %41 = arith.maximumf %39, %40 : vector<4x64xf32>
      %c0_20 = arith.constant 0 : index
      %c0_21 = arith.constant 0 : index
      %42 = vector.load %arg4[%c0_20, %c0_21] : memref<640x256xf32, #tpu.memory_space<vmem>>, vector<64x64xf32>
      %43 = vector.extract_strided_slice %13 {offsets = [2, 0], sizes = [1, 64], strides = [1, 1]} : vector<11x256xf32> to vector<1x64xf32>
      %44 = vector.extract_strided_slice %13 {offsets = [3, 0], sizes = [1, 64], strides = [1, 1]} : vector<11x256xf32> to vector<1x64xf32>
      %cst_22 = arith.constant dense<0.000000e+00> : vector<4x64xf32>
      %45 = tpu.matmul %41, %42, %cst_22 {dimension_numbers = #tpu.dot_dimension_numbers<[1], [0], [0], [1], [0, 0, 1, 1], [], []>} : vector<4x64xf32>, vector<64x64xf32>, vector<4x64xf32> -> vector<4x64xf32>
      %cst_23 = arith.constant dense<0.000000e+00> : vector<64xf32>
      %46 = vector.multi_reduction <add>, %45, %cst_23 [0] : vector<4x64xf32> to vector<64xf32>
      %47 = vector.shape_cast %46 : vector<64xf32> to vector<1x64xf32>
      %cst_24 = arith.constant 4.000000e+00 : f32
      %48 = vector.broadcast %cst_24 : f32 to vector<1x64xf32>
      %49 = arith.divf %47, %48 : vector<1x64xf32>
      %50 = arith.mulf %45, %45 : vector<4x64xf32>
      %cst_25 = arith.constant dense<0.000000e+00> : vector<64xf32>
      %51 = vector.multi_reduction <add>, %50, %cst_25 [0] : vector<4x64xf32> to vector<64xf32>
      %52 = vector.shape_cast %51 : vector<64xf32> to vector<1x64xf32>
      %cst_26 = arith.constant 4.000000e+00 : f32
      %53 = vector.broadcast %cst_26 : f32 to vector<1x64xf32>
      %54 = arith.divf %52, %53 : vector<1x64xf32>
      %55 = arith.mulf %49, %49 : vector<1x64xf32>
      %56 = arith.subf %54, %55 : vector<1x64xf32>
      %cst_27 = arith.constant 0.000000e+00 : f32
      %57 = vector.broadcast %cst_27 : f32 to vector<1x64xf32>
      %58 = arith.maximumf %56, %57 : vector<1x64xf32>
      %cst_28 = arith.constant 9.99999974E-6 : f32
      %59 = vector.broadcast %cst_28 : f32 to vector<1x64xf32>
      %60 = arith.addf %58, %59 : vector<1x64xf32>
      %61 = math.rsqrt %60 : vector<1x64xf32>
      %62 = arith.mulf %43, %61 : vector<1x64xf32>
      %63 = vector.broadcast %62 : vector<1x64xf32> to vector<4x64xf32>
      %64 = arith.mulf %45, %63 : vector<4x64xf32>
      %65 = arith.mulf %49, %62 : vector<1x64xf32>
      %66 = arith.subf %44, %65 : vector<1x64xf32>
      %67 = vector.broadcast %66 : vector<1x64xf32> to vector<4x64xf32>
      %68 = arith.addf %64, %67 : vector<4x64xf32>
      %cst_29 = arith.constant 0.000000e+00 : f32
      %69 = vector.broadcast %cst_29 : f32 to vector<4x64xf32>
      %70 = arith.maximumf %68, %69 : vector<4x64xf32>
      %cst_30 = arith.constant dense<0.000000e+00> : vector<4x64xf32>
      %71 = tpu.matmul %70, %42, %cst_30 {dimension_numbers = #tpu.dot_dimension_numbers<[1], [0], [0], [1], [0, 0, 1, 1], [], []>} : vector<4x64xf32>, vector<64x64xf32>, vector<4x64xf32> -> vector<4x64xf32>
      %cst_31 = arith.constant dense<0.000000e+00> : vector<64xf32>
      %72 = vector.multi_reduction <add>, %71, %cst_31 [0] : vector<4x64xf32> to vector<64xf32>
      %73 = vector.shape_cast %72 : vector<64xf32> to vector<1x64xf32>
      %cst_32 = arith.constant 4.000000e+00 : f32
      %74 = vector.broadcast %cst_32 : f32 to vector<1x64xf32>
      %75 = arith.divf %73, %74 : vector<1x64xf32>
      %76 = arith.mulf %71, %71 : vector<4x64xf32>
      %cst_33 = arith.constant dense<0.000000e+00> : vector<64xf32>
      %77 = vector.multi_reduction <add>, %76, %cst_33 [0] : vector<4x64xf32> to vector<64xf32>
      %78 = vector.shape_cast %77 : vector<64xf32> to vector<1x64xf32>
      %cst_34 = arith.constant 4.000000e+00 : f32
      %79 = vector.broadcast %cst_34 : f32 to vector<1x64xf32>
      %80 = arith.divf %78, %79 : vector<1x64xf32>
      %81 = arith.mulf %75, %75 : vector<1x64xf32>
      %82 = arith.subf %80, %81 : vector<1x64xf32>
      %cst_35 = arith.constant 0.000000e+00 : f32
      %83 = vector.broadcast %cst_35 : f32 to vector<1x64xf32>
      %84 = arith.maximumf %82, %83 : vector<1x64xf32>
      %cst_36 = arith.constant 9.99999974E-6 : f32
      %85 = vector.broadcast %cst_36 : f32 to vector<1x64xf32>
      %86 = arith.addf %84, %85 : vector<1x64xf32>
      %87 = math.rsqrt %86 : vector<1x64xf32>
      %88 = arith.mulf %43, %87 : vector<1x64xf32>
      %89 = vector.broadcast %88 : vector<1x64xf32> to vector<4x64xf32>
      %90 = arith.mulf %71, %89 : vector<4x64xf32>
      %91 = arith.mulf %75, %88 : vector<1x64xf32>
      %92 = arith.subf %44, %91 : vector<1x64xf32>
      %93 = vector.broadcast %92 : vector<1x64xf32> to vector<4x64xf32>
      %94 = arith.addf %90, %93 : vector<4x64xf32>
      %cst_37 = arith.constant 0.000000e+00 : f32
      %95 = vector.broadcast %cst_37 : f32 to vector<4x64xf32>
      %96 = arith.maximumf %94, %95 : vector<4x64xf32>
      %c64 = arith.constant 64 : index
      %c0_38 = arith.constant 0 : index
      %97 = vector.load %arg4[%c64, %c0_38] : memref<640x256xf32, #tpu.memory_space<vmem>>, vector<64x128xf32>
      %cst_39 = arith.constant dense<0.000000e+00> : vector<4x128xf32>
      %98 = tpu.matmul %96, %97, %cst_39 {dimension_numbers = #tpu.dot_dimension_numbers<[1], [0], [0], [1], [0, 0, 1, 1], [], []>} : vector<4x64xf32>, vector<64x128xf32>, vector<4x128xf32> -> vector<4x128xf32>
      %99 = vector.extract_strided_slice %13 {offsets = [4, 0], sizes = [1, 128], strides = [1, 1]} : vector<11x256xf32> to vector<1x128xf32>
      %100 = vector.extract_strided_slice %13 {offsets = [5, 0], sizes = [1, 128], strides = [1, 1]} : vector<11x256xf32> to vector<1x128xf32>
      %cst_40 = arith.constant dense<0.000000e+00> : vector<128xf32>
      %101 = vector.multi_reduction <add>, %98, %cst_40 [0] : vector<4x128xf32> to vector<128xf32>
      %102 = vector.shape_cast %101 : vector<128xf32> to vector<1x128xf32>
      %cst_41 = arith.constant 4.000000e+00 : f32
      %103 = vector.broadcast %cst_41 : f32 to vector<1x128xf32>
      %104 = arith.divf %102, %103 : vector<1x128xf32>
      %105 = arith.mulf %98, %98 : vector<4x128xf32>
      %cst_42 = arith.constant dense<0.000000e+00> : vector<128xf32>
      %106 = vector.multi_reduction <add>, %105, %cst_42 [0] : vector<4x128xf32> to vector<128xf32>
      %107 = vector.shape_cast %106 : vector<128xf32> to vector<1x128xf32>
      %cst_43 = arith.constant 4.000000e+00 : f32
      %108 = vector.broadcast %cst_43 : f32 to vector<1x128xf32>
      %109 = arith.divf %107, %108 : vector<1x128xf32>
      %110 = arith.mulf %104, %104 : vector<1x128xf32>
      %111 = arith.subf %109, %110 : vector<1x128xf32>
      %cst_44 = arith.constant 0.000000e+00 : f32
      %112 = vector.broadcast %cst_44 : f32 to vector<1x128xf32>
      %113 = arith.maximumf %111, %112 : vector<1x128xf32>
      %cst_45 = arith.constant 9.99999974E-6 : f32
      %114 = vector.broadcast %cst_45 : f32 to vector<1x128xf32>
      %115 = arith.addf %113, %114 : vector<1x128xf32>
      %116 = math.rsqrt %115 : vector<1x128xf32>
      %117 = arith.mulf %99, %116 : vector<1x128xf32>
      %118 = vector.broadcast %117 : vector<1x128xf32> to vector<4x128xf32>
      %119 = arith.mulf %98, %118 : vector<4x128xf32>
      %120 = arith.mulf %104, %117 : vector<1x128xf32>
      %121 = arith.subf %100, %120 : vector<1x128xf32>
      %122 = vector.broadcast %121 : vector<1x128xf32> to vector<4x128xf32>
      %123 = arith.addf %119, %122 : vector<4x128xf32>
      %cst_46 = arith.constant 0.000000e+00 : f32
      %124 = vector.broadcast %cst_46 : f32 to vector<4x128xf32>
      %125 = arith.maximumf %123, %124 : vector<4x128xf32>
      %c128 = arith.constant 128 : index
      %c0_47 = arith.constant 0 : index
      %126 = vector.load %arg4[%c128, %c0_47] : memref<640x256xf32, #tpu.memory_space<vmem>>, vector<128x256xf32>
      %cst_48 = arith.constant dense<0.000000e+00> : vector<4x256xf32>
      %127 = tpu.matmul %125, %126, %cst_48 {dimension_numbers = #tpu.dot_dimension_numbers<[1], [0], [0], [1], [0, 0, 1, 1], [], []>} : vector<4x128xf32>, vector<128x256xf32>, vector<4x256xf32> -> vector<4x256xf32>
      %128 = vector.extract_strided_slice %13 {offsets = [6, 0], sizes = [1, 256], strides = [1, 1]} : vector<11x256xf32> to vector<1x256xf32>
      %129 = vector.extract_strided_slice %13 {offsets = [7, 0], sizes = [1, 256], strides = [1, 1]} : vector<11x256xf32> to vector<1x256xf32>
      %cst_49 = arith.constant dense<0.000000e+00> : vector<256xf32>
      %130 = vector.multi_reduction <add>, %127, %cst_49 [0] : vector<4x256xf32> to vector<256xf32>
      %131 = vector.shape_cast %130 : vector<256xf32> to vector<1x256xf32>
      %cst_50 = arith.constant 4.000000e+00 : f32
      %132 = vector.broadcast %cst_50 : f32 to vector<1x256xf32>
      %133 = arith.divf %131, %132 : vector<1x256xf32>
      %134 = arith.mulf %127, %127 : vector<4x256xf32>
      %cst_51 = arith.constant dense<0.000000e+00> : vector<256xf32>
      %135 = vector.multi_reduction <add>, %134, %cst_51 [0] : vector<4x256xf32> to vector<256xf32>
      %136 = vector.shape_cast %135 : vector<256xf32> to vector<1x256xf32>
      %cst_52 = arith.constant 4.000000e+00 : f32
      %137 = vector.broadcast %cst_52 : f32 to vector<1x256xf32>
      %138 = arith.divf %136, %137 : vector<1x256xf32>
      %139 = arith.mulf %133, %133 : vector<1x256xf32>
      %140 = arith.subf %138, %139 : vector<1x256xf32>
      %cst_53 = arith.constant 0.000000e+00 : f32
      %141 = vector.broadcast %cst_53 : f32 to vector<1x256xf32>
      %142 = arith.maximumf %140, %141 : vector<1x256xf32>
      %cst_54 = arith.constant 9.99999974E-6 : f32
      %143 = vector.broadcast %cst_54 : f32 to vector<1x256xf32>
      %144 = arith.addf %142, %143 : vector<1x256xf32>
      %145 = math.rsqrt %144 : vector<1x256xf32>
      %146 = arith.mulf %128, %145 : vector<1x256xf32>
      %147 = vector.broadcast %146 : vector<1x256xf32> to vector<4x256xf32>
      %148 = arith.mulf %127, %147 : vector<4x256xf32>
      %149 = arith.mulf %133, %146 : vector<1x256xf32>
      %150 = arith.subf %129, %149 : vector<1x256xf32>
      %151 = vector.broadcast %150 : vector<1x256xf32> to vector<4x256xf32>
      %152 = arith.addf %148, %151 : vector<4x256xf32>
      %cst_55 = arith.constant 0.000000e+00 : f32
      %153 = vector.broadcast %cst_55 : f32 to vector<4x256xf32>
      %154 = arith.maximumf %152, %153 : vector<4x256xf32>
      %c256 = arith.constant 256 : index
      %c0_56 = arith.constant 0 : index
      %155 = vector.load %arg4[%c256, %c0_56] : memref<640x256xf32, #tpu.memory_space<vmem>>, vector<256x128xf32>
      %cst_57 = arith.constant dense<0.000000e+00> : vector<4x128xf32>
      %156 = tpu.matmul %154, %155, %cst_57 {dimension_numbers = #tpu.dot_dimension_numbers<[1], [0], [0], [1], [0, 0, 1, 1], [], []>} : vector<4x256xf32>, vector<256x128xf32>, vector<4x128xf32> -> vector<4x128xf32>
      %157 = vector.extract_strided_slice %13 {offsets = [8, 0], sizes = [1, 128], strides = [1, 1]} : vector<11x256xf32> to vector<1x128xf32>
      %158 = vector.extract_strided_slice %13 {offsets = [9, 0], sizes = [1, 128], strides = [1, 1]} : vector<11x256xf32> to vector<1x128xf32>
      %cst_58 = arith.constant dense<0.000000e+00> : vector<128xf32>
      %159 = vector.multi_reduction <add>, %156, %cst_58 [0] : vector<4x128xf32> to vector<128xf32>
      %160 = vector.shape_cast %159 : vector<128xf32> to vector<1x128xf32>
      %cst_59 = arith.constant 4.000000e+00 : f32
      %161 = vector.broadcast %cst_59 : f32 to vector<1x128xf32>
      %162 = arith.divf %160, %161 : vector<1x128xf32>
      %163 = arith.mulf %156, %156 : vector<4x128xf32>
      %cst_60 = arith.constant dense<0.000000e+00> : vector<128xf32>
      %164 = vector.multi_reduction <add>, %163, %cst_60 [0] : vector<4x128xf32> to vector<128xf32>
      %165 = vector.shape_cast %164 : vector<128xf32> to vector<1x128xf32>
      %cst_61 = arith.constant 4.000000e+00 : f32
      %166 = vector.broadcast %cst_61 : f32 to vector<1x128xf32>
      %167 = arith.divf %165, %166 : vector<1x128xf32>
      %168 = arith.mulf %162, %162 : vector<1x128xf32>
      %169 = arith.subf %167, %168 : vector<1x128xf32>
      %cst_62 = arith.constant 0.000000e+00 : f32
      %170 = vector.broadcast %cst_62 : f32 to vector<1x128xf32>
      %171 = arith.maximumf %169, %170 : vector<1x128xf32>
      %cst_63 = arith.constant 9.99999974E-6 : f32
      %172 = vector.broadcast %cst_63 : f32 to vector<1x128xf32>
      %173 = arith.addf %171, %172 : vector<1x128xf32>
      %174 = math.rsqrt %173 : vector<1x128xf32>
      %175 = arith.mulf %157, %174 : vector<1x128xf32>
      %176 = vector.broadcast %175 : vector<1x128xf32> to vector<4x128xf32>
      %177 = arith.mulf %156, %176 : vector<4x128xf32>
      %178 = arith.mulf %162, %175 : vector<1x128xf32>
      %179 = arith.subf %158, %178 : vector<1x128xf32>
      %180 = vector.broadcast %179 : vector<1x128xf32> to vector<4x128xf32>
      %181 = arith.addf %177, %180 : vector<4x128xf32>
      %cst_64 = arith.constant 0.000000e+00 : f32
      %182 = vector.broadcast %cst_64 : f32 to vector<4x128xf32>
      %183 = arith.maximumf %181, %182 : vector<4x128xf32>
      %c512 = arith.constant 512 : index
      %c0_65 = arith.constant 0 : index
      %184 = vector.load %arg4[%c512, %c0_65] : memref<640x256xf32, #tpu.memory_space<vmem>>, vector<128x128xf32>
      %cst_66 = arith.constant dense<0.000000e+00> : vector<4x128xf32>
      %185 = tpu.matmul %183, %184, %cst_66 {dimension_numbers = #tpu.dot_dimension_numbers<[1], [0], [0], [1], [0, 0, 1, 1], [], []>} : vector<4x128xf32>, vector<128x128xf32>, vector<4x128xf32> -> vector<4x128xf32>
      %186 = vector.extract_strided_slice %13 {offsets = [10, 0], sizes = [1, 128], strides = [1, 1]} : vector<11x256xf32> to vector<1x128xf32>
      %187 = vector.broadcast %186 : vector<1x128xf32> to vector<4x128xf32>
      %188 = arith.addf %185, %187 : vector<4x128xf32>
      %189 = vector.extract_strided_slice %188 {offsets = [0, 0], sizes = [4, 10], strides = [1, 1]} : vector<4x128xf32> to vector<4x10xf32>
      %c0_67 = arith.constant 0 : index
      %c0_68 = arith.constant 0 : index
      %190 = vector.load %arg5[%c0_67, %c0_68] : memref<4x10xf32, #tpu.memory_space<vmem>>, vector<4x10xf32>
      tpu.vector_store %arg5[%c0_67, %c0_68], %189 {strides = array<i32>} : memref<4x10xf32, #tpu.memory_space<vmem>>, vector<4x10xf32>,
    } else {
    }
    return
  }
  func.func @transform_0(%arg0: i32) -> (i32, i32) {
    %c0_i32 = arith.constant 0 : i32
    %c0_i32_0 = arith.constant 0 : i32
    return %c0_i32, %arg0 : i32, i32
  }
  func.func @transform_1(%arg0: i32) -> (i32, i32) {
    %c0_i32 = arith.constant 0 : i32
    %c0_i32_0 = arith.constant 0 : i32
    return %arg0, %c0_i32 : i32, i32
  }
  func.func @transform_2(%arg0: i32) -> (i32, i32) {
    %c0_i32 = arith.constant 0 : i32
    %c0_i32_0 = arith.constant 0 : i32
    %c0_i32_1 = arith.constant 0 : i32
    return %c0_i32, %c0_i32_0 : i32, i32
  }
  func.func @transform_3(%arg0: i32) -> (i32, i32) {
    %c0_i32 = arith.constant 0 : i32
    %c0_i32_0 = arith.constant 0 : i32
    %c0_i32_1 = arith.constant 0 : i32
    return %c0_i32, %c0_i32_0 : i32, i32
  }
  func.func @transform_4(%arg0: i32) -> (i32, i32) {
    %c0_i32 = arith.constant 0 : i32
    %c0_i32_0 = arith.constant 0 : i32
    %c0_i32_1 = arith.constant 0 : i32
    return %c0_i32, %c0_i32_0 : i32, i32
  }
}

</mosaic_0001>

<llo_original>
// kernel: model_forward.1
$region0: #{model_forward.1}
  #allocation0 [shape = 'u32[]', space=smem, size = 0x4, offset = 0x4, fixed_abs, tag = 'smem constant byte address 0x4 - core index']
  #allocation1 [shape = 'u32[144,128]{1,0:T(1,128)}', space=vmem, size = 0x12000, scoped, tag = 'internal scratch']
  #allocation2 [shape = 'f32[4,64]{1,0:T(4,128)}', space=vmem, size = 0x800, scoped, tag = 'scratch operand']
  %s0 = inlined_call_operand.vmem [shape: f32[4,37632], index: 0, kind: input, shape index: {}]
  %s1 = inlined_call_operand.vmem [shape: bf16[37632,64], index: 1, kind: input, shape index: {}]
  %s2 = inlined_call_operand.vmem [shape: f32[11,256], index: 2, kind: input, shape index: {}]
  %s3 = inlined_call_operand.vmem [shape: f32[640,256], index: 3, kind: input, shape index: {}]
  %s4 = inlined_call_operand.hbm [shape: f32[4,10], index: 4, kind: output, shape index: {}]
  %s5 = sld [smem:[#allocation0]]
  $region57: #{model_forward.1} parent=0
    _
  %s7 = ssub.s32 1, %s5
  %s8 = scalar_select 0, %s7, %s5
  $region1: #{model_forward.1} parent=0
    #allocation3 [shape = 'u8[2048]{0}', space=vmem, size = 0x800, scoped, tag = 'output window, operand 0, single buffered']
    #allocation4 [shape = 's32[2]{0}', space=sflag, size = 0x8, scoped, tag = 'scoped memory for model_forward.1']
    %9 = vsyncpa [#allocation4], 0
    loop: start=0, step=1, limit=5
    $region2: #{model_forward.1} parent=1 // loop_pre_header
      _
    $region3: #{model_forward.1} parent=1 // loop_header
      %s11 = sphi 0, %s15
      %p12 = scmp.ge.s32.totalorder %s11, 5
      %s21 = sphi 0, %s23
      %s24 = sphi 0, %s21
      %s25 = sphi 0, %s24
      %s41 = sphi 0, %s25
      %s47 = sphi 0, %s49
      %s50 = sphi 0, %s47
      %s51 = sphi 0, %s50
      %s67 = sphi 0, %s51
      %s71 = sphi 0, %s71
      %s73 = sphi 0, %s71
      %s74 = sphi 0, %s73
      %s88 = sphi 0, %s74
      %s92 = sphi 0, %s92
      %s94 = sphi 0, %s92
      %s95 = sphi 0, %s94
      %s109 = sphi 0, %s95
      %s113 = sphi 0, %s113
      %s115 = sphi 0, %s113
      %s116 = sphi 0, %s115
      %s130 = sphi 0, %s116
    $region4: #{model_forward.1} parent=1 // loop_header_branch
      %14 = sbr.rel (%p12) target = $region8
    $region5: #{model_forward.1} parent=1 // loop_body
      %s16 = ssub.s32 %s11, 1
      %s17 = ssub.s32 %s11, 2
      %s18 = sadd.s32 %s11, 1
      %s19 = ssub.s32 %s11, %s18
      %p20 = scmp.eq.s32.totalorder %s19, 0
      %s22 = sadd.s32 %s21, 1
      %s23 = scalar_select %p20, %s21, %s22
      %p26 = pneg %p20
      %p27 = scmp.eq.s32.totalorder %s11, 2
      %p28 = por %p26, %p27
      %p29 = scmp.ne.s32.totalorder %s21, %s24
      %p30 = scmp.eq.s32.totalorder %s11, 0
      %p31 = por %p29, %p30
      %p32 = scmp.ne.s32.totalorder %s21, %s24
      %p33 = scmp.eq.s32.totalorder %s16, 2
      %p34 = por %p32, %p33
      %p35 = scmp.ne.s32.totalorder %s24, %s25
      %p36 = scmp.eq.s32.totalorder %s16, 0
      %p37 = por %p35, %p36
      %p38 = scmp.ne.s32.totalorder %s24, %s25
      %p39 = scmp.eq.s32.totalorder %s17, 2
      %p40 = por %p38, %p39
      %p42 = scmp.ne.s32.totalorder %s25, %s41
      %p43 = scmp.eq.s32.totalorder %s17, 0
      %p44 = por %p42, %p43
      %s45 = ssub.s32 %s11, %s18
      %p46 = scmp.eq.s32.totalorder %s45, 0
      %s48 = sadd.s32 %s47, 1
      %s49 = scalar_select %p46, %s47, %s48
      %p52 = pneg %p46
      %p53 = scmp.eq.s32.totalorder %s11, 2
      %p54 = por %p52, %p53
      %p55 = scmp.ne.s32.totalorder %s47, %s50
      %p56 = scmp.eq.s32.totalorder %s11, 0
      %p57 = por %p55, %p56
      %p58 = scmp.ne.s32.totalorder %s47, %s50
      %p59 = scmp.eq.s32.totalorder %s16, 2
      %p60 = por %p58, %p59
      %p61 = scmp.ne.s32.totalorder %s50, %s51
      %p62 = scmp.eq.s32.totalorder %s16, 0
      %p63 = por %p61, %p62
      %p64 = scmp.ne.s32.totalorder %s50, %s51
      %p65 = scmp.eq.s32.totalorder %s17, 2
      %p66 = por %p64, %p65
      %p68 = scmp.ne.s32.totalorder %s51, %s67
      %p69 = scmp.eq.s32.totalorder %s17, 0
      %p70 = por %p68, %p69
      %s72 = sadd.s32 %s71, 1
      %p75 = scmp.eq.s32.totalorder %s11, 2
      %p76 = scmp.ne.s32.totalorder %s71, %s73
      %p77 = scmp.eq.s32.totalorder %s11, 0
      %p78 = por %p76, %p77
      %p79 = scmp.ne.s32.totalorder %s71, %s73
      %p80 = scmp.eq.s32.totalorder %s16, 2
      %p81 = por %p79, %p80
      %p82 = scmp.ne.s32.totalorder %s73, %s74
      %p83 = scmp.eq.s32.totalorder %s16, 0
      %p84 = por %p82, %p83
      %p85 = scmp.ne.s32.totalorder %s73, %s74
      %p86 = scmp.eq.s32.totalorder %s17, 2
      %p87 = por %p85, %p86
      %p89 = scmp.ne.s32.totalorder %s74, %s88
      %p90 = scmp.eq.s32.totalorder %s17, 0
      %p91 = por %p89, %p90
      %s93 = sadd.s32 %s92, 1
      %p96 = scmp.eq.s32.totalorder %s11, 2
      %p97 = scmp.ne.s32.totalorder %s92, %s94
      %p98 = scmp.eq.s32.totalorder %s11, 0
      %p99 = por %p97, %p98
      %p100 = scmp.ne.s32.totalorder %s92, %s94
      %p101 = scmp.eq.s32.totalorder %s16, 2
      %p102 = por %p100, %p101
      %p103 = scmp.ne.s32.totalorder %s94, %s95
      %p104 = scmp.eq.s32.totalorder %s16, 0
      %p105 = por %p103, %p104
      %p106 = scmp.ne.s32.totalorder %s94, %s95
      %p107 = scmp.eq.s32.totalorder %s17, 2
      %p108 = por %p106, %p107
      %p110 = scmp.ne.s32.totalorder %s95, %s109
      %p111 = scmp.eq.s32.totalorder %s17, 0
      %p112 = por %p110, %p111
      %s114 = sadd.s32 %s113, 1
      %p117 = scmp.eq.s32.totalorder %s11, 2
      %p118 = scmp.ne.s32.totalorder %s113, %s115
      %p119 = scmp.eq.s32.totalorder %s11, 0
      %p120 = por %p118, %p119
      %p121 = scmp.ne.s32.totalorder %s113, %s115
      %p122 = scmp.eq.s32.totalorder %s16, 2
      %p123 = por %p121, %p122
      %p124 = scmp.ne.s32.totalorder %s115, %s116
      %p125 = scmp.eq.s32.totalorder %s16, 0
      %p126 = por %p124, %p125
      %p127 = scmp.ne.s32.totalorder %s115, %s116
      %p128 = scmp.eq.s32.totalorder %s17, 2
      %p129 = por %p127, %p128
      %p131 = scmp.ne.s32.totalorder %s116, %s130
      %p132 = scmp.eq.s32.totalorder %s17, 0
      %p133 = por %p131, %p132
      %p134 = scmp.le.s32.totalorder 1, %s11
      %p135 = scmp.lt.s32.totalorder %s11, 4
      %p136 = pnand %p134, %p135
      %p137 = pneg %p136
      // Predicated region
      $region9: #{model_forward.1} parent=5 // pred_check
        _
      $region10: #{model_forward.1} parent=5 // pred_check_branch
        %139 = sbr.rel (%p136) target = $region12
      $region11: #{model_forward.1} parent=5 // pred_region
        %s140 = ssub.s32 %s11, 1
        // Predicated region
        $region13: #{model_forward.1} parent=11 // pred_check
          %p141 = pneg %p84
        $region14: #{model_forward.1} parent=11 // pred_check_branch
          %143 = sbr.rel (%p141) target = $region16
        $region15: #{model_forward.1} parent=11 // pred_region
          _
        $region16: #{model_forward.1} parent=11 // pred_fallthru
          _
        // Predicated region
        $region17: #{model_forward.1} parent=11 // pred_check
          %p144 = pneg %p105
        $region18: #{model_forward.1} parent=11 // pred_check_branch
          %146 = sbr.rel (%p144) target = $region20
        $region19: #{model_forward.1} parent=11 // pred_region
          _
        $region20: #{model_forward.1} parent=11 // pred_fallthru
          _
      $region12: #{model_forward.1} parent=5 // pred_fallthru
        _
      %p147 = scmp.lt.s32.totalorder %s11, 3
      // Predicated region
      $region21: #{model_forward.1} parent=5 // pred_check
        %p148 = pneg %p147
      $region22: #{model_forward.1} parent=5 // pred_check_branch
        %150 = sbr.rel (%p148) target = $region24
      $region23: #{model_forward.1} parent=5 // pred_region
        // Predicated region
        $region25: #{model_forward.1} parent=23 // pred_check
          %p151 = pneg %p31
        $region26: #{model_forward.1} parent=23 // pred_check_branch
          %153 = sbr.rel (%p151) target = $region28
        $region27: #{model_forward.1} parent=23 // pred_region
          %s154 = smul.u32 98, %s11
          %p155 = scmp.lt.s32.totalorder %s154, 293
          %s156 = scalar_select %p155, %s154, 293
          %s157 = smul.addr %s156, 4
          %s158 = scalar_lea.vmem %s0, %s157
          %s159 = smul.u32 98, %s11
        $region28: #{model_forward.1} parent=23 // pred_fallthru
          _
        // Predicated region
        $region29: #{model_forward.1} parent=23 // pred_check
          %p160 = pneg %p57
        $region30: #{model_forward.1} parent=23 // pred_check_branch
          %162 = sbr.rel (%p160) target = $region32
        $region31: #{model_forward.1} parent=23 // pred_region
          %s163 = smul.u32 1568, %s11
          %p164 = scmp.lt.s32.totalorder %s163, 4703
          %s165 = scalar_select %p164, %s163, 4703
          %s166 = smul.addr %s165, 4
          %s167 = scalar_lea.vmem %s1, %s166
          %s168 = smul.u32 1568, %s11
        $region32: #{model_forward.1} parent=23 // pred_fallthru
          _
      $region24: #{model_forward.1} parent=5 // pred_fallthru
        _
      %p169 = scmp.le.s32.totalorder 1, %s11
      %p170 = scmp.lt.s32.totalorder %s11, 4
      %p171 = pnand %p169, %p170
      %p172 = pneg %p171
      // Predicated region
      $region33: #{model_forward.1} parent=5 // pred_check
        _
      $region34: #{model_forward.1} parent=5 // pred_check_branch
        %174 = sbr.rel (%p171) target = $region36
      $region35: #{model_forward.1} parent=5 // pred_region
        %s175 = ssub.s32 %s11, 1
        %s176 = smul.u32 98, %s16
        %p177 = scmp.lt.s32.totalorder %s176, 293
        %s178 = scalar_select %p177, %s176, 293
        %s179 = smul.addr %s178, 4
        %s180 = scalar_lea.vmem %s0, %s179
        %p181 = pneg %p37
        %p182 = pneg %p34
        %s183 = smul.u32 1568, %s16
        %p184 = scmp.lt.s32.totalorder %s183, 4703
        %s185 = scalar_select %p184, %s183, 4703
        %s186 = smul.addr %s185, 4
        %s187 = scalar_lea.vmem %s1, %s186
        %p188 = pneg %p63
        %p189 = pneg %p60
        %p190 = pneg %p84
        %p191 = pneg %p81
        %p192 = pneg %p105
        %p193 = pneg %p102
        %p194 = pneg %p126
        %p195 = pneg %p123
        %s196 = smul.u32 98, %s16
        %p197 = scmp.lt.s32.totalorder %s196, 293
        %s198 = scalar_select %p197, %s196, 293
        %s199 = smul.addr %s198, 4
        %s200 = scalar_lea.vmem %s0, %s199
        %s201 = smul.u32 98, %s16
        %s202 = smul.u32 1568, %s16
        %p203 = scmp.lt.s32.totalorder %s202, 4703
        %s204 = scalar_select %p203, %s202, 4703
        %s205 = smul.addr %s204, 4
        %s206 = scalar_lea.vmem %s1, %s205
        %s207 = smul.u32 1568, %s16
        %p209 = scmp.eq.s32.totalorder %s16, 0
        // Predicated region
        $region37: #{model_forward.1} parent=35 // pred_check
          %p210 = pneg %p209
        $region38: #{model_forward.1} parent=35 // pred_check_branch
          %212 = sbr.rel (%p210) target = $region40
        $region39: #{model_forward.1} parent=35 // pred_region
          %vm213 = vcmask 519168
          %214 = vst.msk [vmem:[#allocation2] sm:$0xf] %vm213, 0.0
        $region40: #{model_forward.1} parent=35 // pred_fallthru
          _
        %v215 = vld [vmem:[%s200] sm:$0xff]
        %v216 = vld [vmem:[%s200 + $0x8] sm:$0xff]
        %v217 = vld [vmem:[%s200 + $0x10] sm:$0xff]
        %v218 = vld [vmem:[%s200 + $0x18] sm:$0xff]
        %v219 = vld [vmem:[%s200 + $0x20] sm:$0xff]
        %v220 = vld [vmem:[%s200 + $0x28] sm:$0xff]
        %v221 = vld [vmem:[%s200 + $0x30] sm:$0xff]
        %v222 = vld [vmem:[%s200 + $0x38] sm:$0xff]
        %v223 = vld [vmem:[%s200 + $0x40] sm:$0xff]
        %v224 = vld [vmem:[%s200 + $0x48] sm:$0xff]
        %v225 = vld [vmem:[%s200 + $0x50] sm:$0xff]
        %v226 = vld [vmem:[%s200 + $0x58] sm:$0xff]
        %v227 = vld [vmem:[%s200 + $0x60] sm:$0xff]
        %v228 = vld [vmem:[%s200 + $0x68] sm:$0xff]
        %v229 = vld [vmem:[%s200 + $0x70] sm:$0xff]
        %v230 = vld [vmem:[%s200 + $0x78] sm:$0xff]
        %v231 = vld [vmem:[%s200 + $0x80] sm:$0xff]
        %v232 = vld [vmem:[%s200 + $0x88] sm:$0xff]
        %v233 = vld [vmem:[%s200 + $0x90] sm:$0xff]
        %v234 = vld [vmem:[%s200 + $0x98] sm:$0xff]
        %v235 = vld [vmem:[%s200 + $0xa0] sm:$0xff]
        %v236 = vld [vmem:[%s200 + $0xa8] sm:$0xff]
        %v237 = vld [vmem:[%s200 + $0xb0] sm:$0xff]
        %v238 = vld [vmem:[%s200 + $0xb8] sm:$0xff]
        %v239 = vld [vmem:[%s200 + $0xc0] sm:$0xff]
        %v240 = vld [vmem:[%s200 + $0xc8] sm:$0xff]
        %v241 = vld [vmem:[%s200 + $0xd0] sm:$0xff]
        %v242 = vld [vmem:[%s200 + $0xd8] sm:$0xff]
        %v243 = vld [vmem:[%s200 + $0xe0] sm:$0xff]
        %v244 = vld [vmem:[%s200 + $0xe8] sm:$0xff]
        %v245 = vld [vmem:[%s200 + $0xf0] sm:$0xff]
        %v246 = vld [vmem:[%s200 + $0xf8] sm:$0xff]
        %v247 = vld [vmem:[%s200 + $0x100] sm:$0xff]
        %v248 = vld [vmem:[%s200 + $0x108] sm:$0xff]
        %v249 = vld [vmem:[%s200 + $0x110] sm:$0xff]
        %v250 = vld [vmem:[%s200 + $0x118] sm:$0xff]
        %v251 = vld [vmem:[%s200 + $0x120] sm:$0xff]
        %v252 = vld [vmem:[%s200 + $0x128] sm:$0xff]
        %v253 = vld [vmem:[%s200 + $0x130] sm:$0xff]
        %v254 = vld [vmem:[%s200 + $0x138] sm:$0xff]
        %v255 = vld [vmem:[%s200 + $0x140] sm:$0xff]
        %v256 = vld [vmem:[%s200 + $0x148] sm:$0xff]
        %v257 = vld [vmem:[%s200 + $0x150] sm:$0xff]
        %v258 = vld [vmem:[%s200 + $0x158] sm:$0xff]
        %v259 = vld [vmem:[%s200 + $0x160] sm:$0xff]
        %v260 = vld [vmem:[%s200 + $0x168] sm:$0xff]
        %v261 = vld [vmem:[%s200 + $0x170] sm:$0xff]
        %v262 = vld [vmem:[%s200 + $0x178] sm:$0xff]
        %v263 = vld [vmem:[%s200 + $0x180] sm:$0xff]
        %v313 = vcombine.high %v215, %v215
        %v314 = vcombine.high %v216, %v216
        %v315 = vcombine.high %v217, %v217
        %v316 = vcombine.high %v218, %v218
        %v317 = vcombine.high %v219, %v219
        %v318 = vcombine.high %v220, %v220
        %v319 = vcombine.high %v221, %v221
        %v320 = vcombine.high %v222, %v222
        %v321 = vcombine.high %v223, %v223
        %v322 = vcombine.high %v224, %v224
        %v323 = vcombine.high %v225, %v225
        %v324 = vcombine.high %v226, %v226
        %v325 = vcombine.high %v227, %v227
        %v326 = vcombine.high %v228, %v228
        %v327 = vcombine.high %v229, %v229
        %v328 = vcombine.high %v230, %v230
        %v329 = vcombine.high %v231, %v231
        %v330 = vcombine.high %v232, %v232
        %v331 = vcombine.high %v233, %v233
        %v332 = vcombine.high %v234, %v234
        %v333 = vcombine.high %v235, %v235
        %v334 = vcombine.high %v236, %v236
        %v335 = vcombine.high %v237, %v237
        %v336 = vcombine.high %v238, %v238
        %v337 = vcombine.high %v239, %v239
        %v338 = vcombine.high %v240, %v240
        %v339 = vcombine.high %v241, %v241
        %v340 = vcombine.high %v242, %v242
        %v341 = vcombine.high %v243, %v243
        %v342 = vcombine.high %v244, %v244
        %v343 = vcombine.high %v245, %v245
        %v344 = vcombine.high %v246, %v246
        %v345 = vcombine.high %v247, %v247
        %v346 = vcombine.high %v248, %v248
        %v347 = vcombine.high %v249, %v249
        %v348 = vcombine.high %v250, %v250
        %v349 = vcombine.high %v251, %v251
        %v350 = vcombine.high %v252, %v252
        %v351 = vcombine.high %v253, %v253
        %v352 = vcombine.high %v254, %v254
        %v353 = vcombine.high %v255, %v255
        %v354 = vcombine.high %v256, %v256
        %v355 = vcombine.high %v257, %v257
        %v356 = vcombine.high %v258, %v258
        %v357 = vcombine.high %v259, %v259
        %v358 = vcombine.high %v260, %v260
        %v359 = vcombine.high %v261, %v261
        %v360 = vcombine.high %v262, %v262
        %v361 = vcombine.high %v263, %v263
        %v411 = vpack.c.bf16 %v215, %v215
        %v412 = vpack.c.bf16 %v313, %v313
        %v413 = vpack.c.bf16 %v216, %v216
        %v414 = vpack.c.bf16 %v314, %v314
        %v415 = vpack.c.bf16 %v217, %v217
        %v416 = vpack.c.bf16 %v315, %v315
        %v417 = vpack.c.bf16 %v218, %v218
        %v418 = vpack.c.bf16 %v316, %v316
        %v419 = vpack.c.bf16 %v219, %v219
        %v420 = vpack.c.bf16 %v317, %v317
        %v421 = vpack.c.bf16 %v220, %v220
        %v422 = vpack.c.bf16 %v318, %v318
        %v423 = vpack.c.bf16 %v221, %v221
        %v424 = vpack.c.bf16 %v319, %v319
        %v425 = vpack.c.bf16 %v222, %v222
        %v426 = vpack.c.bf16 %v320, %v320
        %v427 = vpack.c.bf16 %v223, %v223
        %v428 = vpack.c.bf16 %v321, %v321
        %v429 = vpack.c.bf16 %v224, %v224
        %v430 = vpack.c.bf16 %v322, %v322
        %v431 = vpack.c.bf16 %v225, %v225
        %v432 = vpack.c.bf16 %v323, %v323
        %v433 = vpack.c.bf16 %v226, %v226
        %v434 = vpack.c.bf16 %v324, %v324
        %v435 = vpack.c.bf16 %v227, %v227
        %v436 = vpack.c.bf16 %v325, %v325
        %v437 = vpack.c.bf16 %v228, %v228
        %v438 = vpack.c.bf16 %v326, %v326
        %v439 = vpack.c.bf16 %v229, %v229
        %v440 = vpack.c.bf16 %v327, %v327
        %v441 = vpack.c.bf16 %v230, %v230
        %v442 = vpack.c.bf16 %v328, %v328
        %v443 = vpack.c.bf16 %v231, %v231
        %v444 = vpack.c.bf16 %v329, %v329
        %v445 = vpack.c.bf16 %v232, %v232
        %v446 = vpack.c.bf16 %v330, %v330
        %v447 = vpack.c.bf16 %v233, %v233
        %v448 = vpack.c.bf16 %v331, %v331
        %v449 = vpack.c.bf16 %v234, %v234
        %v450 = vpack.c.bf16 %v332, %v332
        %v451 = vpack.c.bf16 %v235, %v235
        %v452 = vpack.c.bf16 %v333, %v333
        %v453 = vpack.c.bf16 %v236, %v236
        %v454 = vpack.c.bf16 %v334, %v334
        %v455 = vpack.c.bf16 %v237, %v237
        %v456 = vpack.c.bf16 %v335, %v335
        %v457 = vpack.c.bf16 %v238, %v238
        %v458 = vpack.c.bf16 %v336, %v336
        %v459 = vpack.c.bf16 %v239, %v239
        %v460 = vpack.c.bf16 %v337, %v337
        %v461 = vpack.c.bf16 %v240, %v240
        %v462 = vpack.c.bf16 %v338, %v338
        %v463 = vpack.c.bf16 %v241, %v241
        %v464 = vpack.c.bf16 %v339, %v339
        %v465 = vpack.c.bf16 %v242, %v242
        %v466 = vpack.c.bf16 %v340, %v340
        %v467 = vpack.c.bf16 %v243, %v243
        %v468 = vpack.c.bf16 %v341, %v341
        %v469 = vpack.c.bf16 %v244, %v244
        %v470 = vpack.c.bf16 %v342, %v342
        %v471 = vpack.c.bf16 %v245, %v245
        %v472 = vpack.c.bf16 %v343, %v343
        %v473 = vpack.c.bf16 %v246, %v246
        %v474 = vpack.c.bf16 %v344, %v344
        %v475 = vpack.c.bf16 %v247, %v247
        %v476 = vpack.c.bf16 %v345, %v345
        %v477 = vpack.c.bf16 %v248, %v248
        %v478 = vpack.c.bf16 %v346, %v346
        %v479 = vpack.c.bf16 %v249, %v249
        %v480 = vpack.c.bf16 %v347, %v347
        %v481 = vpack.c.bf16 %v250, %v250
        %v482 = vpack.c.bf16 %v348, %v348
        %v483 = vpack.c.bf16 %v251, %v251
        %v484 = vpack.c.bf16 %v349, %v349
        %v485 = vpack.c.bf16 %v252, %v252
        %v486 = vpack.c.bf16 %v350, %v350
        %v487 = vpack.c.bf16 %v253, %v253
        %v488 = vpack.c.bf16 %v351, %v351
        %v489 = vpack.c.bf16 %v254, %v254
        %v490 = vpack.c.bf16 %v352, %v352
        %v491 = vpack.c.bf16 %v255, %v255
        %v492 = vpack.c.bf16 %v353, %v353
        %v493 = vpack.c.bf16 %v256, %v256
        %v494 = vpack.c.bf16 %v354, %v354
        %v495 = vpack.c.bf16 %v257, %v257
        %v496 = vpack.c.bf16 %v355, %v355
        %v497 = vpack.c.bf16 %v258, %v258
        %v498 = vpack.c.bf16 %v356, %v356
        %v499 = vpack.c.bf16 %v259, %v259
        %v500 = vpack.c.bf16 %v357, %v357
        %v501 = vpack.c.bf16 %v260, %v260
        %v502 = vpack.c.bf16 %v358, %v358
        %v503 = vpack.c.bf16 %v261, %v261
        %v504 = vpack.c.bf16 %v359, %v359
        %v505 = vpack.c.bf16 %v262, %v262
        %v506 = vpack.c.bf16 %v360, %v360
        %v507 = vpack.c.bf16 %v263, %v263
        %v508 = vpack.c.bf16 %v361, %v361
        %v509 = vld [vmem:[#allocation2] sm:$0xf]
        %v510 = vld [vmem:[%s206] sm:$0xf]
        %v511 = vld [vmem:[%s206 + $0x4] sm:$0xf]
        %v512 = vld [vmem:[%s206 + $0x8] sm:$0xf]
        %v513 = vld [vmem:[%s206 + $0xc] sm:$0xf]
        %v514 = vld [vmem:[%s206 + $0x10] sm:$0xf]
        %v515 = vld [vmem:[%s206 + $0x14] sm:$0xf]
        %v516 = vld [vmem:[%s206 + $0x18] sm:$0xf]
        %v517 = vld [vmem:[%s206 + $0x1c] sm:$0xf]
        %v518 = vld [vmem:[%s206 + $0x20] sm:$0xf]
        %v519 = vld [vmem:[%s206 + $0x24] sm:$0xf]
        %v520 = vld [vmem:[%s206 + $0x28] sm:$0xf]
        %v521 = vld [vmem:[%s206 + $0x2c] sm:$0xf]
        %v522 = vld [vmem:[%s206 + $0x30] sm:$0xf]
        %v523 = vld [vmem:[%s206 + $0x34] sm:$0xf]
        %v524 = vld [vmem:[%s206 + $0x38] sm:$0xf]
        %v525 = vld [vmem:[%s206 + $0x3c] sm:$0xf]
        %v526 = vld [vmem:[%s206 + $0x40] sm:$0xf]
        %v527 = vld [vmem:[%s206 + $0x44] sm:$0xf]
        %v528 = vld [vmem:[%s206 + $0x48] sm:$0xf]
        %v529 = vld [vmem:[%s206 + $0x4c] sm:$0xf]
        %v530 = vld [vmem:[%s206 + $0x50] sm:$0xf]
        %v531 = vld [vmem:[%s206 + $0x54] sm:$0xf]
        %v532 = vld [vmem:[%s206 + $0x58] sm:$0xf]
        %v533 = vld [vmem:[%s206 + $0x5c] sm:$0xf]
        %v534 = vld [vmem:[%s206 + $0x60] sm:$0xf]
        %v535 = vld [vmem:[%s206 + $0x64] sm:$0xf]
        %v536 = vld [vmem:[%s206 + $0x68] sm:$0xf]
        %v537 = vld [vmem:[%s206 + $0x6c] sm:$0xf]
        %v538 = vld [vmem:[%s206 + $0x70] sm:$0xf]
        %v539 = vld [vmem:[%s206 + $0x74] sm:$0xf]
        %v540 = vld [vmem:[%s206 + $0x78] sm:$0xf]
        %v541 = vld [vmem:[%s206 + $0x7c] sm:$0xf]
        %v542 = vld [vmem:[%s206 + $0x80] sm:$0xf]
        %v543 = vld [vmem:[%s206 + $0x84] sm:$0xf]
        %v544 = vld [vmem:[%s206 + $0x88] sm:$0xf]
        %v545 = vld [vmem:[%s206 + $0x8c] sm:$0xf]
        %v546 = vld [vmem:[%s206 + $0x90] sm:$0xf]
        %v547 = vld [vmem:[%s206 + $0x94] sm:$0xf]
        %v548 = vld [vmem:[%s206 + $0x98] sm:$0xf]
        %v549 = vld [vmem:[%s206 + $0x9c] sm:$0xf]
        %v550 = vld [vmem:[%s206 + $0xa0] sm:$0xf]
        %v551 = vld [vmem:[%s206 + $0xa4] sm:$0xf]
        %v552 = vld [vmem:[%s206 + $0xa8] sm:$0xf]
        %v553 = vld [vmem:[%s206 + $0xac] sm:$0xf]
        %v554 = vld [vmem:[%s206 + $0xb0] sm:$0xf]
        %v555 = vld [vmem:[%s206 + $0xb4] sm:$0xf]
        %v556 = vld [vmem:[%s206 + $0xb8] sm:$0xf]
        %v557 = vld [vmem:[%s206 + $0xbc] sm:$0xf]
        %v558 = vld [vmem:[%s206 + $0xc0] sm:$0xf]
        %v559 = vld [vmem:[%s206 + $0xc4] sm:$0xf]
        %v560 = vld [vmem:[%s206 + $0xc8] sm:$0xf]
        %v561 = vld [vmem:[%s206 + $0xcc] sm:$0xf]
        %v562 = vld [vmem:[%s206 + $0xd0] sm:$0xf]
        %v563 = vld [vmem:[%s206 + $0xd4] sm:$0xf]
        %v564 = vld [vmem:[%s206 + $0xd8] sm:$0xf]
        %v565 = vld [vmem:[%s206 + $0xdc] sm:$0xf]
        %v566 = vld [vmem:[%s206 + $0xe0] sm:$0xf]
        %v567 = vld [vmem:[%s206 + $0xe4] sm:$0xf]
        %v568 = vld [vmem:[%s206 + $0xe8] sm:$0xf]
        %v569 = vld [vmem:[%s206 + $0xec] sm:$0xf]
        %v570 = vld [vmem:[%s206 + $0xf0] sm:$0xf]
        %v571 = vld [vmem:[%s206 + $0xf4] sm:$0xf]
        %v572 = vld [vmem:[%s206 + $0xf8] sm:$0xf]
        %v573 = vld [vmem:[%s206 + $0xfc] sm:$0xf]
        %v574 = vld [vmem:[%s206 + $0x100] sm:$0xf]
        %v575 = vld [vmem:[%s206 + $0x104] sm:$0xf]
        %v576 = vld [vmem:[%s206 + $0x108] sm:$0xf]
        %v577 = vld [vmem:[%s206 + $0x10c] sm:$0xf]
        %v578 = vld [vmem:[%s206 + $0x110] sm:$0xf]
        %v579 = vld [vmem:[%s206 + $0x114] sm:$0xf]
        %v580 = vld [vmem:[%s206 + $0x118] sm:$0xf]
        %v581 = vld [vmem:[%s206 + $0x11c] sm:$0xf]
        %v582 = vld [vmem:[%s206 + $0x120] sm:$0xf]
        %v583 = vld [vmem:[%s206 + $0x124] sm:$0xf]
        %v584 = vld [vmem:[%s206 + $0x128] sm:$0xf]
        %v585 = vld [vmem:[%s206 + $0x12c] sm:$0xf]
        %v586 = vld [vmem:[%s206 + $0x130] sm:$0xf]
        %v587 = vld [vmem:[%s206 + $0x134] sm:$0xf]
        %v588 = vld [vmem:[%s206 + $0x138] sm:$0xf]
        %v589 = vld [vmem:[%s206 + $0x13c] sm:$0xf]
        %v590 = vld [vmem:[%s206 + $0x140] sm:$0xf]
        %v591 = vld [vmem:[%s206 + $0x144] sm:$0xf]
        %v592 = vld [vmem:[%s206 + $0x148] sm:$0xf]
        %v593 = vld [vmem:[%s206 + $0x14c] sm:$0xf]
        %v594 = vld [vmem:[%s206 + $0x150] sm:$0xf]
        %v595 = vld [vmem:[%s206 + $0x154] sm:$0xf]
        %v596 = vld [vmem:[%s206 + $0x158] sm:$0xf]
        %v597 = vld [vmem:[%s206 + $0x15c] sm:$0xf]
        %v598 = vld [vmem:[%s206 + $0x160] sm:$0xf]
        %v599 = vld [vmem:[%s206 + $0x164] sm:$0xf]
        %v600 = vld [vmem:[%s206 + $0x168] sm:$0xf]
        %v601 = vld [vmem:[%s206 + $0x16c] sm:$0xf]
        %v602 = vld [vmem:[%s206 + $0x170] sm:$0xf]
        %v603 = vld [vmem:[%s206 + $0x174] sm:$0xf]
        %v604 = vld [vmem:[%s206 + $0x178] sm:$0xf]
        %v605 = vld [vmem:[%s206 + $0x17c] sm:$0xf]
        %v606 = vld [vmem:[%s206 + $0x180] sm:$0xf]
        %v607 = vld [vmem:[%s206 + $0x184] sm:$0xf]
        %v608 = vld [vmem:[%s206 + $0x188] sm:$0xf]
        %v609 = vld [vmem:[%s206 + $0x18c] sm:$0xf]
        %v610 = vld [vmem:[%s206 + $0x190] sm:$0xf]
        %v611 = vld [vmem:[%s206 + $0x194] sm:$0xf]
        %v612 = vld [vmem:[%s206 + $0x198] sm:$0xf]
        %v613 = vld [vmem:[%s206 + $0x19c] sm:$0xf]
        %v614 = vld [vmem:[%s206 + $0x1a0] sm:$0xf]
        %v615 = vld [vmem:[%s206 + $0x1a4] sm:$0xf]
        %v616 = vld [vmem:[%s206 + $0x1a8] sm:$0xf]
        %v617 = vld [vmem:[%s206 + $0x1ac] sm:$0xf]
        %v618 = vld [vmem:[%s206 + $0x1b0] sm:$0xf]
        %v619 = vld [vmem:[%s206 + $0x1b4] sm:$0xf]
        %v620 = vld [vmem:[%s206 + $0x1b8] sm:$0xf]
        %v621 = vld [vmem:[%s206 + $0x1bc] sm:$0xf]
        %v622 = vld [vmem:[%s206 + $0x1c0] sm:$0xf]
        %v623 = vld [vmem:[%s206 + $0x1c4] sm:$0xf]
        %v624 = vld [vmem:[%s206 + $0x1c8] sm:$0xf]
        %v625 = vld [vmem:[%s206 + $0x1cc] sm:$0xf]
        %v626 = vld [vmem:[%s206 + $0x1d0] sm:$0xf]
        %v627 = vld [vmem:[%s206 + $0x1d4] sm:$0xf]
        %v628 = vld [vmem:[%s206 + $0x1d8] sm:$0xf]
        %v629 = vld [vmem:[%s206 + $0x1dc] sm:$0xf]
        %v630 = vld [vmem:[%s206 + $0x1e0] sm:$0xf]
        %v631 = vld [vmem:[%s206 + $0x1e4] sm:$0xf]
        %v632 = vld [vmem:[%s206 + $0x1e8] sm:$0xf]
        %v633 = vld [vmem:[%s206 + $0x1ec] sm:$0xf]
        %v634 = vld [vmem:[%s206 + $0x1f0] sm:$0xf]
        %v635 = vld [vmem:[%s206 + $0x1f4] sm:$0xf]
        %v636 = vld [vmem:[%s206 + $0x1f8] sm:$0xf]
        %v637 = vld [vmem:[%s206 + $0x1fc] sm:$0xf]
        %v638 = vld [vmem:[%s206 + $0x200] sm:$0xf]
        %v639 = vld [vmem:[%s206 + $0x204] sm:$0xf]
        %v640 = vld [vmem:[%s206 + $0x208] sm:$0xf]
        %v641 = vld [vmem:[%s206 + $0x20c] sm:$0xf]
        %v642 = vld [vmem:[%s206 + $0x210] sm:$0xf]
        %v643 = vld [vmem:[%s206 + $0x214] sm:$0xf]
        %v644 = vld [vmem:[%s206 + $0x218] sm:$0xf]
        %v645 = vld [vmem:[%s206 + $0x21c] sm:$0xf]
        %v646 = vld [vmem:[%s206 + $0x220] sm:$0xf]
        %v647 = vld [vmem:[%s206 + $0x224] sm:$0xf]
        %v648 = vld [vmem:[%s206 + $0x228] sm:$0xf]
        %v649 = vld [vmem:[%s206 + $0x22c] sm:$0xf]
        %v650 = vld [vmem:[%s206 + $0x230] sm:$0xf]
        %v651 = vld [vmem:[%s206 + $0x234] sm:$0xf]
        %v652 = vld [vmem:[%s206 + $0x238] sm:$0xf]
        %v653 = vld [vmem:[%s206 + $0x23c] sm:$0xf]
        %v654 = vld [vmem:[%s206 + $0x240] sm:$0xf]
        %v655 = vld [vmem:[%s206 + $0x244] sm:$0xf]
        %v656 = vld [vmem:[%s206 + $0x248] sm:$0xf]
        %v657 = vld [vmem:[%s206 + $0x24c] sm:$0xf]
        %v658 = vld [vmem:[%s206 + $0x250] sm:$0xf]
        %v659 = vld [vmem:[%s206 + $0x254] sm:$0xf]
        %v660 = vld [vmem:[%s206 + $0x258] sm:$0xf]
        %v661 = vld [vmem:[%s206 + $0x25c] sm:$0xf]
        %v662 = vld [vmem:[%s206 + $0x260] sm:$0xf]
        %v663 = vld [vmem:[%s206 + $0x264] sm:$0xf]
        %v664 = vld [vmem:[%s206 + $0x268] sm:$0xf]
        %v665 = vld [vmem:[%s206 + $0x26c] sm:$0xf]
        %v666 = vld [vmem:[%s206 + $0x270] sm:$0xf]
        %v667 = vld [vmem:[%s206 + $0x274] sm:$0xf]
        %v668 = vld [vmem:[%s206 + $0x278] sm:$0xf]
        %v669 = vld [vmem:[%s206 + $0x27c] sm:$0xf]
        %v670 = vld [vmem:[%s206 + $0x280] sm:$0xf]
        %v671 = vld [vmem:[%s206 + $0x284] sm:$0xf]
        %v672 = vld [vmem:[%s206 + $0x288] sm:$0xf]
        %v673 = vld [vmem:[%s206 + $0x28c] sm:$0xf]
        %v674 = vld [vmem:[%s206 + $0x290] sm:$0xf]
        %v675 = vld [vmem:[%s206 + $0x294] sm:$0xf]
        %v676 = vld [vmem:[%s206 + $0x298] sm:$0xf]
        %v677 = vld [vmem:[%s206 + $0x29c] sm:$0xf]
        %v678 = vld [vmem:[%s206 + $0x2a0] sm:$0xf]
        %v679 = vld [vmem:[%s206 + $0x2a4] sm:$0xf]
        %v680 = vld [vmem:[%s206 + $0x2a8] sm:$0xf]
        %v681 = vld [vmem:[%s206 + $0x2ac] sm:$0xf]
        %v682 = vld [vmem:[%s206 + $0x2b0] sm:$0xf]
        %v683 = vld [vmem:[%s206 + $0x2b4] sm:$0xf]
        %v684 = vld [vmem:[%s206 + $0x2b8] sm:$0xf]
        %v685 = vld [vmem:[%s206 + $0x2bc] sm:$0xf]
        %v686 = vld [vmem:[%s206 + $0x2c0] sm:$0xf]
        %v687 = vld [vmem:[%s206 + $0x2c4] sm:$0xf]
        %v688 = vld [vmem:[%s206 + $0x2c8] sm:$0xf]
        %v689 = vld [vmem:[%s206 + $0x2cc] sm:$0xf]
        %v690 = vld [vmem:[%s206 + $0x2d0] sm:$0xf]
        %v691 = vld [vmem:[%s206 + $0x2d4] sm:$0xf]
        %v692 = vld [vmem:[%s206 + $0x2d8] sm:$0xf]
        %v693 = vld [vmem:[%s206 + $0x2dc] sm:$0xf]
        %v694 = vld [vmem:[%s206 + $0x2e0] sm:$0xf]
        %v695 = vld [vmem:[%s206 + $0x2e4] sm:$0xf]
        %v696 = vld [vmem:[%s206 + $0x2e8] sm:$0xf]
        %v697 = vld [vmem:[%s206 + $0x2ec] sm:$0xf]
        %v698 = vld [vmem:[%s206 + $0x2f0] sm:$0xf]
        %v699 = vld [vmem:[%s206 + $0x2f4] sm:$0xf]
        %v700 = vld [vmem:[%s206 + $0x2f8] sm:$0xf]
        %v701 = vld [vmem:[%s206 + $0x2fc] sm:$0xf]
        %v702 = vld [vmem:[%s206 + $0x300] sm:$0xf]
        %v703 = vld [vmem:[%s206 + $0x304] sm:$0xf]
        %v704 = vld [vmem:[%s206 + $0x308] sm:$0xf]
        %v705 = vld [vmem:[%s206 + $0x30c] sm:$0xf]
        %v706 = vld [vmem:[%s206 + $0x310] sm:$0xf]
        %v707 = vld [vmem:[%s206 + $0x314] sm:$0xf]
        %v708 = vld [vmem:[%s206 + $0x318] sm:$0xf]
        %v709 = vld [vmem:[%s206 + $0x31c] sm:$0xf]
        %v710 = vld [vmem:[%s206 + $0x320] sm:$0xf]
        %v711 = vld [vmem:[%s206 + $0x324] sm:$0xf]
        %v712 = vld [vmem:[%s206 + $0x328] sm:$0xf]
        %v713 = vld [vmem:[%s206 + $0x32c] sm:$0xf]
        %v714 = vld [vmem:[%s206 + $0x330] sm:$0xf]
        %v715 = vld [vmem:[%s206 + $0x334] sm:$0xf]
        %v716 = vld [vmem:[%s206 + $0x338] sm:$0xf]
        %v717 = vld [vmem:[%s206 + $0x33c] sm:$0xf]
        %v718 = vld [vmem:[%s206 + $0x340] sm:$0xf]
        %v719 = vld [vmem:[%s206 + $0x344] sm:$0xf]
        %v720 = vld [vmem:[%s206 + $0x348] sm:$0xf]
        %v721 = vld [vmem:[%s206 + $0x34c] sm:$0xf]
        %v722 = vld [vmem:[%s206 + $0x350] sm:$0xf]
        %v723 = vld [vmem:[%s206 + $0x354] sm:$0xf]
        %v724 = vld [vmem:[%s206 + $0x358] sm:$0xf]
        %v725 = vld [vmem:[%s206 + $0x35c] sm:$0xf]
        %v726 = vld [vmem:[%s206 + $0x360] sm:$0xf]
        %v727 = vld [vmem:[%s206 + $0x364] sm:$0xf]
        %v728 = vld [vmem:[%s206 + $0x368] sm:$0xf]
        %v729 = vld [vmem:[%s206 + $0x36c] sm:$0xf]
        %v730 = vld [vmem:[%s206 + $0x370] sm:$0xf]
        %v731 = vld [vmem:[%s206 + $0x374] sm:$0xf]
        %v732 = vld [vmem:[%s206 + $0x378] sm:$0xf]
        %v733 = vld [vmem:[%s206 + $0x37c] sm:$0xf]
        %v734 = vld [vmem:[%s206 + $0x380] sm:$0xf]
        %v735 = vld [vmem:[%s206 + $0x384] sm:$0xf]
        %v736 = vld [vmem:[%s206 + $0x388] sm:$0xf]
        %v737 = vld [vmem:[%s206 + $0x38c] sm:$0xf]
        %v738 = vld [vmem:[%s206 + $0x390] sm:$0xf]
        %v739 = vld [vmem:[%s206 + $0x394] sm:$0xf]
        %v740 = vld [vmem:[%s206 + $0x398] sm:$0xf]
        %v741 = vld [vmem:[%s206 + $0x39c] sm:$0xf]
        %v742 = vld [vmem:[%s206 + $0x3a0] sm:$0xf]
        %v743 = vld [vmem:[%s206 + $0x3a4] sm:$0xf]
        %v744 = vld [vmem:[%s206 + $0x3a8] sm:$0xf]
        %v745 = vld [vmem:[%s206 + $0x3ac] sm:$0xf]
        %v746 = vld [vmem:[%s206 + $0x3b0] sm:$0xf]
        %v747 = vld [vmem:[%s206 + $0x3b4] sm:$0xf]
        %v748 = vld [vmem:[%s206 + $0x3b8] sm:$0xf]
        %v749 = vld [vmem:[%s206 + $0x3bc] sm:$0xf]
        %v750 = vld [vmem:[%s206 + $0x3c0] sm:$0xf]
        %v751 = vld [vmem:[%s206 + $0x3c4] sm:$0xf]
        %v752 = vld [vmem:[%s206 + $0x3c8] sm:$0xf]
        %v753 = vld [vmem:[%s206 + $0x3cc] sm:$0xf]
        %v754 = vld [vmem:[%s206 + $0x3d0] sm:$0xf]
        %v755 = vld [vmem:[%s206 + $0x3d4] sm:$0xf]
        %v756 = vld [vmem:[%s206 + $0x3d8] sm:$0xf]
        %v757 = vld [vmem:[%s206 + $0x3dc] sm:$0xf]
        %v758 = vld [vmem:[%s206 + $0x3e0] sm:$0xf]
        %v759 = vld [vmem:[%s206 + $0x3e4] sm:$0xf]
        %v760 = vld [vmem:[%s206 + $0x3e8] sm:$0xf]
        %v761 = vld [vmem:[%s206 + $0x3ec] sm:$0xf]
        %v762 = vld [vmem:[%s206 + $0x3f0] sm:$0xf]
        %v763 = vld [vmem:[%s206 + $0x3f4] sm:$0xf]
        %v764 = vld [vmem:[%s206 + $0x3f8] sm:$0xf]
        %v765 = vld [vmem:[%s206 + $0x3fc] sm:$0xf]
        %v766 = vld [vmem:[%s206 + $0x400] sm:$0xf]
        %v767 = vld [vmem:[%s206 + $0x404] sm:$0xf]
        %v768 = vld [vmem:[%s206 + $0x408] sm:$0xf]
        %v769 = vld [vmem:[%s206 + $0x40c] sm:$0xf]
        %v770 = vld [vmem:[%s206 + $0x410] sm:$0xf]
        %v771 = vld [vmem:[%s206 + $0x414] sm:$0xf]
        %v772 = vld [vmem:[%s206 + $0x418] sm:$0xf]
        %v773 = vld [vmem:[%s206 + $0x41c] sm:$0xf]
        %v774 = vld [vmem:[%s206 + $0x420] sm:$0xf]
        %v775 = vld [vmem:[%s206 + $0x424] sm:$0xf]
        %v776 = vld [vmem:[%s206 + $0x428] sm:$0xf]
        %v777 = vld [vmem:[%s206 + $0x42c] sm:$0xf]
        %v778 = vld [vmem:[%s206 + $0x430] sm:$0xf]
        %v779 = vld [vmem:[%s206 + $0x434] sm:$0xf]
        %v780 = vld [vmem:[%s206 + $0x438] sm:$0xf]
        %v781 = vld [vmem:[%s206 + $0x43c] sm:$0xf]
        %v782 = vld [vmem:[%s206 + $0x440] sm:$0xf]
        %v783 = vld [vmem:[%s206 + $0x444] sm:$0xf]
        %v784 = vld [vmem:[%s206 + $0x448] sm:$0xf]
        %v785 = vld [vmem:[%s206 + $0x44c] sm:$0xf]
        %v786 = vld [vmem:[%s206 + $0x450] sm:$0xf]
        %v787 = vld [vmem:[%s206 + $0x454] sm:$0xf]
        %v788 = vld [vmem:[%s206 + $0x458] sm:$0xf]
        %v789 = vld [vmem:[%s206 + $0x45c] sm:$0xf]
        %v790 = vld [vmem:[%s206 + $0x460] sm:$0xf]
        %v791 = vld [vmem:[%s206 + $0x464] sm:$0xf]
        %v792 = vld [vmem:[%s206 + $0x468] sm:$0xf]
        %v793 = vld [vmem:[%s206 + $0x46c] sm:$0xf]
        %v794 = vld [vmem:[%s206 + $0x470] sm:$0xf]
        %v795 = vld [vmem:[%s206 + $0x474] sm:$0xf]
        %v796 = vld [vmem:[%s206 + $0x478] sm:$0xf]
        %v797 = vld [vmem:[%s206 + $0x47c] sm:$0xf]
        %v798 = vld [vmem:[%s206 + $0x480] sm:$0xf]
        %v799 = vld [vmem:[%s206 + $0x484] sm:$0xf]
        %v800 = vld [vmem:[%s206 + $0x488] sm:$0xf]
        %v801 = vld [vmem:[%s206 + $0x48c] sm:$0xf]
        %v802 = vld [vmem:[%s206 + $0x490] sm:$0xf]
        %v803 = vld [vmem:[%s206 + $0x494] sm:$0xf]
        %v804 = vld [vmem:[%s206 + $0x498] sm:$0xf]
        %v805 = vld [vmem:[%s206 + $0x49c] sm:$0xf]
        %v806 = vld [vmem:[%s206 + $0x4a0] sm:$0xf]
        %v807 = vld [vmem:[%s206 + $0x4a4] sm:$0xf]
        %v808 = vld [vmem:[%s206 + $0x4a8] sm:$0xf]
        %v809 = vld [vmem:[%s206 + $0x4ac] sm:$0xf]
        %v810 = vld [vmem:[%s206 + $0x4b0] sm:$0xf]
        %v811 = vld [vmem:[%s206 + $0x4b4] sm:$0xf]
        %v812 = vld [vmem:[%s206 + $0x4b8] sm:$0xf]
        %v813 = vld [vmem:[%s206 + $0x4bc] sm:$0xf]
        %v814 = vld [vmem:[%s206 + $0x4c0] sm:$0xf]
        %v815 = vld [vmem:[%s206 + $0x4c4] sm:$0xf]
        %v816 = vld [vmem:[%s206 + $0x4c8] sm:$0xf]
        %v817 = vld [vmem:[%s206 + $0x4cc] sm:$0xf]
        %v818 = vld [vmem:[%s206 + $0x4d0] sm:$0xf]
        %v819 = vld [vmem:[%s206 + $0x4d4] sm:$0xf]
        %v820 = vld [vmem:[%s206 + $0x4d8] sm:$0xf]
        %v821 = vld [vmem:[%s206 + $0x4dc] sm:$0xf]
        %v822 = vld [vmem:[%s206 + $0x4e0] sm:$0xf]
        %v823 = vld [vmem:[%s206 + $0x4e4] sm:$0xf]
        %v824 = vld [vmem:[%s206 + $0x4e8] sm:$0xf]
        %v825 = vld [vmem:[%s206 + $0x4ec] sm:$0xf]
        %v826 = vld [vmem:[%s206 + $0x4f0] sm:$0xf]
        %v827 = vld [vmem:[%s206 + $0x4f4] sm:$0xf]
        %v828 = vld [vmem:[%s206 + $0x4f8] sm:$0xf]
        %v829 = vld [vmem:[%s206 + $0x4fc] sm:$0xf]
        %v830 = vld [vmem:[%s206 + $0x500] sm:$0xf]
        %v831 = vld [vmem:[%s206 + $0x504] sm:$0xf]
        %v832 = vld [vmem:[%s206 + $0x508] sm:$0xf]
        %v833 = vld [vmem:[%s206 + $0x50c] sm:$0xf]
        %v834 = vld [vmem:[%s206 + $0x510] sm:$0xf]
        %v835 = vld [vmem:[%s206 + $0x514] sm:$0xf]
        %v836 = vld [vmem:[%s206 + $0x518] sm:$0xf]
        %v837 = vld [vmem:[%s206 + $0x51c] sm:$0xf]
        %v838 = vld [vmem:[%s206 + $0x520] sm:$0xf]
        %v839 = vld [vmem:[%s206 + $0x524] sm:$0xf]
        %v840 = vld [vmem:[%s206 + $0x528] sm:$0xf]
        %v841 = vld [vmem:[%s206 + $0x52c] sm:$0xf]
        %v842 = vld [vmem:[%s206 + $0x530] sm:$0xf]
        %v843 = vld [vmem:[%s206 + $0x534] sm:$0xf]
        %v844 = vld [vmem:[%s206 + $0x538] sm:$0xf]
        %v845 = vld [vmem:[%s206 + $0x53c] sm:$0xf]
        %v846 = vld [vmem:[%s206 + $0x540] sm:$0xf]
        %v847 = vld [vmem:[%s206 + $0x544] sm:$0xf]
        %v848 = vld [vmem:[%s206 + $0x548] sm:$0xf]
        %v849 = vld [vmem:[%s206 + $0x54c] sm:$0xf]
        %v850 = vld [vmem:[%s206 + $0x550] sm:$0xf]
        %v851 = vld [vmem:[%s206 + $0x554] sm:$0xf]
        %v852 = vld [vmem:[%s206 + $0x558] sm:$0xf]
        %v853 = vld [vmem:[%s206 + $0x55c] sm:$0xf]
        %v854 = vld [vmem:[%s206 + $0x560] sm:$0xf]
        %v855 = vld [vmem:[%s206 + $0x564] sm:$0xf]
        %v856 = vld [vmem:[%s206 + $0x568] sm:$0xf]
        %v857 = vld [vmem:[%s206 + $0x56c] sm:$0xf]
        %v858 = vld [vmem:[%s206 + $0x570] sm:$0xf]
        %v859 = vld [vmem:[%s206 + $0x574] sm:$0xf]
        %v860 = vld [vmem:[%s206 + $0x578] sm:$0xf]
        %v861 = vld [vmem:[%s206 + $0x57c] sm:$0xf]
        %v862 = vld [vmem:[%s206 + $0x580] sm:$0xf]
        %v863 = vld [vmem:[%s206 + $0x584] sm:$0xf]
        %v864 = vld [vmem:[%s206 + $0x588] sm:$0xf]
        %v865 = vld [vmem:[%s206 + $0x58c] sm:$0xf]
        %v866 = vld [vmem:[%s206 + $0x590] sm:$0xf]
        %v867 = vld [vmem:[%s206 + $0x594] sm:$0xf]
        %v868 = vld [vmem:[%s206 + $0x598] sm:$0xf]
        %v869 = vld [vmem:[%s206 + $0x59c] sm:$0xf]
        %v870 = vld [vmem:[%s206 + $0x5a0] sm:$0xf]
        %v871 = vld [vmem:[%s206 + $0x5a4] sm:$0xf]
        %v872 = vld [vmem:[%s206 + $0x5a8] sm:$0xf]
        %v873 = vld [vmem:[%s206 + $0x5ac] sm:$0xf]
        %v874 = vld [vmem:[%s206 + $0x5b0] sm:$0xf]
        %v875 = vld [vmem:[%s206 + $0x5b4] sm:$0xf]
        %v876 = vld [vmem:[%s206 + $0x5b8] sm:$0xf]
        %v877 = vld [vmem:[%s206 + $0x5bc] sm:$0xf]
        %v878 = vld [vmem:[%s206 + $0x5c0] sm:$0xf]
        %v879 = vld [vmem:[%s206 + $0x5c4] sm:$0xf]
        %v880 = vld [vmem:[%s206 + $0x5c8] sm:$0xf]
        %v881 = vld [vmem:[%s206 + $0x5cc] sm:$0xf]
        %v882 = vld [vmem:[%s206 + $0x5d0] sm:$0xf]
        %v883 = vld [vmem:[%s206 + $0x5d4] sm:$0xf]
        %v884 = vld [vmem:[%s206 + $0x5d8] sm:$0xf]
        %v885 = vld [vmem:[%s206 + $0x5dc] sm:$0xf]
        %v886 = vld [vmem:[%s206 + $0x5e0] sm:$0xf]
        %v887 = vld [vmem:[%s206 + $0x5e4] sm:$0xf]
        %v888 = vld [vmem:[%s206 + $0x5e8] sm:$0xf]
        %v889 = vld [vmem:[%s206 + $0x5ec] sm:$0xf]
        %v890 = vld [vmem:[%s206 + $0x5f0] sm:$0xf]
        %v891 = vld [vmem:[%s206 + $0x5f4] sm:$0xf]
        %v892 = vld [vmem:[%s206 + $0x5f8] sm:$0xf]
        %v893 = vld [vmem:[%s206 + $0x5fc] sm:$0xf]
        %v894 = vld [vmem:[%s206 + $0x600] sm:$0xf]
        %v895 = vld [vmem:[%s206 + $0x604] sm:$0xf]
        %v896 = vld [vmem:[%s206 + $0x608] sm:$0xf]
        %v897 = vld [vmem:[%s206 + $0x60c] sm:$0xf]
        %v898 = vld [vmem:[%s206 + $0x610] sm:$0xf]
        %v899 = vld [vmem:[%s206 + $0x614] sm:$0xf]
        %v900 = vld [vmem:[%s206 + $0x618] sm:$0xf]
        %v901 = vld [vmem:[%s206 + $0x61c] sm:$0xf]
        %v902 = vld [vmem:[%s206 + $0x620] sm:$0xf]
        %v903 = vld [vmem:[%s206 + $0x624] sm:$0xf]
        %v904 = vld [vmem:[%s206 + $0x628] sm:$0xf]
        %v905 = vld [vmem:[%s206 + $0x62c] sm:$0xf]
        %v906 = vld [vmem:[%s206 + $0x630] sm:$0xf]
        %v907 = vld [vmem:[%s206 + $0x634] sm:$0xf]
        %v908 = vld [vmem:[%s206 + $0x638] sm:$0xf]
        %v909 = vld [vmem:[%s206 + $0x63c] sm:$0xf]
        %v910 = vld [vmem:[%s206 + $0x640] sm:$0xf]
        %v911 = vld [vmem:[%s206 + $0x644] sm:$0xf]
        %v912 = vld [vmem:[%s206 + $0x648] sm:$0xf]
        %v913 = vld [vmem:[%s206 + $0x64c] sm:$0xf]
        %v914 = vld [vmem:[%s206 + $0x650] sm:$0xf]
        %v915 = vld [vmem:[%s206 + $0x654] sm:$0xf]
        %v916 = vld [vmem:[%s206 + $0x658] sm:$0xf]
        %v917 = vld [vmem:[%s206 + $0x65c] sm:$0xf]
        %v918 = vld [vmem:[%s206 + $0x660] sm:$0xf]
        %v919 = vld [vmem:[%s206 + $0x664] sm:$0xf]
        %v920 = vld [vmem:[%s206 + $0x668] sm:$0xf]
        %v921 = vld [vmem:[%s206 + $0x66c] sm:$0xf]
        %v922 = vld [vmem:[%s206 + $0x670] sm:$0xf]
        %v923 = vld [vmem:[%s206 + $0x674] sm:$0xf]
        %v924 = vld [vmem:[%s206 + $0x678] sm:$0xf]
        %v925 = vld [vmem:[%s206 + $0x67c] sm:$0xf]
        %v926 = vld [vmem:[%s206 + $0x680] sm:$0xf]
        %v927 = vld [vmem:[%s206 + $0x684] sm:$0xf]
        %v928 = vld [vmem:[%s206 + $0x688] sm:$0xf]
        %v929 = vld [vmem:[%s206 + $0x68c] sm:$0xf]
        %v930 = vld [vmem:[%s206 + $0x690] sm:$0xf]
        %v931 = vld [vmem:[%s206 + $0x694] sm:$0xf]
        %v932 = vld [vmem:[%s206 + $0x698] sm:$0xf]
        %v933 = vld [vmem:[%s206 + $0x69c] sm:$0xf]
        %v934 = vld [vmem:[%s206 + $0x6a0] sm:$0xf]
        %v935 = vld [vmem:[%s206 + $0x6a4] sm:$0xf]
        %v936 = vld [vmem:[%s206 + $0x6a8] sm:$0xf]
        %v937 = vld [vmem:[%s206 + $0x6ac] sm:$0xf]
        %v938 = vld [vmem:[%s206 + $0x6b0] sm:$0xf]
        %v939 = vld [vmem:[%s206 + $0x6b4] sm:$0xf]
        %v940 = vld [vmem:[%s206 + $0x6b8] sm:$0xf]
        %v941 = vld [vmem:[%s206 + $0x6bc] sm:$0xf]
        %v942 = vld [vmem:[%s206 + $0x6c0] sm:$0xf]
        %v943 = vld [vmem:[%s206 + $0x6c4] sm:$0xf]
        %v944 = vld [vmem:[%s206 + $0x6c8] sm:$0xf]
        %v945 = vld [vmem:[%s206 + $0x6cc] sm:$0xf]
        %v946 = vld [vmem:[%s206 + $0x6d0] sm:$0xf]
        %v947 = vld [vmem:[%s206 + $0x6d4] sm:$0xf]
        %v948 = vld [vmem:[%s206 + $0x6d8] sm:$0xf]
        %v949 = vld [vmem:[%s206 + $0x6dc] sm:$0xf]
        %v950 = vld [vmem:[%s206 + $0x6e0] sm:$0xf]
        %v951 = vld [vmem:[%s206 + $0x6e4] sm:$0xf]
        %v952 = vld [vmem:[%s206 + $0x6e8] sm:$0xf]
        %v953 = vld [vmem:[%s206 + $0x6ec] sm:$0xf]
        %v954 = vld [vmem:[%s206 + $0x6f0] sm:$0xf]
        %v955 = vld [vmem:[%s206 + $0x6f4] sm:$0xf]
        %v956 = vld [vmem:[%s206 + $0x6f8] sm:$0xf]
        %v957 = vld [vmem:[%s206 + $0x6fc] sm:$0xf]
        %v958 = vld [vmem:[%s206 + $0x700] sm:$0xf]
        %v959 = vld [vmem:[%s206 + $0x704] sm:$0xf]
        %v960 = vld [vmem:[%s206 + $0x708] sm:$0xf]
        %v961 = vld [vmem:[%s206 + $0x70c] sm:$0xf]
        %v962 = vld [vmem:[%s206 + $0x710] sm:$0xf]
        %v963 = vld [vmem:[%s206 + $0x714] sm:$0xf]
        %v964 = vld [vmem:[%s206 + $0x718] sm:$0xf]
        %v965 = vld [vmem:[%s206 + $0x71c] sm:$0xf]
        %v966 = vld [vmem:[%s206 + $0x720] sm:$0xf]
        %v967 = vld [vmem:[%s206 + $0x724] sm:$0xf]
        %v968 = vld [vmem:[%s206 + $0x728] sm:$0xf]
        %v969 = vld [vmem:[%s206 + $0x72c] sm:$0xf]
        %v970 = vld [vmem:[%s206 + $0x730] sm:$0xf]
        %v971 = vld [vmem:[%s206 + $0x734] sm:$0xf]
        %v972 = vld [vmem:[%s206 + $0x738] sm:$0xf]
        %v973 = vld [vmem:[%s206 + $0x73c] sm:$0xf]
        %v974 = vld [vmem:[%s206 + $0x740] sm:$0xf]
        %v975 = vld [vmem:[%s206 + $0x744] sm:$0xf]
        %v976 = vld [vmem:[%s206 + $0x748] sm:$0xf]
        %v977 = vld [vmem:[%s206 + $0x74c] sm:$0xf]
        %v978 = vld [vmem:[%s206 + $0x750] sm:$0xf]
        %v979 = vld [vmem:[%s206 + $0x754] sm:$0xf]
        %v980 = vld [vmem:[%s206 + $0x758] sm:$0xf]
        %v981 = vld [vmem:[%s206 + $0x75c] sm:$0xf]
        %v982 = vld [vmem:[%s206 + $0x760] sm:$0xf]
        %v983 = vld [vmem:[%s206 + $0x764] sm:$0xf]
        %v984 = vld [vmem:[%s206 + $0x768] sm:$0xf]
        %v985 = vld [vmem:[%s206 + $0x76c] sm:$0xf]
        %v986 = vld [vmem:[%s206 + $0x770] sm:$0xf]
        %v987 = vld [vmem:[%s206 + $0x774] sm:$0xf]
        %v988 = vld [vmem:[%s206 + $0x778] sm:$0xf]
        %v989 = vld [vmem:[%s206 + $0x77c] sm:$0xf]
        %v990 = vld [vmem:[%s206 + $0x780] sm:$0xf]
        %v991 = vld [vmem:[%s206 + $0x784] sm:$0xf]
        %v992 = vld [vmem:[%s206 + $0x788] sm:$0xf]
        %v993 = vld [vmem:[%s206 + $0x78c] sm:$0xf]
        %v994 = vld [vmem:[%s206 + $0x790] sm:$0xf]
        %v995 = vld [vmem:[%s206 + $0x794] sm:$0xf]
        %v996 = vld [vmem:[%s206 + $0x798] sm:$0xf]
        %v997 = vld [vmem:[%s206 + $0x79c] sm:$0xf]
        %v998 = vld [vmem:[%s206 + $0x7a0] sm:$0xf]
        %v999 = vld [vmem:[%s206 + $0x7a4] sm:$0xf]
        %v1000 = vld [vmem:[%s206 + $0x7a8] sm:$0xf]
        %v1001 = vld [vmem:[%s206 + $0x7ac] sm:$0xf]
        %v1002 = vld [vmem:[%s206 + $0x7b0] sm:$0xf]
        %v1003 = vld [vmem:[%s206 + $0x7b4] sm:$0xf]
        %v1004 = vld [vmem:[%s206 + $0x7b8] sm:$0xf]
        %v1005 = vld [vmem:[%s206 + $0x7bc] sm:$0xf]
        %v1006 = vld [vmem:[%s206 + $0x7c0] sm:$0xf]
        %v1007 = vld [vmem:[%s206 + $0x7c4] sm:$0xf]
        %v1008 = vld [vmem:[%s206 + $0x7c8] sm:$0xf]
        %v1009 = vld [vmem:[%s206 + $0x7cc] sm:$0xf]
        %v1010 = vld [vmem:[%s206 + $0x7d0] sm:$0xf]
        %v1011 = vld [vmem:[%s206 + $0x7d4] sm:$0xf]
        %v1012 = vld [vmem:[%s206 + $0x7d8] sm:$0xf]
        %v1013 = vld [vmem:[%s206 + $0x7dc] sm:$0xf]
        %v1014 = vld [vmem:[%s206 + $0x7e0] sm:$0xf]
        %v1015 = vld [vmem:[%s206 + $0x7e4] sm:$0xf]
        %v1016 = vld [vmem:[%s206 + $0x7e8] sm:$0xf]
        %v1017 = vld [vmem:[%s206 + $0x7ec] sm:$0xf]
        %v1018 = vld [vmem:[%s206 + $0x7f0] sm:$0xf]
        %v1019 = vld [vmem:[%s206 + $0x7f4] sm:$0xf]
        %v1020 = vld [vmem:[%s206 + $0x7f8] sm:$0xf]
        %v1021 = vld [vmem:[%s206 + $0x7fc] sm:$0xf]
        %v1022 = vld [vmem:[%s206 + $0x800] sm:$0xf]
        %v1023 = vld [vmem:[%s206 + $0x804] sm:$0xf]
        %v1024 = vld [vmem:[%s206 + $0x808] sm:$0xf]
        %v1025 = vld [vmem:[%s206 + $0x80c] sm:$0xf]
        %v1026 = vld [vmem:[%s206 + $0x810] sm:$0xf]
        %v1027 = vld [vmem:[%s206 + $0x814] sm:$0xf]
        %v1028 = vld [vmem:[%s206 + $0x818] sm:$0xf]
        %v1029 = vld [vmem:[%s206 + $0x81c] sm:$0xf]
        %v1030 = vld [vmem:[%s206 + $0x820] sm:$0xf]
        %v1031 = vld [vmem:[%s206 + $0x824] sm:$0xf]
        %v1032 = vld [vmem:[%s206 + $0x828] sm:$0xf]
        %v1033 = vld [vmem:[%s206 + $0x82c] sm:$0xf]
        %v1034 = vld [vmem:[%s206 + $0x830] sm:$0xf]
        %v1035 = vld [vmem:[%s206 + $0x834] sm:$0xf]
        %v1036 = vld [vmem:[%s206 + $0x838] sm:$0xf]
        %v1037 = vld [vmem:[%s206 + $0x83c] sm:$0xf]
        %v1038 = vld [vmem:[%s206 + $0x840] sm:$0xf]
        %v1039 = vld [vmem:[%s206 + $0x844] sm:$0xf]
        %v1040 = vld [vmem:[%s206 + $0x848] sm:$0xf]
        %v1041 = vld [vmem:[%s206 + $0x84c] sm:$0xf]
        %v1042 = vld [vmem:[%s206 + $0x850] sm:$0xf]
        %v1043 = vld [vmem:[%s206 + $0x854] sm:$0xf]
        %v1044 = vld [vmem:[%s206 + $0x858] sm:$0xf]
        %v1045 = vld [vmem:[%s206 + $0x85c] sm:$0xf]
        %v1046 = vld [vmem:[%s206 + $0x860] sm:$0xf]
        %v1047 = vld [vmem:[%s206 + $0x864] sm:$0xf]
        %v1048 = vld [vmem:[%s206 + $0x868] sm:$0xf]
        %v1049 = vld [vmem:[%s206 + $0x86c] sm:$0xf]
        %v1050 = vld [vmem:[%s206 + $0x870] sm:$0xf]
        %v1051 = vld [vmem:[%s206 + $0x874] sm:$0xf]
        %v1052 = vld [vmem:[%s206 + $0x878] sm:$0xf]
        %v1053 = vld [vmem:[%s206 + $0x87c] sm:$0xf]
        %v1054 = vld [vmem:[%s206 + $0x880] sm:$0xf]
        %v1055 = vld [vmem:[%s206 + $0x884] sm:$0xf]
        %v1056 = vld [vmem:[%s206 + $0x888] sm:$0xf]
        %v1057 = vld [vmem:[%s206 + $0x88c] sm:$0xf]
        %v1058 = vld [vmem:[%s206 + $0x890] sm:$0xf]
        %v1059 = vld [vmem:[%s206 + $0x894] sm:$0xf]
        %v1060 = vld [vmem:[%s206 + $0x898] sm:$0xf]
        %v1061 = vld [vmem:[%s206 + $0x89c] sm:$0xf]
        %v1062 = vld [vmem:[%s206 + $0x8a0] sm:$0xf]
        %v1063 = vld [vmem:[%s206 + $0x8a4] sm:$0xf]
        %v1064 = vld [vmem:[%s206 + $0x8a8] sm:$0xf]
        %v1065 = vld [vmem:[%s206 + $0x8ac] sm:$0xf]
        %v1066 = vld [vmem:[%s206 + $0x8b0] sm:$0xf]
        %v1067 = vld [vmem:[%s206 + $0x8b4] sm:$0xf]
        %v1068 = vld [vmem:[%s206 + $0x8b8] sm:$0xf]
        %v1069 = vld [vmem:[%s206 + $0x8bc] sm:$0xf]
        %v1070 = vld [vmem:[%s206 + $0x8c0] sm:$0xf]
        %v1071 = vld [vmem:[%s206 + $0x8c4] sm:$0xf]
        %v1072 = vld [vmem:[%s206 + $0x8c8] sm:$0xf]
        %v1073 = vld [vmem:[%s206 + $0x8cc] sm:$0xf]
        %v1074 = vld [vmem:[%s206 + $0x8d0] sm:$0xf]
        %v1075 = vld [vmem:[%s206 + $0x8d4] sm:$0xf]
        %v1076 = vld [vmem:[%s206 + $0x8d8] sm:$0xf]
        %v1077 = vld [vmem:[%s206 + $0x8dc] sm:$0xf]
        %v1078 = vld [vmem:[%s206 + $0x8e0] sm:$0xf]
        %v1079 = vld [vmem:[%s206 + $0x8e4] sm:$0xf]
        %v1080 = vld [vmem:[%s206 + $0x8e8] sm:$0xf]
        %v1081 = vld [vmem:[%s206 + $0x8ec] sm:$0xf]
        %v1082 = vld [vmem:[%s206 + $0x8f0] sm:$0xf]
        %v1083 = vld [vmem:[%s206 + $0x8f4] sm:$0xf]
        %v1084 = vld [vmem:[%s206 + $0x8f8] sm:$0xf]
        %v1085 = vld [vmem:[%s206 + $0x8fc] sm:$0xf]
        %v1086 = vld [vmem:[%s206 + $0x900] sm:$0xf]
        %v1087 = vld [vmem:[%s206 + $0x904] sm:$0xf]
        %v1088 = vld [vmem:[%s206 + $0x908] sm:$0xf]
        %v1089 = vld [vmem:[%s206 + $0x90c] sm:$0xf]
        %v1090 = vld [vmem:[%s206 + $0x910] sm:$0xf]
        %v1091 = vld [vmem:[%s206 + $0x914] sm:$0xf]
        %v1092 = vld [vmem:[%s206 + $0x918] sm:$0xf]
        %v1093 = vld [vmem:[%s206 + $0x91c] sm:$0xf]
        %v1094 = vld [vmem:[%s206 + $0x920] sm:$0xf]
        %v1095 = vld [vmem:[%s206 + $0x924] sm:$0xf]
        %v1096 = vld [vmem:[%s206 + $0x928] sm:$0xf]
        %v1097 = vld [vmem:[%s206 + $0x92c] sm:$0xf]
        %v1098 = vld [vmem:[%s206 + $0x930] sm:$0xf]
        %v1099 = vld [vmem:[%s206 + $0x934] sm:$0xf]
        %v1100 = vld [vmem:[%s206 + $0x938] sm:$0xf]
        %v1101 = vld [vmem:[%s206 + $0x93c] sm:$0xf]
        %v1102 = vld [vmem:[%s206 + $0x940] sm:$0xf]
        %v1103 = vld [vmem:[%s206 + $0x944] sm:$0xf]
        %v1104 = vld [vmem:[%s206 + $0x948] sm:$0xf]
        %v1105 = vld [vmem:[%s206 + $0x94c] sm:$0xf]
        %v1106 = vld [vmem:[%s206 + $0x950] sm:$0xf]
        %v1107 = vld [vmem:[%s206 + $0x954] sm:$0xf]
        %v1108 = vld [vmem:[%s206 + $0x958] sm:$0xf]
        %v1109 = vld [vmem:[%s206 + $0x95c] sm:$0xf]
        %v1110 = vld [vmem:[%s206 + $0x960] sm:$0xf]
        %v1111 = vld [vmem:[%s206 + $0x964] sm:$0xf]
        %v1112 = vld [vmem:[%s206 + $0x968] sm:$0xf]
        %v1113 = vld [vmem:[%s206 + $0x96c] sm:$0xf]
        %v1114 = vld [vmem:[%s206 + $0x970] sm:$0xf]
        %v1115 = vld [vmem:[%s206 + $0x974] sm:$0xf]
        %v1116 = vld [vmem:[%s206 + $0x978] sm:$0xf]
        %v1117 = vld [vmem:[%s206 + $0x97c] sm:$0xf]
        %v1118 = vld [vmem:[%s206 + $0x980] sm:$0xf]
        %v1119 = vld [vmem:[%s206 + $0x984] sm:$0xf]
        %v1120 = vld [vmem:[%s206 + $0x988] sm:$0xf]
        %v1121 = vld [vmem:[%s206 + $0x98c] sm:$0xf]
        %v1122 = vld [vmem:[%s206 + $0x990] sm:$0xf]
        %v1123 = vld [vmem:[%s206 + $0x994] sm:$0xf]
        %v1124 = vld [vmem:[%s206 + $0x998] sm:$0xf]
        %v1125 = vld [vmem:[%s206 + $0x99c] sm:$0xf]
        %v1126 = vld [vmem:[%s206 + $0x9a0] sm:$0xf]
        %v1127 = vld [vmem:[%s206 + $0x9a4] sm:$0xf]
        %v1128 = vld [vmem:[%s206 + $0x9a8] sm:$0xf]
        %v1129 = vld [vmem:[%s206 + $0x9ac] sm:$0xf]
        %v1130 = vld [vmem:[%s206 + $0x9b0] sm:$0xf]
        %v1131 = vld [vmem:[%s206 + $0x9b4] sm:$0xf]
        %v1132 = vld [vmem:[%s206 + $0x9b8] sm:$0xf]
        %v1133 = vld [vmem:[%s206 + $0x9bc] sm:$0xf]
        %v1134 = vld [vmem:[%s206 + $0x9c0] sm:$0xf]
        %v1135 = vld [vmem:[%s206 + $0x9c4] sm:$0xf]
        %v1136 = vld [vmem:[%s206 + $0x9c8] sm:$0xf]
        %v1137 = vld [vmem:[%s206 + $0x9cc] sm:$0xf]
        %v1138 = vld [vmem:[%s206 + $0x9d0] sm:$0xf]
        %v1139 = vld [vmem:[%s206 + $0x9d4] sm:$0xf]
        %v1140 = vld [vmem:[%s206 + $0x9d8] sm:$0xf]
        %v1141 = vld [vmem:[%s206 + $0x9dc] sm:$0xf]
        %v1142 = vld [vmem:[%s206 + $0x9e0] sm:$0xf]
        %v1143 = vld [vmem:[%s206 + $0x9e4] sm:$0xf]
        %v1144 = vld [vmem:[%s206 + $0x9e8] sm:$0xf]
        %v1145 = vld [vmem:[%s206 + $0x9ec] sm:$0xf]
        %v1146 = vld [vmem:[%s206 + $0x9f0] sm:$0xf]
        %v1147 = vld [vmem:[%s206 + $0x9f4] sm:$0xf]
        %v1148 = vld [vmem:[%s206 + $0x9f8] sm:$0xf]
        %v1149 = vld [vmem:[%s206 + $0x9fc] sm:$0xf]
        %v1150 = vld [vmem:[%s206 + $0xa00] sm:$0xf]
        %v1151 = vld [vmem:[%s206 + $0xa04] sm:$0xf]
        %v1152 = vld [vmem:[%s206 + $0xa08] sm:$0xf]
        %v1153 = vld [vmem:[%s206 + $0xa0c] sm:$0xf]
        %v1154 = vld [vmem:[%s206 + $0xa10] sm:$0xf]
        %v1155 = vld [vmem:[%s206 + $0xa14] sm:$0xf]
        %v1156 = vld [vmem:[%s206 + $0xa18] sm:$0xf]
        %v1157 = vld [vmem:[%s206 + $0xa1c] sm:$0xf]
        %v1158 = vld [vmem:[%s206 + $0xa20] sm:$0xf]
        %v1159 = vld [vmem:[%s206 + $0xa24] sm:$0xf]
        %v1160 = vld [vmem:[%s206 + $0xa28] sm:$0xf]
        %v1161 = vld [vmem:[%s206 + $0xa2c] sm:$0xf]
        %v1162 = vld [vmem:[%s206 + $0xa30] sm:$0xf]
        %v1163 = vld [vmem:[%s206 + $0xa34] sm:$0xf]
        %v1164 = vld [vmem:[%s206 + $0xa38] sm:$0xf]
        %v1165 = vld [vmem:[%s206 + $0xa3c] sm:$0xf]
        %v1166 = vld [vmem:[%s206 + $0xa40] sm:$0xf]
        %v1167 = vld [vmem:[%s206 + $0xa44] sm:$0xf]
        %v1168 = vld [vmem:[%s206 + $0xa48] sm:$0xf]
        %v1169 = vld [vmem:[%s206 + $0xa4c] sm:$0xf]
        %v1170 = vld [vmem:[%s206 + $0xa50] sm:$0xf]
        %v1171 = vld [vmem:[%s206 + $0xa54] sm:$0xf]
        %v1172 = vld [vmem:[%s206 + $0xa58] sm:$0xf]
        %v1173 = vld [vmem:[%s206 + $0xa5c] sm:$0xf]
        %v1174 = vld [vmem:[%s206 + $0xa60] sm:$0xf]
        %v1175 = vld [vmem:[%s206 + $0xa64] sm:$0xf]
        %v1176 = vld [vmem:[%s206 + $0xa68] sm:$0xf]
        %v1177 = vld [vmem:[%s206 + $0xa6c] sm:$0xf]
        %v1178 = vld [vmem:[%s206 + $0xa70] sm:$0xf]
        %v1179 = vld [vmem:[%s206 + $0xa74] sm:$0xf]
        %v1180 = vld [vmem:[%s206 + $0xa78] sm:$0xf]
        %v1181 = vld [vmem:[%s206 + $0xa7c] sm:$0xf]
        %v1182 = vld [vmem:[%s206 + $0xa80] sm:$0xf]
        %v1183 = vld [vmem:[%s206 + $0xa84] sm:$0xf]
        %v1184 = vld [vmem:[%s206 + $0xa88] sm:$0xf]
        %v1185 = vld [vmem:[%s206 + $0xa8c] sm:$0xf]
        %v1186 = vld [vmem:[%s206 + $0xa90] sm:$0xf]
        %v1187 = vld [vmem:[%s206 + $0xa94] sm:$0xf]
        %v1188 = vld [vmem:[%s206 + $0xa98] sm:$0xf]
        %v1189 = vld [vmem:[%s206 + $0xa9c] sm:$0xf]
        %v1190 = vld [vmem:[%s206 + $0xaa0] sm:$0xf]
        %v1191 = vld [vmem:[%s206 + $0xaa4] sm:$0xf]
        %v1192 = vld [vmem:[%s206 + $0xaa8] sm:$0xf]
        %v1193 = vld [vmem:[%s206 + $0xaac] sm:$0xf]
        %v1194 = vld [vmem:[%s206 + $0xab0] sm:$0xf]
        %v1195 = vld [vmem:[%s206 + $0xab4] sm:$0xf]
        %v1196 = vld [vmem:[%s206 + $0xab8] sm:$0xf]
        %v1197 = vld [vmem:[%s206 + $0xabc] sm:$0xf]
        %v1198 = vld [vmem:[%s206 + $0xac0] sm:$0xf]
        %v1199 = vld [vmem:[%s206 + $0xac4] sm:$0xf]
        %v1200 = vld [vmem:[%s206 + $0xac8] sm:$0xf]
        %v1201 = vld [vmem:[%s206 + $0xacc] sm:$0xf]
        %v1202 = vld [vmem:[%s206 + $0xad0] sm:$0xf]
        %v1203 = vld [vmem:[%s206 + $0xad4] sm:$0xf]
        %v1204 = vld [vmem:[%s206 + $0xad8] sm:$0xf]
        %v1205 = vld [vmem:[%s206 + $0xadc] sm:$0xf]
        %v1206 = vld [vmem:[%s206 + $0xae0] sm:$0xf]
        %v1207 = vld [vmem:[%s206 + $0xae4] sm:$0xf]
        %v1208 = vld [vmem:[%s206 + $0xae8] sm:$0xf]
        %v1209 = vld [vmem:[%s206 + $0xaec] sm:$0xf]
        %v1210 = vld [vmem:[%s206 + $0xaf0] sm:$0xf]
        %v1211 = vld [vmem:[%s206 + $0xaf4] sm:$0xf]
        %v1212 = vld [vmem:[%s206 + $0xaf8] sm:$0xf]
        %v1213 = vld [vmem:[%s206 + $0xafc] sm:$0xf]
        %v1214 = vld [vmem:[%s206 + $0xb00] sm:$0xf]
        %v1215 = vld [vmem:[%s206 + $0xb04] sm:$0xf]
        %v1216 = vld [vmem:[%s206 + $0xb08] sm:$0xf]
        %v1217 = vld [vmem:[%s206 + $0xb0c] sm:$0xf]
        %v1218 = vld [vmem:[%s206 + $0xb10] sm:$0xf]
        %v1219 = vld [vmem:[%s206 + $0xb14] sm:$0xf]
        %v1220 = vld [vmem:[%s206 + $0xb18] sm:$0xf]
        %v1221 = vld [vmem:[%s206 + $0xb1c] sm:$0xf]
        %v1222 = vld [vmem:[%s206 + $0xb20] sm:$0xf]
        %v1223 = vld [vmem:[%s206 + $0xb24] sm:$0xf]
        %v1224 = vld [vmem:[%s206 + $0xb28] sm:$0xf]
        %v1225 = vld [vmem:[%s206 + $0xb2c] sm:$0xf]
        %v1226 = vld [vmem:[%s206 + $0xb30] sm:$0xf]
        %v1227 = vld [vmem:[%s206 + $0xb34] sm:$0xf]
        %v1228 = vld [vmem:[%s206 + $0xb38] sm:$0xf]
        %v1229 = vld [vmem:[%s206 + $0xb3c] sm:$0xf]
        %v1230 = vld [vmem:[%s206 + $0xb40] sm:$0xf]
        %v1231 = vld [vmem:[%s206 + $0xb44] sm:$0xf]
        %v1232 = vld [vmem:[%s206 + $0xb48] sm:$0xf]
        %v1233 = vld [vmem:[%s206 + $0xb4c] sm:$0xf]
        %v1234 = vld [vmem:[%s206 + $0xb50] sm:$0xf]
        %v1235 = vld [vmem:[%s206 + $0xb54] sm:$0xf]
        %v1236 = vld [vmem:[%s206 + $0xb58] sm:$0xf]
        %v1237 = vld [vmem:[%s206 + $0xb5c] sm:$0xf]
        %v1238 = vld [vmem:[%s206 + $0xb60] sm:$0xf]
        %v1239 = vld [vmem:[%s206 + $0xb64] sm:$0xf]
        %v1240 = vld [vmem:[%s206 + $0xb68] sm:$0xf]
        %v1241 = vld [vmem:[%s206 + $0xb6c] sm:$0xf]
        %v1242 = vld [vmem:[%s206 + $0xb70] sm:$0xf]
        %v1243 = vld [vmem:[%s206 + $0xb74] sm:$0xf]
        %v1244 = vld [vmem:[%s206 + $0xb78] sm:$0xf]
        %v1245 = vld [vmem:[%s206 + $0xb7c] sm:$0xf]
        %v1246 = vld [vmem:[%s206 + $0xb80] sm:$0xf]
        %v1247 = vld [vmem:[%s206 + $0xb84] sm:$0xf]
        %v1248 = vld [vmem:[%s206 + $0xb88] sm:$0xf]
        %v1249 = vld [vmem:[%s206 + $0xb8c] sm:$0xf]
        %v1250 = vld [vmem:[%s206 + $0xb90] sm:$0xf]
        %v1251 = vld [vmem:[%s206 + $0xb94] sm:$0xf]
        %v1252 = vld [vmem:[%s206 + $0xb98] sm:$0xf]
        %v1253 = vld [vmem:[%s206 + $0xb9c] sm:$0xf]
        %v1254 = vld [vmem:[%s206 + $0xba0] sm:$0xf]
        %v1255 = vld [vmem:[%s206 + $0xba4] sm:$0xf]
        %v1256 = vld [vmem:[%s206 + $0xba8] sm:$0xf]
        %v1257 = vld [vmem:[%s206 + $0xbac] sm:$0xf]
        %v1258 = vld [vmem:[%s206 + $0xbb0] sm:$0xf]
        %v1259 = vld [vmem:[%s206 + $0xbb4] sm:$0xf]
        %v1260 = vld [vmem:[%s206 + $0xbb8] sm:$0xf]
        %v1261 = vld [vmem:[%s206 + $0xbbc] sm:$0xf]
        %v1262 = vld [vmem:[%s206 + $0xbc0] sm:$0xf]
        %v1263 = vld [vmem:[%s206 + $0xbc4] sm:$0xf]
        %v1264 = vld [vmem:[%s206 + $0xbc8] sm:$0xf]
        %v1265 = vld [vmem:[%s206 + $0xbcc] sm:$0xf]
        %v1266 = vld [vmem:[%s206 + $0xbd0] sm:$0xf]
        %v1267 = vld [vmem:[%s206 + $0xbd4] sm:$0xf]
        %v1268 = vld [vmem:[%s206 + $0xbd8] sm:$0xf]
        %v1269 = vld [vmem:[%s206 + $0xbdc] sm:$0xf]
        %v1270 = vld [vmem:[%s206 + $0xbe0] sm:$0xf]
        %v1271 = vld [vmem:[%s206 + $0xbe4] sm:$0xf]
        %v1272 = vld [vmem:[%s206 + $0xbe8] sm:$0xf]
        %v1273 = vld [vmem:[%s206 + $0xbec] sm:$0xf]
        %v1274 = vld [vmem:[%s206 + $0xbf0] sm:$0xf]
        %v1275 = vld [vmem:[%s206 + $0xbf4] sm:$0xf]
        %v1276 = vld [vmem:[%s206 + $0xbf8] sm:$0xf]
        %v1277 = vld [vmem:[%s206 + $0xbfc] sm:$0xf]
        %v1278 = vld [vmem:[%s206 + $0xc00] sm:$0xf]
        %v1279 = vld [vmem:[%s206 + $0xc04] sm:$0xf]
        %v1280 = vld [vmem:[%s206 + $0xc08] sm:$0xf]
        %v1281 = vld [vmem:[%s206 + $0xc0c] sm:$0xf]
        %v1282 = vld [vmem:[%s206 + $0xc10] sm:$0xf]
        %v1283 = vld [vmem:[%s206 + $0xc14] sm:$0xf]
        %v1284 = vld [vmem:[%s206 + $0xc18] sm:$0xf]
        %v1285 = vld [vmem:[%s206 + $0xc1c] sm:$0xf]
        %v1286 = vld [vmem:[%s206 + $0xc20] sm:$0xf]
        %v1287 = vld [vmem:[%s206 + $0xc24] sm:$0xf]
        %v1288 = vld [vmem:[%s206 + $0xc28] sm:$0xf]
        %v1289 = vld [vmem:[%s206 + $0xc2c] sm:$0xf]
        %v1290 = vld [vmem:[%s206 + $0xc30] sm:$0xf]
        %v1291 = vld [vmem:[%s206 + $0xc34] sm:$0xf]
        %v1292 = vld [vmem:[%s206 + $0xc38] sm:$0xf]
        %v1293 = vld [vmem:[%s206 + $0xc3c] sm:$0xf]
        %v1294 = vld [vmem:[%s206 + $0xc40] sm:$0xf]
        %v1295 = vld [vmem:[%s206 + $0xc44] sm:$0xf]
        %v1296 = vld [vmem:[%s206 + $0xc48] sm:$0xf]
        %v1297 = vld [vmem:[%s206 + $0xc4c] sm:$0xf]
        %v1298 = vld [vmem:[%s206 + $0xc50] sm:$0xf]
        %v1299 = vld [vmem:[%s206 + $0xc54] sm:$0xf]
        %v1300 = vld [vmem:[%s206 + $0xc58] sm:$0xf]
        %v1301 = vld [vmem:[%s206 + $0xc5c] sm:$0xf]
        %v1302 = vld [vmem:[%s206 + $0xc60] sm:$0xf]
        %v1303 = vld [vmem:[%s206 + $0xc64] sm:$0xf]
        %v1304 = vld [vmem:[%s206 + $0xc68] sm:$0xf]
        %v1305 = vld [vmem:[%s206 + $0xc6c] sm:$0xf]
        %v1306 = vld [vmem:[%s206 + $0xc70] sm:$0xf]
        %v1307 = vld [vmem:[%s206 + $0xc74] sm:$0xf]
        %v1308 = vld [vmem:[%s206 + $0xc78] sm:$0xf]
        %v1309 = vld [vmem:[%s206 + $0xc7c] sm:$0xf]
        %v1310 = vld [vmem:[%s206 + $0xc80] sm:$0xf]
        %v1311 = vld [vmem:[%s206 + $0xc84] sm:$0xf]
        %v1312 = vld [vmem:[%s206 + $0xc88] sm:$0xf]
        %v1313 = vld [vmem:[%s206 + $0xc8c] sm:$0xf]
        %v1314 = vld [vmem:[%s206 + $0xc90] sm:$0xf]
        %v1315 = vld [vmem:[%s206 + $0xc94] sm:$0xf]
        %v1316 = vld [vmem:[%s206 + $0xc98] sm:$0xf]
        %v1317 = vld [vmem:[%s206 + $0xc9c] sm:$0xf]
        %v1318 = vld [vmem:[%s206 + $0xca0] sm:$0xf]
        %v1319 = vld [vmem:[%s206 + $0xca4] sm:$0xf]
        %v1320 = vld [vmem:[%s206 + $0xca8] sm:$0xf]
        %v1321 = vld [vmem:[%s206 + $0xcac] sm:$0xf]
        %v1322 = vld [vmem:[%s206 + $0xcb0] sm:$0xf]
        %v1323 = vld [vmem:[%s206 + $0xcb4] sm:$0xf]
        %v1324 = vld [vmem:[%s206 + $0xcb8] sm:$0xf]
        %v1325 = vld [vmem:[%s206 + $0xcbc] sm:$0xf]
        %v1326 = vld [vmem:[%s206 + $0xcc0] sm:$0xf]
        %v1327 = vld [vmem:[%s206 + $0xcc4] sm:$0xf]
        %v1328 = vld [vmem:[%s206 + $0xcc8] sm:$0xf]
        %v1329 = vld [vmem:[%s206 + $0xccc] sm:$0xf]
        %v1330 = vld [vmem:[%s206 + $0xcd0] sm:$0xf]
        %v1331 = vld [vmem:[%s206 + $0xcd4] sm:$0xf]
        %v1332 = vld [vmem:[%s206 + $0xcd8] sm:$0xf]
        %v1333 = vld [vmem:[%s206 + $0xcdc] sm:$0xf]
        %v1334 = vld [vmem:[%s206 + $0xce0] sm:$0xf]
        %v1335 = vld [vmem:[%s206 + $0xce4] sm:$0xf]
        %v1336 = vld [vmem:[%s206 + $0xce8] sm:$0xf]
        %v1337 = vld [vmem:[%s206 + $0xcec] sm:$0xf]
        %v1338 = vld [vmem:[%s206 + $0xcf0] sm:$0xf]
        %v1339 = vld [vmem:[%s206 + $0xcf4] sm:$0xf]
        %v1340 = vld [vmem:[%s206 + $0xcf8] sm:$0xf]
        %v1341 = vld [vmem:[%s206 + $0xcfc] sm:$0xf]
        %v1342 = vld [vmem:[%s206 + $0xd00] sm:$0xf]
        %v1343 = vld [vmem:[%s206 + $0xd04] sm:$0xf]
        %v1344 = vld [vmem:[%s206 + $0xd08] sm:$0xf]
        %v1345 = vld [vmem:[%s206 + $0xd0c] sm:$0xf]
        %v1346 = vld [vmem:[%s206 + $0xd10] sm:$0xf]
        %v1347 = vld [vmem:[%s206 + $0xd14] sm:$0xf]
        %v1348 = vld [vmem:[%s206 + $0xd18] sm:$0xf]
        %v1349 = vld [vmem:[%s206 + $0xd1c] sm:$0xf]
        %v1350 = vld [vmem:[%s206 + $0xd20] sm:$0xf]
        %v1351 = vld [vmem:[%s206 + $0xd24] sm:$0xf]
        %v1352 = vld [vmem:[%s206 + $0xd28] sm:$0xf]
        %v1353 = vld [vmem:[%s206 + $0xd2c] sm:$0xf]
        %v1354 = vld [vmem:[%s206 + $0xd30] sm:$0xf]
        %v1355 = vld [vmem:[%s206 + $0xd34] sm:$0xf]
        %v1356 = vld [vmem:[%s206 + $0xd38] sm:$0xf]
        %v1357 = vld [vmem:[%s206 + $0xd3c] sm:$0xf]
        %v1358 = vld [vmem:[%s206 + $0xd40] sm:$0xf]
        %v1359 = vld [vmem:[%s206 + $0xd44] sm:$0xf]
        %v1360 = vld [vmem:[%s206 + $0xd48] sm:$0xf]
        %v1361 = vld [vmem:[%s206 + $0xd4c] sm:$0xf]
        %v1362 = vld [vmem:[%s206 + $0xd50] sm:$0xf]
        %v1363 = vld [vmem:[%s206 + $0xd54] sm:$0xf]
        %v1364 = vld [vmem:[%s206 + $0xd58] sm:$0xf]
        %v1365 = vld [vmem:[%s206 + $0xd5c] sm:$0xf]
        %v1366 = vld [vmem:[%s206 + $0xd60] sm:$0xf]
        %v1367 = vld [vmem:[%s206 + $0xd64] sm:$0xf]
        %v1368 = vld [vmem:[%s206 + $0xd68] sm:$0xf]
        %v1369 = vld [vmem:[%s206 + $0xd6c] sm:$0xf]
        %v1370 = vld [vmem:[%s206 + $0xd70] sm:$0xf]
        %v1371 = vld [vmem:[%s206 + $0xd74] sm:$0xf]
        %v1372 = vld [vmem:[%s206 + $0xd78] sm:$0xf]
        %v1373 = vld [vmem:[%s206 + $0xd7c] sm:$0xf]
        %v1374 = vld [vmem:[%s206 + $0xd80] sm:$0xf]
        %v1375 = vld [vmem:[%s206 + $0xd84] sm:$0xf]
        %v1376 = vld [vmem:[%s206 + $0xd88] sm:$0xf]
        %v1377 = vld [vmem:[%s206 + $0xd8c] sm:$0xf]
        %v1378 = vld [vmem:[%s206 + $0xd90] sm:$0xf]
        %v1379 = vld [vmem:[%s206 + $0xd94] sm:$0xf]
        %v1380 = vld [vmem:[%s206 + $0xd98] sm:$0xf]
        %v1381 = vld [vmem:[%s206 + $0xd9c] sm:$0xf]
        %v1382 = vld [vmem:[%s206 + $0xda0] sm:$0xf]
        %v1383 = vld [vmem:[%s206 + $0xda4] sm:$0xf]
        %v1384 = vld [vmem:[%s206 + $0xda8] sm:$0xf]
        %v1385 = vld [vmem:[%s206 + $0xdac] sm:$0xf]
        %v1386 = vld [vmem:[%s206 + $0xdb0] sm:$0xf]
        %v1387 = vld [vmem:[%s206 + $0xdb4] sm:$0xf]
        %v1388 = vld [vmem:[%s206 + $0xdb8] sm:$0xf]
        %v1389 = vld [vmem:[%s206 + $0xdbc] sm:$0xf]
        %v1390 = vld [vmem:[%s206 + $0xdc0] sm:$0xf]
        %v1391 = vld [vmem:[%s206 + $0xdc4] sm:$0xf]
        %v1392 = vld [vmem:[%s206 + $0xdc8] sm:$0xf]
        %v1393 = vld [vmem:[%s206 + $0xdcc] sm:$0xf]
        %v1394 = vld [vmem:[%s206 + $0xdd0] sm:$0xf]
        %v1395 = vld [vmem:[%s206 + $0xdd4] sm:$0xf]
        %v1396 = vld [vmem:[%s206 + $0xdd8] sm:$0xf]
        %v1397 = vld [vmem:[%s206 + $0xddc] sm:$0xf]
        %v1398 = vld [vmem:[%s206 + $0xde0] sm:$0xf]
        %v1399 = vld [vmem:[%s206 + $0xde4] sm:$0xf]
        %v1400 = vld [vmem:[%s206 + $0xde8] sm:$0xf]
        %v1401 = vld [vmem:[%s206 + $0xdec] sm:$0xf]
        %v1402 = vld [vmem:[%s206 + $0xdf0] sm:$0xf]
        %v1403 = vld [vmem:[%s206 + $0xdf4] sm:$0xf]
        %v1404 = vld [vmem:[%s206 + $0xdf8] sm:$0xf]
        %v1405 = vld [vmem:[%s206 + $0xdfc] sm:$0xf]
        %v1406 = vld [vmem:[%s206 + $0xe00] sm:$0xf]
        %v1407 = vld [vmem:[%s206 + $0xe04] sm:$0xf]
        %v1408 = vld [vmem:[%s206 + $0xe08] sm:$0xf]
        %v1409 = vld [vmem:[%s206 + $0xe0c] sm:$0xf]
        %v1410 = vld [vmem:[%s206 + $0xe10] sm:$0xf]
        %v1411 = vld [vmem:[%s206 + $0xe14] sm:$0xf]
        %v1412 = vld [vmem:[%s206 + $0xe18] sm:$0xf]
        %v1413 = vld [vmem:[%s206 + $0xe1c] sm:$0xf]
        %v1414 = vld [vmem:[%s206 + $0xe20] sm:$0xf]
        %v1415 = vld [vmem:[%s206 + $0xe24] sm:$0xf]
        %v1416 = vld [vmem:[%s206 + $0xe28] sm:$0xf]
        %v1417 = vld [vmem:[%s206 + $0xe2c] sm:$0xf]
        %v1418 = vld [vmem:[%s206 + $0xe30] sm:$0xf]
        %v1419 = vld [vmem:[%s206 + $0xe34] sm:$0xf]
        %v1420 = vld [vmem:[%s206 + $0xe38] sm:$0xf]
        %v1421 = vld [vmem:[%s206 + $0xe3c] sm:$0xf]
        %v1422 = vld [vmem:[%s206 + $0xe40] sm:$0xf]
        %v1423 = vld [vmem:[%s206 + $0xe44] sm:$0xf]
        %v1424 = vld [vmem:[%s206 + $0xe48] sm:$0xf]
        %v1425 = vld [vmem:[%s206 + $0xe4c] sm:$0xf]
        %v1426 = vld [vmem:[%s206 + $0xe50] sm:$0xf]
        %v1427 = vld [vmem:[%s206 + $0xe54] sm:$0xf]
        %v1428 = vld [vmem:[%s206 + $0xe58] sm:$0xf]
        %v1429 = vld [vmem:[%s206 + $0xe5c] sm:$0xf]
        %v1430 = vld [vmem:[%s206 + $0xe60] sm:$0xf]
        %v1431 = vld [vmem:[%s206 + $0xe64] sm:$0xf]
        %v1432 = vld [vmem:[%s206 + $0xe68] sm:$0xf]
        %v1433 = vld [vmem:[%s206 + $0xe6c] sm:$0xf]
        %v1434 = vld [vmem:[%s206 + $0xe70] sm:$0xf]
        %v1435 = vld [vmem:[%s206 + $0xe74] sm:$0xf]
        %v1436 = vld [vmem:[%s206 + $0xe78] sm:$0xf]
        %v1437 = vld [vmem:[%s206 + $0xe7c] sm:$0xf]
        %v1438 = vld [vmem:[%s206 + $0xe80] sm:$0xf]
        %v1439 = vld [vmem:[%s206 + $0xe84] sm:$0xf]
        %v1440 = vld [vmem:[%s206 + $0xe88] sm:$0xf]
        %v1441 = vld [vmem:[%s206 + $0xe8c] sm:$0xf]
        %v1442 = vld [vmem:[%s206 + $0xe90] sm:$0xf]
        %v1443 = vld [vmem:[%s206 + $0xe94] sm:$0xf]
        %v1444 = vld [vmem:[%s206 + $0xe98] sm:$0xf]
        %v1445 = vld [vmem:[%s206 + $0xe9c] sm:$0xf]
        %v1446 = vld [vmem:[%s206 + $0xea0] sm:$0xf]
        %v1447 = vld [vmem:[%s206 + $0xea4] sm:$0xf]
        %v1448 = vld [vmem:[%s206 + $0xea8] sm:$0xf]
        %v1449 = vld [vmem:[%s206 + $0xeac] sm:$0xf]
        %v1450 = vld [vmem:[%s206 + $0xeb0] sm:$0xf]
        %v1451 = vld [vmem:[%s206 + $0xeb4] sm:$0xf]
        %v1452 = vld [vmem:[%s206 + $0xeb8] sm:$0xf]
        %v1453 = vld [vmem:[%s206 + $0xebc] sm:$0xf]
        %v1454 = vld [vmem:[%s206 + $0xec0] sm:$0xf]
        %v1455 = vld [vmem:[%s206 + $0xec4] sm:$0xf]
        %v1456 = vld [vmem:[%s206 + $0xec8] sm:$0xf]
        %v1457 = vld [vmem:[%s206 + $0xecc] sm:$0xf]
        %v1458 = vld [vmem:[%s206 + $0xed0] sm:$0xf]
        %v1459 = vld [vmem:[%s206 + $0xed4] sm:$0xf]
        %v1460 = vld [vmem:[%s206 + $0xed8] sm:$0xf]
        %v1461 = vld [vmem:[%s206 + $0xedc] sm:$0xf]
        %v1462 = vld [vmem:[%s206 + $0xee0] sm:$0xf]
        %v1463 = vld [vmem:[%s206 + $0xee4] sm:$0xf]
        %v1464 = vld [vmem:[%s206 + $0xee8] sm:$0xf]
        %v1465 = vld [vmem:[%s206 + $0xeec] sm:$0xf]
        %v1466 = vld [vmem:[%s206 + $0xef0] sm:$0xf]
        %v1467 = vld [vmem:[%s206 + $0xef4] sm:$0xf]
        %v1468 = vld [vmem:[%s206 + $0xef8] sm:$0xf]
        %v1469 = vld [vmem:[%s206 + $0xefc] sm:$0xf]
        %v1470 = vld [vmem:[%s206 + $0xf00] sm:$0xf]
        %v1471 = vld [vmem:[%s206 + $0xf04] sm:$0xf]
        %v1472 = vld [vmem:[%s206 + $0xf08] sm:$0xf]
        %v1473 = vld [vmem:[%s206 + $0xf0c] sm:$0xf]
        %v1474 = vld [vmem:[%s206 + $0xf10] sm:$0xf]
        %v1475 = vld [vmem:[%s206 + $0xf14] sm:$0xf]
        %v1476 = vld [vmem:[%s206 + $0xf18] sm:$0xf]
        %v1477 = vld [vmem:[%s206 + $0xf1c] sm:$0xf]
        %v1478 = vld [vmem:[%s206 + $0xf20] sm:$0xf]
        %v1479 = vld [vmem:[%s206 + $0xf24] sm:$0xf]
        %v1480 = vld [vmem:[%s206 + $0xf28] sm:$0xf]
        %v1481 = vld [vmem:[%s206 + $0xf2c] sm:$0xf]
        %v1482 = vld [vmem:[%s206 + $0xf30] sm:$0xf]
        %v1483 = vld [vmem:[%s206 + $0xf34] sm:$0xf]
        %v1484 = vld [vmem:[%s206 + $0xf38] sm:$0xf]
        %v1485 = vld [vmem:[%s206 + $0xf3c] sm:$0xf]
        %v1486 = vld [vmem:[%s206 + $0xf40] sm:$0xf]
        %v1487 = vld [vmem:[%s206 + $0xf44] sm:$0xf]
        %v1488 = vld [vmem:[%s206 + $0xf48] sm:$0xf]
        %v1489 = vld [vmem:[%s206 + $0xf4c] sm:$0xf]
        %v1490 = vld [vmem:[%s206 + $0xf50] sm:$0xf]
        %v1491 = vld [vmem:[%s206 + $0xf54] sm:$0xf]
        %v1492 = vld [vmem:[%s206 + $0xf58] sm:$0xf]
        %v1493 = vld [vmem:[%s206 + $0xf5c] sm:$0xf]
        %v1494 = vld [vmem:[%s206 + $0xf60] sm:$0xf]
        %v1495 = vld [vmem:[%s206 + $0xf64] sm:$0xf]
        %v1496 = vld [vmem:[%s206 + $0xf68] sm:$0xf]
        %v1497 = vld [vmem:[%s206 + $0xf6c] sm:$0xf]
        %v1498 = vld [vmem:[%s206 + $0xf70] sm:$0xf]
        %v1499 = vld [vmem:[%s206 + $0xf74] sm:$0xf]
        %v1500 = vld [vmem:[%s206 + $0xf78] sm:$0xf]
        %v1501 = vld [vmem:[%s206 + $0xf7c] sm:$0xf]
        %v1502 = vld [vmem:[%s206 + $0xf80] sm:$0xf]
        %v1503 = vld [vmem:[%s206 + $0xf84] sm:$0xf]
        %v1504 = vld [vmem:[%s206 + $0xf88] sm:$0xf]
        %v1505 = vld [vmem:[%s206 + $0xf8c] sm:$0xf]
        %v1506 = vld [vmem:[%s206 + $0xf90] sm:$0xf]
        %v1507 = vld [vmem:[%s206 + $0xf94] sm:$0xf]
        %v1508 = vld [vmem:[%s206 + $0xf98] sm:$0xf]
        %v1509 = vld [vmem:[%s206 + $0xf9c] sm:$0xf]
        %v1510 = vld [vmem:[%s206 + $0xfa0] sm:$0xf]
        %v1511 = vld [vmem:[%s206 + $0xfa4] sm:$0xf]
        %v1512 = vld [vmem:[%s206 + $0xfa8] sm:$0xf]
        %v1513 = vld [vmem:[%s206 + $0xfac] sm:$0xf]
        %v1514 = vld [vmem:[%s206 + $0xfb0] sm:$0xf]
        %v1515 = vld [vmem:[%s206 + $0xfb4] sm:$0xf]
        %v1516 = vld [vmem:[%s206 + $0xfb8] sm:$0xf]
        %v1517 = vld [vmem:[%s206 + $0xfbc] sm:$0xf]
        %v1518 = vld [vmem:[%s206 + $0xfc0] sm:$0xf]
        %v1519 = vld [vmem:[%s206 + $0xfc4] sm:$0xf]
        %v1520 = vld [vmem:[%s206 + $0xfc8] sm:$0xf]
        %v1521 = vld [vmem:[%s206 + $0xfcc] sm:$0xf]
        %v1522 = vld [vmem:[%s206 + $0xfd0] sm:$0xf]
        %v1523 = vld [vmem:[%s206 + $0xfd4] sm:$0xf]
        %v1524 = vld [vmem:[%s206 + $0xfd8] sm:$0xf]
        %v1525 = vld [vmem:[%s206 + $0xfdc] sm:$0xf]
        %v1526 = vld [vmem:[%s206 + $0xfe0] sm:$0xf]
        %v1527 = vld [vmem:[%s206 + $0xfe4] sm:$0xf]
        %v1528 = vld [vmem:[%s206 + $0xfe8] sm:$0xf]
        %v1529 = vld [vmem:[%s206 + $0xfec] sm:$0xf]
        %v1530 = vld [vmem:[%s206 + $0xff0] sm:$0xf]
        %v1531 = vld [vmem:[%s206 + $0xff4] sm:$0xf]
        %v1532 = vld [vmem:[%s206 + $0xff8] sm:$0xf]
        %v1533 = vld [vmem:[%s206 + $0xffc] sm:$0xf]
        %v1534 = vld [vmem:[%s206 + $0x1000] sm:$0xf]
        %v1535 = vld [vmem:[%s206 + $0x1004] sm:$0xf]
        %v1536 = vld [vmem:[%s206 + $0x1008] sm:$0xf]
        %v1537 = vld [vmem:[%s206 + $0x100c] sm:$0xf]
        %v1538 = vld [vmem:[%s206 + $0x1010] sm:$0xf]
        %v1539 = vld [vmem:[%s206 + $0x1014] sm:$0xf]
        %v1540 = vld [vmem:[%s206 + $0x1018] sm:$0xf]
        %v1541 = vld [vmem:[%s206 + $0x101c] sm:$0xf]
        %v1542 = vld [vmem:[%s206 + $0x1020] sm:$0xf]
        %v1543 = vld [vmem:[%s206 + $0x1024] sm:$0xf]
        %v1544 = vld [vmem:[%s206 + $0x1028] sm:$0xf]
        %v1545 = vld [vmem:[%s206 + $0x102c] sm:$0xf]
        %v1546 = vld [vmem:[%s206 + $0x1030] sm:$0xf]
        %v1547 = vld [vmem:[%s206 + $0x1034] sm:$0xf]
        %v1548 = vld [vmem:[%s206 + $0x1038] sm:$0xf]
        %v1549 = vld [vmem:[%s206 + $0x103c] sm:$0xf]
        %v1550 = vld [vmem:[%s206 + $0x1040] sm:$0xf]
        %v1551 = vld [vmem:[%s206 + $0x1044] sm:$0xf]
        %v1552 = vld [vmem:[%s206 + $0x1048] sm:$0xf]
        %v1553 = vld [vmem:[%s206 + $0x104c] sm:$0xf]
        %v1554 = vld [vmem:[%s206 + $0x1050] sm:$0xf]
        %v1555 = vld [vmem:[%s206 + $0x1054] sm:$0xf]
        %v1556 = vld [vmem:[%s206 + $0x1058] sm:$0xf]
        %v1557 = vld [vmem:[%s206 + $0x105c] sm:$0xf]
        %v1558 = vld [vmem:[%s206 + $0x1060] sm:$0xf]
        %v1559 = vld [vmem:[%s206 + $0x1064] sm:$0xf]
        %v1560 = vld [vmem:[%s206 + $0x1068] sm:$0xf]
        %v1561 = vld [vmem:[%s206 + $0x106c] sm:$0xf]
        %v1562 = vld [vmem:[%s206 + $0x1070] sm:$0xf]
        %v1563 = vld [vmem:[%s206 + $0x1074] sm:$0xf]
        %v1564 = vld [vmem:[%s206 + $0x1078] sm:$0xf]
        %v1565 = vld [vmem:[%s206 + $0x107c] sm:$0xf]
        %v1566 = vld [vmem:[%s206 + $0x1080] sm:$0xf]
        %v1567 = vld [vmem:[%s206 + $0x1084] sm:$0xf]
        %v1568 = vld [vmem:[%s206 + $0x1088] sm:$0xf]
        %v1569 = vld [vmem:[%s206 + $0x108c] sm:$0xf]
        %v1570 = vld [vmem:[%s206 + $0x1090] sm:$0xf]
        %v1571 = vld [vmem:[%s206 + $0x1094] sm:$0xf]
        %v1572 = vld [vmem:[%s206 + $0x1098] sm:$0xf]
        %v1573 = vld [vmem:[%s206 + $0x109c] sm:$0xf]
        %v1574 = vld [vmem:[%s206 + $0x10a0] sm:$0xf]
        %v1575 = vld [vmem:[%s206 + $0x10a4] sm:$0xf]
        %v1576 = vld [vmem:[%s206 + $0x10a8] sm:$0xf]
        %v1577 = vld [vmem:[%s206 + $0x10ac] sm:$0xf]
        %v1578 = vld [vmem:[%s206 + $0x10b0] sm:$0xf]
        %v1579 = vld [vmem:[%s206 + $0x10b4] sm:$0xf]
        %v1580 = vld [vmem:[%s206 + $0x10b8] sm:$0xf]
        %v1581 = vld [vmem:[%s206 + $0x10bc] sm:$0xf]
        %v1582 = vld [vmem:[%s206 + $0x10c0] sm:$0xf]
        %v1583 = vld [vmem:[%s206 + $0x10c4] sm:$0xf]
        %v1584 = vld [vmem:[%s206 + $0x10c8] sm:$0xf]
        %v1585 = vld [vmem:[%s206 + $0x10cc] sm:$0xf]
        %v1586 = vld [vmem:[%s206 + $0x10d0] sm:$0xf]
        %v1587 = vld [vmem:[%s206 + $0x10d4] sm:$0xf]
        %v1588 = vld [vmem:[%s206 + $0x10d8] sm:$0xf]
        %v1589 = vld [vmem:[%s206 + $0x10dc] sm:$0xf]
        %v1590 = vld [vmem:[%s206 + $0x10e0] sm:$0xf]
        %v1591 = vld [vmem:[%s206 + $0x10e4] sm:$0xf]
        %v1592 = vld [vmem:[%s206 + $0x10e8] sm:$0xf]
        %v1593 = vld [vmem:[%s206 + $0x10ec] sm:$0xf]
        %v1594 = vld [vmem:[%s206 + $0x10f0] sm:$0xf]
        %v1595 = vld [vmem:[%s206 + $0x10f4] sm:$0xf]
        %v1596 = vld [vmem:[%s206 + $0x10f8] sm:$0xf]
        %v1597 = vld [vmem:[%s206 + $0x10fc] sm:$0xf]
        %v1598 = vld [vmem:[%s206 + $0x1100] sm:$0xf]
        %v1599 = vld [vmem:[%s206 + $0x1104] sm:$0xf]
        %v1600 = vld [vmem:[%s206 + $0x1108] sm:$0xf]
        %v1601 = vld [vmem:[%s206 + $0x110c] sm:$0xf]
        %v1602 = vld [vmem:[%s206 + $0x1110] sm:$0xf]
        %v1603 = vld [vmem:[%s206 + $0x1114] sm:$0xf]
        %v1604 = vld [vmem:[%s206 + $0x1118] sm:$0xf]
        %v1605 = vld [vmem:[%s206 + $0x111c] sm:$0xf]
        %v1606 = vld [vmem:[%s206 + $0x1120] sm:$0xf]
        %v1607 = vld [vmem:[%s206 + $0x1124] sm:$0xf]
        %v1608 = vld [vmem:[%s206 + $0x1128] sm:$0xf]
        %v1609 = vld [vmem:[%s206 + $0x112c] sm:$0xf]
        %v1610 = vld [vmem:[%s206 + $0x1130] sm:$0xf]
        %v1611 = vld [vmem:[%s206 + $0x1134] sm:$0xf]
        %v1612 = vld [vmem:[%s206 + $0x1138] sm:$0xf]
        %v1613 = vld [vmem:[%s206 + $0x113c] sm:$0xf]
        %v1614 = vld [vmem:[%s206 + $0x1140] sm:$0xf]
        %v1615 = vld [vmem:[%s206 + $0x1144] sm:$0xf]
        %v1616 = vld [vmem:[%s206 + $0x1148] sm:$0xf]
        %v1617 = vld [vmem:[%s206 + $0x114c] sm:$0xf]
        %v1618 = vld [vmem:[%s206 + $0x1150] sm:$0xf]
        %v1619 = vld [vmem:[%s206 + $0x1154] sm:$0xf]
        %v1620 = vld [vmem:[%s206 + $0x1158] sm:$0xf]
        %v1621 = vld [vmem:[%s206 + $0x115c] sm:$0xf]
        %v1622 = vld [vmem:[%s206 + $0x1160] sm:$0xf]
        %v1623 = vld [vmem:[%s206 + $0x1164] sm:$0xf]
        %v1624 = vld [vmem:[%s206 + $0x1168] sm:$0xf]
        %v1625 = vld [vmem:[%s206 + $0x116c] sm:$0xf]
        %v1626 = vld [vmem:[%s206 + $0x1170] sm:$0xf]
        %v1627 = vld [vmem:[%s206 + $0x1174] sm:$0xf]
        %v1628 = vld [vmem:[%s206 + $0x1178] sm:$0xf]
        %v1629 = vld [vmem:[%s206 + $0x117c] sm:$0xf]
        %v1630 = vld [vmem:[%s206 + $0x1180] sm:$0xf]
        %v1631 = vld [vmem:[%s206 + $0x1184] sm:$0xf]
        %v1632 = vld [vmem:[%s206 + $0x1188] sm:$0xf]
        %v1633 = vld [vmem:[%s206 + $0x118c] sm:$0xf]
        %v1634 = vld [vmem:[%s206 + $0x1190] sm:$0xf]
        %v1635 = vld [vmem:[%s206 + $0x1194] sm:$0xf]
        %v1636 = vld [vmem:[%s206 + $0x1198] sm:$0xf]
        %v1637 = vld [vmem:[%s206 + $0x119c] sm:$0xf]
        %v1638 = vld [vmem:[%s206 + $0x11a0] sm:$0xf]
        %v1639 = vld [vmem:[%s206 + $0x11a4] sm:$0xf]
        %v1640 = vld [vmem:[%s206 + $0x11a8] sm:$0xf]
        %v1641 = vld [vmem:[%s206 + $0x11ac] sm:$0xf]
        %v1642 = vld [vmem:[%s206 + $0x11b0] sm:$0xf]
        %v1643 = vld [vmem:[%s206 + $0x11b4] sm:$0xf]
        %v1644 = vld [vmem:[%s206 + $0x11b8] sm:$0xf]
        %v1645 = vld [vmem:[%s206 + $0x11bc] sm:$0xf]
        %v1646 = vld [vmem:[%s206 + $0x11c0] sm:$0xf]
        %v1647 = vld [vmem:[%s206 + $0x11c4] sm:$0xf]
        %v1648 = vld [vmem:[%s206 + $0x11c8] sm:$0xf]
        %v1649 = vld [vmem:[%s206 + $0x11cc] sm:$0xf]
        %v1650 = vld [vmem:[%s206 + $0x11d0] sm:$0xf]
        %v1651 = vld [vmem:[%s206 + $0x11d4] sm:$0xf]
        %v1652 = vld [vmem:[%s206 + $0x11d8] sm:$0xf]
        %v1653 = vld [vmem:[%s206 + $0x11dc] sm:$0xf]
        %v1654 = vld [vmem:[%s206 + $0x11e0] sm:$0xf]
        %v1655 = vld [vmem:[%s206 + $0x11e4] sm:$0xf]
        %v1656 = vld [vmem:[%s206 + $0x11e8] sm:$0xf]
        %v1657 = vld [vmem:[%s206 + $0x11ec] sm:$0xf]
        %v1658 = vld [vmem:[%s206 + $0x11f0] sm:$0xf]
        %v1659 = vld [vmem:[%s206 + $0x11f4] sm:$0xf]
        %v1660 = vld [vmem:[%s206 + $0x11f8] sm:$0xf]
        %v1661 = vld [vmem:[%s206 + $0x11fc] sm:$0xf]
        %v1662 = vld [vmem:[%s206 + $0x1200] sm:$0xf]
        %v1663 = vld [vmem:[%s206 + $0x1204] sm:$0xf]
        %v1664 = vld [vmem:[%s206 + $0x1208] sm:$0xf]
        %v1665 = vld [vmem:[%s206 + $0x120c] sm:$0xf]
        %v1666 = vld [vmem:[%s206 + $0x1210] sm:$0xf]
        %v1667 = vld [vmem:[%s206 + $0x1214] sm:$0xf]
        %v1668 = vld [vmem:[%s206 + $0x1218] sm:$0xf]
        %v1669 = vld [vmem:[%s206 + $0x121c] sm:$0xf]
        %v1670 = vld [vmem:[%s206 + $0x1220] sm:$0xf]
        %v1671 = vld [vmem:[%s206 + $0x1224] sm:$0xf]
        %v1672 = vld [vmem:[%s206 + $0x1228] sm:$0xf]
        %v1673 = vld [vmem:[%s206 + $0x122c] sm:$0xf]
        %v1674 = vld [vmem:[%s206 + $0x1230] sm:$0xf]
        %v1675 = vld [vmem:[%s206 + $0x1234] sm:$0xf]
        %v1676 = vld [vmem:[%s206 + $0x1238] sm:$0xf]
        %v1677 = vld [vmem:[%s206 + $0x123c] sm:$0xf]
        %v1678 = vld [vmem:[%s206 + $0x1240] sm:$0xf]
        %v1679 = vld [vmem:[%s206 + $0x1244] sm:$0xf]
        %v1680 = vld [vmem:[%s206 + $0x1248] sm:$0xf]
        %v1681 = vld [vmem:[%s206 + $0x124c] sm:$0xf]
        %v1682 = vld [vmem:[%s206 + $0x1250] sm:$0xf]
        %v1683 = vld [vmem:[%s206 + $0x1254] sm:$0xf]
        %v1684 = vld [vmem:[%s206 + $0x1258] sm:$0xf]
        %v1685 = vld [vmem:[%s206 + $0x125c] sm:$0xf]
        %v1686 = vld [vmem:[%s206 + $0x1260] sm:$0xf]
        %v1687 = vld [vmem:[%s206 + $0x1264] sm:$0xf]
        %v1688 = vld [vmem:[%s206 + $0x1268] sm:$0xf]
        %v1689 = vld [vmem:[%s206 + $0x126c] sm:$0xf]
        %v1690 = vld [vmem:[%s206 + $0x1270] sm:$0xf]
        %v1691 = vld [vmem:[%s206 + $0x1274] sm:$0xf]
        %v1692 = vld [vmem:[%s206 + $0x1278] sm:$0xf]
        %v1693 = vld [vmem:[%s206 + $0x127c] sm:$0xf]
        %v1694 = vld [vmem:[%s206 + $0x1280] sm:$0xf]
        %v1695 = vld [vmem:[%s206 + $0x1284] sm:$0xf]
        %v1696 = vld [vmem:[%s206 + $0x1288] sm:$0xf]
        %v1697 = vld [vmem:[%s206 + $0x128c] sm:$0xf]
        %v1698 = vld [vmem:[%s206 + $0x1290] sm:$0xf]
        %v1699 = vld [vmem:[%s206 + $0x1294] sm:$0xf]
        %v1700 = vld [vmem:[%s206 + $0x1298] sm:$0xf]
        %v1701 = vld [vmem:[%s206 + $0x129c] sm:$0xf]
        %v1702 = vld [vmem:[%s206 + $0x12a0] sm:$0xf]
        %v1703 = vld [vmem:[%s206 + $0x12a4] sm:$0xf]
        %v1704 = vld [vmem:[%s206 + $0x12a8] sm:$0xf]
        %v1705 = vld [vmem:[%s206 + $0x12ac] sm:$0xf]
        %v1706 = vld [vmem:[%s206 + $0x12b0] sm:$0xf]
        %v1707 = vld [vmem:[%s206 + $0x12b4] sm:$0xf]
        %v1708 = vld [vmem:[%s206 + $0x12b8] sm:$0xf]
        %v1709 = vld [vmem:[%s206 + $0x12bc] sm:$0xf]
        %v1710 = vld [vmem:[%s206 + $0x12c0] sm:$0xf]
        %v1711 = vld [vmem:[%s206 + $0x12c4] sm:$0xf]
        %v1712 = vld [vmem:[%s206 + $0x12c8] sm:$0xf]
        %v1713 = vld [vmem:[%s206 + $0x12cc] sm:$0xf]
        %v1714 = vld [vmem:[%s206 + $0x12d0] sm:$0xf]
        %v1715 = vld [vmem:[%s206 + $0x12d4] sm:$0xf]
        %v1716 = vld [vmem:[%s206 + $0x12d8] sm:$0xf]
        %v1717 = vld [vmem:[%s206 + $0x12dc] sm:$0xf]
        %v1718 = vld [vmem:[%s206 + $0x12e0] sm:$0xf]
        %v1719 = vld [vmem:[%s206 + $0x12e4] sm:$0xf]
        %v1720 = vld [vmem:[%s206 + $0x12e8] sm:$0xf]
        %v1721 = vld [vmem:[%s206 + $0x12ec] sm:$0xf]
        %v1722 = vld [vmem:[%s206 + $0x12f0] sm:$0xf]
        %v1723 = vld [vmem:[%s206 + $0x12f4] sm:$0xf]
        %v1724 = vld [vmem:[%s206 + $0x12f8] sm:$0xf]
        %v1725 = vld [vmem:[%s206 + $0x12fc] sm:$0xf]
        %v1726 = vld [vmem:[%s206 + $0x1300] sm:$0xf]
        %v1727 = vld [vmem:[%s206 + $0x1304] sm:$0xf]
        %v1728 = vld [vmem:[%s206 + $0x1308] sm:$0xf]
        %v1729 = vld [vmem:[%s206 + $0x130c] sm:$0xf]
        %v1730 = vld [vmem:[%s206 + $0x1310] sm:$0xf]
        %v1731 = vld [vmem:[%s206 + $0x1314] sm:$0xf]
        %v1732 = vld [vmem:[%s206 + $0x1318] sm:$0xf]
        %v1733 = vld [vmem:[%s206 + $0x131c] sm:$0xf]
        %v1734 = vld [vmem:[%s206 + $0x1320] sm:$0xf]
        %v1735 = vld [vmem:[%s206 + $0x1324] sm:$0xf]
        %v1736 = vld [vmem:[%s206 + $0x1328] sm:$0xf]
        %v1737 = vld [vmem:[%s206 + $0x132c] sm:$0xf]
        %v1738 = vld [vmem:[%s206 + $0x1330] sm:$0xf]
        %v1739 = vld [vmem:[%s206 + $0x1334] sm:$0xf]
        %v1740 = vld [vmem:[%s206 + $0x1338] sm:$0xf]
        %v1741 = vld [vmem:[%s206 + $0x133c] sm:$0xf]
        %v1742 = vld [vmem:[%s206 + $0x1340] sm:$0xf]
        %v1743 = vld [vmem:[%s206 + $0x1344] sm:$0xf]
        %v1744 = vld [vmem:[%s206 + $0x1348] sm:$0xf]
        %v1745 = vld [vmem:[%s206 + $0x134c] sm:$0xf]
        %v1746 = vld [vmem:[%s206 + $0x1350] sm:$0xf]
        %v1747 = vld [vmem:[%s206 + $0x1354] sm:$0xf]
        %v1748 = vld [vmem:[%s206 + $0x1358] sm:$0xf]
        %v1749 = vld [vmem:[%s206 + $0x135c] sm:$0xf]
        %v1750 = vld [vmem:[%s206 + $0x1360] sm:$0xf]
        %v1751 = vld [vmem:[%s206 + $0x1364] sm:$0xf]
        %v1752 = vld [vmem:[%s206 + $0x1368] sm:$0xf]
        %v1753 = vld [vmem:[%s206 + $0x136c] sm:$0xf]
        %v1754 = vld [vmem:[%s206 + $0x1370] sm:$0xf]
        %v1755 = vld [vmem:[%s206 + $0x1374] sm:$0xf]
        %v1756 = vld [vmem:[%s206 + $0x1378] sm:$0xf]
        %v1757 = vld [vmem:[%s206 + $0x137c] sm:$0xf]
        %v1758 = vld [vmem:[%s206 + $0x1380] sm:$0xf]
        %v1759 = vld [vmem:[%s206 + $0x1384] sm:$0xf]
        %v1760 = vld [vmem:[%s206 + $0x1388] sm:$0xf]
        %v1761 = vld [vmem:[%s206 + $0x138c] sm:$0xf]
        %v1762 = vld [vmem:[%s206 + $0x1390] sm:$0xf]
        %v1763 = vld [vmem:[%s206 + $0x1394] sm:$0xf]
        %v1764 = vld [vmem:[%s206 + $0x1398] sm:$0xf]
        %v1765 = vld [vmem:[%s206 + $0x139c] sm:$0xf]
        %v1766 = vld [vmem:[%s206 + $0x13a0] sm:$0xf]
        %v1767 = vld [vmem:[%s206 + $0x13a4] sm:$0xf]
        %v1768 = vld [vmem:[%s206 + $0x13a8] sm:$0xf]
        %v1769 = vld [vmem:[%s206 + $0x13ac] sm:$0xf]
        %v1770 = vld [vmem:[%s206 + $0x13b0] sm:$0xf]
        %v1771 = vld [vmem:[%s206 + $0x13b4] sm:$0xf]
        %v1772 = vld [vmem:[%s206 + $0x13b8] sm:$0xf]
        %v1773 = vld [vmem:[%s206 + $0x13bc] sm:$0xf]
        %v1774 = vld [vmem:[%s206 + $0x13c0] sm:$0xf]
        %v1775 = vld [vmem:[%s206 + $0x13c4] sm:$0xf]
        %v1776 = vld [vmem:[%s206 + $0x13c8] sm:$0xf]
        %v1777 = vld [vmem:[%s206 + $0x13cc] sm:$0xf]
        %v1778 = vld [vmem:[%s206 + $0x13d0] sm:$0xf]
        %v1779 = vld [vmem:[%s206 + $0x13d4] sm:$0xf]
        %v1780 = vld [vmem:[%s206 + $0x13d8] sm:$0xf]
        %v1781 = vld [vmem:[%s206 + $0x13dc] sm:$0xf]
        %v1782 = vld [vmem:[%s206 + $0x13e0] sm:$0xf]
        %v1783 = vld [vmem:[%s206 + $0x13e4] sm:$0xf]
        %v1784 = vld [vmem:[%s206 + $0x13e8] sm:$0xf]
        %v1785 = vld [vmem:[%s206 + $0x13ec] sm:$0xf]
        %v1786 = vld [vmem:[%s206 + $0x13f0] sm:$0xf]
        %v1787 = vld [vmem:[%s206 + $0x13f4] sm:$0xf]
        %v1788 = vld [vmem:[%s206 + $0x13f8] sm:$0xf]
        %v1789 = vld [vmem:[%s206 + $0x13fc] sm:$0xf]
        %v1790 = vld [vmem:[%s206 + $0x1400] sm:$0xf]
        %v1791 = vld [vmem:[%s206 + $0x1404] sm:$0xf]
        %v1792 = vld [vmem:[%s206 + $0x1408] sm:$0xf]
        %v1793 = vld [vmem:[%s206 + $0x140c] sm:$0xf]
        %v1794 = vld [vmem:[%s206 + $0x1410] sm:$0xf]
        %v1795 = vld [vmem:[%s206 + $0x1414] sm:$0xf]
        %v1796 = vld [vmem:[%s206 + $0x1418] sm:$0xf]
        %v1797 = vld [vmem:[%s206 + $0x141c] sm:$0xf]
        %v1798 = vld [vmem:[%s206 + $0x1420] sm:$0xf]
        %v1799 = vld [vmem:[%s206 + $0x1424] sm:$0xf]
        %v1800 = vld [vmem:[%s206 + $0x1428] sm:$0xf]
        %v1801 = vld [vmem:[%s206 + $0x142c] sm:$0xf]
        %v1802 = vld [vmem:[%s206 + $0x1430] sm:$0xf]
        %v1803 = vld [vmem:[%s206 + $0x1434] sm:$0xf]
        %v1804 = vld [vmem:[%s206 + $0x1438] sm:$0xf]
        %v1805 = vld [vmem:[%s206 + $0x143c] sm:$0xf]
        %v1806 = vld [vmem:[%s206 + $0x1440] sm:$0xf]
        %v1807 = vld [vmem:[%s206 + $0x1444] sm:$0xf]
        %v1808 = vld [vmem:[%s206 + $0x1448] sm:$0xf]
        %v1809 = vld [vmem:[%s206 + $0x144c] sm:$0xf]
        %v1810 = vld [vmem:[%s206 + $0x1450] sm:$0xf]
        %v1811 = vld [vmem:[%s206 + $0x1454] sm:$0xf]
        %v1812 = vld [vmem:[%s206 + $0x1458] sm:$0xf]
        %v1813 = vld [vmem:[%s206 + $0x145c] sm:$0xf]
        %v1814 = vld [vmem:[%s206 + $0x1460] sm:$0xf]
        %v1815 = vld [vmem:[%s206 + $0x1464] sm:$0xf]
        %v1816 = vld [vmem:[%s206 + $0x1468] sm:$0xf]
        %v1817 = vld [vmem:[%s206 + $0x146c] sm:$0xf]
        %v1818 = vld [vmem:[%s206 + $0x1470] sm:$0xf]
        %v1819 = vld [vmem:[%s206 + $0x1474] sm:$0xf]
        %v1820 = vld [vmem:[%s206 + $0x1478] sm:$0xf]
        %v1821 = vld [vmem:[%s206 + $0x147c] sm:$0xf]
        %v1822 = vld [vmem:[%s206 + $0x1480] sm:$0xf]
        %v1823 = vld [vmem:[%s206 + $0x1484] sm:$0xf]
        %v1824 = vld [vmem:[%s206 + $0x1488] sm:$0xf]
        %v1825 = vld [vmem:[%s206 + $0x148c] sm:$0xf]
        %v1826 = vld [vmem:[%s206 + $0x1490] sm:$0xf]
        %v1827 = vld [vmem:[%s206 + $0x1494] sm:$0xf]
        %v1828 = vld [vmem:[%s206 + $0x1498] sm:$0xf]
        %v1829 = vld [vmem:[%s206 + $0x149c] sm:$0xf]
        %v1830 = vld [vmem:[%s206 + $0x14a0] sm:$0xf]
        %v1831 = vld [vmem:[%s206 + $0x14a4] sm:$0xf]
        %v1832 = vld [vmem:[%s206 + $0x14a8] sm:$0xf]
        %v1833 = vld [vmem:[%s206 + $0x14ac] sm:$0xf]
        %v1834 = vld [vmem:[%s206 + $0x14b0] sm:$0xf]
        %v1835 = vld [vmem:[%s206 + $0x14b4] sm:$0xf]
        %v1836 = vld [vmem:[%s206 + $0x14b8] sm:$0xf]
        %v1837 = vld [vmem:[%s206 + $0x14bc] sm:$0xf]
        %v1838 = vld [vmem:[%s206 + $0x14c0] sm:$0xf]
        %v1839 = vld [vmem:[%s206 + $0x14c4] sm:$0xf]
        %v1840 = vld [vmem:[%s206 + $0x14c8] sm:$0xf]
        %v1841 = vld [vmem:[%s206 + $0x14cc] sm:$0xf]
        %v1842 = vld [vmem:[%s206 + $0x14d0] sm:$0xf]
        %v1843 = vld [vmem:[%s206 + $0x14d4] sm:$0xf]
        %v1844 = vld [vmem:[%s206 + $0x14d8] sm:$0xf]
        %v1845 = vld [vmem:[%s206 + $0x14dc] sm:$0xf]
        %v1846 = vld [vmem:[%s206 + $0x14e0] sm:$0xf]
        %v1847 = vld [vmem:[%s206 + $0x14e4] sm:$0xf]
        %v1848 = vld [vmem:[%s206 + $0x14e8] sm:$0xf]
        %v1849 = vld [vmem:[%s206 + $0x14ec] sm:$0xf]
        %v1850 = vld [vmem:[%s206 + $0x14f0] sm:$0xf]
        %v1851 = vld [vmem:[%s206 + $0x14f4] sm:$0xf]
        %v1852 = vld [vmem:[%s206 + $0x14f8] sm:$0xf]
        %v1853 = vld [vmem:[%s206 + $0x14fc] sm:$0xf]
        %v1854 = vld [vmem:[%s206 + $0x1500] sm:$0xf]
        %v1855 = vld [vmem:[%s206 + $0x1504] sm:$0xf]
        %v1856 = vld [vmem:[%s206 + $0x1508] sm:$0xf]
        %v1857 = vld [vmem:[%s206 + $0x150c] sm:$0xf]
        %v1858 = vld [vmem:[%s206 + $0x1510] sm:$0xf]
        %v1859 = vld [vmem:[%s206 + $0x1514] sm:$0xf]
        %v1860 = vld [vmem:[%s206 + $0x1518] sm:$0xf]
        %v1861 = vld [vmem:[%s206 + $0x151c] sm:$0xf]
        %v1862 = vld [vmem:[%s206 + $0x1520] sm:$0xf]
        %v1863 = vld [vmem:[%s206 + $0x1524] sm:$0xf]
        %v1864 = vld [vmem:[%s206 + $0x1528] sm:$0xf]
        %v1865 = vld [vmem:[%s206 + $0x152c] sm:$0xf]
        %v1866 = vld [vmem:[%s206 + $0x1530] sm:$0xf]
        %v1867 = vld [vmem:[%s206 + $0x1534] sm:$0xf]
        %v1868 = vld [vmem:[%s206 + $0x1538] sm:$0xf]
        %v1869 = vld [vmem:[%s206 + $0x153c] sm:$0xf]
        %v1870 = vld [vmem:[%s206 + $0x1540] sm:$0xf]
        %v1871 = vld [vmem:[%s206 + $0x1544] sm:$0xf]
        %v1872 = vld [vmem:[%s206 + $0x1548] sm:$0xf]
        %v1873 = vld [vmem:[%s206 + $0x154c] sm:$0xf]
        %v1874 = vld [vmem:[%s206 + $0x1550] sm:$0xf]
        %v1875 = vld [vmem:[%s206 + $0x1554] sm:$0xf]
        %v1876 = vld [vmem:[%s206 + $0x1558] sm:$0xf]
        %v1877 = vld [vmem:[%s206 + $0x155c] sm:$0xf]
        %v1878 = vld [vmem:[%s206 + $0x1560] sm:$0xf]
        %v1879 = vld [vmem:[%s206 + $0x1564] sm:$0xf]
        %v1880 = vld [vmem:[%s206 + $0x1568] sm:$0xf]
        %v1881 = vld [vmem:[%s206 + $0x156c] sm:$0xf]
        %v1882 = vld [vmem:[%s206 + $0x1570] sm:$0xf]
        %v1883 = vld [vmem:[%s206 + $0x1574] sm:$0xf]
        %v1884 = vld [vmem:[%s206 + $0x1578] sm:$0xf]
        %v1885 = vld [vmem:[%s206 + $0x157c] sm:$0xf]
        %v1886 = vld [vmem:[%s206 + $0x1580] sm:$0xf]
        %v1887 = vld [vmem:[%s206 + $0x1584] sm:$0xf]
        %v1888 = vld [vmem:[%s206 + $0x1588] sm:$0xf]
        %v1889 = vld [vmem:[%s206 + $0x158c] sm:$0xf]
        %v1890 = vld [vmem:[%s206 + $0x1590] sm:$0xf]
        %v1891 = vld [vmem:[%s206 + $0x1594] sm:$0xf]
        %v1892 = vld [vmem:[%s206 + $0x1598] sm:$0xf]
        %v1893 = vld [vmem:[%s206 + $0x159c] sm:$0xf]
        %v1894 = vld [vmem:[%s206 + $0x15a0] sm:$0xf]
        %v1895 = vld [vmem:[%s206 + $0x15a4] sm:$0xf]
        %v1896 = vld [vmem:[%s206 + $0x15a8] sm:$0xf]
        %v1897 = vld [vmem:[%s206 + $0x15ac] sm:$0xf]
        %v1898 = vld [vmem:[%s206 + $0x15b0] sm:$0xf]
        %v1899 = vld [vmem:[%s206 + $0x15b4] sm:$0xf]
        %v1900 = vld [vmem:[%s206 + $0x15b8] sm:$0xf]
        %v1901 = vld [vmem:[%s206 + $0x15bc] sm:$0xf]
        %v1902 = vld [vmem:[%s206 + $0x15c0] sm:$0xf]
        %v1903 = vld [vmem:[%s206 + $0x15c4] sm:$0xf]
        %v1904 = vld [vmem:[%s206 + $0x15c8] sm:$0xf]
        %v1905 = vld [vmem:[%s206 + $0x15cc] sm:$0xf]
        %v1906 = vld [vmem:[%s206 + $0x15d0] sm:$0xf]
        %v1907 = vld [vmem:[%s206 + $0x15d4] sm:$0xf]
        %v1908 = vld [vmem:[%s206 + $0x15d8] sm:$0xf]
        %v1909 = vld [vmem:[%s206 + $0x15dc] sm:$0xf]
        %v1910 = vld [vmem:[%s206 + $0x15e0] sm:$0xf]
        %v1911 = vld [vmem:[%s206 + $0x15e4] sm:$0xf]
        %v1912 = vld [vmem:[%s206 + $0x15e8] sm:$0xf]
        %v1913 = vld [vmem:[%s206 + $0x15ec] sm:$0xf]
        %v1914 = vld [vmem:[%s206 + $0x15f0] sm:$0xf]
        %v1915 = vld [vmem:[%s206 + $0x15f4] sm:$0xf]
        %v1916 = vld [vmem:[%s206 + $0x15f8] sm:$0xf]
        %v1917 = vld [vmem:[%s206 + $0x15fc] sm:$0xf]
        %v1918 = vld [vmem:[%s206 + $0x1600] sm:$0xf]
        %v1919 = vld [vmem:[%s206 + $0x1604] sm:$0xf]
        %v1920 = vld [vmem:[%s206 + $0x1608] sm:$0xf]
        %v1921 = vld [vmem:[%s206 + $0x160c] sm:$0xf]
        %v1922 = vld [vmem:[%s206 + $0x1610] sm:$0xf]
        %v1923 = vld [vmem:[%s206 + $0x1614] sm:$0xf]
        %v1924 = vld [vmem:[%s206 + $0x1618] sm:$0xf]
        %v1925 = vld [vmem:[%s206 + $0x161c] sm:$0xf]
        %v1926 = vld [vmem:[%s206 + $0x1620] sm:$0xf]
        %v1927 = vld [vmem:[%s206 + $0x1624] sm:$0xf]
        %v1928 = vld [vmem:[%s206 + $0x1628] sm:$0xf]
        %v1929 = vld [vmem:[%s206 + $0x162c] sm:$0xf]
        %v1930 = vld [vmem:[%s206 + $0x1630] sm:$0xf]
        %v1931 = vld [vmem:[%s206 + $0x1634] sm:$0xf]
        %v1932 = vld [vmem:[%s206 + $0x1638] sm:$0xf]
        %v1933 = vld [vmem:[%s206 + $0x163c] sm:$0xf]
        %v1934 = vld [vmem:[%s206 + $0x1640] sm:$0xf]
        %v1935 = vld [vmem:[%s206 + $0x1644] sm:$0xf]
        %v1936 = vld [vmem:[%s206 + $0x1648] sm:$0xf]
        %v1937 = vld [vmem:[%s206 + $0x164c] sm:$0xf]
        %v1938 = vld [vmem:[%s206 + $0x1650] sm:$0xf]
        %v1939 = vld [vmem:[%s206 + $0x1654] sm:$0xf]
        %v1940 = vld [vmem:[%s206 + $0x1658] sm:$0xf]
        %v1941 = vld [vmem:[%s206 + $0x165c] sm:$0xf]
        %v1942 = vld [vmem:[%s206 + $0x1660] sm:$0xf]
        %v1943 = vld [vmem:[%s206 + $0x1664] sm:$0xf]
        %v1944 = vld [vmem:[%s206 + $0x1668] sm:$0xf]
        %v1945 = vld [vmem:[%s206 + $0x166c] sm:$0xf]
        %v1946 = vld [vmem:[%s206 + $0x1670] sm:$0xf]
        %v1947 = vld [vmem:[%s206 + $0x1674] sm:$0xf]
        %v1948 = vld [vmem:[%s206 + $0x1678] sm:$0xf]
        %v1949 = vld [vmem:[%s206 + $0x167c] sm:$0xf]
        %v1950 = vld [vmem:[%s206 + $0x1680] sm:$0xf]
        %v1951 = vld [vmem:[%s206 + $0x1684] sm:$0xf]
        %v1952 = vld [vmem:[%s206 + $0x1688] sm:$0xf]
        %v1953 = vld [vmem:[%s206 + $0x168c] sm:$0xf]
        %v1954 = vld [vmem:[%s206 + $0x1690] sm:$0xf]
        %v1955 = vld [vmem:[%s206 + $0x1694] sm:$0xf]
        %v1956 = vld [vmem:[%s206 + $0x1698] sm:$0xf]
        %v1957 = vld [vmem:[%s206 + $0x169c] sm:$0xf]
        %v1958 = vld [vmem:[%s206 + $0x16a0] sm:$0xf]
        %v1959 = vld [vmem:[%s206 + $0x16a4] sm:$0xf]
        %v1960 = vld [vmem:[%s206 + $0x16a8] sm:$0xf]
        %v1961 = vld [vmem:[%s206 + $0x16ac] sm:$0xf]
        %v1962 = vld [vmem:[%s206 + $0x16b0] sm:$0xf]
        %v1963 = vld [vmem:[%s206 + $0x16b4] sm:$0xf]
        %v1964 = vld [vmem:[%s206 + $0x16b8] sm:$0xf]
        %v1965 = vld [vmem:[%s206 + $0x16bc] sm:$0xf]
        %v1966 = vld [vmem:[%s206 + $0x16c0] sm:$0xf]
        %v1967 = vld [vmem:[%s206 + $0x16c4] sm:$0xf]
        %v1968 = vld [vmem:[%s206 + $0x16c8] sm:$0xf]
        %v1969 = vld [vmem:[%s206 + $0x16cc] sm:$0xf]
        %v1970 = vld [vmem:[%s206 + $0x16d0] sm:$0xf]
        %v1971 = vld [vmem:[%s206 + $0x16d4] sm:$0xf]
        %v1972 = vld [vmem:[%s206 + $0x16d8] sm:$0xf]
        %v1973 = vld [vmem:[%s206 + $0x16dc] sm:$0xf]
        %v1974 = vld [vmem:[%s206 + $0x16e0] sm:$0xf]
        %v1975 = vld [vmem:[%s206 + $0x16e4] sm:$0xf]
        %v1976 = vld [vmem:[%s206 + $0x16e8] sm:$0xf]
        %v1977 = vld [vmem:[%s206 + $0x16ec] sm:$0xf]
        %v1978 = vld [vmem:[%s206 + $0x16f0] sm:$0xf]
        %v1979 = vld [vmem:[%s206 + $0x16f4] sm:$0xf]
        %v1980 = vld [vmem:[%s206 + $0x16f8] sm:$0xf]
        %v1981 = vld [vmem:[%s206 + $0x16fc] sm:$0xf]
        %v1982 = vld [vmem:[%s206 + $0x1700] sm:$0xf]
        %v1983 = vld [vmem:[%s206 + $0x1704] sm:$0xf]
        %v1984 = vld [vmem:[%s206 + $0x1708] sm:$0xf]
        %v1985 = vld [vmem:[%s206 + $0x170c] sm:$0xf]
        %v1986 = vld [vmem:[%s206 + $0x1710] sm:$0xf]
        %v1987 = vld [vmem:[%s206 + $0x1714] sm:$0xf]
        %v1988 = vld [vmem:[%s206 + $0x1718] sm:$0xf]
        %v1989 = vld [vmem:[%s206 + $0x171c] sm:$0xf]
        %v1990 = vld [vmem:[%s206 + $0x1720] sm:$0xf]
        %v1991 = vld [vmem:[%s206 + $0x1724] sm:$0xf]
        %v1992 = vld [vmem:[%s206 + $0x1728] sm:$0xf]
        %v1993 = vld [vmem:[%s206 + $0x172c] sm:$0xf]
        %v1994 = vld [vmem:[%s206 + $0x1730] sm:$0xf]
        %v1995 = vld [vmem:[%s206 + $0x1734] sm:$0xf]
        %v1996 = vld [vmem:[%s206 + $0x1738] sm:$0xf]
        %v1997 = vld [vmem:[%s206 + $0x173c] sm:$0xf]
        %v1998 = vld [vmem:[%s206 + $0x1740] sm:$0xf]
        %v1999 = vld [vmem:[%s206 + $0x1744] sm:$0xf]
        %v2000 = vld [vmem:[%s206 + $0x1748] sm:$0xf]
        %v2001 = vld [vmem:[%s206 + $0x174c] sm:$0xf]
        %v2002 = vld [vmem:[%s206 + $0x1750] sm:$0xf]
        %v2003 = vld [vmem:[%s206 + $0x1754] sm:$0xf]
        %v2004 = vld [vmem:[%s206 + $0x1758] sm:$0xf]
        %v2005 = vld [vmem:[%s206 + $0x175c] sm:$0xf]
        %v2006 = vld [vmem:[%s206 + $0x1760] sm:$0xf]
        %v2007 = vld [vmem:[%s206 + $0x1764] sm:$0xf]
        %v2008 = vld [vmem:[%s206 + $0x1768] sm:$0xf]
        %v2009 = vld [vmem:[%s206 + $0x176c] sm:$0xf]
        %v2010 = vld [vmem:[%s206 + $0x1770] sm:$0xf]
        %v2011 = vld [vmem:[%s206 + $0x1774] sm:$0xf]
        %v2012 = vld [vmem:[%s206 + $0x1778] sm:$0xf]
        %v2013 = vld [vmem:[%s206 + $0x177c] sm:$0xf]
        %v2014 = vld [vmem:[%s206 + $0x1780] sm:$0xf]
        %v2015 = vld [vmem:[%s206 + $0x1784] sm:$0xf]
        %v2016 = vld [vmem:[%s206 + $0x1788] sm:$0xf]
        %v2017 = vld [vmem:[%s206 + $0x178c] sm:$0xf]
        %v2018 = vld [vmem:[%s206 + $0x1790] sm:$0xf]
        %v2019 = vld [vmem:[%s206 + $0x1794] sm:$0xf]
        %v2020 = vld [vmem:[%s206 + $0x1798] sm:$0xf]
        %v2021 = vld [vmem:[%s206 + $0x179c] sm:$0xf]
        %v2022 = vld [vmem:[%s206 + $0x17a0] sm:$0xf]
        %v2023 = vld [vmem:[%s206 + $0x17a4] sm:$0xf]
        %v2024 = vld [vmem:[%s206 + $0x17a8] sm:$0xf]
        %v2025 = vld [vmem:[%s206 + $0x17ac] sm:$0xf]
        %v2026 = vld [vmem:[%s206 + $0x17b0] sm:$0xf]
        %v2027 = vld [vmem:[%s206 + $0x17b4] sm:$0xf]
        %v2028 = vld [vmem:[%s206 + $0x17b8] sm:$0xf]
        %v2029 = vld [vmem:[%s206 + $0x17bc] sm:$0xf]
        %v2030 = vld [vmem:[%s206 + $0x17c0] sm:$0xf]
        %v2031 = vld [vmem:[%s206 + $0x17c4] sm:$0xf]
        %v2032 = vld [vmem:[%s206 + $0x17c8] sm:$0xf]
        %v2033 = vld [vmem:[%s206 + $0x17cc] sm:$0xf]
        %v2034 = vld [vmem:[%s206 + $0x17d0] sm:$0xf]
        %v2035 = vld [vmem:[%s206 + $0x17d4] sm:$0xf]
        %v2036 = vld [vmem:[%s206 + $0x17d8] sm:$0xf]
        %v2037 = vld [vmem:[%s206 + $0x17dc] sm:$0xf]
        %v2038 = vld [vmem:[%s206 + $0x17e0] sm:$0xf]
        %v2039 = vld [vmem:[%s206 + $0x17e4] sm:$0xf]
        %v2040 = vld [vmem:[%s206 + $0x17e8] sm:$0xf]
        %v2041 = vld [vmem:[%s206 + $0x17ec] sm:$0xf]
        %v2042 = vld [vmem:[%s206 + $0x17f0] sm:$0xf]
        %v2043 = vld [vmem:[%s206 + $0x17f4] sm:$0xf]
        %v2044 = vld [vmem:[%s206 + $0x17f8] sm:$0xf]
        %v2045 = vld [vmem:[%s206 + $0x17fc] sm:$0xf]
        %v2046 = vld [vmem:[%s206 + $0x1800] sm:$0xf]
        %v2047 = vld [vmem:[%s206 + $0x1804] sm:$0xf]
        %v2048 = vld [vmem:[%s206 + $0x1808] sm:$0xf]
        %v2049 = vld [vmem:[%s206 + $0x180c] sm:$0xf]
        %v2050 = vld [vmem:[%s206 + $0x1810] sm:$0xf]
        %v2051 = vld [vmem:[%s206 + $0x1814] sm:$0xf]
        %v2052 = vld [vmem:[%s206 + $0x1818] sm:$0xf]
        %v2053 = vld [vmem:[%s206 + $0x181c] sm:$0xf]
        %v2054 = vld [vmem:[%s206 + $0x1820] sm:$0xf]
        %v2055 = vld [vmem:[%s206 + $0x1824] sm:$0xf]
        %v2056 = vld [vmem:[%s206 + $0x1828] sm:$0xf]
        %v2057 = vld [vmem:[%s206 + $0x182c] sm:$0xf]
        %v2058 = vld [vmem:[%s206 + $0x1830] sm:$0xf]
        %v2059 = vld [vmem:[%s206 + $0x1834] sm:$0xf]
        %v2060 = vld [vmem:[%s206 + $0x1838] sm:$0xf]
        %v2061 = vld [vmem:[%s206 + $0x183c] sm:$0xf]
        %v2062 = vld [vmem:[%s206 + $0x1840] sm:$0xf]
        %v2063 = vld [vmem:[%s206 + $0x1844] sm:$0xf]
        %v2064 = vld [vmem:[%s206 + $0x1848] sm:$0xf]
        %v2065 = vld [vmem:[%s206 + $0x184c] sm:$0xf]
        %v2066 = vld [vmem:[%s206 + $0x1850] sm:$0xf]
        %v2067 = vld [vmem:[%s206 + $0x1854] sm:$0xf]
        %v2068 = vld [vmem:[%s206 + $0x1858] sm:$0xf]
        %v2069 = vld [vmem:[%s206 + $0x185c] sm:$0xf]
        %v2070 = vld [vmem:[%s206 + $0x1860] sm:$0xf]
        %v2071 = vld [vmem:[%s206 + $0x1864] sm:$0xf]
        %v2072 = vld [vmem:[%s206 + $0x1868] sm:$0xf]
        %v2073 = vld [vmem:[%s206 + $0x186c] sm:$0xf]
        %v2074 = vld [vmem:[%s206 + $0x1870] sm:$0xf]
        %v2075 = vld [vmem:[%s206 + $0x1874] sm:$0xf]
        %v2076 = vld [vmem:[%s206 + $0x1878] sm:$0xf]
        %v2077 = vld [vmem:[%s206 + $0x187c] sm:$0xf]
        %v3646 = vunpack.c.l.b16 %v510
        %v3647 = vunpack.c.l.b16 %v511
        %v3648 = vunpack.c.l.b16 %v512
        %v3649 = vunpack.c.l.b16 %v513
        %v3650 = vunpack.c.l.b16 %v514
        %v3651 = vunpack.c.l.b16 %v515
        %v3652 = vunpack.c.l.b16 %v516
        %v3653 = vunpack.c.l.b16 %v517
        %v3654 = vunpack.c.l.b16 %v518
        %v3655 = vunpack.c.l.b16 %v519
        %v3656 = vunpack.c.l.b16 %v520
        %v3657 = vunpack.c.l.b16 %v521
        %v3658 = vunpack.c.l.b16 %v522
        %v3659 = vunpack.c.l.b16 %v523
        %v3660 = vunpack.c.l.b16 %v524
        %v3661 = vunpack.c.l.b16 %v525
        %v3662 = vunpack.c.l.b16 %v526
        %v3663 = vunpack.c.l.b16 %v527
        %v3664 = vunpack.c.l.b16 %v528
        %v3665 = vunpack.c.l.b16 %v529
        %v3666 = vunpack.c.l.b16 %v530
        %v3667 = vunpack.c.l.b16 %v531
        %v3668 = vunpack.c.l.b16 %v532
        %v3669 = vunpack.c.l.b16 %v533
        %v3670 = vunpack.c.l.b16 %v534
        %v3671 = vunpack.c.l.b16 %v535
        %v3672 = vunpack.c.l.b16 %v536
        %v3673 = vunpack.c.l.b16 %v537
        %v3674 = vunpack.c.l.b16 %v538
        %v3675 = vunpack.c.l.b16 %v539
        %v3676 = vunpack.c.l.b16 %v540
        %v3677 = vunpack.c.l.b16 %v541
        %v3678 = vunpack.c.l.b16 %v542
        %v3679 = vunpack.c.l.b16 %v543
        %v3680 = vunpack.c.l.b16 %v544
        %v3681 = vunpack.c.l.b16 %v545
        %v3682 = vunpack.c.l.b16 %v546
        %v3683 = vunpack.c.l.b16 %v547
        %v3684 = vunpack.c.l.b16 %v548
        %v3685 = vunpack.c.l.b16 %v549
        %v3686 = vunpack.c.l.b16 %v550
        %v3687 = vunpack.c.l.b16 %v551
        %v3688 = vunpack.c.l.b16 %v552
        %v3689 = vunpack.c.l.b16 %v553
        %v3690 = vunpack.c.l.b16 %v554
        %v3691 = vunpack.c.l.b16 %v555
        %v3692 = vunpack.c.l.b16 %v556
        %v3693 = vunpack.c.l.b16 %v557
        %v3694 = vunpack.c.l.b16 %v558
        %v3695 = vunpack.c.l.b16 %v559
        %v3696 = vunpack.c.l.b16 %v560
        %v3697 = vunpack.c.l.b16 %v561
        %v3698 = vunpack.c.l.b16 %v562
        %v3699 = vunpack.c.l.b16 %v563
        %v3700 = vunpack.c.l.b16 %v564
        %v3701 = vunpack.c.l.b16 %v565
        %v3702 = vunpack.c.l.b16 %v566
        %v3703 = vunpack.c.l.b16 %v567
        %v3704 = vunpack.c.l.b16 %v568
        %v3705 = vunpack.c.l.b16 %v569
        %v3706 = vunpack.c.l.b16 %v570
        %v3707 = vunpack.c.l.b16 %v571
        %v3708 = vunpack.c.l.b16 %v572
        %v3709 = vunpack.c.l.b16 %v573
        %v3710 = vunpack.c.l.b16 %v574
        %v3711 = vunpack.c.l.b16 %v575
        %v3712 = vunpack.c.l.b16 %v576
        %v3713 = vunpack.c.l.b16 %v577
        %v3714 = vunpack.c.l.b16 %v578
        %v3715 = vunpack.c.l.b16 %v579
        %v3716 = vunpack.c.l.b16 %v580
        %v3717 = vunpack.c.l.b16 %v581
        %v3718 = vunpack.c.l.b16 %v582
        %v3719 = vunpack.c.l.b16 %v583
        %v3720 = vunpack.c.l.b16 %v584
        %v3721 = vunpack.c.l.b16 %v585
        %v3722 = vunpack.c.l.b16 %v586
        %v3723 = vunpack.c.l.b16 %v587
        %v3724 = vunpack.c.l.b16 %v588
        %v3725 = vunpack.c.l.b16 %v589
        %v3726 = vunpack.c.l.b16 %v590
        %v3727 = vunpack.c.l.b16 %v591
        %v3728 = vunpack.c.l.b16 %v592
        %v3729 = vunpack.c.l.b16 %v593
        %v3730 = vunpack.c.l.b16 %v594
        %v3731 = vunpack.c.l.b16 %v595
        %v3732 = vunpack.c.l.b16 %v596
        %v3733 = vunpack.c.l.b16 %v597
        %v3734 = vunpack.c.l.b16 %v598
        %v3735 = vunpack.c.l.b16 %v599
        %v3736 = vunpack.c.l.b16 %v600
        %v3737 = vunpack.c.l.b16 %v601
        %v3738 = vunpack.c.l.b16 %v602
        %v3739 = vunpack.c.l.b16 %v603
        %v3740 = vunpack.c.l.b16 %v604
        %v3741 = vunpack.c.l.b16 %v605
        %v3742 = vunpack.c.l.b16 %v606
        %v3743 = vunpack.c.l.b16 %v607
        %v3744 = vunpack.c.l.b16 %v608
        %v3745 = vunpack.c.l.b16 %v609
        %v3746 = vunpack.c.l.b16 %v610
        %v3747 = vunpack.c.l.b16 %v611
        %v3748 = vunpack.c.l.b16 %v612
        %v3749 = vunpack.c.l.b16 %v613
        %v3750 = vunpack.c.l.b16 %v614
        %v3751 = vunpack.c.l.b16 %v615
        %v3752 = vunpack.c.l.b16 %v616
        %v3753 = vunpack.c.l.b16 %v617
        %v3754 = vunpack.c.l.b16 %v618
        %v3755 = vunpack.c.l.b16 %v619
        %v3756 = vunpack.c.l.b16 %v620
        %v3757 = vunpack.c.l.b16 %v621
        %v3758 = vunpack.c.l.b16 %v622
        %v3759 = vunpack.c.l.b16 %v623
        %v3760 = vunpack.c.l.b16 %v624
        %v3761 = vunpack.c.l.b16 %v625
        %v3762 = vunpack.c.l.b16 %v626
        %v3763 = vunpack.c.l.b16 %v627
        %v3764 = vunpack.c.l.b16 %v628
        %v3765 = vunpack.c.l.b16 %v629
        %v3766 = vunpack.c.l.b16 %v630
        %v3767 = vunpack.c.l.b16 %v631
        %v3768 = vunpack.c.l.b16 %v632
        %v3769 = vunpack.c.l.b16 %v633
        %v3770 = vunpack.c.l.b16 %v634
        %v3771 = vunpack.c.l.b16 %v635
        %v3772 = vunpack.c.l.b16 %v636
        %v3773 = vunpack.c.l.b16 %v637
        %v3774 = vunpack.c.l.b16 %v638
        %v3775 = vunpack.c.l.b16 %v639
        %v3776 = vunpack.c.l.b16 %v640
        %v3777 = vunpack.c.l.b16 %v641
        %v3778 = vunpack.c.l.b16 %v642
        %v3779 = vunpack.c.l.b16 %v643
        %v3780 = vunpack.c.l.b16 %v644
        %v3781 = vunpack.c.l.b16 %v645
        %v3782 = vunpack.c.l.b16 %v646
        %v3783 = vunpack.c.l.b16 %v647
        %v3784 = vunpack.c.l.b16 %v648
        %v3785 = vunpack.c.l.b16 %v649
        %v3786 = vunpack.c.l.b16 %v650
        %v3787 = vunpack.c.l.b16 %v651
        %v3788 = vunpack.c.l.b16 %v652
        %v3789 = vunpack.c.l.b16 %v653
        %v3790 = vunpack.c.l.b16 %v654
        %v3791 = vunpack.c.l.b16 %v655
        %v3792 = vunpack.c.l.b16 %v656
        %v3793 = vunpack.c.l.b16 %v657
        %v3794 = vunpack.c.l.b16 %v658
        %v3795 = vunpack.c.l.b16 %v659
        %v3796 = vunpack.c.l.b16 %v660
        %v3797 = vunpack.c.l.b16 %v661
        %v3798 = vunpack.c.l.b16 %v662
        %v3799 = vunpack.c.l.b16 %v663
        %v3800 = vunpack.c.l.b16 %v664
        %v3801 = vunpack.c.l.b16 %v665
        %v3802 = vunpack.c.l.b16 %v666
        %v3803 = vunpack.c.l.b16 %v667
        %v3804 = vunpack.c.l.b16 %v668
        %v3805 = vunpack.c.l.b16 %v669
        %v3806 = vunpack.c.l.b16 %v670
        %v3807 = vunpack.c.l.b16 %v671
        %v3808 = vunpack.c.l.b16 %v672
        %v3809 = vunpack.c.l.b16 %v673
        %v3810 = vunpack.c.l.b16 %v674
        %v3811 = vunpack.c.l.b16 %v675
        %v3812 = vunpack.c.l.b16 %v676
        %v3813 = vunpack.c.l.b16 %v677
        %v3814 = vunpack.c.l.b16 %v678
        %v3815 = vunpack.c.l.b16 %v679
        %v3816 = vunpack.c.l.b16 %v680
        %v3817 = vunpack.c.l.b16 %v681
        %v3818 = vunpack.c.l.b16 %v682
        %v3819 = vunpack.c.l.b16 %v683
        %v3820 = vunpack.c.l.b16 %v684
        %v3821 = vunpack.c.l.b16 %v685
        %v3822 = vunpack.c.l.b16 %v686
        %v3823 = vunpack.c.l.b16 %v687
        %v3824 = vunpack.c.l.b16 %v688
        %v3825 = vunpack.c.l.b16 %v689
        %v3826 = vunpack.c.l.b16 %v690
        %v3827 = vunpack.c.l.b16 %v691
        %v3828 = vunpack.c.l.b16 %v692
        %v3829 = vunpack.c.l.b16 %v693
        %v3830 = vunpack.c.l.b16 %v694
        %v3831 = vunpack.c.l.b16 %v695
        %v3832 = vunpack.c.l.b16 %v696
        %v3833 = vunpack.c.l.b16 %v697
        %v3834 = vunpack.c.l.b16 %v698
        %v3835 = vunpack.c.l.b16 %v699
        %v3836 = vunpack.c.l.b16 %v700
        %v3837 = vunpack.c.l.b16 %v701
        %v3838 = vunpack.c.l.b16 %v702
        %v3839 = vunpack.c.l.b16 %v703
        %v3840 = vunpack.c.l.b16 %v704
        %v3841 = vunpack.c.l.b16 %v705
        %v3842 = vunpack.c.l.b16 %v706
        %v3843 = vunpack.c.l.b16 %v707
        %v3844 = vunpack.c.l.b16 %v708
        %v3845 = vunpack.c.l.b16 %v709
        %v3846 = vunpack.c.l.b16 %v710
        %v3847 = vunpack.c.l.b16 %v711
        %v3848 = vunpack.c.l.b16 %v712
        %v3849 = vunpack.c.l.b16 %v713
        %v3850 = vunpack.c.l.b16 %v714
        %v3851 = vunpack.c.l.b16 %v715
        %v3852 = vunpack.c.l.b16 %v716
        %v3853 = vunpack.c.l.b16 %v717
        %v3854 = vunpack.c.l.b16 %v718
        %v3855 = vunpack.c.l.b16 %v719
        %v3856 = vunpack.c.l.b16 %v720
        %v3857 = vunpack.c.l.b16 %v721
        %v3858 = vunpack.c.l.b16 %v722
        %v3859 = vunpack.c.l.b16 %v723
        %v3860 = vunpack.c.l.b16 %v724
        %v3861 = vunpack.c.l.b16 %v725
        %v3862 = vunpack.c.l.b16 %v726
        %v3863 = vunpack.c.l.b16 %v727
        %v3864 = vunpack.c.l.b16 %v728
        %v3865 = vunpack.c.l.b16 %v729
        %v3866 = vunpack.c.l.b16 %v730
        %v3867 = vunpack.c.l.b16 %v731
        %v3868 = vunpack.c.l.b16 %v732
        %v3869 = vunpack.c.l.b16 %v733
        %v3870 = vunpack.c.l.b16 %v734
        %v3871 = vunpack.c.l.b16 %v735
        %v3872 = vunpack.c.l.b16 %v736
        %v3873 = vunpack.c.l.b16 %v737
        %v3874 = vunpack.c.l.b16 %v738
        %v3875 = vunpack.c.l.b16 %v739
        %v3876 = vunpack.c.l.b16 %v740
        %v3877 = vunpack.c.l.b16 %v741
        %v3878 = vunpack.c.l.b16 %v742
        %v3879 = vunpack.c.l.b16 %v743
        %v3880 = vunpack.c.l.b16 %v744
        %v3881 = vunpack.c.l.b16 %v745
        %v3882 = vunpack.c.l.b16 %v746
        %v3883 = vunpack.c.l.b16 %v747
        %v3884 = vunpack.c.l.b16 %v748
        %v3885 = vunpack.c.l.b16 %v749
        %v3886 = vunpack.c.l.b16 %v750
        %v3887 = vunpack.c.l.b16 %v751
        %v3888 = vunpack.c.l.b16 %v752
        %v3889 = vunpack.c.l.b16 %v753
        %v3890 = vunpack.c.l.b16 %v754
        %v3891 = vunpack.c.l.b16 %v755
        %v3892 = vunpack.c.l.b16 %v756
        %v3893 = vunpack.c.l.b16 %v757
        %v3894 = vunpack.c.l.b16 %v758
        %v3895 = vunpack.c.l.b16 %v759
        %v3896 = vunpack.c.l.b16 %v760
        %v3897 = vunpack.c.l.b16 %v761
        %v3898 = vunpack.c.l.b16 %v762
        %v3899 = vunpack.c.l.b16 %v763
        %v3900 = vunpack.c.l.b16 %v764
        %v3901 = vunpack.c.l.b16 %v765
        %v3902 = vunpack.c.l.b16 %v766
        %v3903 = vunpack.c.l.b16 %v767
        %v3904 = vunpack.c.l.b16 %v768
        %v3905 = vunpack.c.l.b16 %v769
        %v3906 = vunpack.c.l.b16 %v770
        %v3907 = vunpack.c.l.b16 %v771
        %v3908 = vunpack.c.l.b16 %v772
        %v3909 = vunpack.c.l.b16 %v773
        %v3910 = vunpack.c.l.b16 %v774
        %v3911 = vunpack.c.l.b16 %v775
        %v3912 = vunpack.c.l.b16 %v776
        %v3913 = vunpack.c.l.b16 %v777
        %v3914 = vunpack.c.l.b16 %v778
        %v3915 = vunpack.c.l.b16 %v779
        %v3916 = vunpack.c.l.b16 %v780
        %v3917 = vunpack.c.l.b16 %v781
        %v3918 = vunpack.c.l.b16 %v782
        %v3919 = vunpack.c.l.b16 %v783
        %v3920 = vunpack.c.l.b16 %v784
        %v3921 = vunpack.c.l.b16 %v785
        %v3922 = vunpack.c.l.b16 %v786
        %v3923 = vunpack.c.l.b16 %v787
        %v3924 = vunpack.c.l.b16 %v788
        %v3925 = vunpack.c.l.b16 %v789
        %v3926 = vunpack.c.l.b16 %v790
        %v3927 = vunpack.c.l.b16 %v791
        %v3928 = vunpack.c.l.b16 %v792
        %v3929 = vunpack.c.l.b16 %v793
        %v3930 = vunpack.c.l.b16 %v794
        %v3931 = vunpack.c.l.b16 %v795
        %v3932 = vunpack.c.l.b16 %v796
        %v3933 = vunpack.c.l.b16 %v797
        %v3934 = vunpack.c.l.b16 %v798
        %v3935 = vunpack.c.l.b16 %v799
        %v3936 = vunpack.c.l.b16 %v800
        %v3937 = vunpack.c.l.b16 %v801
        %v3938 = vunpack.c.l.b16 %v802
        %v3939 = vunpack.c.l.b16 %v803
        %v3940 = vunpack.c.l.b16 %v804
        %v3941 = vunpack.c.l.b16 %v805
        %v3942 = vunpack.c.l.b16 %v806
        %v3943 = vunpack.c.l.b16 %v807
        %v3944 = vunpack.c.l.b16 %v808
        %v3945 = vunpack.c.l.b16 %v809
        %v3946 = vunpack.c.l.b16 %v810
        %v3947 = vunpack.c.l.b16 %v811
        %v3948 = vunpack.c.l.b16 %v812
        %v3949 = vunpack.c.l.b16 %v813
        %v3950 = vunpack.c.l.b16 %v814
        %v3951 = vunpack.c.l.b16 %v815
        %v3952 = vunpack.c.l.b16 %v816
        %v3953 = vunpack.c.l.b16 %v817
        %v3954 = vunpack.c.l.b16 %v818
        %v3955 = vunpack.c.l.b16 %v819
        %v3956 = vunpack.c.l.b16 %v820
        %v3957 = vunpack.c.l.b16 %v821
        %v3958 = vunpack.c.l.b16 %v822
        %v3959 = vunpack.c.l.b16 %v823
        %v3960 = vunpack.c.l.b16 %v824
        %v3961 = vunpack.c.l.b16 %v825
        %v3962 = vunpack.c.l.b16 %v826
        %v3963 = vunpack.c.l.b16 %v827
        %v3964 = vunpack.c.l.b16 %v828
        %v3965 = vunpack.c.l.b16 %v829
        %v3966 = vunpack.c.l.b16 %v830
        %v3967 = vunpack.c.l.b16 %v831
        %v3968 = vunpack.c.l.b16 %v832
        %v3969 = vunpack.c.l.b16 %v833
        %v3970 = vunpack.c.l.b16 %v834
        %v3971 = vunpack.c.l.b16 %v835
        %v3972 = vunpack.c.l.b16 %v836
        %v3973 = vunpack.c.l.b16 %v837
        %v3974 = vunpack.c.l.b16 %v838
        %v3975 = vunpack.c.l.b16 %v839
        %v3976 = vunpack.c.l.b16 %v840
        %v3977 = vunpack.c.l.b16 %v841
        %v3978 = vunpack.c.l.b16 %v842
        %v3979 = vunpack.c.l.b16 %v843
        %v3980 = vunpack.c.l.b16 %v844
        %v3981 = vunpack.c.l.b16 %v845
        %v3982 = vunpack.c.l.b16 %v846
        %v3983 = vunpack.c.l.b16 %v847
        %v3984 = vunpack.c.l.b16 %v848
        %v3985 = vunpack.c.l.b16 %v849
        %v3986 = vunpack.c.l.b16 %v850
        %v3987 = vunpack.c.l.b16 %v851
        %v3988 = vunpack.c.l.b16 %v852
        %v3989 = vunpack.c.l.b16 %v853
        %v3990 = vunpack.c.l.b16 %v854
        %v3991 = vunpack.c.l.b16 %v855
        %v3992 = vunpack.c.l.b16 %v856
        %v3993 = vunpack.c.l.b16 %v857
        %v3994 = vunpack.c.l.b16 %v858
        %v3995 = vunpack.c.l.b16 %v859
        %v3996 = vunpack.c.l.b16 %v860
        %v3997 = vunpack.c.l.b16 %v861
        %v3998 = vunpack.c.l.b16 %v862
        %v3999 = vunpack.c.l.b16 %v863
        %v4000 = vunpack.c.l.b16 %v864
        %v4001 = vunpack.c.l.b16 %v865
        %v4002 = vunpack.c.l.b16 %v866
        %v4003 = vunpack.c.l.b16 %v867
        %v4004 = vunpack.c.l.b16 %v868
        %v4005 = vunpack.c.l.b16 %v869
        %v4006 = vunpack.c.l.b16 %v870
        %v4007 = vunpack.c.l.b16 %v871
        %v4008 = vunpack.c.l.b16 %v872
        %v4009 = vunpack.c.l.b16 %v873
        %v4010 = vunpack.c.l.b16 %v874
        %v4011 = vunpack.c.l.b16 %v875
        %v4012 = vunpack.c.l.b16 %v876
        %v4013 = vunpack.c.l.b16 %v877
        %v4014 = vunpack.c.l.b16 %v878
        %v4015 = vunpack.c.l.b16 %v879
        %v4016 = vunpack.c.l.b16 %v880
        %v4017 = vunpack.c.l.b16 %v881
        %v4018 = vunpack.c.l.b16 %v882
        %v4019 = vunpack.c.l.b16 %v883
        %v4020 = vunpack.c.l.b16 %v884
        %v4021 = vunpack.c.l.b16 %v885
        %v4022 = vunpack.c.l.b16 %v886
        %v4023 = vunpack.c.l.b16 %v887
        %v4024 = vunpack.c.l.b16 %v888
        %v4025 = vunpack.c.l.b16 %v889
        %v4026 = vunpack.c.l.b16 %v890
        %v4027 = vunpack.c.l.b16 %v891
        %v4028 = vunpack.c.l.b16 %v892
        %v4029 = vunpack.c.l.b16 %v893
        %v4030 = vunpack.c.l.b16 %v894
        %v4031 = vunpack.c.l.b16 %v895
        %v4032 = vunpack.c.l.b16 %v896
        %v4033 = vunpack.c.l.b16 %v897
        %v4034 = vunpack.c.l.b16 %v898
        %v4035 = vunpack.c.l.b16 %v899
        %v4036 = vunpack.c.l.b16 %v900
        %v4037 = vunpack.c.l.b16 %v901
        %v4038 = vunpack.c.l.b16 %v902
        %v4039 = vunpack.c.l.b16 %v903
        %v4040 = vunpack.c.l.b16 %v904
        %v4041 = vunpack.c.l.b16 %v905
        %v4042 = vunpack.c.l.b16 %v906
        %v4043 = vunpack.c.l.b16 %v907
        %v4044 = vunpack.c.l.b16 %v908
        %v4045 = vunpack.c.l.b16 %v909
        %v4046 = vunpack.c.l.b16 %v910
        %v4047 = vunpack.c.l.b16 %v911
        %v4048 = vunpack.c.l.b16 %v912
        %v4049 = vunpack.c.l.b16 %v913
        %v4050 = vunpack.c.l.b16 %v914
        %v4051 = vunpack.c.l.b16 %v915
        %v4052 = vunpack.c.l.b16 %v916
        %v4053 = vunpack.c.l.b16 %v917
        %v4054 = vunpack.c.l.b16 %v918
        %v4055 = vunpack.c.l.b16 %v919
        %v4056 = vunpack.c.l.b16 %v920
        %v4057 = vunpack.c.l.b16 %v921
        %v4058 = vunpack.c.l.b16 %v922
        %v4059 = vunpack.c.l.b16 %v923
        %v4060 = vunpack.c.l.b16 %v924
        %v4061 = vunpack.c.l.b16 %v925
        %v4062 = vunpack.c.l.b16 %v926
        %v4063 = vunpack.c.l.b16 %v927
        %v4064 = vunpack.c.l.b16 %v928
        %v4065 = vunpack.c.l.b16 %v929
        %v4066 = vunpack.c.l.b16 %v930
        %v4067 = vunpack.c.l.b16 %v931
        %v4068 = vunpack.c.l.b16 %v932
        %v4069 = vunpack.c.l.b16 %v933
        %v4070 = vunpack.c.l.b16 %v934
        %v4071 = vunpack.c.l.b16 %v935
        %v4072 = vunpack.c.l.b16 %v936
        %v4073 = vunpack.c.l.b16 %v937
        %v4074 = vunpack.c.l.b16 %v938
        %v4075 = vunpack.c.l.b16 %v939
        %v4076 = vunpack.c.l.b16 %v940
        %v4077 = vunpack.c.l.b16 %v941
        %v4078 = vunpack.c.l.b16 %v942
        %v4079 = vunpack.c.l.b16 %v943
        %v4080 = vunpack.c.l.b16 %v944
        %v4081 = vunpack.c.l.b16 %v945
        %v4082 = vunpack.c.l.b16 %v946
        %v4083 = vunpack.c.l.b16 %v947
        %v4084 = vunpack.c.l.b16 %v948
        %v4085 = vunpack.c.l.b16 %v949
        %v4086 = vunpack.c.l.b16 %v950
        %v4087 = vunpack.c.l.b16 %v951
        %v4088 = vunpack.c.l.b16 %v952
        %v4089 = vunpack.c.l.b16 %v953
        %v4090 = vunpack.c.l.b16 %v954
        %v4091 = vunpack.c.l.b16 %v955
        %v4092 = vunpack.c.l.b16 %v956
        %v4093 = vunpack.c.l.b16 %v957
        %v4094 = vunpack.c.l.b16 %v958
        %v4095 = vunpack.c.l.b16 %v959
        %v4096 = vunpack.c.l.b16 %v960
        %v4097 = vunpack.c.l.b16 %v961
        %v4098 = vunpack.c.l.b16 %v962
        %v4099 = vunpack.c.l.b16 %v963
        %v4100 = vunpack.c.l.b16 %v964
        %v4101 = vunpack.c.l.b16 %v965
        %v4102 = vunpack.c.l.b16 %v966
        %v4103 = vunpack.c.l.b16 %v967
        %v4104 = vunpack.c.l.b16 %v968
        %v4105 = vunpack.c.l.b16 %v969
        %v4106 = vunpack.c.l.b16 %v970
        %v4107 = vunpack.c.l.b16 %v971
        %v4108 = vunpack.c.l.b16 %v972
        %v4109 = vunpack.c.l.b16 %v973
        %v4110 = vunpack.c.l.b16 %v974
        %v4111 = vunpack.c.l.b16 %v975
        %v4112 = vunpack.c.l.b16 %v976
        %v4113 = vunpack.c.l.b16 %v977
        %v4114 = vunpack.c.l.b16 %v978
        %v4115 = vunpack.c.l.b16 %v979
        %v4116 = vunpack.c.l.b16 %v980
        %v4117 = vunpack.c.l.b16 %v981
        %v4118 = vunpack.c.l.b16 %v982
        %v4119 = vunpack.c.l.b16 %v983
        %v4120 = vunpack.c.l.b16 %v984
        %v4121 = vunpack.c.l.b16 %v985
        %v4122 = vunpack.c.l.b16 %v986
        %v4123 = vunpack.c.l.b16 %v987
        %v4124 = vunpack.c.l.b16 %v988
        %v4125 = vunpack.c.l.b16 %v989
        %v4126 = vunpack.c.l.b16 %v990
        %v4127 = vunpack.c.l.b16 %v991
        %v4128 = vunpack.c.l.b16 %v992
        %v4129 = vunpack.c.l.b16 %v993
        %v4130 = vunpack.c.l.b16 %v994
        %v4131 = vunpack.c.l.b16 %v995
        %v4132 = vunpack.c.l.b16 %v996
        %v4133 = vunpack.c.l.b16 %v997
        %v4134 = vunpack.c.l.b16 %v998
        %v4135 = vunpack.c.l.b16 %v999
        %v4136 = vunpack.c.l.b16 %v1000
        %v4137 = vunpack.c.l.b16 %v1001
        %v4138 = vunpack.c.l.b16 %v1002
        %v4139 = vunpack.c.l.b16 %v1003
        %v4140 = vunpack.c.l.b16 %v1004
        %v4141 = vunpack.c.l.b16 %v1005
        %v4142 = vunpack.c.l.b16 %v1006
        %v4143 = vunpack.c.l.b16 %v1007
        %v4144 = vunpack.c.l.b16 %v1008
        %v4145 = vunpack.c.l.b16 %v1009
        %v4146 = vunpack.c.l.b16 %v1010
        %v4147 = vunpack.c.l.b16 %v1011
        %v4148 = vunpack.c.l.b16 %v1012
        %v4149 = vunpack.c.l.b16 %v1013
        %v4150 = vunpack.c.l.b16 %v1014
        %v4151 = vunpack.c.l.b16 %v1015
        %v4152 = vunpack.c.l.b16 %v1016
        %v4153 = vunpack.c.l.b16 %v1017
        %v4154 = vunpack.c.l.b16 %v1018
        %v4155 = vunpack.c.l.b16 %v1019
        %v4156 = vunpack.c.l.b16 %v1020
        %v4157 = vunpack.c.l.b16 %v1021
        %v4158 = vunpack.c.l.b16 %v1022
        %v4159 = vunpack.c.l.b16 %v1023
        %v4160 = vunpack.c.l.b16 %v1024
        %v4161 = vunpack.c.l.b16 %v1025
        %v4162 = vunpack.c.l.b16 %v1026
        %v4163 = vunpack.c.l.b16 %v1027
        %v4164 = vunpack.c.l.b16 %v1028
        %v4165 = vunpack.c.l.b16 %v1029
        %v4166 = vunpack.c.l.b16 %v1030
        %v4167 = vunpack.c.l.b16 %v1031
        %v4168 = vunpack.c.l.b16 %v1032
        %v4169 = vunpack.c.l.b16 %v1033
        %v4170 = vunpack.c.l.b16 %v1034
        %v4171 = vunpack.c.l.b16 %v1035
        %v4172 = vunpack.c.l.b16 %v1036
        %v4173 = vunpack.c.l.b16 %v1037
        %v4174 = vunpack.c.l.b16 %v1038
        %v4175 = vunpack.c.l.b16 %v1039
        %v4176 = vunpack.c.l.b16 %v1040
        %v4177 = vunpack.c.l.b16 %v1041
        %v4178 = vunpack.c.l.b16 %v1042
        %v4179 = vunpack.c.l.b16 %v1043
        %v4180 = vunpack.c.l.b16 %v1044
        %v4181 = vunpack.c.l.b16 %v1045
        %v4182 = vunpack.c.l.b16 %v1046
        %v4183 = vunpack.c.l.b16 %v1047
        %v4184 = vunpack.c.l.b16 %v1048
        %v4185 = vunpack.c.l.b16 %v1049
        %v4186 = vunpack.c.l.b16 %v1050
        %v4187 = vunpack.c.l.b16 %v1051
        %v4188 = vunpack.c.l.b16 %v1052
        %v4189 = vunpack.c.l.b16 %v1053
        %v4190 = vunpack.c.l.b16 %v1054
        %v4191 = vunpack.c.l.b16 %v1055
        %v4192 = vunpack.c.l.b16 %v1056
        %v4193 = vunpack.c.l.b16 %v1057
        %v4194 = vunpack.c.l.b16 %v1058
        %v4195 = vunpack.c.l.b16 %v1059
        %v4196 = vunpack.c.l.b16 %v1060
        %v4197 = vunpack.c.l.b16 %v1061
        %v4198 = vunpack.c.l.b16 %v1062
        %v4199 = vunpack.c.l.b16 %v1063
        %v4200 = vunpack.c.l.b16 %v1064
        %v4201 = vunpack.c.l.b16 %v1065
        %v4202 = vunpack.c.l.b16 %v1066
        %v4203 = vunpack.c.l.b16 %v1067
        %v4204 = vunpack.c.l.b16 %v1068
        %v4205 = vunpack.c.l.b16 %v1069
        %v4206 = vunpack.c.l.b16 %v1070
        %v4207 = vunpack.c.l.b16 %v1071
        %v4208 = vunpack.c.l.b16 %v1072
        %v4209 = vunpack.c.l.b16 %v1073
        %v4210 = vunpack.c.l.b16 %v1074
        %v4211 = vunpack.c.l.b16 %v1075
        %v4212 = vunpack.c.l.b16 %v1076
        %v4213 = vunpack.c.l.b16 %v1077
        %v4214 = vunpack.c.l.b16 %v1078
        %v4215 = vunpack.c.l.b16 %v1079
        %v4216 = vunpack.c.l.b16 %v1080
        %v4217 = vunpack.c.l.b16 %v1081
        %v4218 = vunpack.c.l.b16 %v1082
        %v4219 = vunpack.c.l.b16 %v1083
        %v4220 = vunpack.c.l.b16 %v1084
        %v4221 = vunpack.c.l.b16 %v1085
        %v4222 = vunpack.c.l.b16 %v1086
        %v4223 = vunpack.c.l.b16 %v1087
        %v4224 = vunpack.c.l.b16 %v1088
        %v4225 = vunpack.c.l.b16 %v1089
        %v4226 = vunpack.c.l.b16 %v1090
        %v4227 = vunpack.c.l.b16 %v1091
        %v4228 = vunpack.c.l.b16 %v1092
        %v4229 = vunpack.c.l.b16 %v1093
        %v4230 = vunpack.c.l.b16 %v1094
        %v4231 = vunpack.c.l.b16 %v1095
        %v4232 = vunpack.c.l.b16 %v1096
        %v4233 = vunpack.c.l.b16 %v1097
        %v4234 = vunpack.c.l.b16 %v1098
        %v4235 = vunpack.c.l.b16 %v1099
        %v4236 = vunpack.c.l.b16 %v1100
        %v4237 = vunpack.c.l.b16 %v1101
        %v4238 = vunpack.c.l.b16 %v1102
        %v4239 = vunpack.c.l.b16 %v1103
        %v4240 = vunpack.c.l.b16 %v1104
        %v4241 = vunpack.c.l.b16 %v1105
        %v4242 = vunpack.c.l.b16 %v1106
        %v4243 = vunpack.c.l.b16 %v1107
        %v4244 = vunpack.c.l.b16 %v1108
        %v4245 = vunpack.c.l.b16 %v1109
        %v4246 = vunpack.c.l.b16 %v1110
        %v4247 = vunpack.c.l.b16 %v1111
        %v4248 = vunpack.c.l.b16 %v1112
        %v4249 = vunpack.c.l.b16 %v1113
        %v4250 = vunpack.c.l.b16 %v1114
        %v4251 = vunpack.c.l.b16 %v1115
        %v4252 = vunpack.c.l.b16 %v1116
        %v4253 = vunpack.c.l.b16 %v1117
        %v4254 = vunpack.c.l.b16 %v1118
        %v4255 = vunpack.c.l.b16 %v1119
        %v4256 = vunpack.c.l.b16 %v1120
        %v4257 = vunpack.c.l.b16 %v1121
        %v4258 = vunpack.c.l.b16 %v1122
        %v4259 = vunpack.c.l.b16 %v1123
        %v4260 = vunpack.c.l.b16 %v1124
        %v4261 = vunpack.c.l.b16 %v1125
        %v4262 = vunpack.c.l.b16 %v1126
        %v4263 = vunpack.c.l.b16 %v1127
        %v4264 = vunpack.c.l.b16 %v1128
        %v4265 = vunpack.c.l.b16 %v1129
        %v4266 = vunpack.c.l.b16 %v1130
        %v4267 = vunpack.c.l.b16 %v1131
        %v4268 = vunpack.c.l.b16 %v1132
        %v4269 = vunpack.c.l.b16 %v1133
        %v4270 = vunpack.c.l.b16 %v1134
        %v4271 = vunpack.c.l.b16 %v1135
        %v4272 = vunpack.c.l.b16 %v1136
        %v4273 = vunpack.c.l.b16 %v1137
        %v4274 = vunpack.c.l.b16 %v1138
        %v4275 = vunpack.c.l.b16 %v1139
        %v4276 = vunpack.c.l.b16 %v1140
        %v4277 = vunpack.c.l.b16 %v1141
        %v4278 = vunpack.c.l.b16 %v1142
        %v4279 = vunpack.c.l.b16 %v1143
        %v4280 = vunpack.c.l.b16 %v1144
        %v4281 = vunpack.c.l.b16 %v1145
        %v4282 = vunpack.c.l.b16 %v1146
        %v4283 = vunpack.c.l.b16 %v1147
        %v4284 = vunpack.c.l.b16 %v1148
        %v4285 = vunpack.c.l.b16 %v1149
        %v4286 = vunpack.c.l.b16 %v1150
        %v4287 = vunpack.c.l.b16 %v1151
        %v4288 = vunpack.c.l.b16 %v1152
        %v4289 = vunpack.c.l.b16 %v1153
        %v4290 = vunpack.c.l.b16 %v1154
        %v4291 = vunpack.c.l.b16 %v1155
        %v4292 = vunpack.c.l.b16 %v1156
        %v4293 = vunpack.c.l.b16 %v1157
        %v4294 = vunpack.c.l.b16 %v1158
        %v4295 = vunpack.c.l.b16 %v1159
        %v4296 = vunpack.c.l.b16 %v1160
        %v4297 = vunpack.c.l.b16 %v1161
        %v4298 = vunpack.c.l.b16 %v1162
        %v4299 = vunpack.c.l.b16 %v1163
        %v4300 = vunpack.c.l.b16 %v1164
        %v4301 = vunpack.c.l.b16 %v1165
        %v4302 = vunpack.c.l.b16 %v1166
        %v4303 = vunpack.c.l.b16 %v1167
        %v4304 = vunpack.c.l.b16 %v1168
        %v4305 = vunpack.c.l.b16 %v1169
        %v4306 = vunpack.c.l.b16 %v1170
        %v4307 = vunpack.c.l.b16 %v1171
        %v4308 = vunpack.c.l.b16 %v1172
        %v4309 = vunpack.c.l.b16 %v1173
        %v4310 = vunpack.c.l.b16 %v1174
        %v4311 = vunpack.c.l.b16 %v1175
        %v4312 = vunpack.c.l.b16 %v1176
        %v4313 = vunpack.c.l.b16 %v1177
        %v4314 = vunpack.c.l.b16 %v1178
        %v4315 = vunpack.c.l.b16 %v1179
        %v4316 = vunpack.c.l.b16 %v1180
        %v4317 = vunpack.c.l.b16 %v1181
        %v4318 = vunpack.c.l.b16 %v1182
        %v4319 = vunpack.c.l.b16 %v1183
        %v4320 = vunpack.c.l.b16 %v1184
        %v4321 = vunpack.c.l.b16 %v1185
        %v4322 = vunpack.c.l.b16 %v1186
        %v4323 = vunpack.c.l.b16 %v1187
        %v4324 = vunpack.c.l.b16 %v1188
        %v4325 = vunpack.c.l.b16 %v1189
        %v4326 = vunpack.c.l.b16 %v1190
        %v4327 = vunpack.c.l.b16 %v1191
        %v4328 = vunpack.c.l.b16 %v1192
        %v4329 = vunpack.c.l.b16 %v1193
        %v4330 = vunpack.c.l.b16 %v1194
        %v4331 = vunpack.c.l.b16 %v1195
        %v4332 = vunpack.c.l.b16 %v1196
        %v4333 = vunpack.c.l.b16 %v1197
        %v4334 = vunpack.c.l.b16 %v1198
        %v4335 = vunpack.c.l.b16 %v1199
        %v4336 = vunpack.c.l.b16 %v1200
        %v4337 = vunpack.c.l.b16 %v1201
        %v4338 = vunpack.c.l.b16 %v1202
        %v4339 = vunpack.c.l.b16 %v1203
        %v4340 = vunpack.c.l.b16 %v1204
        %v4341 = vunpack.c.l.b16 %v1205
        %v4342 = vunpack.c.l.b16 %v1206
        %v4343 = vunpack.c.l.b16 %v1207
        %v4344 = vunpack.c.l.b16 %v1208
        %v4345 = vunpack.c.l.b16 %v1209
        %v4346 = vunpack.c.l.b16 %v1210
        %v4347 = vunpack.c.l.b16 %v1211
        %v4348 = vunpack.c.l.b16 %v1212
        %v4349 = vunpack.c.l.b16 %v1213
        %v4350 = vunpack.c.l.b16 %v1214
        %v4351 = vunpack.c.l.b16 %v1215
        %v4352 = vunpack.c.l.b16 %v1216
        %v4353 = vunpack.c.l.b16 %v1217
        %v4354 = vunpack.c.l.b16 %v1218
        %v4355 = vunpack.c.l.b16 %v1219
        %v4356 = vunpack.c.l.b16 %v1220
        %v4357 = vunpack.c.l.b16 %v1221
        %v4358 = vunpack.c.l.b16 %v1222
        %v4359 = vunpack.c.l.b16 %v1223
        %v4360 = vunpack.c.l.b16 %v1224
        %v4361 = vunpack.c.l.b16 %v1225
        %v4362 = vunpack.c.l.b16 %v1226
        %v4363 = vunpack.c.l.b16 %v1227
        %v4364 = vunpack.c.l.b16 %v1228
        %v4365 = vunpack.c.l.b16 %v1229
        %v4366 = vunpack.c.l.b16 %v1230
        %v4367 = vunpack.c.l.b16 %v1231
        %v4368 = vunpack.c.l.b16 %v1232
        %v4369 = vunpack.c.l.b16 %v1233
        %v4370 = vunpack.c.l.b16 %v1234
        %v4371 = vunpack.c.l.b16 %v1235
        %v4372 = vunpack.c.l.b16 %v1236
        %v4373 = vunpack.c.l.b16 %v1237
        %v4374 = vunpack.c.l.b16 %v1238
        %v4375 = vunpack.c.l.b16 %v1239
        %v4376 = vunpack.c.l.b16 %v1240
        %v4377 = vunpack.c.l.b16 %v1241
        %v4378 = vunpack.c.l.b16 %v1242
        %v4379 = vunpack.c.l.b16 %v1243
        %v4380 = vunpack.c.l.b16 %v1244
        %v4381 = vunpack.c.l.b16 %v1245
        %v4382 = vunpack.c.l.b16 %v1246
        %v4383 = vunpack.c.l.b16 %v1247
        %v4384 = vunpack.c.l.b16 %v1248
        %v4385 = vunpack.c.l.b16 %v1249
        %v4386 = vunpack.c.l.b16 %v1250
        %v4387 = vunpack.c.l.b16 %v1251
        %v4388 = vunpack.c.l.b16 %v1252
        %v4389 = vunpack.c.l.b16 %v1253
        %v4390 = vunpack.c.l.b16 %v1254
        %v4391 = vunpack.c.l.b16 %v1255
        %v4392 = vunpack.c.l.b16 %v1256
        %v4393 = vunpack.c.l.b16 %v1257
        %v4394 = vunpack.c.l.b16 %v1258
        %v4395 = vunpack.c.l.b16 %v1259
        %v4396 = vunpack.c.l.b16 %v1260
        %v4397 = vunpack.c.l.b16 %v1261
        %v4398 = vunpack.c.l.b16 %v1262
        %v4399 = vunpack.c.l.b16 %v1263
        %v4400 = vunpack.c.l.b16 %v1264
        %v4401 = vunpack.c.l.b16 %v1265
        %v4402 = vunpack.c.l.b16 %v1266
        %v4403 = vunpack.c.l.b16 %v1267
        %v4404 = vunpack.c.l.b16 %v1268
        %v4405 = vunpack.c.l.b16 %v1269
        %v4406 = vunpack.c.l.b16 %v1270
        %v4407 = vunpack.c.l.b16 %v1271
        %v4408 = vunpack.c.l.b16 %v1272
        %v4409 = vunpack.c.l.b16 %v1273
        %v4410 = vunpack.c.l.b16 %v1274
        %v4411 = vunpack.c.l.b16 %v1275
        %v4412 = vunpack.c.l.b16 %v1276
        %v4413 = vunpack.c.l.b16 %v1277
        %v4414 = vunpack.c.l.b16 %v1278
        %v4415 = vunpack.c.l.b16 %v1279
        %v4416 = vunpack.c.l.b16 %v1280
        %v4417 = vunpack.c.l.b16 %v1281
        %v4418 = vunpack.c.l.b16 %v1282
        %v4419 = vunpack.c.l.b16 %v1283
        %v4420 = vunpack.c.l.b16 %v1284
        %v4421 = vunpack.c.l.b16 %v1285
        %v4422 = vunpack.c.l.b16 %v1286
        %v4423 = vunpack.c.l.b16 %v1287
        %v4424 = vunpack.c.l.b16 %v1288
        %v4425 = vunpack.c.l.b16 %v1289
        %v4426 = vunpack.c.l.b16 %v1290
        %v4427 = vunpack.c.l.b16 %v1291
        %v4428 = vunpack.c.l.b16 %v1292
        %v4429 = vunpack.c.l.b16 %v1293
        %v4430 = vunpack.c.l.b16 %v1294
        %v4431 = vunpack.c.l.b16 %v1295
        %v4432 = vunpack.c.l.b16 %v1296
        %v4433 = vunpack.c.l.b16 %v1297
        %v4434 = vunpack.c.l.b16 %v1298
        %v4435 = vunpack.c.l.b16 %v1299
        %v4436 = vunpack.c.l.b16 %v1300
        %v4437 = vunpack.c.l.b16 %v1301
        %v4438 = vunpack.c.l.b16 %v1302
        %v4439 = vunpack.c.l.b16 %v1303
        %v4440 = vunpack.c.l.b16 %v1304
        %v4441 = vunpack.c.l.b16 %v1305
        %v4442 = vunpack.c.l.b16 %v1306
        %v4443 = vunpack.c.l.b16 %v1307
        %v4444 = vunpack.c.l.b16 %v1308
        %v4445 = vunpack.c.l.b16 %v1309
        %v4446 = vunpack.c.l.b16 %v1310
        %v4447 = vunpack.c.l.b16 %v1311
        %v4448 = vunpack.c.l.b16 %v1312
        %v4449 = vunpack.c.l.b16 %v1313
        %v4450 = vunpack.c.l.b16 %v1314
        %v4451 = vunpack.c.l.b16 %v1315
        %v4452 = vunpack.c.l.b16 %v1316
        %v4453 = vunpack.c.l.b16 %v1317
        %v4454 = vunpack.c.l.b16 %v1318
        %v4455 = vunpack.c.l.b16 %v1319
        %v4456 = vunpack.c.l.b16 %v1320
        %v4457 = vunpack.c.l.b16 %v1321
        %v4458 = vunpack.c.l.b16 %v1322
        %v4459 = vunpack.c.l.b16 %v1323
        %v4460 = vunpack.c.l.b16 %v1324
        %v4461 = vunpack.c.l.b16 %v1325
        %v4462 = vunpack.c.l.b16 %v1326
        %v4463 = vunpack.c.l.b16 %v1327
        %v4464 = vunpack.c.l.b16 %v1328
        %v4465 = vunpack.c.l.b16 %v1329
        %v4466 = vunpack.c.l.b16 %v1330
        %v4467 = vunpack.c.l.b16 %v1331
        %v4468 = vunpack.c.l.b16 %v1332
        %v4469 = vunpack.c.l.b16 %v1333
        %v4470 = vunpack.c.l.b16 %v1334
        %v4471 = vunpack.c.l.b16 %v1335
        %v4472 = vunpack.c.l.b16 %v1336
        %v4473 = vunpack.c.l.b16 %v1337
        %v4474 = vunpack.c.l.b16 %v1338
        %v4475 = vunpack.c.l.b16 %v1339
        %v4476 = vunpack.c.l.b16 %v1340
        %v4477 = vunpack.c.l.b16 %v1341
        %v4478 = vunpack.c.l.b16 %v1342
        %v4479 = vunpack.c.l.b16 %v1343
        %v4480 = vunpack.c.l.b16 %v1344
        %v4481 = vunpack.c.l.b16 %v1345
        %v4482 = vunpack.c.l.b16 %v1346
        %v4483 = vunpack.c.l.b16 %v1347
        %v4484 = vunpack.c.l.b16 %v1348
        %v4485 = vunpack.c.l.b16 %v1349
        %v4486 = vunpack.c.l.b16 %v1350
        %v4487 = vunpack.c.l.b16 %v1351
        %v4488 = vunpack.c.l.b16 %v1352
        %v4489 = vunpack.c.l.b16 %v1353
        %v4490 = vunpack.c.l.b16 %v1354
        %v4491 = vunpack.c.l.b16 %v1355
        %v4492 = vunpack.c.l.b16 %v1356
        %v4493 = vunpack.c.l.b16 %v1357
        %v4494 = vunpack.c.l.b16 %v1358
        %v4495 = vunpack.c.l.b16 %v1359
        %v4496 = vunpack.c.l.b16 %v1360
        %v4497 = vunpack.c.l.b16 %v1361
        %v4498 = vunpack.c.l.b16 %v1362
        %v4499 = vunpack.c.l.b16 %v1363
        %v4500 = vunpack.c.l.b16 %v1364
        %v4501 = vunpack.c.l.b16 %v1365
        %v4502 = vunpack.c.l.b16 %v1366
        %v4503 = vunpack.c.l.b16 %v1367
        %v4504 = vunpack.c.l.b16 %v1368
        %v4505 = vunpack.c.l.b16 %v1369
        %v4506 = vunpack.c.l.b16 %v1370
        %v4507 = vunpack.c.l.b16 %v1371
        %v4508 = vunpack.c.l.b16 %v1372
        %v4509 = vunpack.c.l.b16 %v1373
        %v4510 = vunpack.c.l.b16 %v1374
        %v4511 = vunpack.c.l.b16 %v1375
        %v4512 = vunpack.c.l.b16 %v1376
        %v4513 = vunpack.c.l.b16 %v1377
        %v4514 = vunpack.c.l.b16 %v1378
        %v4515 = vunpack.c.l.b16 %v1379
        %v4516 = vunpack.c.l.b16 %v1380
        %v4517 = vunpack.c.l.b16 %v1381
        %v4518 = vunpack.c.l.b16 %v1382
        %v4519 = vunpack.c.l.b16 %v1383
        %v4520 = vunpack.c.l.b16 %v1384
        %v4521 = vunpack.c.l.b16 %v1385
        %v4522 = vunpack.c.l.b16 %v1386
        %v4523 = vunpack.c.l.b16 %v1387
        %v4524 = vunpack.c.l.b16 %v1388
        %v4525 = vunpack.c.l.b16 %v1389
        %v4526 = vunpack.c.l.b16 %v1390
        %v4527 = vunpack.c.l.b16 %v1391
        %v4528 = vunpack.c.l.b16 %v1392
        %v4529 = vunpack.c.l.b16 %v1393
        %v4530 = vunpack.c.l.b16 %v1394
        %v4531 = vunpack.c.l.b16 %v1395
        %v4532 = vunpack.c.l.b16 %v1396
        %v4533 = vunpack.c.l.b16 %v1397
        %v4534 = vunpack.c.l.b16 %v1398
        %v4535 = vunpack.c.l.b16 %v1399
        %v4536 = vunpack.c.l.b16 %v1400
        %v4537 = vunpack.c.l.b16 %v1401
        %v4538 = vunpack.c.l.b16 %v1402
        %v4539 = vunpack.c.l.b16 %v1403
        %v4540 = vunpack.c.l.b16 %v1404
        %v4541 = vunpack.c.l.b16 %v1405
        %v4542 = vunpack.c.l.b16 %v1406
        %v4543 = vunpack.c.l.b16 %v1407
        %v4544 = vunpack.c.l.b16 %v1408
        %v4545 = vunpack.c.l.b16 %v1409
        %v4546 = vunpack.c.l.b16 %v1410
        %v4547 = vunpack.c.l.b16 %v1411
        %v4548 = vunpack.c.l.b16 %v1412
        %v4549 = vunpack.c.l.b16 %v1413
        %v4550 = vunpack.c.l.b16 %v1414
        %v4551 = vunpack.c.l.b16 %v1415
        %v4552 = vunpack.c.l.b16 %v1416
        %v4553 = vunpack.c.l.b16 %v1417
        %v4554 = vunpack.c.l.b16 %v1418
        %v4555 = vunpack.c.l.b16 %v1419
        %v4556 = vunpack.c.l.b16 %v1420
        %v4557 = vunpack.c.l.b16 %v1421
        %v4558 = vunpack.c.l.b16 %v1422
        %v4559 = vunpack.c.l.b16 %v1423
        %v4560 = vunpack.c.l.b16 %v1424
        %v4561 = vunpack.c.l.b16 %v1425
        %v4562 = vunpack.c.l.b16 %v1426
        %v4563 = vunpack.c.l.b16 %v1427
        %v4564 = vunpack.c.l.b16 %v1428
        %v4565 = vunpack.c.l.b16 %v1429
        %v4566 = vunpack.c.l.b16 %v1430
        %v4567 = vunpack.c.l.b16 %v1431
        %v4568 = vunpack.c.l.b16 %v1432
        %v4569 = vunpack.c.l.b16 %v1433
        %v4570 = vunpack.c.l.b16 %v1434
        %v4571 = vunpack.c.l.b16 %v1435
        %v4572 = vunpack.c.l.b16 %v1436
        %v4573 = vunpack.c.l.b16 %v1437
        %v4574 = vunpack.c.l.b16 %v1438
        %v4575 = vunpack.c.l.b16 %v1439
        %v4576 = vunpack.c.l.b16 %v1440
        %v4577 = vunpack.c.l.b16 %v1441
        %v4578 = vunpack.c.l.b16 %v1442
        %v4579 = vunpack.c.l.b16 %v1443
        %v4580 = vunpack.c.l.b16 %v1444
        %v4581 = vunpack.c.l.b16 %v1445
        %v4582 = vunpack.c.l.b16 %v1446
        %v4583 = vunpack.c.l.b16 %v1447
        %v4584 = vunpack.c.l.b16 %v1448
        %v4585 = vunpack.c.l.b16 %v1449
        %v4586 = vunpack.c.l.b16 %v1450
        %v4587 = vunpack.c.l.b16 %v1451
        %v4588 = vunpack.c.l.b16 %v1452
        %v4589 = vunpack.c.l.b16 %v1453
        %v4590 = vunpack.c.l.b16 %v1454
        %v4591 = vunpack.c.l.b16 %v1455
        %v4592 = vunpack.c.l.b16 %v1456
        %v4593 = vunpack.c.l.b16 %v1457
        %v4594 = vunpack.c.l.b16 %v1458
        %v4595 = vunpack.c.l.b16 %v1459
        %v4596 = vunpack.c.l.b16 %v1460
        %v4597 = vunpack.c.l.b16 %v1461
        %v4598 = vunpack.c.l.b16 %v1462
        %v4599 = vunpack.c.l.b16 %v1463
        %v4600 = vunpack.c.l.b16 %v1464
        %v4601 = vunpack.c.l.b16 %v1465
        %v4602 = vunpack.c.l.b16 %v1466
        %v4603 = vunpack.c.l.b16 %v1467
        %v4604 = vunpack.c.l.b16 %v1468
        %v4605 = vunpack.c.l.b16 %v1469
        %v4606 = vunpack.c.l.b16 %v1470
        %v4607 = vunpack.c.l.b16 %v1471
        %v4608 = vunpack.c.l.b16 %v1472
        %v4609 = vunpack.c.l.b16 %v1473
        %v4610 = vunpack.c.l.b16 %v1474
        %v4611 = vunpack.c.l.b16 %v1475
        %v4612 = vunpack.c.l.b16 %v1476
        %v4613 = vunpack.c.l.b16 %v1477
        %v4614 = vunpack.c.l.b16 %v1478
        %v4615 = vunpack.c.l.b16 %v1479
        %v4616 = vunpack.c.l.b16 %v1480
        %v4617 = vunpack.c.l.b16 %v1481
        %v4618 = vunpack.c.l.b16 %v1482
        %v4619 = vunpack.c.l.b16 %v1483
        %v4620 = vunpack.c.l.b16 %v1484
        %v4621 = vunpack.c.l.b16 %v1485
        %v4622 = vunpack.c.l.b16 %v1486
        %v4623 = vunpack.c.l.b16 %v1487
        %v4624 = vunpack.c.l.b16 %v1488
        %v4625 = vunpack.c.l.b16 %v1489
        %v4626 = vunpack.c.l.b16 %v1490
        %v4627 = vunpack.c.l.b16 %v1491
        %v4628 = vunpack.c.l.b16 %v1492
        %v4629 = vunpack.c.l.b16 %v1493
        %v4630 = vunpack.c.l.b16 %v1494
        %v4631 = vunpack.c.l.b16 %v1495
        %v4632 = vunpack.c.l.b16 %v1496
        %v4633 = vunpack.c.l.b16 %v1497
        %v4634 = vunpack.c.l.b16 %v1498
        %v4635 = vunpack.c.l.b16 %v1499
        %v4636 = vunpack.c.l.b16 %v1500
        %v4637 = vunpack.c.l.b16 %v1501
        %v4638 = vunpack.c.l.b16 %v1502
        %v4639 = vunpack.c.l.b16 %v1503
        %v4640 = vunpack.c.l.b16 %v1504
        %v4641 = vunpack.c.l.b16 %v1505
        %v4642 = vunpack.c.l.b16 %v1506
        %v4643 = vunpack.c.l.b16 %v1507
        %v4644 = vunpack.c.l.b16 %v1508
        %v4645 = vunpack.c.l.b16 %v1509
        %v4646 = vunpack.c.l.b16 %v1510
        %v4647 = vunpack.c.l.b16 %v1511
        %v4648 = vunpack.c.l.b16 %v1512
        %v4649 = vunpack.c.l.b16 %v1513
        %v4650 = vunpack.c.l.b16 %v1514
        %v4651 = vunpack.c.l.b16 %v1515
        %v4652 = vunpack.c.l.b16 %v1516
        %v4653 = vunpack.c.l.b16 %v1517
        %v4654 = vunpack.c.l.b16 %v1518
        %v4655 = vunpack.c.l.b16 %v1519
        %v4656 = vunpack.c.l.b16 %v1520
        %v4657 = vunpack.c.l.b16 %v1521
        %v4658 = vunpack.c.l.b16 %v1522
        %v4659 = vunpack.c.l.b16 %v1523
        %v4660 = vunpack.c.l.b16 %v1524
        %v4661 = vunpack.c.l.b16 %v1525
        %v4662 = vunpack.c.l.b16 %v1526
        %v4663 = vunpack.c.l.b16 %v1527
        %v4664 = vunpack.c.l.b16 %v1528
        %v4665 = vunpack.c.l.b16 %v1529
        %v4666 = vunpack.c.l.b16 %v1530
        %v4667 = vunpack.c.l.b16 %v1531
        %v4668 = vunpack.c.l.b16 %v1532
        %v4669 = vunpack.c.l.b16 %v1533
        %v4670 = vunpack.c.l.b16 %v1534
        %v4671 = vunpack.c.l.b16 %v1535
        %v4672 = vunpack.c.l.b16 %v1536
        %v4673 = vunpack.c.l.b16 %v1537
        %v4674 = vunpack.c.l.b16 %v1538
        %v4675 = vunpack.c.l.b16 %v1539
        %v4676 = vunpack.c.l.b16 %v1540
        %v4677 = vunpack.c.l.b16 %v1541
        %v4678 = vunpack.c.l.b16 %v1542
        %v4679 = vunpack.c.l.b16 %v1543
        %v4680 = vunpack.c.l.b16 %v1544
        %v4681 = vunpack.c.l.b16 %v1545
        %v4682 = vunpack.c.l.b16 %v1546
        %v4683 = vunpack.c.l.b16 %v1547
        %v4684 = vunpack.c.l.b16 %v1548
        %v4685 = vunpack.c.l.b16 %v1549
        %v4686 = vunpack.c.l.b16 %v1550
        %v4687 = vunpack.c.l.b16 %v1551
        %v4688 = vunpack.c.l.b16 %v1552
        %v4689 = vunpack.c.l.b16 %v1553
        %v4690 = vunpack.c.l.b16 %v1554
        %v4691 = vunpack.c.l.b16 %v1555
        %v4692 = vunpack.c.l.b16 %v1556
        %v4693 = vunpack.c.l.b16 %v1557
        %v4694 = vunpack.c.l.b16 %v1558
        %v4695 = vunpack.c.l.b16 %v1559
        %v4696 = vunpack.c.l.b16 %v1560
        %v4697 = vunpack.c.l.b16 %v1561
        %v4698 = vunpack.c.l.b16 %v1562
        %v4699 = vunpack.c.l.b16 %v1563
        %v4700 = vunpack.c.l.b16 %v1564
        %v4701 = vunpack.c.l.b16 %v1565
        %v4702 = vunpack.c.l.b16 %v1566
        %v4703 = vunpack.c.l.b16 %v1567
        %v4704 = vunpack.c.l.b16 %v1568
        %v4705 = vunpack.c.l.b16 %v1569
        %v4706 = vunpack.c.l.b16 %v1570
        %v4707 = vunpack.c.l.b16 %v1571
        %v4708 = vunpack.c.l.b16 %v1572
        %v4709 = vunpack.c.l.b16 %v1573
        %v4710 = vunpack.c.l.b16 %v1574
        %v4711 = vunpack.c.l.b16 %v1575
        %v4712 = vunpack.c.l.b16 %v1576
        %v4713 = vunpack.c.l.b16 %v1577
        %v4714 = vunpack.c.l.b16 %v1578
        %v4715 = vunpack.c.l.b16 %v1579
        %v4716 = vunpack.c.l.b16 %v1580
        %v4717 = vunpack.c.l.b16 %v1581
        %v4718 = vunpack.c.l.b16 %v1582
        %v4719 = vunpack.c.l.b16 %v1583
        %v4720 = vunpack.c.l.b16 %v1584
        %v4721 = vunpack.c.l.b16 %v1585
        %v4722 = vunpack.c.l.b16 %v1586
        %v4723 = vunpack.c.l.b16 %v1587
        %v4724 = vunpack.c.l.b16 %v1588
        %v4725 = vunpack.c.l.b16 %v1589
        %v4726 = vunpack.c.l.b16 %v1590
        %v4727 = vunpack.c.l.b16 %v1591
        %v4728 = vunpack.c.l.b16 %v1592
        %v4729 = vunpack.c.l.b16 %v1593
        %v4730 = vunpack.c.l.b16 %v1594
        %v4731 = vunpack.c.l.b16 %v1595
        %v4732 = vunpack.c.l.b16 %v1596
        %v4733 = vunpack.c.l.b16 %v1597
        %v4734 = vunpack.c.l.b16 %v1598
        %v4735 = vunpack.c.l.b16 %v1599
        %v4736 = vunpack.c.l.b16 %v1600
        %v4737 = vunpack.c.l.b16 %v1601
        %v4738 = vunpack.c.l.b16 %v1602
        %v4739 = vunpack.c.l.b16 %v1603
        %v4740 = vunpack.c.l.b16 %v1604
        %v4741 = vunpack.c.l.b16 %v1605
        %v4742 = vunpack.c.l.b16 %v1606
        %v4743 = vunpack.c.l.b16 %v1607
        %v4744 = vunpack.c.l.b16 %v1608
        %v4745 = vunpack.c.l.b16 %v1609
        %v4746 = vunpack.c.l.b16 %v1610
        %v4747 = vunpack.c.l.b16 %v1611
        %v4748 = vunpack.c.l.b16 %v1612
        %v4749 = vunpack.c.l.b16 %v1613
        %v4750 = vunpack.c.l.b16 %v1614
        %v4751 = vunpack.c.l.b16 %v1615
        %v4752 = vunpack.c.l.b16 %v1616
        %v4753 = vunpack.c.l.b16 %v1617
        %v4754 = vunpack.c.l.b16 %v1618
        %v4755 = vunpack.c.l.b16 %v1619
        %v4756 = vunpack.c.l.b16 %v1620
        %v4757 = vunpack.c.l.b16 %v1621
        %v4758 = vunpack.c.l.b16 %v1622
        %v4759 = vunpack.c.l.b16 %v1623
        %v4760 = vunpack.c.l.b16 %v1624
        %v4761 = vunpack.c.l.b16 %v1625
        %v4762 = vunpack.c.l.b16 %v1626
        %v4763 = vunpack.c.l.b16 %v1627
        %v4764 = vunpack.c.l.b16 %v1628
        %v4765 = vunpack.c.l.b16 %v1629
        %v4766 = vunpack.c.l.b16 %v1630
        %v4767 = vunpack.c.l.b16 %v1631
        %v4768 = vunpack.c.l.b16 %v1632
        %v4769 = vunpack.c.l.b16 %v1633
        %v4770 = vunpack.c.l.b16 %v1634
        %v4771 = vunpack.c.l.b16 %v1635
        %v4772 = vunpack.c.l.b16 %v1636
        %v4773 = vunpack.c.l.b16 %v1637
        %v4774 = vunpack.c.l.b16 %v1638
        %v4775 = vunpack.c.l.b16 %v1639
        %v4776 = vunpack.c.l.b16 %v1640
        %v4777 = vunpack.c.l.b16 %v1641
        %v4778 = vunpack.c.l.b16 %v1642
        %v4779 = vunpack.c.l.b16 %v1643
        %v4780 = vunpack.c.l.b16 %v1644
        %v4781 = vunpack.c.l.b16 %v1645
        %v4782 = vunpack.c.l.b16 %v1646
        %v4783 = vunpack.c.l.b16 %v1647
        %v4784 = vunpack.c.l.b16 %v1648
        %v4785 = vunpack.c.l.b16 %v1649
        %v4786 = vunpack.c.l.b16 %v1650
        %v4787 = vunpack.c.l.b16 %v1651
        %v4788 = vunpack.c.l.b16 %v1652
        %v4789 = vunpack.c.l.b16 %v1653
        %v4790 = vunpack.c.l.b16 %v1654
        %v4791 = vunpack.c.l.b16 %v1655
        %v4792 = vunpack.c.l.b16 %v1656
        %v4793 = vunpack.c.l.b16 %v1657
        %v4794 = vunpack.c.l.b16 %v1658
        %v4795 = vunpack.c.l.b16 %v1659
        %v4796 = vunpack.c.l.b16 %v1660
        %v4797 = vunpack.c.l.b16 %v1661
        %v4798 = vunpack.c.l.b16 %v1662
        %v4799 = vunpack.c.l.b16 %v1663
        %v4800 = vunpack.c.l.b16 %v1664
        %v4801 = vunpack.c.l.b16 %v1665
        %v4802 = vunpack.c.l.b16 %v1666
        %v4803 = vunpack.c.l.b16 %v1667
        %v4804 = vunpack.c.l.b16 %v1668
        %v4805 = vunpack.c.l.b16 %v1669
        %v4806 = vunpack.c.l.b16 %v1670
        %v4807 = vunpack.c.l.b16 %v1671
        %v4808 = vunpack.c.l.b16 %v1672
        %v4809 = vunpack.c.l.b16 %v1673
        %v4810 = vunpack.c.l.b16 %v1674
        %v4811 = vunpack.c.l.b16 %v1675
        %v4812 = vunpack.c.l.b16 %v1676
        %v4813 = vunpack.c.l.b16 %v1677
        %v4814 = vunpack.c.l.b16 %v1678
        %v4815 = vunpack.c.l.b16 %v1679
        %v4816 = vunpack.c.l.b16 %v1680
        %v4817 = vunpack.c.l.b16 %v1681
        %v4818 = vunpack.c.l.b16 %v1682
        %v4819 = vunpack.c.l.b16 %v1683
        %v4820 = vunpack.c.l.b16 %v1684
        %v4821 = vunpack.c.l.b16 %v1685
        %v4822 = vunpack.c.l.b16 %v1686
        %v4823 = vunpack.c.l.b16 %v1687
        %v4824 = vunpack.c.l.b16 %v1688
        %v4825 = vunpack.c.l.b16 %v1689
        %v4826 = vunpack.c.l.b16 %v1690
        %v4827 = vunpack.c.l.b16 %v1691
        %v4828 = vunpack.c.l.b16 %v1692
        %v4829 = vunpack.c.l.b16 %v1693
        %v4830 = vunpack.c.l.b16 %v1694
        %v4831 = vunpack.c.l.b16 %v1695
        %v4832 = vunpack.c.l.b16 %v1696
        %v4833 = vunpack.c.l.b16 %v1697
        %v4834 = vunpack.c.l.b16 %v1698
        %v4835 = vunpack.c.l.b16 %v1699
        %v4836 = vunpack.c.l.b16 %v1700
        %v4837 = vunpack.c.l.b16 %v1701
        %v4838 = vunpack.c.l.b16 %v1702
        %v4839 = vunpack.c.l.b16 %v1703
        %v4840 = vunpack.c.l.b16 %v1704
        %v4841 = vunpack.c.l.b16 %v1705
        %v4842 = vunpack.c.l.b16 %v1706
        %v4843 = vunpack.c.l.b16 %v1707
        %v4844 = vunpack.c.l.b16 %v1708
        %v4845 = vunpack.c.l.b16 %v1709
        %v4846 = vunpack.c.l.b16 %v1710
        %v4847 = vunpack.c.l.b16 %v1711
        %v4848 = vunpack.c.l.b16 %v1712
        %v4849 = vunpack.c.l.b16 %v1713
        %v4850 = vunpack.c.l.b16 %v1714
        %v4851 = vunpack.c.l.b16 %v1715
        %v4852 = vunpack.c.l.b16 %v1716
        %v4853 = vunpack.c.l.b16 %v1717
        %v4854 = vunpack.c.l.b16 %v1718
        %v4855 = vunpack.c.l.b16 %v1719
        %v4856 = vunpack.c.l.b16 %v1720
        %v4857 = vunpack.c.l.b16 %v1721
        %v4858 = vunpack.c.l.b16 %v1722
        %v4859 = vunpack.c.l.b16 %v1723
        %v4860 = vunpack.c.l.b16 %v1724
        %v4861 = vunpack.c.l.b16 %v1725
        %v4862 = vunpack.c.l.b16 %v1726
        %v4863 = vunpack.c.l.b16 %v1727
        %v4864 = vunpack.c.l.b16 %v1728
        %v4865 = vunpack.c.l.b16 %v1729
        %v4866 = vunpack.c.l.b16 %v1730
        %v4867 = vunpack.c.l.b16 %v1731
        %v4868 = vunpack.c.l.b16 %v1732
        %v4869 = vunpack.c.l.b16 %v1733
        %v4870 = vunpack.c.l.b16 %v1734
        %v4871 = vunpack.c.l.b16 %v1735
        %v4872 = vunpack.c.l.b16 %v1736
        %v4873 = vunpack.c.l.b16 %v1737
        %v4874 = vunpack.c.l.b16 %v1738
        %v4875 = vunpack.c.l.b16 %v1739
        %v4876 = vunpack.c.l.b16 %v1740
        %v4877 = vunpack.c.l.b16 %v1741
        %v4878 = vunpack.c.l.b16 %v1742
        %v4879 = vunpack.c.l.b16 %v1743
        %v4880 = vunpack.c.l.b16 %v1744
        %v4881 = vunpack.c.l.b16 %v1745
        %v4882 = vunpack.c.l.b16 %v1746
        %v4883 = vunpack.c.l.b16 %v1747
        %v4884 = vunpack.c.l.b16 %v1748
        %v4885 = vunpack.c.l.b16 %v1749
        %v4886 = vunpack.c.l.b16 %v1750
        %v4887 = vunpack.c.l.b16 %v1751
        %v4888 = vunpack.c.l.b16 %v1752
        %v4889 = vunpack.c.l.b16 %v1753
        %v4890 = vunpack.c.l.b16 %v1754
        %v4891 = vunpack.c.l.b16 %v1755
        %v4892 = vunpack.c.l.b16 %v1756
        %v4893 = vunpack.c.l.b16 %v1757
        %v4894 = vunpack.c.l.b16 %v1758
        %v4895 = vunpack.c.l.b16 %v1759
        %v4896 = vunpack.c.l.b16 %v1760
        %v4897 = vunpack.c.l.b16 %v1761
        %v4898 = vunpack.c.l.b16 %v1762
        %v4899 = vunpack.c.l.b16 %v1763
        %v4900 = vunpack.c.l.b16 %v1764
        %v4901 = vunpack.c.l.b16 %v1765
        %v4902 = vunpack.c.l.b16 %v1766
        %v4903 = vunpack.c.l.b16 %v1767
        %v4904 = vunpack.c.l.b16 %v1768
        %v4905 = vunpack.c.l.b16 %v1769
        %v4906 = vunpack.c.l.b16 %v1770
        %v4907 = vunpack.c.l.b16 %v1771
        %v4908 = vunpack.c.l.b16 %v1772
        %v4909 = vunpack.c.l.b16 %v1773
        %v4910 = vunpack.c.l.b16 %v1774
        %v4911 = vunpack.c.l.b16 %v1775
        %v4912 = vunpack.c.l.b16 %v1776
        %v4913 = vunpack.c.l.b16 %v1777
        %v4914 = vunpack.c.l.b16 %v1778
        %v4915 = vunpack.c.l.b16 %v1779
        %v4916 = vunpack.c.l.b16 %v1780
        %v4917 = vunpack.c.l.b16 %v1781
        %v4918 = vunpack.c.l.b16 %v1782
        %v4919 = vunpack.c.l.b16 %v1783
        %v4920 = vunpack.c.l.b16 %v1784
        %v4921 = vunpack.c.l.b16 %v1785
        %v4922 = vunpack.c.l.b16 %v1786
        %v4923 = vunpack.c.l.b16 %v1787
        %v4924 = vunpack.c.l.b16 %v1788
        %v4925 = vunpack.c.l.b16 %v1789
        %v4926 = vunpack.c.l.b16 %v1790
        %v4927 = vunpack.c.l.b16 %v1791
        %v4928 = vunpack.c.l.b16 %v1792
        %v4929 = vunpack.c.l.b16 %v1793
        %v4930 = vunpack.c.l.b16 %v1794
        %v4931 = vunpack.c.l.b16 %v1795
        %v4932 = vunpack.c.l.b16 %v1796
        %v4933 = vunpack.c.l.b16 %v1797
        %v4934 = vunpack.c.l.b16 %v1798
        %v4935 = vunpack.c.l.b16 %v1799
        %v4936 = vunpack.c.l.b16 %v1800
        %v4937 = vunpack.c.l.b16 %v1801
        %v4938 = vunpack.c.l.b16 %v1802
        %v4939 = vunpack.c.l.b16 %v1803
        %v4940 = vunpack.c.l.b16 %v1804
        %v4941 = vunpack.c.l.b16 %v1805
        %v4942 = vunpack.c.l.b16 %v1806
        %v4943 = vunpack.c.l.b16 %v1807
        %v4944 = vunpack.c.l.b16 %v1808
        %v4945 = vunpack.c.l.b16 %v1809
        %v4946 = vunpack.c.l.b16 %v1810
        %v4947 = vunpack.c.l.b16 %v1811
        %v4948 = vunpack.c.l.b16 %v1812
        %v4949 = vunpack.c.l.b16 %v1813
        %v4950 = vunpack.c.l.b16 %v1814
        %v4951 = vunpack.c.l.b16 %v1815
        %v4952 = vunpack.c.l.b16 %v1816
        %v4953 = vunpack.c.l.b16 %v1817
        %v4954 = vunpack.c.l.b16 %v1818
        %v4955 = vunpack.c.l.b16 %v1819
        %v4956 = vunpack.c.l.b16 %v1820
        %v4957 = vunpack.c.l.b16 %v1821
        %v4958 = vunpack.c.l.b16 %v1822
        %v4959 = vunpack.c.l.b16 %v1823
        %v4960 = vunpack.c.l.b16 %v1824
        %v4961 = vunpack.c.l.b16 %v1825
        %v4962 = vunpack.c.l.b16 %v1826
        %v4963 = vunpack.c.l.b16 %v1827
        %v4964 = vunpack.c.l.b16 %v1828
        %v4965 = vunpack.c.l.b16 %v1829
        %v4966 = vunpack.c.l.b16 %v1830
        %v4967 = vunpack.c.l.b16 %v1831
        %v4968 = vunpack.c.l.b16 %v1832
        %v4969 = vunpack.c.l.b16 %v1833
        %v4970 = vunpack.c.l.b16 %v1834
        %v4971 = vunpack.c.l.b16 %v1835
        %v4972 = vunpack.c.l.b16 %v1836
        %v4973 = vunpack.c.l.b16 %v1837
        %v4974 = vunpack.c.l.b16 %v1838
        %v4975 = vunpack.c.l.b16 %v1839
        %v4976 = vunpack.c.l.b16 %v1840
        %v4977 = vunpack.c.l.b16 %v1841
        %v4978 = vunpack.c.l.b16 %v1842
        %v4979 = vunpack.c.l.b16 %v1843
        %v4980 = vunpack.c.l.b16 %v1844
        %v4981 = vunpack.c.l.b16 %v1845
        %v4982 = vunpack.c.l.b16 %v1846
        %v4983 = vunpack.c.l.b16 %v1847
        %v4984 = vunpack.c.l.b16 %v1848
        %v4985 = vunpack.c.l.b16 %v1849
        %v4986 = vunpack.c.l.b16 %v1850
        %v4987 = vunpack.c.l.b16 %v1851
        %v4988 = vunpack.c.l.b16 %v1852
        %v4989 = vunpack.c.l.b16 %v1853
        %v4990 = vunpack.c.l.b16 %v1854
        %v4991 = vunpack.c.l.b16 %v1855
        %v4992 = vunpack.c.l.b16 %v1856
        %v4993 = vunpack.c.l.b16 %v1857
        %v4994 = vunpack.c.l.b16 %v1858
        %v4995 = vunpack.c.l.b16 %v1859
        %v4996 = vunpack.c.l.b16 %v1860
        %v4997 = vunpack.c.l.b16 %v1861
        %v4998 = vunpack.c.l.b16 %v1862
        %v4999 = vunpack.c.l.b16 %v1863
        %v5000 = vunpack.c.l.b16 %v1864
        %v5001 = vunpack.c.l.b16 %v1865
        %v5002 = vunpack.c.l.b16 %v1866
        %v5003 = vunpack.c.l.b16 %v1867
        %v5004 = vunpack.c.l.b16 %v1868
        %v5005 = vunpack.c.l.b16 %v1869
        %v5006 = vunpack.c.l.b16 %v1870
        %v5007 = vunpack.c.l.b16 %v1871
        %v5008 = vunpack.c.l.b16 %v1872
        %v5009 = vunpack.c.l.b16 %v1873
        %v5010 = vunpack.c.l.b16 %v1874
        %v5011 = vunpack.c.l.b16 %v1875
        %v5012 = vunpack.c.l.b16 %v1876
        %v5013 = vunpack.c.l.b16 %v1877
        %v5014 = vunpack.c.l.b16 %v1878
        %v5015 = vunpack.c.l.b16 %v1879
        %v5016 = vunpack.c.l.b16 %v1880
        %v5017 = vunpack.c.l.b16 %v1881
        %v5018 = vunpack.c.l.b16 %v1882
        %v5019 = vunpack.c.l.b16 %v1883
        %v5020 = vunpack.c.l.b16 %v1884
        %v5021 = vunpack.c.l.b16 %v1885
        %v5022 = vunpack.c.l.b16 %v1886
        %v5023 = vunpack.c.l.b16 %v1887
        %v5024 = vunpack.c.l.b16 %v1888
        %v5025 = vunpack.c.l.b16 %v1889
        %v5026 = vunpack.c.l.b16 %v1890
        %v5027 = vunpack.c.l.b16 %v1891
        %v5028 = vunpack.c.l.b16 %v1892
        %v5029 = vunpack.c.l.b16 %v1893
        %v5030 = vunpack.c.l.b16 %v1894
        %v5031 = vunpack.c.l.b16 %v1895
        %v5032 = vunpack.c.l.b16 %v1896
        %v5033 = vunpack.c.l.b16 %v1897
        %v5034 = vunpack.c.l.b16 %v1898
        %v5035 = vunpack.c.l.b16 %v1899
        %v5036 = vunpack.c.l.b16 %v1900
        %v5037 = vunpack.c.l.b16 %v1901
        %v5038 = vunpack.c.l.b16 %v1902
        %v5039 = vunpack.c.l.b16 %v1903
        %v5040 = vunpack.c.l.b16 %v1904
        %v5041 = vunpack.c.l.b16 %v1905
        %v5042 = vunpack.c.l.b16 %v1906
        %v5043 = vunpack.c.l.b16 %v1907
        %v5044 = vunpack.c.l.b16 %v1908
        %v5045 = vunpack.c.l.b16 %v1909
        %v5046 = vunpack.c.l.b16 %v1910
        %v5047 = vunpack.c.l.b16 %v1911
        %v5048 = vunpack.c.l.b16 %v1912
        %v5049 = vunpack.c.l.b16 %v1913
        %v5050 = vunpack.c.l.b16 %v1914
        %v5051 = vunpack.c.l.b16 %v1915
        %v5052 = vunpack.c.l.b16 %v1916
        %v5053 = vunpack.c.l.b16 %v1917
        %v5054 = vunpack.c.l.b16 %v1918
        %v5055 = vunpack.c.l.b16 %v1919
        %v5056 = vunpack.c.l.b16 %v1920
        %v5057 = vunpack.c.l.b16 %v1921
        %v5058 = vunpack.c.l.b16 %v1922
        %v5059 = vunpack.c.l.b16 %v1923
        %v5060 = vunpack.c.l.b16 %v1924
        %v5061 = vunpack.c.l.b16 %v1925
        %v5062 = vunpack.c.l.b16 %v1926
        %v5063 = vunpack.c.l.b16 %v1927
        %v5064 = vunpack.c.l.b16 %v1928
        %v5065 = vunpack.c.l.b16 %v1929
        %v5066 = vunpack.c.l.b16 %v1930
        %v5067 = vunpack.c.l.b16 %v1931
        %v5068 = vunpack.c.l.b16 %v1932
        %v5069 = vunpack.c.l.b16 %v1933
        %v5070 = vunpack.c.l.b16 %v1934
        %v5071 = vunpack.c.l.b16 %v1935
        %v5072 = vunpack.c.l.b16 %v1936
        %v5073 = vunpack.c.l.b16 %v1937
        %v5074 = vunpack.c.l.b16 %v1938
        %v5075 = vunpack.c.l.b16 %v1939
        %v5076 = vunpack.c.l.b16 %v1940
        %v5077 = vunpack.c.l.b16 %v1941
        %v5078 = vunpack.c.l.b16 %v1942
        %v5079 = vunpack.c.l.b16 %v1943
        %v5080 = vunpack.c.l.b16 %v1944
        %v5081 = vunpack.c.l.b16 %v1945
        %v5082 = vunpack.c.l.b16 %v1946
        %v5083 = vunpack.c.l.b16 %v1947
        %v5084 = vunpack.c.l.b16 %v1948
        %v5085 = vunpack.c.l.b16 %v1949
        %v5086 = vunpack.c.l.b16 %v1950
        %v5087 = vunpack.c.l.b16 %v1951
        %v5088 = vunpack.c.l.b16 %v1952
        %v5089 = vunpack.c.l.b16 %v1953
        %v5090 = vunpack.c.l.b16 %v1954
        %v5091 = vunpack.c.l.b16 %v1955
        %v5092 = vunpack.c.l.b16 %v1956
        %v5093 = vunpack.c.l.b16 %v1957
        %v5094 = vunpack.c.l.b16 %v1958
        %v5095 = vunpack.c.l.b16 %v1959
        %v5096 = vunpack.c.l.b16 %v1960
        %v5097 = vunpack.c.l.b16 %v1961
        %v5098 = vunpack.c.l.b16 %v1962
        %v5099 = vunpack.c.l.b16 %v1963
        %v5100 = vunpack.c.l.b16 %v1964
        %v5101 = vunpack.c.l.b16 %v1965
        %v5102 = vunpack.c.l.b16 %v1966
        %v5103 = vunpack.c.l.b16 %v1967
        %v5104 = vunpack.c.l.b16 %v1968
        %v5105 = vunpack.c.l.b16 %v1969
        %v5106 = vunpack.c.l.b16 %v1970
        %v5107 = vunpack.c.l.b16 %v1971
        %v5108 = vunpack.c.l.b16 %v1972
        %v5109 = vunpack.c.l.b16 %v1973
        %v5110 = vunpack.c.l.b16 %v1974
        %v5111 = vunpack.c.l.b16 %v1975
        %v5112 = vunpack.c.l.b16 %v1976
        %v5113 = vunpack.c.l.b16 %v1977
        %v5114 = vunpack.c.l.b16 %v1978
        %v5115 = vunpack.c.l.b16 %v1979
        %v5116 = vunpack.c.l.b16 %v1980
        %v5117 = vunpack.c.l.b16 %v1981
        %v5118 = vunpack.c.l.b16 %v1982
        %v5119 = vunpack.c.l.b16 %v1983
        %v5120 = vunpack.c.l.b16 %v1984
        %v5121 = vunpack.c.l.b16 %v1985
        %v5122 = vunpack.c.l.b16 %v1986
        %v5123 = vunpack.c.l.b16 %v1987
        %v5124 = vunpack.c.l.b16 %v1988
        %v5125 = vunpack.c.l.b16 %v1989
        %v5126 = vunpack.c.l.b16 %v1990
        %v5127 = vunpack.c.l.b16 %v1991
        %v5128 = vunpack.c.l.b16 %v1992
        %v5129 = vunpack.c.l.b16 %v1993
        %v5130 = vunpack.c.l.b16 %v1994
        %v5131 = vunpack.c.l.b16 %v1995
        %v5132 = vunpack.c.l.b16 %v1996
        %v5133 = vunpack.c.l.b16 %v1997
        %v5134 = vunpack.c.l.b16 %v1998
        %v5135 = vunpack.c.l.b16 %v1999
        %v5136 = vunpack.c.l.b16 %v2000
        %v5137 = vunpack.c.l.b16 %v2001
        %v5138 = vunpack.c.l.b16 %v2002
        %v5139 = vunpack.c.l.b16 %v2003
        %v5140 = vunpack.c.l.b16 %v2004
        %v5141 = vunpack.c.l.b16 %v2005
        %v5142 = vunpack.c.l.b16 %v2006
        %v5143 = vunpack.c.l.b16 %v2007
        %v5144 = vunpack.c.l.b16 %v2008
        %v5145 = vunpack.c.l.b16 %v2009
        %v5146 = vunpack.c.l.b16 %v2010
        %v5147 = vunpack.c.l.b16 %v2011
        %v5148 = vunpack.c.l.b16 %v2012
        %v5149 = vunpack.c.l.b16 %v2013
        %v5150 = vunpack.c.l.b16 %v2014
        %v5151 = vunpack.c.l.b16 %v2015
        %v5152 = vunpack.c.l.b16 %v2016
        %v5153 = vunpack.c.l.b16 %v2017
        %v5154 = vunpack.c.l.b16 %v2018
        %v5155 = vunpack.c.l.b16 %v2019
        %v5156 = vunpack.c.l.b16 %v2020
        %v5157 = vunpack.c.l.b16 %v2021
        %v5158 = vunpack.c.l.b16 %v2022
        %v5159 = vunpack.c.l.b16 %v2023
        %v5160 = vunpack.c.l.b16 %v2024
        %v5161 = vunpack.c.l.b16 %v2025
        %v5162 = vunpack.c.l.b16 %v2026
        %v5163 = vunpack.c.l.b16 %v2027
        %v5164 = vunpack.c.l.b16 %v2028
        %v5165 = vunpack.c.l.b16 %v2029
        %v5166 = vunpack.c.l.b16 %v2030
        %v5167 = vunpack.c.l.b16 %v2031
        %v5168 = vunpack.c.l.b16 %v2032
        %v5169 = vunpack.c.l.b16 %v2033
        %v5170 = vunpack.c.l.b16 %v2034
        %v5171 = vunpack.c.l.b16 %v2035
        %v5172 = vunpack.c.l.b16 %v2036
        %v5173 = vunpack.c.l.b16 %v2037
        %v5174 = vunpack.c.l.b16 %v2038
        %v5175 = vunpack.c.l.b16 %v2039
        %v5176 = vunpack.c.l.b16 %v2040
        %v5177 = vunpack.c.l.b16 %v2041
        %v5178 = vunpack.c.l.b16 %v2042
        %v5179 = vunpack.c.l.b16 %v2043
        %v5180 = vunpack.c.l.b16 %v2044
        %v5181 = vunpack.c.l.b16 %v2045
        %v5182 = vunpack.c.l.b16 %v2046
        %v5183 = vunpack.c.l.b16 %v2047
        %v5184 = vunpack.c.l.b16 %v2048
        %v5185 = vunpack.c.l.b16 %v2049
        %v5186 = vunpack.c.l.b16 %v2050
        %v5187 = vunpack.c.l.b16 %v2051
        %v5188 = vunpack.c.l.b16 %v2052
        %v5189 = vunpack.c.l.b16 %v2053
        %v5190 = vunpack.c.l.b16 %v2054
        %v5191 = vunpack.c.l.b16 %v2055
        %v5192 = vunpack.c.l.b16 %v2056
        %v5193 = vunpack.c.l.b16 %v2057
        %v5194 = vunpack.c.l.b16 %v2058
        %v5195 = vunpack.c.l.b16 %v2059
        %v5196 = vunpack.c.l.b16 %v2060
        %v5197 = vunpack.c.l.b16 %v2061
        %v5198 = vunpack.c.l.b16 %v2062
        %v5199 = vunpack.c.l.b16 %v2063
        %v5200 = vunpack.c.l.b16 %v2064
        %v5201 = vunpack.c.l.b16 %v2065
        %v5202 = vunpack.c.l.b16 %v2066
        %v5203 = vunpack.c.l.b16 %v2067
        %v5204 = vunpack.c.l.b16 %v2068
        %v5205 = vunpack.c.l.b16 %v2069
        %v5206 = vunpack.c.l.b16 %v2070
        %v5207 = vunpack.c.l.b16 %v2071
        %v5208 = vunpack.c.l.b16 %v2072
        %v5209 = vunpack.c.l.b16 %v2073
        %v5210 = vunpack.c.l.b16 %v2074
        %v5211 = vunpack.c.l.b16 %v2075
        %v5212 = vunpack.c.l.b16 %v2076
        %v5213 = vunpack.c.l.b16 %v2077
        %v5214 = vpack.c.b16 %v3647, %v3646
        %v5215 = vpack.c.b16 %v3649, %v3648
        %v5216 = vpack.c.b16 %v3651, %v3650
        %v5217 = vpack.c.b16 %v3653, %v3652
        %v5218 = vpack.c.b16 %v3655, %v3654
        %v5219 = vpack.c.b16 %v3657, %v3656
        %v5220 = vpack.c.b16 %v3659, %v3658
        %v5221 = vpack.c.b16 %v3661, %v3660
        %v5222 = vpack.c.b16 %v3663, %v3662
        %v5223 = vpack.c.b16 %v3665, %v3664
        %v5224 = vpack.c.b16 %v3667, %v3666
        %v5225 = vpack.c.b16 %v3669, %v3668
        %v5226 = vpack.c.b16 %v3671, %v3670
        %v5227 = vpack.c.b16 %v3673, %v3672
        %v5228 = vpack.c.b16 %v3675, %v3674
        %v5229 = vpack.c.b16 %v3677, %v3676
        %v5230 = vpack.c.b16 %v3679, %v3678
        %v5231 = vpack.c.b16 %v3681, %v3680
        %v5232 = vpack.c.b16 %v3683, %v3682
        %v5233 = vpack.c.b16 %v3685, %v3684
        %v5234 = vpack.c.b16 %v3687, %v3686
        %v5235 = vpack.c.b16 %v3689, %v3688
        %v5236 = vpack.c.b16 %v3691, %v3690
        %v5237 = vpack.c.b16 %v3693, %v3692
        %v5238 = vpack.c.b16 %v3695, %v3694
        %v5239 = vpack.c.b16 %v3697, %v3696
        %v5240 = vpack.c.b16 %v3699, %v3698
        %v5241 = vpack.c.b16 %v3701, %v3700
        %v5242 = vpack.c.b16 %v3703, %v3702
        %v5243 = vpack.c.b16 %v3705, %v3704
        %v5244 = vpack.c.b16 %v3707, %v3706
        %v5245 = vpack.c.b16 %v3709, %v3708
        %v5246 = vpack.c.b16 %v3711, %v3710
        %v5247 = vpack.c.b16 %v3713, %v3712
        %v5248 = vpack.c.b16 %v3715, %v3714
        %v5249 = vpack.c.b16 %v3717, %v3716
        %v5250 = vpack.c.b16 %v3719, %v3718
        %v5251 = vpack.c.b16 %v3721, %v3720
        %v5252 = vpack.c.b16 %v3723, %v3722
        %v5253 = vpack.c.b16 %v3725, %v3724
        %v5254 = vpack.c.b16 %v3727, %v3726
        %v5255 = vpack.c.b16 %v3729, %v3728
        %v5256 = vpack.c.b16 %v3731, %v3730
        %v5257 = vpack.c.b16 %v3733, %v3732
        %v5258 = vpack.c.b16 %v3735, %v3734
        %v5259 = vpack.c.b16 %v3737, %v3736
        %v5260 = vpack.c.b16 %v3739, %v3738
        %v5261 = vpack.c.b16 %v3741, %v3740
        %v5262 = vpack.c.b16 %v3743, %v3742
        %v5263 = vpack.c.b16 %v3745, %v3744
        %v5264 = vpack.c.b16 %v3747, %v3746
        %v5265 = vpack.c.b16 %v3749, %v3748
        %v5266 = vpack.c.b16 %v3751, %v3750
        %v5267 = vpack.c.b16 %v3753, %v3752
        %v5268 = vpack.c.b16 %v3755, %v3754
        %v5269 = vpack.c.b16 %v3757, %v3756
        %v5270 = vpack.c.b16 %v3759, %v3758
        %v5271 = vpack.c.b16 %v3761, %v3760
        %v5272 = vpack.c.b16 %v3763, %v3762
        %v5273 = vpack.c.b16 %v3765, %v3764
        %v5274 = vpack.c.b16 %v3767, %v3766
        %v5275 = vpack.c.b16 %v3769, %v3768
        %v5276 = vpack.c.b16 %v3771, %v3770
        %v5277 = vpack.c.b16 %v3773, %v3772
        %v5278 = vpack.c.b16 %v3775, %v3774
        %v5279 = vpack.c.b16 %v3777, %v3776
        %v5280 = vpack.c.b16 %v3779, %v3778
        %v5281 = vpack.c.b16 %v3781, %v3780
        %v5282 = vpack.c.b16 %v3783, %v3782
        %v5283 = vpack.c.b16 %v3785, %v3784
        %v5284 = vpack.c.b16 %v3787, %v3786
        %v5285 = vpack.c.b16 %v3789, %v3788
        %v5286 = vpack.c.b16 %v3791, %v3790
        %v5287 = vpack.c.b16 %v3793, %v3792
        %v5288 = vpack.c.b16 %v3795, %v3794
        %v5289 = vpack.c.b16 %v3797, %v3796
        %v5290 = vpack.c.b16 %v3799, %v3798
        %v5291 = vpack.c.b16 %v3801, %v3800
        %v5292 = vpack.c.b16 %v3803, %v3802
        %v5293 = vpack.c.b16 %v3805, %v3804
        %v5294 = vpack.c.b16 %v3807, %v3806
        %v5295 = vpack.c.b16 %v3809, %v3808
        %v5296 = vpack.c.b16 %v3811, %v3810
        %v5297 = vpack.c.b16 %v3813, %v3812
        %v5298 = vpack.c.b16 %v3815, %v3814
        %v5299 = vpack.c.b16 %v3817, %v3816
        %v5300 = vpack.c.b16 %v3819, %v3818
        %v5301 = vpack.c.b16 %v3821, %v3820
        %v5302 = vpack.c.b16 %v3823, %v3822
        %v5303 = vpack.c.b16 %v3825, %v3824
        %v5304 = vpack.c.b16 %v3827, %v3826
        %v5305 = vpack.c.b16 %v3829, %v3828
        %v5306 = vpack.c.b16 %v3831, %v3830
        %v5307 = vpack.c.b16 %v3833, %v3832
        %v5308 = vpack.c.b16 %v3835, %v3834
        %v5309 = vpack.c.b16 %v3837, %v3836
        %v5310 = vpack.c.b16 %v3839, %v3838
        %v5311 = vpack.c.b16 %v3841, %v3840
        %v5312 = vpack.c.b16 %v3843, %v3842
        %v5313 = vpack.c.b16 %v3845, %v3844
        %v5314 = vpack.c.b16 %v3847, %v3846
        %v5315 = vpack.c.b16 %v3849, %v3848
        %v5316 = vpack.c.b16 %v3851, %v3850
        %v5317 = vpack.c.b16 %v3853, %v3852
        %v5318 = vpack.c.b16 %v3855, %v3854
        %v5319 = vpack.c.b16 %v3857, %v3856
        %v5320 = vpack.c.b16 %v3859, %v3858
        %v5321 = vpack.c.b16 %v3861, %v3860
        %v5322 = vpack.c.b16 %v3863, %v3862
        %v5323 = vpack.c.b16 %v3865, %v3864
        %v5324 = vpack.c.b16 %v3867, %v3866
        %v5325 = vpack.c.b16 %v3869, %v3868
        %v5326 = vpack.c.b16 %v3871, %v3870
        %v5327 = vpack.c.b16 %v3873, %v3872
        %v5328 = vpack.c.b16 %v3875, %v3874
        %v5329 = vpack.c.b16 %v3877, %v3876
        %v5330 = vpack.c.b16 %v3879, %v3878
        %v5331 = vpack.c.b16 %v3881, %v3880
        %v5332 = vpack.c.b16 %v3883, %v3882
        %v5333 = vpack.c.b16 %v3885, %v3884
        %v5334 = vpack.c.b16 %v3887, %v3886
        %v5335 = vpack.c.b16 %v3889, %v3888
        %v5336 = vpack.c.b16 %v3891, %v3890
        %v5337 = vpack.c.b16 %v3893, %v3892
        %v5338 = vpack.c.b16 %v3895, %v3894
        %v5339 = vpack.c.b16 %v3897, %v3896
        %v5340 = vpack.c.b16 %v3899, %v3898
        %v5341 = vpack.c.b16 %v3901, %v3900
        %v5342 = vpack.c.b16 %v3903, %v3902
        %v5343 = vpack.c.b16 %v3905, %v3904
        %v5344 = vpack.c.b16 %v3907, %v3906
        %v5345 = vpack.c.b16 %v3909, %v3908
        %v5346 = vpack.c.b16 %v3911, %v3910
        %v5347 = vpack.c.b16 %v3913, %v3912
        %v5348 = vpack.c.b16 %v3915, %v3914
        %v5349 = vpack.c.b16 %v3917, %v3916
        %v5350 = vpack.c.b16 %v3919, %v3918
        %v5351 = vpack.c.b16 %v3921, %v3920
        %v5352 = vpack.c.b16 %v3923, %v3922
        %v5353 = vpack.c.b16 %v3925, %v3924
        %v5354 = vpack.c.b16 %v3927, %v3926
        %v5355 = vpack.c.b16 %v3929, %v3928
        %v5356 = vpack.c.b16 %v3931, %v3930
        %v5357 = vpack.c.b16 %v3933, %v3932
        %v5358 = vpack.c.b16 %v3935, %v3934
        %v5359 = vpack.c.b16 %v3937, %v3936
        %v5360 = vpack.c.b16 %v3939, %v3938
        %v5361 = vpack.c.b16 %v3941, %v3940
        %v5362 = vpack.c.b16 %v3943, %v3942
        %v5363 = vpack.c.b16 %v3945, %v3944
        %v5364 = vpack.c.b16 %v3947, %v3946
        %v5365 = vpack.c.b16 %v3949, %v3948
        %v5366 = vpack.c.b16 %v3951, %v3950
        %v5367 = vpack.c.b16 %v3953, %v3952
        %v5368 = vpack.c.b16 %v3955, %v3954
        %v5369 = vpack.c.b16 %v3957, %v3956
        %v5370 = vpack.c.b16 %v3959, %v3958
        %v5371 = vpack.c.b16 %v3961, %v3960
        %v5372 = vpack.c.b16 %v3963, %v3962
        %v5373 = vpack.c.b16 %v3965, %v3964
        %v5374 = vpack.c.b16 %v3967, %v3966
        %v5375 = vpack.c.b16 %v3969, %v3968
        %v5376 = vpack.c.b16 %v3971, %v3970
        %v5377 = vpack.c.b16 %v3973, %v3972
        %v5378 = vpack.c.b16 %v3975, %v3974
        %v5379 = vpack.c.b16 %v3977, %v3976
        %v5380 = vpack.c.b16 %v3979, %v3978
        %v5381 = vpack.c.b16 %v3981, %v3980
        %v5382 = vpack.c.b16 %v3983, %v3982
        %v5383 = vpack.c.b16 %v3985, %v3984
        %v5384 = vpack.c.b16 %v3987, %v3986
        %v5385 = vpack.c.b16 %v3989, %v3988
        %v5386 = vpack.c.b16 %v3991, %v3990
        %v5387 = vpack.c.b16 %v3993, %v3992
        %v5388 = vpack.c.b16 %v3995, %v3994
        %v5389 = vpack.c.b16 %v3997, %v3996
        %v5390 = vpack.c.b16 %v3999, %v3998
        %v5391 = vpack.c.b16 %v4001, %v4000
        %v5392 = vpack.c.b16 %v4003, %v4002
        %v5393 = vpack.c.b16 %v4005, %v4004
        %v5394 = vpack.c.b16 %v4007, %v4006
        %v5395 = vpack.c.b16 %v4009, %v4008
        %v5396 = vpack.c.b16 %v4011, %v4010
        %v5397 = vpack.c.b16 %v4013, %v4012
        %v5398 = vpack.c.b16 %v4015, %v4014
        %v5399 = vpack.c.b16 %v4017, %v4016
        %v5400 = vpack.c.b16 %v4019, %v4018
        %v5401 = vpack.c.b16 %v4021, %v4020
        %v5402 = vpack.c.b16 %v4023, %v4022
        %v5403 = vpack.c.b16 %v4025, %v4024
        %v5404 = vpack.c.b16 %v4027, %v4026
        %v5405 = vpack.c.b16 %v4029, %v4028
        %v5406 = vpack.c.b16 %v4031, %v4030
        %v5407 = vpack.c.b16 %v4033, %v4032
        %v5408 = vpack.c.b16 %v4035, %v4034
        %v5409 = vpack.c.b16 %v4037, %v4036
        %v5410 = vpack.c.b16 %v4039, %v4038
        %v5411 = vpack.c.b16 %v4041, %v4040
        %v5412 = vpack.c.b16 %v4043, %v4042
        %v5413 = vpack.c.b16 %v4045, %v4044
        %v5414 = vpack.c.b16 %v4047, %v4046
        %v5415 = vpack.c.b16 %v4049, %v4048
        %v5416 = vpack.c.b16 %v4051, %v4050
        %v5417 = vpack.c.b16 %v4053, %v4052
        %v5418 = vpack.c.b16 %v4055, %v4054
        %v5419 = vpack.c.b16 %v4057, %v4056
        %v5420 = vpack.c.b16 %v4059, %v4058
        %v5421 = vpack.c.b16 %v4061, %v4060
        %v5422 = vpack.c.b16 %v4063, %v4062
        %v5423 = vpack.c.b16 %v4065, %v4064
        %v5424 = vpack.c.b16 %v4067, %v4066
        %v5425 = vpack.c.b16 %v4069, %v4068
        %v5426 = vpack.c.b16 %v4071, %v4070
        %v5427 = vpack.c.b16 %v4073, %v4072
        %v5428 = vpack.c.b16 %v4075, %v4074
        %v5429 = vpack.c.b16 %v4077, %v4076
        %v5430 = vpack.c.b16 %v4079, %v4078
        %v5431 = vpack.c.b16 %v4081, %v4080
        %v5432 = vpack.c.b16 %v4083, %v4082
        %v5433 = vpack.c.b16 %v4085, %v4084
        %v5434 = vpack.c.b16 %v4087, %v4086
        %v5435 = vpack.c.b16 %v4089, %v4088
        %v5436 = vpack.c.b16 %v4091, %v4090
        %v5437 = vpack.c.b16 %v4093, %v4092
        %v5438 = vpack.c.b16 %v4095, %v4094
        %v5439 = vpack.c.b16 %v4097, %v4096
        %v5440 = vpack.c.b16 %v4099, %v4098
        %v5441 = vpack.c.b16 %v4101, %v4100
        %v5442 = vpack.c.b16 %v4103, %v4102
        %v5443 = vpack.c.b16 %v4105, %v4104
        %v5444 = vpack.c.b16 %v4107, %v4106
        %v5445 = vpack.c.b16 %v4109, %v4108
        %v5446 = vpack.c.b16 %v4111, %v4110
        %v5447 = vpack.c.b16 %v4113, %v4112
        %v5448 = vpack.c.b16 %v4115, %v4114
        %v5449 = vpack.c.b16 %v4117, %v4116
        %v5450 = vpack.c.b16 %v4119, %v4118
        %v5451 = vpack.c.b16 %v4121, %v4120
        %v5452 = vpack.c.b16 %v4123, %v4122
        %v5453 = vpack.c.b16 %v4125, %v4124
        %v5454 = vpack.c.b16 %v4127, %v4126
        %v5455 = vpack.c.b16 %v4129, %v4128
        %v5456 = vpack.c.b16 %v4131, %v4130
        %v5457 = vpack.c.b16 %v4133, %v4132
        %v5458 = vpack.c.b16 %v4135, %v4134
        %v5459 = vpack.c.b16 %v4137, %v4136
        %v5460 = vpack.c.b16 %v4139, %v4138
        %v5461 = vpack.c.b16 %v4141, %v4140
        %v5462 = vpack.c.b16 %v4143, %v4142
        %v5463 = vpack.c.b16 %v4145, %v4144
        %v5464 = vpack.c.b16 %v4147, %v4146
        %v5465 = vpack.c.b16 %v4149, %v4148
        %v5466 = vpack.c.b16 %v4151, %v4150
        %v5467 = vpack.c.b16 %v4153, %v4152
        %v5468 = vpack.c.b16 %v4155, %v4154
        %v5469 = vpack.c.b16 %v4157, %v4156
        %v5470 = vpack.c.b16 %v4159, %v4158
        %v5471 = vpack.c.b16 %v4161, %v4160
        %v5472 = vpack.c.b16 %v4163, %v4162
        %v5473 = vpack.c.b16 %v4165, %v4164
        %v5474 = vpack.c.b16 %v4167, %v4166
        %v5475 = vpack.c.b16 %v4169, %v4168
        %v5476 = vpack.c.b16 %v4171, %v4170
        %v5477 = vpack.c.b16 %v4173, %v4172
        %v5478 = vpack.c.b16 %v4175, %v4174
        %v5479 = vpack.c.b16 %v4177, %v4176
        %v5480 = vpack.c.b16 %v4179, %v4178
        %v5481 = vpack.c.b16 %v4181, %v4180
        %v5482 = vpack.c.b16 %v4183, %v4182
        %v5483 = vpack.c.b16 %v4185, %v4184
        %v5484 = vpack.c.b16 %v4187, %v4186
        %v5485 = vpack.c.b16 %v4189, %v4188
        %v5486 = vpack.c.b16 %v4191, %v4190
        %v5487 = vpack.c.b16 %v4193, %v4192
        %v5488 = vpack.c.b16 %v4195, %v4194
        %v5489 = vpack.c.b16 %v4197, %v4196
        %v5490 = vpack.c.b16 %v4199, %v4198
        %v5491 = vpack.c.b16 %v4201, %v4200
        %v5492 = vpack.c.b16 %v4203, %v4202
        %v5493 = vpack.c.b16 %v4205, %v4204
        %v5494 = vpack.c.b16 %v4207, %v4206
        %v5495 = vpack.c.b16 %v4209, %v4208
        %v5496 = vpack.c.b16 %v4211, %v4210
        %v5497 = vpack.c.b16 %v4213, %v4212
        %v5498 = vpack.c.b16 %v4215, %v4214
        %v5499 = vpack.c.b16 %v4217, %v4216
        %v5500 = vpack.c.b16 %v4219, %v4218
        %v5501 = vpack.c.b16 %v4221, %v4220
        %v5502 = vpack.c.b16 %v4223, %v4222
        %v5503 = vpack.c.b16 %v4225, %v4224
        %v5504 = vpack.c.b16 %v4227, %v4226
        %v5505 = vpack.c.b16 %v4229, %v4228
        %v5506 = vpack.c.b16 %v4231, %v4230
        %v5507 = vpack.c.b16 %v4233, %v4232
        %v5508 = vpack.c.b16 %v4235, %v4234
        %v5509 = vpack.c.b16 %v4237, %v4236
        %v5510 = vpack.c.b16 %v4239, %v4238
        %v5511 = vpack.c.b16 %v4241, %v4240
        %v5512 = vpack.c.b16 %v4243, %v4242
        %v5513 = vpack.c.b16 %v4245, %v4244
        %v5514 = vpack.c.b16 %v4247, %v4246
        %v5515 = vpack.c.b16 %v4249, %v4248
        %v5516 = vpack.c.b16 %v4251, %v4250
        %v5517 = vpack.c.b16 %v4253, %v4252
        %v5518 = vpack.c.b16 %v4255, %v4254
        %v5519 = vpack.c.b16 %v4257, %v4256
        %v5520 = vpack.c.b16 %v4259, %v4258
        %v5521 = vpack.c.b16 %v4261, %v4260
        %v5522 = vpack.c.b16 %v4263, %v4262
        %v5523 = vpack.c.b16 %v4265, %v4264
        %v5524 = vpack.c.b16 %v4267, %v4266
        %v5525 = vpack.c.b16 %v4269, %v4268
        %v5526 = vpack.c.b16 %v4271, %v4270
        %v5527 = vpack.c.b16 %v4273, %v4272
        %v5528 = vpack.c.b16 %v4275, %v4274
        %v5529 = vpack.c.b16 %v4277, %v4276
        %v5530 = vpack.c.b16 %v4279, %v4278
        %v5531 = vpack.c.b16 %v4281, %v4280
        %v5532 = vpack.c.b16 %v4283, %v4282
        %v5533 = vpack.c.b16 %v4285, %v4284
        %v5534 = vpack.c.b16 %v4287, %v4286
        %v5535 = vpack.c.b16 %v4289, %v4288
        %v5536 = vpack.c.b16 %v4291, %v4290
        %v5537 = vpack.c.b16 %v4293, %v4292
        %v5538 = vpack.c.b16 %v4295, %v4294
        %v5539 = vpack.c.b16 %v4297, %v4296
        %v5540 = vpack.c.b16 %v4299, %v4298
        %v5541 = vpack.c.b16 %v4301, %v4300
        %v5542 = vpack.c.b16 %v4303, %v4302
        %v5543 = vpack.c.b16 %v4305, %v4304
        %v5544 = vpack.c.b16 %v4307, %v4306
        %v5545 = vpack.c.b16 %v4309, %v4308
        %v5546 = vpack.c.b16 %v4311, %v4310
        %v5547 = vpack.c.b16 %v4313, %v4312
        %v5548 = vpack.c.b16 %v4315, %v4314
        %v5549 = vpack.c.b16 %v4317, %v4316
        %v5550 = vpack.c.b16 %v4319, %v4318
        %v5551 = vpack.c.b16 %v4321, %v4320
        %v5552 = vpack.c.b16 %v4323, %v4322
        %v5553 = vpack.c.b16 %v4325, %v4324
        %v5554 = vpack.c.b16 %v4327, %v4326
        %v5555 = vpack.c.b16 %v4329, %v4328
        %v5556 = vpack.c.b16 %v4331, %v4330
        %v5557 = vpack.c.b16 %v4333, %v4332
        %v5558 = vpack.c.b16 %v4335, %v4334
        %v5559 = vpack.c.b16 %v4337, %v4336
        %v5560 = vpack.c.b16 %v4339, %v4338
        %v5561 = vpack.c.b16 %v4341, %v4340
        %v5562 = vpack.c.b16 %v4343, %v4342
        %v5563 = vpack.c.b16 %v4345, %v4344
        %v5564 = vpack.c.b16 %v4347, %v4346
        %v5565 = vpack.c.b16 %v4349, %v4348
        %v5566 = vpack.c.b16 %v4351, %v4350
        %v5567 = vpack.c.b16 %v4353, %v4352
        %v5568 = vpack.c.b16 %v4355, %v4354
        %v5569 = vpack.c.b16 %v4357, %v4356
        %v5570 = vpack.c.b16 %v4359, %v4358
        %v5571 = vpack.c.b16 %v4361, %v4360
        %v5572 = vpack.c.b16 %v4363, %v4362
        %v5573 = vpack.c.b16 %v4365, %v4364
        %v5574 = vpack.c.b16 %v4367, %v4366
        %v5575 = vpack.c.b16 %v4369, %v4368
        %v5576 = vpack.c.b16 %v4371, %v4370
        %v5577 = vpack.c.b16 %v4373, %v4372
        %v5578 = vpack.c.b16 %v4375, %v4374
        %v5579 = vpack.c.b16 %v4377, %v4376
        %v5580 = vpack.c.b16 %v4379, %v4378
        %v5581 = vpack.c.b16 %v4381, %v4380
        %v5582 = vpack.c.b16 %v4383, %v4382
        %v5583 = vpack.c.b16 %v4385, %v4384
        %v5584 = vpack.c.b16 %v4387, %v4386
        %v5585 = vpack.c.b16 %v4389, %v4388
        %v5586 = vpack.c.b16 %v4391, %v4390
        %v5587 = vpack.c.b16 %v4393, %v4392
        %v5588 = vpack.c.b16 %v4395, %v4394
        %v5589 = vpack.c.b16 %v4397, %v4396
        %v5590 = vpack.c.b16 %v4399, %v4398
        %v5591 = vpack.c.b16 %v4401, %v4400
        %v5592 = vpack.c.b16 %v4403, %v4402
        %v5593 = vpack.c.b16 %v4405, %v4404
        %v5594 = vpack.c.b16 %v4407, %v4406
        %v5595 = vpack.c.b16 %v4409, %v4408
        %v5596 = vpack.c.b16 %v4411, %v4410
        %v5597 = vpack.c.b16 %v4413, %v4412
        %v5598 = vpack.c.b16 %v4415, %v4414
        %v5599 = vpack.c.b16 %v4417, %v4416
        %v5600 = vpack.c.b16 %v4419, %v4418
        %v5601 = vpack.c.b16 %v4421, %v4420
        %v5602 = vpack.c.b16 %v4423, %v4422
        %v5603 = vpack.c.b16 %v4425, %v4424
        %v5604 = vpack.c.b16 %v4427, %v4426
        %v5605 = vpack.c.b16 %v4429, %v4428
        %v5606 = vpack.c.b16 %v4431, %v4430
        %v5607 = vpack.c.b16 %v4433, %v4432
        %v5608 = vpack.c.b16 %v4435, %v4434
        %v5609 = vpack.c.b16 %v4437, %v4436
        %v5610 = vpack.c.b16 %v4439, %v4438
        %v5611 = vpack.c.b16 %v4441, %v4440
        %v5612 = vpack.c.b16 %v4443, %v4442
        %v5613 = vpack.c.b16 %v4445, %v4444
        %v5614 = vpack.c.b16 %v4447, %v4446
        %v5615 = vpack.c.b16 %v4449, %v4448
        %v5616 = vpack.c.b16 %v4451, %v4450
        %v5617 = vpack.c.b16 %v4453, %v4452
        %v5618 = vpack.c.b16 %v4455, %v4454
        %v5619 = vpack.c.b16 %v4457, %v4456
        %v5620 = vpack.c.b16 %v4459, %v4458
        %v5621 = vpack.c.b16 %v4461, %v4460
        %v5622 = vpack.c.b16 %v4463, %v4462
        %v5623 = vpack.c.b16 %v4465, %v4464
        %v5624 = vpack.c.b16 %v4467, %v4466
        %v5625 = vpack.c.b16 %v4469, %v4468
        %v5626 = vpack.c.b16 %v4471, %v4470
        %v5627 = vpack.c.b16 %v4473, %v4472
        %v5628 = vpack.c.b16 %v4475, %v4474
        %v5629 = vpack.c.b16 %v4477, %v4476
        %v5630 = vpack.c.b16 %v4479, %v4478
        %v5631 = vpack.c.b16 %v4481, %v4480
        %v5632 = vpack.c.b16 %v4483, %v4482
        %v5633 = vpack.c.b16 %v4485, %v4484
        %v5634 = vpack.c.b16 %v4487, %v4486
        %v5635 = vpack.c.b16 %v4489, %v4488
        %v5636 = vpack.c.b16 %v4491, %v4490
        %v5637 = vpack.c.b16 %v4493, %v4492
        %v5638 = vpack.c.b16 %v4495, %v4494
        %v5639 = vpack.c.b16 %v4497, %v4496
        %v5640 = vpack.c.b16 %v4499, %v4498
        %v5641 = vpack.c.b16 %v4501, %v4500
        %v5642 = vpack.c.b16 %v4503, %v4502
        %v5643 = vpack.c.b16 %v4505, %v4504
        %v5644 = vpack.c.b16 %v4507, %v4506
        %v5645 = vpack.c.b16 %v4509, %v4508
        %v5646 = vpack.c.b16 %v4511, %v4510
        %v5647 = vpack.c.b16 %v4513, %v4512
        %v5648 = vpack.c.b16 %v4515, %v4514
        %v5649 = vpack.c.b16 %v4517, %v4516
        %v5650 = vpack.c.b16 %v4519, %v4518
        %v5651 = vpack.c.b16 %v4521, %v4520
        %v5652 = vpack.c.b16 %v4523, %v4522
        %v5653 = vpack.c.b16 %v4525, %v4524
        %v5654 = vpack.c.b16 %v4527, %v4526
        %v5655 = vpack.c.b16 %v4529, %v4528
        %v5656 = vpack.c.b16 %v4531, %v4530
        %v5657 = vpack.c.b16 %v4533, %v4532
        %v5658 = vpack.c.b16 %v4535, %v4534
        %v5659 = vpack.c.b16 %v4537, %v4536
        %v5660 = vpack.c.b16 %v4539, %v4538
        %v5661 = vpack.c.b16 %v4541, %v4540
        %v5662 = vpack.c.b16 %v4543, %v4542
        %v5663 = vpack.c.b16 %v4545, %v4544
        %v5664 = vpack.c.b16 %v4547, %v4546
        %v5665 = vpack.c.b16 %v4549, %v4548
        %v5666 = vpack.c.b16 %v4551, %v4550
        %v5667 = vpack.c.b16 %v4553, %v4552
        %v5668 = vpack.c.b16 %v4555, %v4554
        %v5669 = vpack.c.b16 %v4557, %v4556
        %v5670 = vpack.c.b16 %v4559, %v4558
        %v5671 = vpack.c.b16 %v4561, %v4560
        %v5672 = vpack.c.b16 %v4563, %v4562
        %v5673 = vpack.c.b16 %v4565, %v4564
        %v5674 = vpack.c.b16 %v4567, %v4566
        %v5675 = vpack.c.b16 %v4569, %v4568
        %v5676 = vpack.c.b16 %v4571, %v4570
        %v5677 = vpack.c.b16 %v4573, %v4572
        %v5678 = vpack.c.b16 %v4575, %v4574
        %v5679 = vpack.c.b16 %v4577, %v4576
        %v5680 = vpack.c.b16 %v4579, %v4578
        %v5681 = vpack.c.b16 %v4581, %v4580
        %v5682 = vpack.c.b16 %v4583, %v4582
        %v5683 = vpack.c.b16 %v4585, %v4584
        %v5684 = vpack.c.b16 %v4587, %v4586
        %v5685 = vpack.c.b16 %v4589, %v4588
        %v5686 = vpack.c.b16 %v4591, %v4590
        %v5687 = vpack.c.b16 %v4593, %v4592
        %v5688 = vpack.c.b16 %v4595, %v4594
        %v5689 = vpack.c.b16 %v4597, %v4596
        %v5690 = vpack.c.b16 %v4599, %v4598
        %v5691 = vpack.c.b16 %v4601, %v4600
        %v5692 = vpack.c.b16 %v4603, %v4602
        %v5693 = vpack.c.b16 %v4605, %v4604
        %v5694 = vpack.c.b16 %v4607, %v4606
        %v5695 = vpack.c.b16 %v4609, %v4608
        %v5696 = vpack.c.b16 %v4611, %v4610
        %v5697 = vpack.c.b16 %v4613, %v4612
        %v5698 = vpack.c.b16 %v4615, %v4614
        %v5699 = vpack.c.b16 %v4617, %v4616
        %v5700 = vpack.c.b16 %v4619, %v4618
        %v5701 = vpack.c.b16 %v4621, %v4620
        %v5702 = vpack.c.b16 %v4623, %v4622
        %v5703 = vpack.c.b16 %v4625, %v4624
        %v5704 = vpack.c.b16 %v4627, %v4626
        %v5705 = vpack.c.b16 %v4629, %v4628
        %v5706 = vpack.c.b16 %v4631, %v4630
        %v5707 = vpack.c.b16 %v4633, %v4632
        %v5708 = vpack.c.b16 %v4635, %v4634
        %v5709 = vpack.c.b16 %v4637, %v4636
        %v5710 = vpack.c.b16 %v4639, %v4638
        %v5711 = vpack.c.b16 %v4641, %v4640
        %v5712 = vpack.c.b16 %v4643, %v4642
        %v5713 = vpack.c.b16 %v4645, %v4644
        %v5714 = vpack.c.b16 %v4647, %v4646
        %v5715 = vpack.c.b16 %v4649, %v4648
        %v5716 = vpack.c.b16 %v4651, %v4650
        %v5717 = vpack.c.b16 %v4653, %v4652
        %v5718 = vpack.c.b16 %v4655, %v4654
        %v5719 = vpack.c.b16 %v4657, %v4656
        %v5720 = vpack.c.b16 %v4659, %v4658
        %v5721 = vpack.c.b16 %v4661, %v4660
        %v5722 = vpack.c.b16 %v4663, %v4662
        %v5723 = vpack.c.b16 %v4665, %v4664
        %v5724 = vpack.c.b16 %v4667, %v4666
        %v5725 = vpack.c.b16 %v4669, %v4668
        %v5726 = vpack.c.b16 %v4671, %v4670
        %v5727 = vpack.c.b16 %v4673, %v4672
        %v5728 = vpack.c.b16 %v4675, %v4674
        %v5729 = vpack.c.b16 %v4677, %v4676
        %v5730 = vpack.c.b16 %v4679, %v4678
        %v5731 = vpack.c.b16 %v4681, %v4680
        %v5732 = vpack.c.b16 %v4683, %v4682
        %v5733 = vpack.c.b16 %v4685, %v4684
        %v5734 = vpack.c.b16 %v4687, %v4686
        %v5735 = vpack.c.b16 %v4689, %v4688
        %v5736 = vpack.c.b16 %v4691, %v4690
        %v5737 = vpack.c.b16 %v4693, %v4692
        %v5738 = vpack.c.b16 %v4695, %v4694
        %v5739 = vpack.c.b16 %v4697, %v4696
        %v5740 = vpack.c.b16 %v4699, %v4698
        %v5741 = vpack.c.b16 %v4701, %v4700
        %v5742 = vpack.c.b16 %v4703, %v4702
        %v5743 = vpack.c.b16 %v4705, %v4704
        %v5744 = vpack.c.b16 %v4707, %v4706
        %v5745 = vpack.c.b16 %v4709, %v4708
        %v5746 = vpack.c.b16 %v4711, %v4710
        %v5747 = vpack.c.b16 %v4713, %v4712
        %v5748 = vpack.c.b16 %v4715, %v4714
        %v5749 = vpack.c.b16 %v4717, %v4716
        %v5750 = vpack.c.b16 %v4719, %v4718
        %v5751 = vpack.c.b16 %v4721, %v4720
        %v5752 = vpack.c.b16 %v4723, %v4722
        %v5753 = vpack.c.b16 %v4725, %v4724
        %v5754 = vpack.c.b16 %v4727, %v4726
        %v5755 = vpack.c.b16 %v4729, %v4728
        %v5756 = vpack.c.b16 %v4731, %v4730
        %v5757 = vpack.c.b16 %v4733, %v4732
        %v5758 = vpack.c.b16 %v4735, %v4734
        %v5759 = vpack.c.b16 %v4737, %v4736
        %v5760 = vpack.c.b16 %v4739, %v4738
        %v5761 = vpack.c.b16 %v4741, %v4740
        %v5762 = vpack.c.b16 %v4743, %v4742
        %v5763 = vpack.c.b16 %v4745, %v4744
        %v5764 = vpack.c.b16 %v4747, %v4746
        %v5765 = vpack.c.b16 %v4749, %v4748
        %v5766 = vpack.c.b16 %v4751, %v4750
        %v5767 = vpack.c.b16 %v4753, %v4752
        %v5768 = vpack.c.b16 %v4755, %v4754
        %v5769 = vpack.c.b16 %v4757, %v4756
        %v5770 = vpack.c.b16 %v4759, %v4758
        %v5771 = vpack.c.b16 %v4761, %v4760
        %v5772 = vpack.c.b16 %v4763, %v4762
        %v5773 = vpack.c.b16 %v4765, %v4764
        %v5774 = vpack.c.b16 %v4767, %v4766
        %v5775 = vpack.c.b16 %v4769, %v4768
        %v5776 = vpack.c.b16 %v4771, %v4770
        %v5777 = vpack.c.b16 %v4773, %v4772
        %v5778 = vpack.c.b16 %v4775, %v4774
        %v5779 = vpack.c.b16 %v4777, %v4776
        %v5780 = vpack.c.b16 %v4779, %v4778
        %v5781 = vpack.c.b16 %v4781, %v4780
        %v5782 = vpack.c.b16 %v4783, %v4782
        %v5783 = vpack.c.b16 %v4785, %v4784
        %v5784 = vpack.c.b16 %v4787, %v4786
        %v5785 = vpack.c.b16 %v4789, %v4788
        %v5786 = vpack.c.b16 %v4791, %v4790
        %v5787 = vpack.c.b16 %v4793, %v4792
        %v5788 = vpack.c.b16 %v4795, %v4794
        %v5789 = vpack.c.b16 %v4797, %v4796
        %v5790 = vpack.c.b16 %v4799, %v4798
        %v5791 = vpack.c.b16 %v4801, %v4800
        %v5792 = vpack.c.b16 %v4803, %v4802
        %v5793 = vpack.c.b16 %v4805, %v4804
        %v5794 = vpack.c.b16 %v4807, %v4806
        %v5795 = vpack.c.b16 %v4809, %v4808
        %v5796 = vpack.c.b16 %v4811, %v4810
        %v5797 = vpack.c.b16 %v4813, %v4812
        %v5798 = vpack.c.b16 %v4815, %v4814
        %v5799 = vpack.c.b16 %v4817, %v4816
        %v5800 = vpack.c.b16 %v4819, %v4818
        %v5801 = vpack.c.b16 %v4821, %v4820
        %v5802 = vpack.c.b16 %v4823, %v4822
        %v5803 = vpack.c.b16 %v4825, %v4824
        %v5804 = vpack.c.b16 %v4827, %v4826
        %v5805 = vpack.c.b16 %v4829, %v4828
        %v5806 = vpack.c.b16 %v4831, %v4830
        %v5807 = vpack.c.b16 %v4833, %v4832
        %v5808 = vpack.c.b16 %v4835, %v4834
        %v5809 = vpack.c.b16 %v4837, %v4836
        %v5810 = vpack.c.b16 %v4839, %v4838
        %v5811 = vpack.c.b16 %v4841, %v4840
        %v5812 = vpack.c.b16 %v4843, %v4842
        %v5813 = vpack.c.b16 %v4845, %v4844
        %v5814 = vpack.c.b16 %v4847, %v4846
        %v5815 = vpack.c.b16 %v4849, %v4848
        %v5816 = vpack.c.b16 %v4851, %v4850
        %v5817 = vpack.c.b16 %v4853, %v4852
        %v5818 = vpack.c.b16 %v4855, %v4854
        %v5819 = vpack.c.b16 %v4857, %v4856
        %v5820 = vpack.c.b16 %v4859, %v4858
        %v5821 = vpack.c.b16 %v4861, %v4860
        %v5822 = vpack.c.b16 %v4863, %v4862
        %v5823 = vpack.c.b16 %v4865, %v4864
        %v5824 = vpack.c.b16 %v4867, %v4866
        %v5825 = vpack.c.b16 %v4869, %v4868
        %v5826 = vpack.c.b16 %v4871, %v4870
        %v5827 = vpack.c.b16 %v4873, %v4872
        %v5828 = vpack.c.b16 %v4875, %v4874
        %v5829 = vpack.c.b16 %v4877, %v4876
        %v5830 = vpack.c.b16 %v4879, %v4878
        %v5831 = vpack.c.b16 %v4881, %v4880
        %v5832 = vpack.c.b16 %v4883, %v4882
        %v5833 = vpack.c.b16 %v4885, %v4884
        %v5834 = vpack.c.b16 %v4887, %v4886
        %v5835 = vpack.c.b16 %v4889, %v4888
        %v5836 = vpack.c.b16 %v4891, %v4890
        %v5837 = vpack.c.b16 %v4893, %v4892
        %v5838 = vpack.c.b16 %v4895, %v4894
        %v5839 = vpack.c.b16 %v4897, %v4896
        %v5840 = vpack.c.b16 %v4899, %v4898
        %v5841 = vpack.c.b16 %v4901, %v4900
        %v5842 = vpack.c.b16 %v4903, %v4902
        %v5843 = vpack.c.b16 %v4905, %v4904
        %v5844 = vpack.c.b16 %v4907, %v4906
        %v5845 = vpack.c.b16 %v4909, %v4908
        %v5846 = vpack.c.b16 %v4911, %v4910
        %v5847 = vpack.c.b16 %v4913, %v4912
        %v5848 = vpack.c.b16 %v4915, %v4914
        %v5849 = vpack.c.b16 %v4917, %v4916
        %v5850 = vpack.c.b16 %v4919, %v4918
        %v5851 = vpack.c.b16 %v4921, %v4920
        %v5852 = vpack.c.b16 %v4923, %v4922
        %v5853 = vpack.c.b16 %v4925, %v4924
        %v5854 = vpack.c.b16 %v4927, %v4926
        %v5855 = vpack.c.b16 %v4929, %v4928
        %v5856 = vpack.c.b16 %v4931, %v4930
        %v5857 = vpack.c.b16 %v4933, %v4932
        %v5858 = vpack.c.b16 %v4935, %v4934
        %v5859 = vpack.c.b16 %v4937, %v4936
        %v5860 = vpack.c.b16 %v4939, %v4938
        %v5861 = vpack.c.b16 %v4941, %v4940
        %v5862 = vpack.c.b16 %v4943, %v4942
        %v5863 = vpack.c.b16 %v4945, %v4944
        %v5864 = vpack.c.b16 %v4947, %v4946
        %v5865 = vpack.c.b16 %v4949, %v4948
        %v5866 = vpack.c.b16 %v4951, %v4950
        %v5867 = vpack.c.b16 %v4953, %v4952
        %v5868 = vpack.c.b16 %v4955, %v4954
        %v5869 = vpack.c.b16 %v4957, %v4956
        %v5870 = vpack.c.b16 %v4959, %v4958
        %v5871 = vpack.c.b16 %v4961, %v4960
        %v5872 = vpack.c.b16 %v4963, %v4962
        %v5873 = vpack.c.b16 %v4965, %v4964
        %v5874 = vpack.c.b16 %v4967, %v4966
        %v5875 = vpack.c.b16 %v4969, %v4968
        %v5876 = vpack.c.b16 %v4971, %v4970
        %v5877 = vpack.c.b16 %v4973, %v4972
        %v5878 = vpack.c.b16 %v4975, %v4974
        %v5879 = vpack.c.b16 %v4977, %v4976
        %v5880 = vpack.c.b16 %v4979, %v4978
        %v5881 = vpack.c.b16 %v4981, %v4980
        %v5882 = vpack.c.b16 %v4983, %v4982
        %v5883 = vpack.c.b16 %v4985, %v4984
        %v5884 = vpack.c.b16 %v4987, %v4986
        %v5885 = vpack.c.b16 %v4989, %v4988
        %v5886 = vpack.c.b16 %v4991, %v4990
        %v5887 = vpack.c.b16 %v4993, %v4992
        %v5888 = vpack.c.b16 %v4995, %v4994
        %v5889 = vpack.c.b16 %v4997, %v4996
        %v5890 = vpack.c.b16 %v4999, %v4998
        %v5891 = vpack.c.b16 %v5001, %v5000
        %v5892 = vpack.c.b16 %v5003, %v5002
        %v5893 = vpack.c.b16 %v5005, %v5004
        %v5894 = vpack.c.b16 %v5007, %v5006
        %v5895 = vpack.c.b16 %v5009, %v5008
        %v5896 = vpack.c.b16 %v5011, %v5010
        %v5897 = vpack.c.b16 %v5013, %v5012
        %v5898 = vpack.c.b16 %v5015, %v5014
        %v5899 = vpack.c.b16 %v5017, %v5016
        %v5900 = vpack.c.b16 %v5019, %v5018
        %v5901 = vpack.c.b16 %v5021, %v5020
        %v5902 = vpack.c.b16 %v5023, %v5022
        %v5903 = vpack.c.b16 %v5025, %v5024
        %v5904 = vpack.c.b16 %v5027, %v5026
        %v5905 = vpack.c.b16 %v5029, %v5028
        %v5906 = vpack.c.b16 %v5031, %v5030
        %v5907 = vpack.c.b16 %v5033, %v5032
        %v5908 = vpack.c.b16 %v5035, %v5034
        %v5909 = vpack.c.b16 %v5037, %v5036
        %v5910 = vpack.c.b16 %v5039, %v5038
        %v5911 = vpack.c.b16 %v5041, %v5040
        %v5912 = vpack.c.b16 %v5043, %v5042
        %v5913 = vpack.c.b16 %v5045, %v5044
        %v5914 = vpack.c.b16 %v5047, %v5046
        %v5915 = vpack.c.b16 %v5049, %v5048
        %v5916 = vpack.c.b16 %v5051, %v5050
        %v5917 = vpack.c.b16 %v5053, %v5052
        %v5918 = vpack.c.b16 %v5055, %v5054
        %v5919 = vpack.c.b16 %v5057, %v5056
        %v5920 = vpack.c.b16 %v5059, %v5058
        %v5921 = vpack.c.b16 %v5061, %v5060
        %v5922 = vpack.c.b16 %v5063, %v5062
        %v5923 = vpack.c.b16 %v5065, %v5064
        %v5924 = vpack.c.b16 %v5067, %v5066
        %v5925 = vpack.c.b16 %v5069, %v5068
        %v5926 = vpack.c.b16 %v5071, %v5070
        %v5927 = vpack.c.b16 %v5073, %v5072
        %v5928 = vpack.c.b16 %v5075, %v5074
        %v5929 = vpack.c.b16 %v5077, %v5076
        %v5930 = vpack.c.b16 %v5079, %v5078
        %v5931 = vpack.c.b16 %v5081, %v5080
        %v5932 = vpack.c.b16 %v5083, %v5082
        %v5933 = vpack.c.b16 %v5085, %v5084
        %v5934 = vpack.c.b16 %v5087, %v5086
        %v5935 = vpack.c.b16 %v5089, %v5088
        %v5936 = vpack.c.b16 %v5091, %v5090
        %v5937 = vpack.c.b16 %v5093, %v5092
        %v5938 = vpack.c.b16 %v5095, %v5094
        %v5939 = vpack.c.b16 %v5097, %v5096
        %v5940 = vpack.c.b16 %v5099, %v5098
        %v5941 = vpack.c.b16 %v5101, %v5100
        %v5942 = vpack.c.b16 %v5103, %v5102
        %v5943 = vpack.c.b16 %v5105, %v5104
        %v5944 = vpack.c.b16 %v5107, %v5106
        %v5945 = vpack.c.b16 %v5109, %v5108
        %v5946 = vpack.c.b16 %v5111, %v5110
        %v5947 = vpack.c.b16 %v5113, %v5112
        %v5948 = vpack.c.b16 %v5115, %v5114
        %v5949 = vpack.c.b16 %v5117, %v5116
        %v5950 = vpack.c.b16 %v5119, %v5118
        %v5951 = vpack.c.b16 %v5121, %v5120
        %v5952 = vpack.c.b16 %v5123, %v5122
        %v5953 = vpack.c.b16 %v5125, %v5124
        %v5954 = vpack.c.b16 %v5127, %v5126
        %v5955 = vpack.c.b16 %v5129, %v5128
        %v5956 = vpack.c.b16 %v5131, %v5130
        %v5957 = vpack.c.b16 %v5133, %v5132
        %v5958 = vpack.c.b16 %v5135, %v5134
        %v5959 = vpack.c.b16 %v5137, %v5136
        %v5960 = vpack.c.b16 %v5139, %v5138
        %v5961 = vpack.c.b16 %v5141, %v5140
        %v5962 = vpack.c.b16 %v5143, %v5142
        %v5963 = vpack.c.b16 %v5145, %v5144
        %v5964 = vpack.c.b16 %v5147, %v5146
        %v5965 = vpack.c.b16 %v5149, %v5148
        %v5966 = vpack.c.b16 %v5151, %v5150
        %v5967 = vpack.c.b16 %v5153, %v5152
        %v5968 = vpack.c.b16 %v5155, %v5154
        %v5969 = vpack.c.b16 %v5157, %v5156
        %v5970 = vpack.c.b16 %v5159, %v5158
        %v5971 = vpack.c.b16 %v5161, %v5160
        %v5972 = vpack.c.b16 %v5163, %v5162
        %v5973 = vpack.c.b16 %v5165, %v5164
        %v5974 = vpack.c.b16 %v5167, %v5166
        %v5975 = vpack.c.b16 %v5169, %v5168
        %v5976 = vpack.c.b16 %v5171, %v5170
        %v5977 = vpack.c.b16 %v5173, %v5172
        %v5978 = vpack.c.b16 %v5175, %v5174
        %v5979 = vpack.c.b16 %v5177, %v5176
        %v5980 = vpack.c.b16 %v5179, %v5178
        %v5981 = vpack.c.b16 %v5181, %v5180
        %v5982 = vpack.c.b16 %v5183, %v5182
        %v5983 = vpack.c.b16 %v5185, %v5184
        %v5984 = vpack.c.b16 %v5187, %v5186
        %v5985 = vpack.c.b16 %v5189, %v5188
        %v5986 = vpack.c.b16 %v5191, %v5190
        %v5987 = vpack.c.b16 %v5193, %v5192
        %v5988 = vpack.c.b16 %v5195, %v5194
        %v5989 = vpack.c.b16 %v5197, %v5196
        %v5990 = vpack.c.b16 %v5199, %v5198
        %v5991 = vpack.c.b16 %v5201, %v5200
        %v5992 = vpack.c.b16 %v5203, %v5202
        %v5993 = vpack.c.b16 %v5205, %v5204
        %v5994 = vpack.c.b16 %v5207, %v5206
        %v5995 = vpack.c.b16 %v5209, %v5208
        %v5996 = vpack.c.b16 %v5211, %v5210
        %v5997 = vpack.c.b16 %v5213, %v5212
        %6782 = vmatprep.subr.bf16.mxu0 0
        %6783 = vmatpush1.bf16.msra.mxu0 %v5214
        %6784 = vmatprep.subr.bf16.mxu0 0
        %6785 = vmatpush1.bf16.msra.mxu0 %v5215
        %6786 = vmatprep.subr.bf16.mxu0 0
        %6787 = vmatpush1.bf16.msra.mxu0 %v5216
        %6788 = vmatprep.subr.bf16.mxu0 0
        %6789 = vmatpush1.bf16.msra.mxu0 %v5217
        %6790 = vmatprep.subr.bf16.mxu0 0
        %6791 = vmatpush1.bf16.msra.mxu0 %v5218
        %6792 = vmatprep.subr.bf16.mxu0 0
        %6793 = vmatpush1.bf16.msra.mxu0 %v5219
        %6794 = vmatprep.subr.bf16.mxu0 0
        %6795 = vmatpush1.bf16.msra.mxu0 %v5220
        %6796 = vmatprep.subr.bf16.mxu0 0
        %6797 = vmatpush1.bf16.msra.mxu0 %v5221
        %6798 = vmatprep.subr.bf16.mxu0 0
        %6799 = vmatpush1.bf16.msra.mxu0 %v5222
        %6800 = vmatprep.subr.bf16.mxu0 0
        %6801 = vmatpush1.bf16.msra.mxu0 %v5223
        %6802 = vmatprep.subr.bf16.mxu0 0
        %6803 = vmatpush1.bf16.msra.mxu0 %v5224
        %6804 = vmatprep.subr.bf16.mxu0 0
        %6805 = vmatpush1.bf16.msra.mxu0 %v5225
        %6806 = vmatprep.subr.bf16.mxu0 0
        %6807 = vmatpush1.bf16.msra.mxu0 %v5226
        %6808 = vmatprep.subr.bf16.mxu0 0
        %6809 = vmatpush1.bf16.msra.mxu0 %v5227
        %6810 = vmatprep.subr.bf16.mxu0 0
        %6811 = vmatpush1.bf16.msra.mxu0 %v5228
        %6812 = vmatprep.subr.bf16.mxu0 0
        %6813 = vmatpush1.bf16.msra.mxu0 %v5229
        %6814 = vmatprep.mubr.bf16.mxu0 %v412
        %6815 = vmatmul.mubr.bf16.gmra.mrb[0].mxu0 %v411
        %v6816 = vpop.f32.mrb[0].mxu0
        %v6817 = vadd.f32 0.0, %v6816
        %v6818 = vpop.f32.mrb[0].mxu0
        %v6819 = vpop.f32.mrb[0].mxu0
        %v6820 = vpop.f32.mrb[0].mxu0
        %6821 = vdwg.mxu0
        %6822 = vmatprep.subr.bf16.mxu0 0
        %6823 = vmatpush1.bf16.msra.mxu0 %v5230
        %6824 = vmatprep.subr.bf16.mxu0 0
        %6825 = vmatpush1.bf16.msra.mxu0 %v5231
        %6826 = vmatprep.subr.bf16.mxu0 0
        %6827 = vmatpush1.bf16.msra.mxu0 %v5232
        %6828 = vmatprep.subr.bf16.mxu0 0
        %6829 = vmatpush1.bf16.msra.mxu0 %v5233
        %6830 = vmatprep.subr.bf16.mxu0 0
        %6831 = vmatpush1.bf16.msra.mxu0 %v5234
        %6832 = vmatprep.subr.bf16.mxu0 0
        %6833 = vmatpush1.bf16.msra.mxu0 %v5235
        %6834 = vmatprep.subr.bf16.mxu0 0
        %6835 = vmatpush1.bf16.msra.mxu0 %v5236
        %6836 = vmatprep.subr.bf16.mxu0 0
        %6837 = vmatpush1.bf16.msra.mxu0 %v5237
        %6838 = vmatprep.subr.bf16.mxu0 0
        %6839 = vmatpush1.bf16.msra.mxu0 %v5238
        %6840 = vmatprep.subr.bf16.mxu0 0
        %6841 = vmatpush1.bf16.msra.mxu0 %v5239
        %6842 = vmatprep.subr.bf16.mxu0 0
        %6843 = vmatpush1.bf16.msra.mxu0 %v5240
        %6844 = vmatprep.subr.bf16.mxu0 0
        %6845 = vmatpush1.bf16.msra.mxu0 %v5241
        %6846 = vmatprep.subr.bf16.mxu0 0
        %6847 = vmatpush1.bf16.msra.mxu0 %v5242
        %6848 = vmatprep.subr.bf16.mxu0 0
        %6849 = vmatpush1.bf16.msra.mxu0 %v5243
        %6850 = vmatprep.subr.bf16.mxu0 0
        %6851 = vmatpush1.bf16.msra.mxu0 %v5244
        %6852 = vmatprep.subr.bf16.mxu0 0
        %6853 = vmatpush1.bf16.msra.mxu0 %v5245
        %6854 = vmatprep.mubr.bf16.mxu0 %v414
        %6855 = vmatmul.mubr.bf16.gmra.mrb[0].mxu0 %v413
        %v6856 = vpop.f32.mrb[0].mxu0
        %v6857 = vadd.f32 %v6817, %v6856
        %v6858 = vpop.f32.mrb[0].mxu0
        %v6859 = vpop.f32.mrb[0].mxu0
        %v6860 = vpop.f32.mrb[0].mxu0
        %6861 = vdwg.mxu0
        %6862 = vmatprep.subr.bf16.mxu0 0
        %6863 = vmatpush1.bf16.msra.mxu0 %v5246
        %6864 = vmatprep.subr.bf16.mxu0 0
        %6865 = vmatpush1.bf16.msra.mxu0 %v5247
        %6866 = vmatprep.subr.bf16.mxu0 0
        %6867 = vmatpush1.bf16.msra.mxu0 %v5248
        %6868 = vmatprep.subr.bf16.mxu0 0
        %6869 = vmatpush1.bf16.msra.mxu0 %v5249
        %6870 = vmatprep.subr.bf16.mxu0 0
        %6871 = vmatpush1.bf16.msra.mxu0 %v5250
        %6872 = vmatprep.subr.bf16.mxu0 0
        %6873 = vmatpush1.bf16.msra.mxu0 %v5251
        %6874 = vmatprep.subr.bf16.mxu0 0
        %6875 = vmatpush1.bf16.msra.mxu0 %v5252
        %6876 = vmatprep.subr.bf16.mxu0 0
        %6877 = vmatpush1.bf16.msra.mxu0 %v5253
        %6878 = vmatprep.subr.bf16.mxu0 0
        %6879 = vmatpush1.bf16.msra.mxu0 %v5254
        %6880 = vmatprep.subr.bf16.mxu0 0
        %6881 = vmatpush1.bf16.msra.mxu0 %v5255
        %6882 = vmatprep.subr.bf16.mxu0 0
        %6883 = vmatpush1.bf16.msra.mxu0 %v5256
        %6884 = vmatprep.subr.bf16.mxu0 0
        %6885 = vmatpush1.bf16.msra.mxu0 %v5257
        %6886 = vmatprep.subr.bf16.mxu0 0
        %6887 = vmatpush1.bf16.msra.mxu0 %v5258
        %6888 = vmatprep.subr.bf16.mxu0 0
        %6889 = vmatpush1.bf16.msra.mxu0 %v5259
        %6890 = vmatprep.subr.bf16.mxu0 0
        %6891 = vmatpush1.bf16.msra.mxu0 %v5260
        %6892 = vmatprep.subr.bf16.mxu0 0
        %6893 = vmatpush1.bf16.msra.mxu0 %v5261
        %6894 = vmatprep.mubr.bf16.mxu0 %v416
        %6895 = vmatmul.mubr.bf16.gmra.mrb[0].mxu0 %v415
        %v6896 = vpop.f32.mrb[0].mxu0
        %v6897 = vadd.f32 %v6857, %v6896
        %v6898 = vpop.f32.mrb[0].mxu0
        %v6899 = vpop.f32.mrb[0].mxu0
        %v6900 = vpop.f32.mrb[0].mxu0
        %6901 = vdwg.mxu0
        %6902 = vmatprep.subr.bf16.mxu0 0
        %6903 = vmatpush1.bf16.msra.mxu0 %v5262
        %6904 = vmatprep.subr.bf16.mxu0 0
        %6905 = vmatpush1.bf16.msra.mxu0 %v5263
        %6906 = vmatprep.subr.bf16.mxu0 0
        %6907 = vmatpush1.bf16.msra.mxu0 %v5264
        %6908 = vmatprep.subr.bf16.mxu0 0
        %6909 = vmatpush1.bf16.msra.mxu0 %v5265
        %6910 = vmatprep.subr.bf16.mxu0 0
        %6911 = vmatpush1.bf16.msra.mxu0 %v5266
        %6912 = vmatprep.subr.bf16.mxu0 0
        %6913 = vmatpush1.bf16.msra.mxu0 %v5267
        %6914 = vmatprep.subr.bf16.mxu0 0
        %6915 = vmatpush1.bf16.msra.mxu0 %v5268
        %6916 = vmatprep.subr.bf16.mxu0 0
        %6917 = vmatpush1.bf16.msra.mxu0 %v5269
        %6918 = vmatprep.subr.bf16.mxu0 0
        %6919 = vmatpush1.bf16.msra.mxu0 %v5270
        %6920 = vmatprep.subr.bf16.mxu0 0
        %6921 = vmatpush1.bf16.msra.mxu0 %v5271
        %6922 = vmatprep.subr.bf16.mxu0 0
        %6923 = vmatpush1.bf16.msra.mxu0 %v5272
        %6924 = vmatprep.subr.bf16.mxu0 0
        %6925 = vmatpush1.bf16.msra.mxu0 %v5273
        %6926 = vmatprep.subr.bf16.mxu0 0
        %6927 = vmatpush1.bf16.msra.mxu0 %v5274
        %6928 = vmatprep.subr.bf16.mxu0 0
        %6929 = vmatpush1.bf16.msra.mxu0 %v5275
        %6930 = vmatprep.subr.bf16.mxu0 0
        %6931 = vmatpush1.bf16.msra.mxu0 %v5276
        %6932 = vmatprep.subr.bf16.mxu0 0
        %6933 = vmatpush1.bf16.msra.mxu0 %v5277
        %6934 = vmatprep.mubr.bf16.mxu0 %v418
        %6935 = vmatmul.mubr.bf16.gmra.mrb[0].mxu0 %v417
        %v6936 = vpop.f32.mrb[0].mxu0
        %v6937 = vadd.f32 %v6897, %v6936
        %v6938 = vpop.f32.mrb[0].mxu0
        %v6939 = vpop.f32.mrb[0].mxu0
        %v6940 = vpop.f32.mrb[0].mxu0
        %6941 = vdwg.mxu0
        %6942 = vmatprep.subr.bf16.mxu0 0
        %6943 = vmatpush1.bf16.msra.mxu0 %v5278
        %6944 = vmatprep.subr.bf16.mxu0 0
        %6945 = vmatpush1.bf16.msra.mxu0 %v5279
        %6946 = vmatprep.subr.bf16.mxu0 0
        %6947 = vmatpush1.bf16.msra.mxu0 %v5280
        %6948 = vmatprep.subr.bf16.mxu0 0
        %6949 = vmatpush1.bf16.msra.mxu0 %v5281
        %6950 = vmatprep.subr.bf16.mxu0 0
        %6951 = vmatpush1.bf16.msra.mxu0 %v5282
        %6952 = vmatprep.subr.bf16.mxu0 0
        %6953 = vmatpush1.bf16.msra.mxu0 %v5283
        %6954 = vmatprep.subr.bf16.mxu0 0
        %6955 = vmatpush1.bf16.msra.mxu0 %v5284
        %6956 = vmatprep.subr.bf16.mxu0 0
        %6957 = vmatpush1.bf16.msra.mxu0 %v5285
        %6958 = vmatprep.subr.bf16.mxu0 0
        %6959 = vmatpush1.bf16.msra.mxu0 %v5286
        %6960 = vmatprep.subr.bf16.mxu0 0
        %6961 = vmatpush1.bf16.msra.mxu0 %v5287
        %6962 = vmatprep.subr.bf16.mxu0 0
        %6963 = vmatpush1.bf16.msra.mxu0 %v5288
        %6964 = vmatprep.subr.bf16.mxu0 0
        %6965 = vmatpush1.bf16.msra.mxu0 %v5289
        %6966 = vmatprep.subr.bf16.mxu0 0
        %6967 = vmatpush1.bf16.msra.mxu0 %v5290
        %6968 = vmatprep.subr.bf16.mxu0 0
        %6969 = vmatpush1.bf16.msra.mxu0 %v5291
        %6970 = vmatprep.subr.bf16.mxu0 0
        %6971 = vmatpush1.bf16.msra.mxu0 %v5292
        %6972 = vmatprep.subr.bf16.mxu0 0
        %6973 = vmatpush1.bf16.msra.mxu0 %v5293
        %6974 = vmatprep.mubr.bf16.mxu0 %v420
        %6975 = vmatmul.mubr.bf16.gmra.mrb[0].mxu0 %v419
        %v6976 = vpop.f32.mrb[0].mxu0
        %v6977 = vadd.f32 %v6937, %v6976
        %v6978 = vpop.f32.mrb[0].mxu0
        %v6979 = vpop.f32.mrb[0].mxu0
        %v6980 = vpop.f32.mrb[0].mxu0
        %6981 = vdwg.mxu0
        %6982 = vmatprep.subr.bf16.mxu0 0
        %6983 = vmatpush1.bf16.msra.mxu0 %v5294
        %6984 = vmatprep.subr.bf16.mxu0 0
        %6985 = vmatpush1.bf16.msra.mxu0 %v5295
        %6986 = vmatprep.subr.bf16.mxu0 0
        %6987 = vmatpush1.bf16.msra.mxu0 %v5296
        %6988 = vmatprep.subr.bf16.mxu0 0
        %6989 = vmatpush1.bf16.msra.mxu0 %v5297
        %6990 = vmatprep.subr.bf16.mxu0 0
        %6991 = vmatpush1.bf16.msra.mxu0 %v5298
        %6992 = vmatprep.subr.bf16.mxu0 0
        %6993 = vmatpush1.bf16.msra.mxu0 %v5299
        %6994 = vmatprep.subr.bf16.mxu0 0
        %6995 = vmatpush1.bf16.msra.mxu0 %v5300
        %6996 = vmatprep.subr.bf16.mxu0 0
        %6997 = vmatpush1.bf16.msra.mxu0 %v5301
        %6998 = vmatprep.subr.bf16.mxu0 0
        %6999 = vmatpush1.bf16.msra.mxu0 %v5302
        %7000 = vmatprep.subr.bf16.mxu0 0
        %7001 = vmatpush1.bf16.msra.mxu0 %v5303
        %7002 = vmatprep.subr.bf16.mxu0 0
        %7003 = vmatpush1.bf16.msra.mxu0 %v5304
        %7004 = vmatprep.subr.bf16.mxu0 0
        %7005 = vmatpush1.bf16.msra.mxu0 %v5305
        %7006 = vmatprep.subr.bf16.mxu0 0
        %7007 = vmatpush1.bf16.msra.mxu0 %v5306
        %7008 = vmatprep.subr.bf16.mxu0 0
        %7009 = vmatpush1.bf16.msra.mxu0 %v5307
        %7010 = vmatprep.subr.bf16.mxu0 0
        %7011 = vmatpush1.bf16.msra.mxu0 %v5308
        %7012 = vmatprep.subr.bf16.mxu0 0
        %7013 = vmatpush1.bf16.msra.mxu0 %v5309
        %7014 = vmatprep.mubr.bf16.mxu0 %v422
        %7015 = vmatmul.mubr.bf16.gmra.mrb[0].mxu0 %v421
        %v7016 = vpop.f32.mrb[0].mxu0
        %v7017 = vadd.f32 %v6977, %v7016
        %v7018 = vpop.f32.mrb[0].mxu0
        %v7019 = vpop.f32.mrb[0].mxu0
        %v7020 = vpop.f32.mrb[0].mxu0
        %7021 = vdwg.mxu0
        %7022 = vmatprep.subr.bf16.mxu0 0
        %7023 = vmatpush1.bf16.msra.mxu0 %v5310
        %7024 = vmatprep.subr.bf16.mxu0 0
        %7025 = vmatpush1.bf16.msra.mxu0 %v5311
        %7026 = vmatprep.subr.bf16.mxu0 0
        %7027 = vmatpush1.bf16.msra.mxu0 %v5312
        %7028 = vmatprep.subr.bf16.mxu0 0
        %7029 = vmatpush1.bf16.msra.mxu0 %v5313
        %7030 = vmatprep.subr.bf16.mxu0 0
        %7031 = vmatpush1.bf16.msra.mxu0 %v5314
        %7032 = vmatprep.subr.bf16.mxu0 0
        %7033 = vmatpush1.bf16.msra.mxu0 %v5315
        %7034 = vmatprep.subr.bf16.mxu0 0
        %7035 = vmatpush1.bf16.msra.mxu0 %v5316
        %7036 = vmatprep.subr.bf16.mxu0 0
        %7037 = vmatpush1.bf16.msra.mxu0 %v5317
        %7038 = vmatprep.subr.bf16.mxu0 0
        %7039 = vmatpush1.bf16.msra.mxu0 %v5318
        %7040 = vmatprep.subr.bf16.mxu0 0
        %7041 = vmatpush1.bf16.msra.mxu0 %v5319
        %7042 = vmatprep.subr.bf16.mxu0 0
        %7043 = vmatpush1.bf16.msra.mxu0 %v5320
        %7044 = vmatprep.subr.bf16.mxu0 0
        %7045 = vmatpush1.bf16.msra.mxu0 %v5321
        %7046 = vmatprep.subr.bf16.mxu0 0
        %7047 = vmatpush1.bf16.msra.mxu0 %v5322
        %7048 = vmatprep.subr.bf16.mxu0 0
        %7049 = vmatpush1.bf16.msra.mxu0 %v5323
        %7050 = vmatprep.subr.bf16.mxu0 0
        %7051 = vmatpush1.bf16.msra.mxu0 %v5324
        %7052 = vmatprep.subr.bf16.mxu0 0
        %7053 = vmatpush1.bf16.msra.mxu0 %v5325
        %7054 = vmatprep.mubr.bf16.mxu0 %v424
        %7055 = vmatmul.mubr.bf16.gmra.mrb[0].mxu0 %v423
        %v7056 = vpop.f32.mrb[0].mxu0
        %v7057 = vadd.f32 %v7017, %v7056
        %v7058 = vpop.f32.mrb[0].mxu0
        %v7059 = vpop.f32.mrb[0].mxu0
        %v7060 = vpop.f32.mrb[0].mxu0
        %7061 = vdwg.mxu0
        %7062 = vmatprep.subr.bf16.mxu0 0
        %7063 = vmatpush1.bf16.msra.mxu0 %v5326
        %7064 = vmatprep.subr.bf16.mxu0 0
        %7065 = vmatpush1.bf16.msra.mxu0 %v5327
        %7066 = vmatprep.subr.bf16.mxu0 0
        %7067 = vmatpush1.bf16.msra.mxu0 %v5328
        %7068 = vmatprep.subr.bf16.mxu0 0
        %7069 = vmatpush1.bf16.msra.mxu0 %v5329
        %7070 = vmatprep.subr.bf16.mxu0 0
        %7071 = vmatpush1.bf16.msra.mxu0 %v5330
        %7072 = vmatprep.subr.bf16.mxu0 0
        %7073 = vmatpush1.bf16.msra.mxu0 %v5331
        %7074 = vmatprep.subr.bf16.mxu0 0
        %7075 = vmatpush1.bf16.msra.mxu0 %v5332
        %7076 = vmatprep.subr.bf16.mxu0 0
        %7077 = vmatpush1.bf16.msra.mxu0 %v5333
        %7078 = vmatprep.subr.bf16.mxu0 0
        %7079 = vmatpush1.bf16.msra.mxu0 %v5334
        %7080 = vmatprep.subr.bf16.mxu0 0
        %7081 = vmatpush1.bf16.msra.mxu0 %v5335
        %7082 = vmatprep.subr.bf16.mxu0 0
        %7083 = vmatpush1.bf16.msra.mxu0 %v5336
        %7084 = vmatprep.subr.bf16.mxu0 0
        %7085 = vmatpush1.bf16.msra.mxu0 %v5337
        %7086 = vmatprep.subr.bf16.mxu0 0
        %7087 = vmatpush1.bf16.msra.mxu0 %v5338
        %7088 = vmatprep.subr.bf16.mxu0 0
        %7089 = vmatpush1.bf16.msra.mxu0 %v5339
        %7090 = vmatprep.subr.bf16.mxu0 0
        %7091 = vmatpush1.bf16.msra.mxu0 %v5340
        %7092 = vmatprep.subr.bf16.mxu0 0
        %7093 = vmatpush1.bf16.msra.mxu0 %v5341
        %7094 = vmatprep.mubr.bf16.mxu0 %v426
        %7095 = vmatmul.mubr.bf16.gmra.mrb[0].mxu0 %v425
        %v7096 = vpop.f32.mrb[0].mxu0
        %v7097 = vadd.f32 %v7057, %v7096
        %v7098 = vpop.f32.mrb[0].mxu0
        %v7099 = vpop.f32.mrb[0].mxu0
        %v7100 = vpop.f32.mrb[0].mxu0
        %7101 = vdwg.mxu0
        %7102 = vmatprep.subr.bf16.mxu0 0
        %7103 = vmatpush1.bf16.msra.mxu0 %v5342
        %7104 = vmatprep.subr.bf16.mxu0 0
        %7105 = vmatpush1.bf16.msra.mxu0 %v5343
        %7106 = vmatprep.subr.bf16.mxu0 0
        %7107 = vmatpush1.bf16.msra.mxu0 %v5344
        %7108 = vmatprep.subr.bf16.mxu0 0
        %7109 = vmatpush1.bf16.msra.mxu0 %v5345
        %7110 = vmatprep.subr.bf16.mxu0 0
        %7111 = vmatpush1.bf16.msra.mxu0 %v5346
        %7112 = vmatprep.subr.bf16.mxu0 0
        %7113 = vmatpush1.bf16.msra.mxu0 %v5347
        %7114 = vmatprep.subr.bf16.mxu0 0
        %7115 = vmatpush1.bf16.msra.mxu0 %v5348
        %7116 = vmatprep.subr.bf16.mxu0 0
        %7117 = vmatpush1.bf16.msra.mxu0 %v5349
        %7118 = vmatprep.subr.bf16.mxu0 0
        %7119 = vmatpush1.bf16.msra.mxu0 %v5350
        %7120 = vmatprep.subr.bf16.mxu0 0
        %7121 = vmatpush1.bf16.msra.mxu0 %v5351
        %7122 = vmatprep.subr.bf16.mxu0 0
        %7123 = vmatpush1.bf16.msra.mxu0 %v5352
        %7124 = vmatprep.subr.bf16.mxu0 0
        %7125 = vmatpush1.bf16.msra.mxu0 %v5353
        %7126 = vmatprep.subr.bf16.mxu0 0
        %7127 = vmatpush1.bf16.msra.mxu0 %v5354
        %7128 = vmatprep.subr.bf16.mxu0 0
        %7129 = vmatpush1.bf16.msra.mxu0 %v5355
        %7130 = vmatprep.subr.bf16.mxu0 0
        %7131 = vmatpush1.bf16.msra.mxu0 %v5356
        %7132 = vmatprep.subr.bf16.mxu0 0
        %7133 = vmatpush1.bf16.msra.mxu0 %v5357
        %7134 = vmatprep.mubr.bf16.mxu0 %v428
        %7135 = vmatmul.mubr.bf16.gmra.mrb[0].mxu0 %v427
        %v7136 = vpop.f32.mrb[0].mxu0
        %v7137 = vadd.f32 %v7097, %v7136
        %v7138 = vpop.f32.mrb[0].mxu0
        %v7139 = vpop.f32.mrb[0].mxu0
        %v7140 = vpop.f32.mrb[0].mxu0
        %7141 = vdwg.mxu0
        %7142 = vmatprep.subr.bf16.mxu0 0
        %7143 = vmatpush1.bf16.msra.mxu0 %v5358
        %7144 = vmatprep.subr.bf16.mxu0 0
        %7145 = vmatpush1.bf16.msra.mxu0 %v5359
        %7146 = vmatprep.subr.bf16.mxu0 0
        %7147 = vmatpush1.bf16.msra.mxu0 %v5360
        %7148 = vmatprep.subr.bf16.mxu0 0
        %7149 = vmatpush1.bf16.msra.mxu0 %v5361
        %7150 = vmatprep.subr.bf16.mxu0 0
        %7151 = vmatpush1.bf16.msra.mxu0 %v5362
        %7152 = vmatprep.subr.bf16.mxu0 0
        %7153 = vmatpush1.bf16.msra.mxu0 %v5363
        %7154 = vmatprep.subr.bf16.mxu0 0
        %7155 = vmatpush1.bf16.msra.mxu0 %v5364
        %7156 = vmatprep.subr.bf16.mxu0 0
        %7157 = vmatpush1.bf16.msra.mxu0 %v5365
        %7158 = vmatprep.subr.bf16.mxu0 0
        %7159 = vmatpush1.bf16.msra.mxu0 %v5366
        %7160 = vmatprep.subr.bf16.mxu0 0
        %7161 = vmatpush1.bf16.msra.mxu0 %v5367
        %7162 = vmatprep.subr.bf16.mxu0 0
        %7163 = vmatpush1.bf16.msra.mxu0 %v5368
        %7164 = vmatprep.subr.bf16.mxu0 0
        %7165 = vmatpush1.bf16.msra.mxu0 %v5369
        %7166 = vmatprep.subr.bf16.mxu0 0
        %7167 = vmatpush1.bf16.msra.mxu0 %v5370
        %7168 = vmatprep.subr.bf16.mxu0 0
        %7169 = vmatpush1.bf16.msra.mxu0 %v5371
        %7170 = vmatprep.subr.bf16.mxu0 0
        %7171 = vmatpush1.bf16.msra.mxu0 %v5372
        %7172 = vmatprep.subr.bf16.mxu0 0
        %7173 = vmatpush1.bf16.msra.mxu0 %v5373
        %7174 = vmatprep.mubr.bf16.mxu0 %v430
        %7175 = vmatmul.mubr.bf16.gmra.mrb[0].mxu0 %v429
        %v7176 = vpop.f32.mrb[0].mxu0
        %v7177 = vadd.f32 %v7137, %v7176
        %v7178 = vpop.f32.mrb[0].mxu0
        %v7179 = vpop.f32.mrb[0].mxu0
        %v7180 = vpop.f32.mrb[0].mxu0
        %7181 = vdwg.mxu0
        %7182 = vmatprep.subr.bf16.mxu0 0
        %7183 = vmatpush1.bf16.msra.mxu0 %v5374
        %7184 = vmatprep.subr.bf16.mxu0 0
        %7185 = vmatpush1.bf16.msra.mxu0 %v5375
        %7186 = vmatprep.subr.bf16.mxu0 0
        %7187 = vmatpush1.bf16.msra.mxu0 %v5376
        %7188 = vmatprep.subr.bf16.mxu0 0
        %7189 = vmatpush1.bf16.msra.mxu0 %v5377
        %7190 = vmatprep.subr.bf16.mxu0 0
        %7191 = vmatpush1.bf16.msra.mxu0 %v5378
        %7192 = vmatprep.subr.bf16.mxu0 0
        %7193 = vmatpush1.bf16.msra.mxu0 %v5379
        %7194 = vmatprep.subr.bf16.mxu0 0
        %7195 = vmatpush1.bf16.msra.mxu0 %v5380
        %7196 = vmatprep.subr.bf16.mxu0 0
        %7197 = vmatpush1.bf16.msra.mxu0 %v5381
        %7198 = vmatprep.subr.bf16.mxu0 0
        %7199 = vmatpush1.bf16.msra.mxu0 %v5382
        %7200 = vmatprep.subr.bf16.mxu0 0
        %7201 = vmatpush1.bf16.msra.mxu0 %v5383
        %7202 = vmatprep.subr.bf16.mxu0 0
        %7203 = vmatpush1.bf16.msra.mxu0 %v5384
        %7204 = vmatprep.subr.bf16.mxu0 0
        %7205 = vmatpush1.bf16.msra.mxu0 %v5385
        %7206 = vmatprep.subr.bf16.mxu0 0
        %7207 = vmatpush1.bf16.msra.mxu0 %v5386
        %7208 = vmatprep.subr.bf16.mxu0 0
        %7209 = vmatpush1.bf16.msra.mxu0 %v5387
        %7210 = vmatprep.subr.bf16.mxu0 0
        %7211 = vmatpush1.bf16.msra.mxu0 %v5388
        %7212 = vmatprep.subr.bf16.mxu0 0
        %7213 = vmatpush1.bf16.msra.mxu0 %v5389
        %7214 = vmatprep.mubr.bf16.mxu0 %v432
        %7215 = vmatmul.mubr.bf16.gmra.mrb[0].mxu0 %v431
        %v7216 = vpop.f32.mrb[0].mxu0
        %v7217 = vadd.f32 %v7177, %v7216
        %v7218 = vpop.f32.mrb[0].mxu0
        %v7219 = vpop.f32.mrb[0].mxu0
        %v7220 = vpop.f32.mrb[0].mxu0
        %7221 = vdwg.mxu0
        %7222 = vmatprep.subr.bf16.mxu0 0
        %7223 = vmatpush1.bf16.msra.mxu0 %v5390
        %7224 = vmatprep.subr.bf16.mxu0 0
        %7225 = vmatpush1.bf16.msra.mxu0 %v5391
        %7226 = vmatprep.subr.bf16.mxu0 0
        %7227 = vmatpush1.bf16.msra.mxu0 %v5392
        %7228 = vmatprep.subr.bf16.mxu0 0
        %7229 = vmatpush1.bf16.msra.mxu0 %v5393
        %7230 = vmatprep.subr.bf16.mxu0 0
        %7231 = vmatpush1.bf16.msra.mxu0 %v5394
        %7232 = vmatprep.subr.bf16.mxu0 0
        %7233 = vmatpush1.bf16.msra.mxu0 %v5395
        %7234 = vmatprep.subr.bf16.mxu0 0
        %7235 = vmatpush1.bf16.msra.mxu0 %v5396
        %7236 = vmatprep.subr.bf16.mxu0 0
        %7237 = vmatpush1.bf16.msra.mxu0 %v5397
        %7238 = vmatprep.subr.bf16.mxu0 0
        %7239 = vmatpush1.bf16.msra.mxu0 %v5398
        %7240 = vmatprep.subr.bf16.mxu0 0
        %7241 = vmatpush1.bf16.msra.mxu0 %v5399
        %7242 = vmatprep.subr.bf16.mxu0 0
        %7243 = vmatpush1.bf16.msra.mxu0 %v5400
        %7244 = vmatprep.subr.bf16.mxu0 0
        %7245 = vmatpush1.bf16.msra.mxu0 %v5401
        %7246 = vmatprep.subr.bf16.mxu0 0
        %7247 = vmatpush1.bf16.msra.mxu0 %v5402
        %7248 = vmatprep.subr.bf16.mxu0 0
        %7249 = vmatpush1.bf16.msra.mxu0 %v5403
        %7250 = vmatprep.subr.bf16.mxu0 0
        %7251 = vmatpush1.bf16.msra.mxu0 %v5404
        %7252 = vmatprep.subr.bf16.mxu0 0
        %7253 = vmatpush1.bf16.msra.mxu0 %v5405
        %7254 = vmatprep.mubr.bf16.mxu0 %v434
        %7255 = vmatmul.mubr.bf16.gmra.mrb[0].mxu0 %v433
        %v7256 = vpop.f32.mrb[0].mxu0
        %v7257 = vadd.f32 %v7217, %v7256
        %v7258 = vpop.f32.mrb[0].mxu0
        %v7259 = vpop.f32.mrb[0].mxu0
        %v7260 = vpop.f32.mrb[0].mxu0
        %7261 = vdwg.mxu0
        %7262 = vmatprep.subr.bf16.mxu0 0
        %7263 = vmatpush1.bf16.msra.mxu0 %v5406
        %7264 = vmatprep.subr.bf16.mxu0 0
        %7265 = vmatpush1.bf16.msra.mxu0 %v5407
        %7266 = vmatprep.subr.bf16.mxu0 0
        %7267 = vmatpush1.bf16.msra.mxu0 %v5408
        %7268 = vmatprep.subr.bf16.mxu0 0
        %7269 = vmatpush1.bf16.msra.mxu0 %v5409
        %7270 = vmatprep.subr.bf16.mxu0 0
        %7271 = vmatpush1.bf16.msra.mxu0 %v5410
        %7272 = vmatprep.subr.bf16.mxu0 0
        %7273 = vmatpush1.bf16.msra.mxu0 %v5411
        %7274 = vmatprep.subr.bf16.mxu0 0
        %7275 = vmatpush1.bf16.msra.mxu0 %v5412
        %7276 = vmatprep.subr.bf16.mxu0 0
        %7277 = vmatpush1.bf16.msra.mxu0 %v5413
        %7278 = vmatprep.subr.bf16.mxu0 0
        %7279 = vmatpush1.bf16.msra.mxu0 %v5414
        %7280 = vmatprep.subr.bf16.mxu0 0
        %7281 = vmatpush1.bf16.msra.mxu0 %v5415
        %7282 = vmatprep.subr.bf16.mxu0 0
        %7283 = vmatpush1.bf16.msra.mxu0 %v5416
        %7284 = vmatprep.subr.bf16.mxu0 0
        %7285 = vmatpush1.bf16.msra.mxu0 %v5417
        %7286 = vmatprep.subr.bf16.mxu0 0
        %7287 = vmatpush1.bf16.msra.mxu0 %v5418
        %7288 = vmatprep.subr.bf16.mxu0 0
        %7289 = vmatpush1.bf16.msra.mxu0 %v5419
        %7290 = vmatprep.subr.bf16.mxu0 0
        %7291 = vmatpush1.bf16.msra.mxu0 %v5420
        %7292 = vmatprep.subr.bf16.mxu0 0
        %7293 = vmatpush1.bf16.msra.mxu0 %v5421
        %7294 = vmatprep.mubr.bf16.mxu0 %v436
        %7295 = vmatmul.mubr.bf16.gmra.mrb[0].mxu0 %v435
        %v7296 = vpop.f32.mrb[0].mxu0
        %v7297 = vadd.f32 %v7257, %v7296
        %v7298 = vpop.f32.mrb[0].mxu0
        %v7299 = vpop.f32.mrb[0].mxu0
        %v7300 = vpop.f32.mrb[0].mxu0
        %7301 = vdwg.mxu0
        %7302 = vmatprep.subr.bf16.mxu0 0
        %7303 = vmatpush1.bf16.msra.mxu0 %v5422
        %7304 = vmatprep.subr.bf16.mxu0 0
        %7305 = vmatpush1.bf16.msra.mxu0 %v5423
        %7306 = vmatprep.subr.bf16.mxu0 0
        %7307 = vmatpush1.bf16.msra.mxu0 %v5424
        %7308 = vmatprep.subr.bf16.mxu0 0
        %7309 = vmatpush1.bf16.msra.mxu0 %v5425
        %7310 = vmatprep.subr.bf16.mxu0 0
        %7311 = vmatpush1.bf16.msra.mxu0 %v5426
        %7312 = vmatprep.subr.bf16.mxu0 0
        %7313 = vmatpush1.bf16.msra.mxu0 %v5427
        %7314 = vmatprep.subr.bf16.mxu0 0
        %7315 = vmatpush1.bf16.msra.mxu0 %v5428
        %7316 = vmatprep.subr.bf16.mxu0 0
        %7317 = vmatpush1.bf16.msra.mxu0 %v5429
        %7318 = vmatprep.subr.bf16.mxu0 0
        %7319 = vmatpush1.bf16.msra.mxu0 %v5430
        %7320 = vmatprep.subr.bf16.mxu0 0
        %7321 = vmatpush1.bf16.msra.mxu0 %v5431
        %7322 = vmatprep.subr.bf16.mxu0 0
        %7323 = vmatpush1.bf16.msra.mxu0 %v5432
        %7324 = vmatprep.subr.bf16.mxu0 0
        %7325 = vmatpush1.bf16.msra.mxu0 %v5433
        %7326 = vmatprep.subr.bf16.mxu0 0
        %7327 = vmatpush1.bf16.msra.mxu0 %v5434
        %7328 = vmatprep.subr.bf16.mxu0 0
        %7329 = vmatpush1.bf16.msra.mxu0 %v5435
        %7330 = vmatprep.subr.bf16.mxu0 0
        %7331 = vmatpush1.bf16.msra.mxu0 %v5436
        %7332 = vmatprep.subr.bf16.mxu0 0
        %7333 = vmatpush1.bf16.msra.mxu0 %v5437
        %7334 = vmatprep.mubr.bf16.mxu0 %v438
        %7335 = vmatmul.mubr.bf16.gmra.mrb[0].mxu0 %v437
        %v7336 = vpop.f32.mrb[0].mxu0
        %v7337 = vadd.f32 %v7297, %v7336
        %v7338 = vpop.f32.mrb[0].mxu0
        %v7339 = vpop.f32.mrb[0].mxu0
        %v7340 = vpop.f32.mrb[0].mxu0
        %7341 = vdwg.mxu0
        %7342 = vmatprep.subr.bf16.mxu0 0
        %7343 = vmatpush1.bf16.msra.mxu0 %v5438
        %7344 = vmatprep.subr.bf16.mxu0 0
        %7345 = vmatpush1.bf16.msra.mxu0 %v5439
        %7346 = vmatprep.subr.bf16.mxu0 0
        %7347 = vmatpush1.bf16.msra.mxu0 %v5440
        %7348 = vmatprep.subr.bf16.mxu0 0
        %7349 = vmatpush1.bf16.msra.mxu0 %v5441
        %7350 = vmatprep.subr.bf16.mxu0 0
        %7351 = vmatpush1.bf16.msra.mxu0 %v5442
        %7352 = vmatprep.subr.bf16.mxu0 0
        %7353 = vmatpush1.bf16.msra.mxu0 %v5443
        %7354 = vmatprep.subr.bf16.mxu0 0
        %7355 = vmatpush1.bf16.msra.mxu0 %v5444
        %7356 = vmatprep.subr.bf16.mxu0 0
        %7357 = vmatpush1.bf16.msra.mxu0 %v5445
        %7358 = vmatprep.subr.bf16.mxu0 0
        %7359 = vmatpush1.bf16.msra.mxu0 %v5446
        %7360 = vmatprep.subr.bf16.mxu0 0
        %7361 = vmatpush1.bf16.msra.mxu0 %v5447
        %7362 = vmatprep.subr.bf16.mxu0 0
        %7363 = vmatpush1.bf16.msra.mxu0 %v5448
        %7364 = vmatprep.subr.bf16.mxu0 0
        %7365 = vmatpush1.bf16.msra.mxu0 %v5449
        %7366 = vmatprep.subr.bf16.mxu0 0
        %7367 = vmatpush1.bf16.msra.mxu0 %v5450
        %7368 = vmatprep.subr.bf16.mxu0 0
        %7369 = vmatpush1.bf16.msra.mxu0 %v5451
        %7370 = vmatprep.subr.bf16.mxu0 0
        %7371 = vmatpush1.bf16.msra.mxu0 %v5452
        %7372 = vmatprep.subr.bf16.mxu0 0
        %7373 = vmatpush1.bf16.msra.mxu0 %v5453
        %7374 = vmatprep.mubr.bf16.mxu0 %v440
        %7375 = vmatmul.mubr.bf16.gmra.mrb[0].mxu0 %v439
        %v7376 = vpop.f32.mrb[0].mxu0
        %v7377 = vadd.f32 %v7337, %v7376
        %v7378 = vpop.f32.mrb[0].mxu0
        %v7379 = vpop.f32.mrb[0].mxu0
        %v7380 = vpop.f32.mrb[0].mxu0
        %7381 = vdwg.mxu0
        %7382 = vmatprep.subr.bf16.mxu0 0
        %7383 = vmatpush1.bf16.msra.mxu0 %v5454
        %7384 = vmatprep.subr.bf16.mxu0 0
        %7385 = vmatpush1.bf16.msra.mxu0 %v5455
        %7386 = vmatprep.subr.bf16.mxu0 0
        %7387 = vmatpush1.bf16.msra.mxu0 %v5456
        %7388 = vmatprep.subr.bf16.mxu0 0
        %7389 = vmatpush1.bf16.msra.mxu0 %v5457
        %7390 = vmatprep.subr.bf16.mxu0 0
        %7391 = vmatpush1.bf16.msra.mxu0 %v5458
        %7392 = vmatprep.subr.bf16.mxu0 0
        %7393 = vmatpush1.bf16.msra.mxu0 %v5459
        %7394 = vmatprep.subr.bf16.mxu0 0
        %7395 = vmatpush1.bf16.msra.mxu0 %v5460
        %7396 = vmatprep.subr.bf16.mxu0 0
        %7397 = vmatpush1.bf16.msra.mxu0 %v5461
        %7398 = vmatprep.subr.bf16.mxu0 0
        %7399 = vmatpush1.bf16.msra.mxu0 %v5462
        %7400 = vmatprep.subr.bf16.mxu0 0
        %7401 = vmatpush1.bf16.msra.mxu0 %v5463
        %7402 = vmatprep.subr.bf16.mxu0 0
        %7403 = vmatpush1.bf16.msra.mxu0 %v5464
        %7404 = vmatprep.subr.bf16.mxu0 0
        %7405 = vmatpush1.bf16.msra.mxu0 %v5465
        %7406 = vmatprep.subr.bf16.mxu0 0
        %7407 = vmatpush1.bf16.msra.mxu0 %v5466
        %7408 = vmatprep.subr.bf16.mxu0 0
        %7409 = vmatpush1.bf16.msra.mxu0 %v5467
        %7410 = vmatprep.subr.bf16.mxu0 0
        %7411 = vmatpush1.bf16.msra.mxu0 %v5468
        %7412 = vmatprep.subr.bf16.mxu0 0
        %7413 = vmatpush1.bf16.msra.mxu0 %v5469
        %7414 = vmatprep.mubr.bf16.mxu0 %v442
        %7415 = vmatmul.mubr.bf16.gmra.mrb[0].mxu0 %v441
        %v7416 = vpop.f32.mrb[0].mxu0
        %v7417 = vadd.f32 %v7377, %v7416
        %v7418 = vpop.f32.mrb[0].mxu0
        %v7419 = vpop.f32.mrb[0].mxu0
        %v7420 = vpop.f32.mrb[0].mxu0
        %7421 = vdwg.mxu0
        %7422 = vmatprep.subr.bf16.mxu0 0
        %7423 = vmatpush1.bf16.msra.mxu0 %v5470
        %7424 = vmatprep.subr.bf16.mxu0 0
        %7425 = vmatpush1.bf16.msra.mxu0 %v5471
        %7426 = vmatprep.subr.bf16.mxu0 0
        %7427 = vmatpush1.bf16.msra.mxu0 %v5472
        %7428 = vmatprep.subr.bf16.mxu0 0
        %7429 = vmatpush1.bf16.msra.mxu0 %v5473
        %7430 = vmatprep.subr.bf16.mxu0 0
        %7431 = vmatpush1.bf16.msra.mxu0 %v5474
        %7432 = vmatprep.subr.bf16.mxu0 0
        %7433 = vmatpush1.bf16.msra.mxu0 %v5475
        %7434 = vmatprep.subr.bf16.mxu0 0
        %7435 = vmatpush1.bf16.msra.mxu0 %v5476
        %7436 = vmatprep.subr.bf16.mxu0 0
        %7437 = vmatpush1.bf16.msra.mxu0 %v5477
        %7438 = vmatprep.subr.bf16.mxu0 0
        %7439 = vmatpush1.bf16.msra.mxu0 %v5478
        %7440 = vmatprep.subr.bf16.mxu0 0
        %7441 = vmatpush1.bf16.msra.mxu0 %v5479
        %7442 = vmatprep.subr.bf16.mxu0 0
        %7443 = vmatpush1.bf16.msra.mxu0 %v5480
        %7444 = vmatprep.subr.bf16.mxu0 0
        %7445 = vmatpush1.bf16.msra.mxu0 %v5481
        %7446 = vmatprep.subr.bf16.mxu0 0
        %7447 = vmatpush1.bf16.msra.mxu0 %v5482
        %7448 = vmatprep.subr.bf16.mxu0 0
        %7449 = vmatpush1.bf16.msra.mxu0 %v5483
        %7450 = vmatprep.subr.bf16.mxu0 0
        %7451 = vmatpush1.bf16.msra.mxu0 %v5484
        %7452 = vmatprep.subr.bf16.mxu0 0
        %7453 = vmatpush1.bf16.msra.mxu0 %v5485
        %7454 = vmatprep.mubr.bf16.mxu0 %v444
        %7455 = vmatmul.mubr.bf16.gmra.mrb[0].mxu0 %v443
        %v7456 = vpop.f32.mrb[0].mxu0
        %v7457 = vadd.f32 %v7417, %v7456
        %v7458 = vpop.f32.mrb[0].mxu0
        %v7459 = vpop.f32.mrb[0].mxu0
        %v7460 = vpop.f32.mrb[0].mxu0
        %7461 = vdwg.mxu0
        %7462 = vmatprep.subr.bf16.mxu0 0
        %7463 = vmatpush1.bf16.msra.mxu0 %v5486
        %7464 = vmatprep.subr.bf16.mxu0 0
        %7465 = vmatpush1.bf16.msra.mxu0 %v5487
        %7466 = vmatprep.subr.bf16.mxu0 0
        %7467 = vmatpush1.bf16.msra.mxu0 %v5488
        %7468 = vmatprep.subr.bf16.mxu0 0
        %7469 = vmatpush1.bf16.msra.mxu0 %v5489
        %7470 = vmatprep.subr.bf16.mxu0 0
        %7471 = vmatpush1.bf16.msra.mxu0 %v5490
        %7472 = vmatprep.subr.bf16.mxu0 0
        %7473 = vmatpush1.bf16.msra.mxu0 %v5491
        %7474 = vmatprep.subr.bf16.mxu0 0
        %7475 = vmatpush1.bf16.msra.mxu0 %v5492
        %7476 = vmatprep.subr.bf16.mxu0 0
        %7477 = vmatpush1.bf16.msra.mxu0 %v5493
        %7478 = vmatprep.subr.bf16.mxu0 0
        %7479 = vmatpush1.bf16.msra.mxu0 %v5494
        %7480 = vmatprep.subr.bf16.mxu0 0
        %7481 = vmatpush1.bf16.msra.mxu0 %v5495
        %7482 = vmatprep.subr.bf16.mxu0 0
        %7483 = vmatpush1.bf16.msra.mxu0 %v5496
        %7484 = vmatprep.subr.bf16.mxu0 0
        %7485 = vmatpush1.bf16.msra.mxu0 %v5497
        %7486 = vmatprep.subr.bf16.mxu0 0
        %7487 = vmatpush1.bf16.msra.mxu0 %v5498
        %7488 = vmatprep.subr.bf16.mxu0 0
        %7489 = vmatpush1.bf16.msra.mxu0 %v5499
        %7490 = vmatprep.subr.bf16.mxu0 0
        %7491 = vmatpush1.bf16.msra.mxu0 %v5500
        %7492 = vmatprep.subr.bf16.mxu0 0
        %7493 = vmatpush1.bf16.msra.mxu0 %v5501
        %7494 = vmatprep.mubr.bf16.mxu0 %v446
        %7495 = vmatmul.mubr.bf16.gmra.mrb[0].mxu0 %v445
        %v7496 = vpop.f32.mrb[0].mxu0
        %v7497 = vadd.f32 %v7457, %v7496
        %v7498 = vpop.f32.mrb[0].mxu0
        %v7499 = vpop.f32.mrb[0].mxu0
        %v7500 = vpop.f32.mrb[0].mxu0
        %7501 = vdwg.mxu0
        %7502 = vmatprep.subr.bf16.mxu0 0
        %7503 = vmatpush1.bf16.msra.mxu0 %v5502
        %7504 = vmatprep.subr.bf16.mxu0 0
        %7505 = vmatpush1.bf16.msra.mxu0 %v5503
        %7506 = vmatprep.subr.bf16.mxu0 0
        %7507 = vmatpush1.bf16.msra.mxu0 %v5504
        %7508 = vmatprep.subr.bf16.mxu0 0
        %7509 = vmatpush1.bf16.msra.mxu0 %v5505
        %7510 = vmatprep.subr.bf16.mxu0 0
        %7511 = vmatpush1.bf16.msra.mxu0 %v5506
        %7512 = vmatprep.subr.bf16.mxu0 0
        %7513 = vmatpush1.bf16.msra.mxu0 %v5507
        %7514 = vmatprep.subr.bf16.mxu0 0
        %7515 = vmatpush1.bf16.msra.mxu0 %v5508
        %7516 = vmatprep.subr.bf16.mxu0 0
        %7517 = vmatpush1.bf16.msra.mxu0 %v5509
        %7518 = vmatprep.subr.bf16.mxu0 0
        %7519 = vmatpush1.bf16.msra.mxu0 %v5510
        %7520 = vmatprep.subr.bf16.mxu0 0
        %7521 = vmatpush1.bf16.msra.mxu0 %v5511
        %7522 = vmatprep.subr.bf16.mxu0 0
        %7523 = vmatpush1.bf16.msra.mxu0 %v5512
        %7524 = vmatprep.subr.bf16.mxu0 0
        %7525 = vmatpush1.bf16.msra.mxu0 %v5513
        %7526 = vmatprep.subr.bf16.mxu0 0
        %7527 = vmatpush1.bf16.msra.mxu0 %v5514
        %7528 = vmatprep.subr.bf16.mxu0 0
        %7529 = vmatpush1.bf16.msra.mxu0 %v5515
        %7530 = vmatprep.subr.bf16.mxu0 0
        %7531 = vmatpush1.bf16.msra.mxu0 %v5516
        %7532 = vmatprep.subr.bf16.mxu0 0
        %7533 = vmatpush1.bf16.msra.mxu0 %v5517
        %7534 = vmatprep.mubr.bf16.mxu0 %v448
        %7535 = vmatmul.mubr.bf16.gmra.mrb[0].mxu0 %v447
        %v7536 = vpop.f32.mrb[0].mxu0
        %v7537 = vadd.f32 %v7497, %v7536
        %v7538 = vpop.f32.mrb[0].mxu0
        %v7539 = vpop.f32.mrb[0].mxu0
        %v7540 = vpop.f32.mrb[0].mxu0
        %7541 = vdwg.mxu0
        %7542 = vmatprep.subr.bf16.mxu0 0
        %7543 = vmatpush1.bf16.msra.mxu0 %v5518
        %7544 = vmatprep.subr.bf16.mxu0 0
        %7545 = vmatpush1.bf16.msra.mxu0 %v5519
        %7546 = vmatprep.subr.bf16.mxu0 0
        %7547 = vmatpush1.bf16.msra.mxu0 %v5520
        %7548 = vmatprep.subr.bf16.mxu0 0
        %7549 = vmatpush1.bf16.msra.mxu0 %v5521
        %7550 = vmatprep.subr.bf16.mxu0 0
        %7551 = vmatpush1.bf16.msra.mxu0 %v5522
        %7552 = vmatprep.subr.bf16.mxu0 0
        %7553 = vmatpush1.bf16.msra.mxu0 %v5523
        %7554 = vmatprep.subr.bf16.mxu0 0
        %7555 = vmatpush1.bf16.msra.mxu0 %v5524
        %7556 = vmatprep.subr.bf16.mxu0 0
        %7557 = vmatpush1.bf16.msra.mxu0 %v5525
        %7558 = vmatprep.subr.bf16.mxu0 0
        %7559 = vmatpush1.bf16.msra.mxu0 %v5526
        %7560 = vmatprep.subr.bf16.mxu0 0
        %7561 = vmatpush1.bf16.msra.mxu0 %v5527
        %7562 = vmatprep.subr.bf16.mxu0 0
        %7563 = vmatpush1.bf16.msra.mxu0 %v5528
        %7564 = vmatprep.subr.bf16.mxu0 0
        %7565 = vmatpush1.bf16.msra.mxu0 %v5529
        %7566 = vmatprep.subr.bf16.mxu0 0
        %7567 = vmatpush1.bf16.msra.mxu0 %v5530
        %7568 = vmatprep.subr.bf16.mxu0 0
        %7569 = vmatpush1.bf16.msra.mxu0 %v5531
        %7570 = vmatprep.subr.bf16.mxu0 0
        %7571 = vmatpush1.bf16.msra.mxu0 %v5532
        %7572 = vmatprep.subr.bf16.mxu0 0
        %7573 = vmatpush1.bf16.msra.mxu0 %v5533
        %7574 = vmatprep.mubr.bf16.mxu0 %v450
        %7575 = vmatmul.mubr.bf16.gmra.mrb[0].mxu0 %v449
        %v7576 = vpop.f32.mrb[0].mxu0
        %v7577 = vadd.f32 %v7537, %v7576
        %v7578 = vpop.f32.mrb[0].mxu0
        %v7579 = vpop.f32.mrb[0].mxu0
        %v7580 = vpop.f32.mrb[0].mxu0
        %7581 = vdwg.mxu0
        %7582 = vmatprep.subr.bf16.mxu0 0
        %7583 = vmatpush1.bf16.msra.mxu0 %v5534
        %7584 = vmatprep.subr.bf16.mxu0 0
        %7585 = vmatpush1.bf16.msra.mxu0 %v5535
        %7586 = vmatprep.subr.bf16.mxu0 0
        %7587 = vmatpush1.bf16.msra.mxu0 %v5536
        %7588 = vmatprep.subr.bf16.mxu0 0
        %7589 = vmatpush1.bf16.msra.mxu0 %v5537
        %7590 = vmatprep.subr.bf16.mxu0 0
        %7591 = vmatpush1.bf16.msra.mxu0 %v5538
        %7592 = vmatprep.subr.bf16.mxu0 0
        %7593 = vmatpush1.bf16.msra.mxu0 %v5539
        %7594 = vmatprep.subr.bf16.mxu0 0
        %7595 = vmatpush1.bf16.msra.mxu0 %v5540
        %7596 = vmatprep.subr.bf16.mxu0 0
        %7597 = vmatpush1.bf16.msra.mxu0 %v5541
        %7598 = vmatprep.subr.bf16.mxu0 0
        %7599 = vmatpush1.bf16.msra.mxu0 %v5542
        %7600 = vmatprep.subr.bf16.mxu0 0
        %7601 = vmatpush1.bf16.msra.mxu0 %v5543
        %7602 = vmatprep.subr.bf16.mxu0 0
        %7603 = vmatpush1.bf16.msra.mxu0 %v5544
        %7604 = vmatprep.subr.bf16.mxu0 0
        %7605 = vmatpush1.bf16.msra.mxu0 %v5545
        %7606 = vmatprep.subr.bf16.mxu0 0
        %7607 = vmatpush1.bf16.msra.mxu0 %v5546
        %7608 = vmatprep.subr.bf16.mxu0 0
        %7609 = vmatpush1.bf16.msra.mxu0 %v5547
        %7610 = vmatprep.subr.bf16.mxu0 0
        %7611 = vmatpush1.bf16.msra.mxu0 %v5548
        %7612 = vmatprep.subr.bf16.mxu0 0
        %7613 = vmatpush1.bf16.msra.mxu0 %v5549
        %7614 = vmatprep.mubr.bf16.mxu0 %v452
        %7615 = vmatmul.mubr.bf16.gmra.mrb[0].mxu0 %v451
        %v7616 = vpop.f32.mrb[0].mxu0
        %v7617 = vadd.f32 %v7577, %v7616
        %v7618 = vpop.f32.mrb[0].mxu0
        %v7619 = vpop.f32.mrb[0].mxu0
        %v7620 = vpop.f32.mrb[0].mxu0
        %7621 = vdwg.mxu0
        %7622 = vmatprep.subr.bf16.mxu0 0
        %7623 = vmatpush1.bf16.msra.mxu0 %v5550
        %7624 = vmatprep.subr.bf16.mxu0 0
        %7625 = vmatpush1.bf16.msra.mxu0 %v5551
        %7626 = vmatprep.subr.bf16.mxu0 0
        %7627 = vmatpush1.bf16.msra.mxu0 %v5552
        %7628 = vmatprep.subr.bf16.mxu0 0
        %7629 = vmatpush1.bf16.msra.mxu0 %v5553
        %7630 = vmatprep.subr.bf16.mxu0 0
        %7631 = vmatpush1.bf16.msra.mxu0 %v5554
        %7632 = vmatprep.subr.bf16.mxu0 0
        %7633 = vmatpush1.bf16.msra.mxu0 %v5555
        %7634 = vmatprep.subr.bf16.mxu0 0
        %7635 = vmatpush1.bf16.msra.mxu0 %v5556
        %7636 = vmatprep.subr.bf16.mxu0 0
        %7637 = vmatpush1.bf16.msra.mxu0 %v5557
        %7638 = vmatprep.subr.bf16.mxu0 0
        %7639 = vmatpush1.bf16.msra.mxu0 %v5558
        %7640 = vmatprep.subr.bf16.mxu0 0
        %7641 = vmatpush1.bf16.msra.mxu0 %v5559
        %7642 = vmatprep.subr.bf16.mxu0 0
        %7643 = vmatpush1.bf16.msra.mxu0 %v5560
        %7644 = vmatprep.subr.bf16.mxu0 0
        %7645 = vmatpush1.bf16.msra.mxu0 %v5561
        %7646 = vmatprep.subr.bf16.mxu0 0
        %7647 = vmatpush1.bf16.msra.mxu0 %v5562
        %7648 = vmatprep.subr.bf16.mxu0 0
        %7649 = vmatpush1.bf16.msra.mxu0 %v5563
        %7650 = vmatprep.subr.bf16.mxu0 0
        %7651 = vmatpush1.bf16.msra.mxu0 %v5564
        %7652 = vmatprep.subr.bf16.mxu0 0
        %7653 = vmatpush1.bf16.msra.mxu0 %v5565
        %7654 = vmatprep.mubr.bf16.mxu0 %v454
        %7655 = vmatmul.mubr.bf16.gmra.mrb[0].mxu0 %v453
        %v7656 = vpop.f32.mrb[0].mxu0
        %v7657 = vadd.f32 %v7617, %v7656
        %v7658 = vpop.f32.mrb[0].mxu0
        %v7659 = vpop.f32.mrb[0].mxu0
        %v7660 = vpop.f32.mrb[0].mxu0
        %7661 = vdwg.mxu0
        %7662 = vmatprep.subr.bf16.mxu0 0
        %7663 = vmatpush1.bf16.msra.mxu0 %v5566
        %7664 = vmatprep.subr.bf16.mxu0 0
        %7665 = vmatpush1.bf16.msra.mxu0 %v5567
        %7666 = vmatprep.subr.bf16.mxu0 0
        %7667 = vmatpush1.bf16.msra.mxu0 %v5568
        %7668 = vmatprep.subr.bf16.mxu0 0
        %7669 = vmatpush1.bf16.msra.mxu0 %v5569
        %7670 = vmatprep.subr.bf16.mxu0 0
        %7671 = vmatpush1.bf16.msra.mxu0 %v5570
        %7672 = vmatprep.subr.bf16.mxu0 0
        %7673 = vmatpush1.bf16.msra.mxu0 %v5571
        %7674 = vmatprep.subr.bf16.mxu0 0
        %7675 = vmatpush1.bf16.msra.mxu0 %v5572
        %7676 = vmatprep.subr.bf16.mxu0 0
        %7677 = vmatpush1.bf16.msra.mxu0 %v5573
        %7678 = vmatprep.subr.bf16.mxu0 0
        %7679 = vmatpush1.bf16.msra.mxu0 %v5574
        %7680 = vmatprep.subr.bf16.mxu0 0
        %7681 = vmatpush1.bf16.msra.mxu0 %v5575
        %7682 = vmatprep.subr.bf16.mxu0 0
        %7683 = vmatpush1.bf16.msra.mxu0 %v5576
        %7684 = vmatprep.subr.bf16.mxu0 0
        %7685 = vmatpush1.bf16.msra.mxu0 %v5577
        %7686 = vmatprep.subr.bf16.mxu0 0
        %7687 = vmatpush1.bf16.msra.mxu0 %v5578
        %7688 = vmatprep.subr.bf16.mxu0 0
        %7689 = vmatpush1.bf16.msra.mxu0 %v5579
        %7690 = vmatprep.subr.bf16.mxu0 0
        %7691 = vmatpush1.bf16.msra.mxu0 %v5580
        %7692 = vmatprep.subr.bf16.mxu0 0
        %7693 = vmatpush1.bf16.msra.mxu0 %v5581
        %7694 = vmatprep.mubr.bf16.mxu0 %v456
        %7695 = vmatmul.mubr.bf16.gmra.mrb[0].mxu0 %v455
        %v7696 = vpop.f32.mrb[0].mxu0
        %v7697 = vadd.f32 %v7657, %v7696
        %v7698 = vpop.f32.mrb[0].mxu0
        %v7699 = vpop.f32.mrb[0].mxu0
        %v7700 = vpop.f32.mrb[0].mxu0
        %7701 = vdwg.mxu0
        %7702 = vmatprep.subr.bf16.mxu0 0
        %7703 = vmatpush1.bf16.msra.mxu0 %v5582
        %7704 = vmatprep.subr.bf16.mxu0 0
        %7705 = vmatpush1.bf16.msra.mxu0 %v5583
        %7706 = vmatprep.subr.bf16.mxu0 0
        %7707 = vmatpush1.bf16.msra.mxu0 %v5584
        %7708 = vmatprep.subr.bf16.mxu0 0
        %7709 = vmatpush1.bf16.msra.mxu0 %v5585
        %7710 = vmatprep.subr.bf16.mxu0 0
        %7711 = vmatpush1.bf16.msra.mxu0 %v5586
        %7712 = vmatprep.subr.bf16.mxu0 0
        %7713 = vmatpush1.bf16.msra.mxu0 %v5587
        %7714 = vmatprep.subr.bf16.mxu0 0
        %7715 = vmatpush1.bf16.msra.mxu0 %v5588
        %7716 = vmatprep.subr.bf16.mxu0 0
        %7717 = vmatpush1.bf16.msra.mxu0 %v5589
        %7718 = vmatprep.subr.bf16.mxu0 0
        %7719 = vmatpush1.bf16.msra.mxu0 %v5590
        %7720 = vmatprep.subr.bf16.mxu0 0
        %7721 = vmatpush1.bf16.msra.mxu0 %v5591
        %7722 = vmatprep.subr.bf16.mxu0 0
        %7723 = vmatpush1.bf16.msra.mxu0 %v5592
        %7724 = vmatprep.subr.bf16.mxu0 0
        %7725 = vmatpush1.bf16.msra.mxu0 %v5593
        %7726 = vmatprep.subr.bf16.mxu0 0
        %7727 = vmatpush1.bf16.msra.mxu0 %v5594
        %7728 = vmatprep.subr.bf16.mxu0 0
        %7729 = vmatpush1.bf16.msra.mxu0 %v5595
        %7730 = vmatprep.subr.bf16.mxu0 0
        %7731 = vmatpush1.bf16.msra.mxu0 %v5596
        %7732 = vmatprep.subr.bf16.mxu0 0
        %7733 = vmatpush1.bf16.msra.mxu0 %v5597
        %7734 = vmatprep.mubr.bf16.mxu0 %v458
        %7735 = vmatmul.mubr.bf16.gmra.mrb[0].mxu0 %v457
        %v7736 = vpop.f32.mrb[0].mxu0
        %v7737 = vadd.f32 %v7697, %v7736
        %v7738 = vpop.f32.mrb[0].mxu0
        %v7739 = vpop.f32.mrb[0].mxu0
        %v7740 = vpop.f32.mrb[0].mxu0
        %7741 = vdwg.mxu0
        %7742 = vmatprep.subr.bf16.mxu0 0
        %7743 = vmatpush1.bf16.msra.mxu0 %v5598
        %7744 = vmatprep.subr.bf16.mxu0 0
        %7745 = vmatpush1.bf16.msra.mxu0 %v5599
        %7746 = vmatprep.subr.bf16.mxu0 0
        %7747 = vmatpush1.bf16.msra.mxu0 %v5600
        %7748 = vmatprep.subr.bf16.mxu0 0
        %7749 = vmatpush1.bf16.msra.mxu0 %v5601
        %7750 = vmatprep.subr.bf16.mxu0 0
        %7751 = vmatpush1.bf16.msra.mxu0 %v5602
        %7752 = vmatprep.subr.bf16.mxu0 0
        %7753 = vmatpush1.bf16.msra.mxu0 %v5603
        %7754 = vmatprep.subr.bf16.mxu0 0
        %7755 = vmatpush1.bf16.msra.mxu0 %v5604
        %7756 = vmatprep.subr.bf16.mxu0 0
        %7757 = vmatpush1.bf16.msra.mxu0 %v5605
        %7758 = vmatprep.subr.bf16.mxu0 0
        %7759 = vmatpush1.bf16.msra.mxu0 %v5606
        %7760 = vmatprep.subr.bf16.mxu0 0
        %7761 = vmatpush1.bf16.msra.mxu0 %v5607
        %7762 = vmatprep.subr.bf16.mxu0 0
        %7763 = vmatpush1.bf16.msra.mxu0 %v5608
        %7764 = vmatprep.subr.bf16.mxu0 0
        %7765 = vmatpush1.bf16.msra.mxu0 %v5609
        %7766 = vmatprep.subr.bf16.mxu0 0
        %7767 = vmatpush1.bf16.msra.mxu0 %v5610
        %7768 = vmatprep.subr.bf16.mxu0 0
        %7769 = vmatpush1.bf16.msra.mxu0 %v5611
        %7770 = vmatprep.subr.bf16.mxu0 0
        %7771 = vmatpush1.bf16.msra.mxu0 %v5612
        %7772 = vmatprep.subr.bf16.mxu0 0
        %7773 = vmatpush1.bf16.msra.mxu0 %v5613
        %7774 = vmatprep.mubr.bf16.mxu0 %v460
        %7775 = vmatmul.mubr.bf16.gmra.mrb[0].mxu0 %v459
        %v7776 = vpop.f32.mrb[0].mxu0
        %v7777 = vadd.f32 %v7737, %v7776
        %v7778 = vpop.f32.mrb[0].mxu0
        %v7779 = vpop.f32.mrb[0].mxu0
        %v7780 = vpop.f32.mrb[0].mxu0
        %7781 = vdwg.mxu0
        %7782 = vmatprep.subr.bf16.mxu0 0
        %7783 = vmatpush1.bf16.msra.mxu0 %v5614
        %7784 = vmatprep.subr.bf16.mxu0 0
        %7785 = vmatpush1.bf16.msra.mxu0 %v5615
        %7786 = vmatprep.subr.bf16.mxu0 0
        %7787 = vmatpush1.bf16.msra.mxu0 %v5616
        %7788 = vmatprep.subr.bf16.mxu0 0
        %7789 = vmatpush1.bf16.msra.mxu0 %v5617
        %7790 = vmatprep.subr.bf16.mxu0 0
        %7791 = vmatpush1.bf16.msra.mxu0 %v5618
        %7792 = vmatprep.subr.bf16.mxu0 0
        %7793 = vmatpush1.bf16.msra.mxu0 %v5619
        %7794 = vmatprep.subr.bf16.mxu0 0
        %7795 = vmatpush1.bf16.msra.mxu0 %v5620
        %7796 = vmatprep.subr.bf16.mxu0 0
        %7797 = vmatpush1.bf16.msra.mxu0 %v5621
        %7798 = vmatprep.subr.bf16.mxu0 0
        %7799 = vmatpush1.bf16.msra.mxu0 %v5622
        %7800 = vmatprep.subr.bf16.mxu0 0
        %7801 = vmatpush1.bf16.msra.mxu0 %v5623
        %7802 = vmatprep.subr.bf16.mxu0 0
        %7803 = vmatpush1.bf16.msra.mxu0 %v5624
        %7804 = vmatprep.subr.bf16.mxu0 0
        %7805 = vmatpush1.bf16.msra.mxu0 %v5625
        %7806 = vmatprep.subr.bf16.mxu0 0
        %7807 = vmatpush1.bf16.msra.mxu0 %v5626
        %7808 = vmatprep.subr.bf16.mxu0 0
        %7809 = vmatpush1.bf16.msra.mxu0 %v5627
        %7810 = vmatprep.subr.bf16.mxu0 0
        %7811 = vmatpush1.bf16.msra.mxu0 %v5628
        %7812 = vmatprep.subr.bf16.mxu0 0
        %7813 = vmatpush1.bf16.msra.mxu0 %v5629
        %7814 = vmatprep.mubr.bf16.mxu0 %v462
        %7815 = vmatmul.mubr.bf16.gmra.mrb[0].mxu0 %v461
        %v7816 = vpop.f32.mrb[0].mxu0
        %v7817 = vadd.f32 %v7777, %v7816
        %v7818 = vpop.f32.mrb[0].mxu0
        %v7819 = vpop.f32.mrb[0].mxu0
        %v7820 = vpop.f32.mrb[0].mxu0
        %7821 = vdwg.mxu0
        %7822 = vmatprep.subr.bf16.mxu0 0
        %7823 = vmatpush1.bf16.msra.mxu0 %v5630
        %7824 = vmatprep.subr.bf16.mxu0 0
        %7825 = vmatpush1.bf16.msra.mxu0 %v5631
        %7826 = vmatprep.subr.bf16.mxu0 0
        %7827 = vmatpush1.bf16.msra.mxu0 %v5632
        %7828 = vmatprep.subr.bf16.mxu0 0
        %7829 = vmatpush1.bf16.msra.mxu0 %v5633
        %7830 = vmatprep.subr.bf16.mxu0 0
        %7831 = vmatpush1.bf16.msra.mxu0 %v5634
        %7832 = vmatprep.subr.bf16.mxu0 0
        %7833 = vmatpush1.bf16.msra.mxu0 %v5635
        %7834 = vmatprep.subr.bf16.mxu0 0
        %7835 = vmatpush1.bf16.msra.mxu0 %v5636
        %7836 = vmatprep.subr.bf16.mxu0 0
        %7837 = vmatpush1.bf16.msra.mxu0 %v5637
        %7838 = vmatprep.subr.bf16.mxu0 0
        %7839 = vmatpush1.bf16.msra.mxu0 %v5638
        %7840 = vmatprep.subr.bf16.mxu0 0
        %7841 = vmatpush1.bf16.msra.mxu0 %v5639
        %7842 = vmatprep.subr.bf16.mxu0 0
        %7843 = vmatpush1.bf16.msra.mxu0 %v5640
        %7844 = vmatprep.subr.bf16.mxu0 0
        %7845 = vmatpush1.bf16.msra.mxu0 %v5641
        %7846 = vmatprep.subr.bf16.mxu0 0
        %7847 = vmatpush1.bf16.msra.mxu0 %v5642
        %7848 = vmatprep.subr.bf16.mxu0 0
        %7849 = vmatpush1.bf16.msra.mxu0 %v5643
        %7850 = vmatprep.subr.bf16.mxu0 0
        %7851 = vmatpush1.bf16.msra.mxu0 %v5644
        %7852 = vmatprep.subr.bf16.mxu0 0
        %7853 = vmatpush1.bf16.msra.mxu0 %v5645
        %7854 = vmatprep.mubr.bf16.mxu0 %v464
        %7855 = vmatmul.mubr.bf16.gmra.mrb[0].mxu0 %v463
        %v7856 = vpop.f32.mrb[0].mxu0
        %v7857 = vadd.f32 %v7817, %v7856
        %v7858 = vpop.f32.mrb[0].mxu0
        %v7859 = vpop.f32.mrb[0].mxu0
        %v7860 = vpop.f32.mrb[0].mxu0
        %7861 = vdwg.mxu0
        %7862 = vmatprep.subr.bf16.mxu0 0
        %7863 = vmatpush1.bf16.msra.mxu0 %v5646
        %7864 = vmatprep.subr.bf16.mxu0 0
        %7865 = vmatpush1.bf16.msra.mxu0 %v5647
        %7866 = vmatprep.subr.bf16.mxu0 0
        %7867 = vmatpush1.bf16.msra.mxu0 %v5648
        %7868 = vmatprep.subr.bf16.mxu0 0
        %7869 = vmatpush1.bf16.msra.mxu0 %v5649
        %7870 = vmatprep.subr.bf16.mxu0 0
        %7871 = vmatpush1.bf16.msra.mxu0 %v5650
        %7872 = vmatprep.subr.bf16.mxu0 0
        %7873 = vmatpush1.bf16.msra.mxu0 %v5651
        %7874 = vmatprep.subr.bf16.mxu0 0
        %7875 = vmatpush1.bf16.msra.mxu0 %v5652
        %7876 = vmatprep.subr.bf16.mxu0 0
        %7877 = vmatpush1.bf16.msra.mxu0 %v5653
        %7878 = vmatprep.subr.bf16.mxu0 0
        %7879 = vmatpush1.bf16.msra.mxu0 %v5654
        %7880 = vmatprep.subr.bf16.mxu0 0
        %7881 = vmatpush1.bf16.msra.mxu0 %v5655
        %7882 = vmatprep.subr.bf16.mxu0 0
        %7883 = vmatpush1.bf16.msra.mxu0 %v5656
        %7884 = vmatprep.subr.bf16.mxu0 0
        %7885 = vmatpush1.bf16.msra.mxu0 %v5657
        %7886 = vmatprep.subr.bf16.mxu0 0
        %7887 = vmatpush1.bf16.msra.mxu0 %v5658
        %7888 = vmatprep.subr.bf16.mxu0 0
        %7889 = vmatpush1.bf16.msra.mxu0 %v5659
        %7890 = vmatprep.subr.bf16.mxu0 0
        %7891 = vmatpush1.bf16.msra.mxu0 %v5660
        %7892 = vmatprep.subr.bf16.mxu0 0
        %7893 = vmatpush1.bf16.msra.mxu0 %v5661
        %7894 = vmatprep.mubr.bf16.mxu0 %v466
        %7895 = vmatmul.mubr.bf16.gmra.mrb[0].mxu0 %v465
        %v7896 = vpop.f32.mrb[0].mxu0
        %v7897 = vadd.f32 %v7857, %v7896
        %v7898 = vpop.f32.mrb[0].mxu0
        %v7899 = vpop.f32.mrb[0].mxu0
        %v7900 = vpop.f32.mrb[0].mxu0
        %7901 = vdwg.mxu0
        %7902 = vmatprep.subr.bf16.mxu0 0
        %7903 = vmatpush1.bf16.msra.mxu0 %v5662
        %7904 = vmatprep.subr.bf16.mxu0 0
        %7905 = vmatpush1.bf16.msra.mxu0 %v5663
        %7906 = vmatprep.subr.bf16.mxu0 0
        %7907 = vmatpush1.bf16.msra.mxu0 %v5664
        %7908 = vmatprep.subr.bf16.mxu0 0
        %7909 = vmatpush1.bf16.msra.mxu0 %v5665
        %7910 = vmatprep.subr.bf16.mxu0 0
        %7911 = vmatpush1.bf16.msra.mxu0 %v5666
        %7912 = vmatprep.subr.bf16.mxu0 0
        %7913 = vmatpush1.bf16.msra.mxu0 %v5667
        %7914 = vmatprep.subr.bf16.mxu0 0
        %7915 = vmatpush1.bf16.msra.mxu0 %v5668
        %7916 = vmatprep.subr.bf16.mxu0 0
        %7917 = vmatpush1.bf16.msra.mxu0 %v5669
        %7918 = vmatprep.subr.bf16.mxu0 0
        %7919 = vmatpush1.bf16.msra.mxu0 %v5670
        %7920 = vmatprep.subr.bf16.mxu0 0
        %7921 = vmatpush1.bf16.msra.mxu0 %v5671
        %7922 = vmatprep.subr.bf16.mxu0 0
        %7923 = vmatpush1.bf16.msra.mxu0 %v5672
        %7924 = vmatprep.subr.bf16.mxu0 0
        %7925 = vmatpush1.bf16.msra.mxu0 %v5673
        %7926 = vmatprep.subr.bf16.mxu0 0
        %7927 = vmatpush1.bf16.msra.mxu0 %v5674
        %7928 = vmatprep.subr.bf16.mxu0 0
        %7929 = vmatpush1.bf16.msra.mxu0 %v5675
        %7930 = vmatprep.subr.bf16.mxu0 0
        %7931 = vmatpush1.bf16.msra.mxu0 %v5676
        %7932 = vmatprep.subr.bf16.mxu0 0
        %7933 = vmatpush1.bf16.msra.mxu0 %v5677
        %7934 = vmatprep.mubr.bf16.mxu0 %v468
        %7935 = vmatmul.mubr.bf16.gmra.mrb[0].mxu0 %v467
        %v7936 = vpop.f32.mrb[0].mxu0
        %v7937 = vadd.f32 %v7897, %v7936
        %v7938 = vpop.f32.mrb[0].mxu0
        %v7939 = vpop.f32.mrb[0].mxu0
        %v7940 = vpop.f32.mrb[0].mxu0
        %7941 = vdwg.mxu0
        %7942 = vmatprep.subr.bf16.mxu0 0
        %7943 = vmatpush1.bf16.msra.mxu0 %v5678
        %7944 = vmatprep.subr.bf16.mxu0 0
        %7945 = vmatpush1.bf16.msra.mxu0 %v5679
        %7946 = vmatprep.subr.bf16.mxu0 0
        %7947 = vmatpush1.bf16.msra.mxu0 %v5680
        %7948 = vmatprep.subr.bf16.mxu0 0
        %7949 = vmatpush1.bf16.msra.mxu0 %v5681
        %7950 = vmatprep.subr.bf16.mxu0 0
        %7951 = vmatpush1.bf16.msra.mxu0 %v5682
        %7952 = vmatprep.subr.bf16.mxu0 0
        %7953 = vmatpush1.bf16.msra.mxu0 %v5683
        %7954 = vmatprep.subr.bf16.mxu0 0
        %7955 = vmatpush1.bf16.msra.mxu0 %v5684
        %7956 = vmatprep.subr.bf16.mxu0 0
        %7957 = vmatpush1.bf16.msra.mxu0 %v5685
        %7958 = vmatprep.subr.bf16.mxu0 0
        %7959 = vmatpush1.bf16.msra.mxu0 %v5686
        %7960 = vmatprep.subr.bf16.mxu0 0
        %7961 = vmatpush1.bf16.msra.mxu0 %v5687
        %7962 = vmatprep.subr.bf16.mxu0 0
        %7963 = vmatpush1.bf16.msra.mxu0 %v5688
        %7964 = vmatprep.subr.bf16.mxu0 0
        %7965 = vmatpush1.bf16.msra.mxu0 %v5689
        %7966 = vmatprep.subr.bf16.mxu0 0
        %7967 = vmatpush1.bf16.msra.mxu0 %v5690
        %7968 = vmatprep.subr.bf16.mxu0 0
        %7969 = vmatpush1.bf16.msra.mxu0 %v5691
        %7970 = vmatprep.subr.bf16.mxu0 0
        %7971 = vmatpush1.bf16.msra.mxu0 %v5692
        %7972 = vmatprep.subr.bf16.mxu0 0
        %7973 = vmatpush1.bf16.msra.mxu0 %v5693
        %7974 = vmatprep.mubr.bf16.mxu0 %v470
        %7975 = vmatmul.mubr.bf16.gmra.mrb[0].mxu0 %v469
        %v7976 = vpop.f32.mrb[0].mxu0
        %v7977 = vadd.f32 %v7937, %v7976
        %v7978 = vpop.f32.mrb[0].mxu0
        %v7979 = vpop.f32.mrb[0].mxu0
        %v7980 = vpop.f32.mrb[0].mxu0
        %7981 = vdwg.mxu0
        %7982 = vmatprep.subr.bf16.mxu0 0
        %7983 = vmatpush1.bf16.msra.mxu0 %v5694
        %7984 = vmatprep.subr.bf16.mxu0 0
        %7985 = vmatpush1.bf16.msra.mxu0 %v5695
        %7986 = vmatprep.subr.bf16.mxu0 0
        %7987 = vmatpush1.bf16.msra.mxu0 %v5696
        %7988 = vmatprep.subr.bf16.mxu0 0
        %7989 = vmatpush1.bf16.msra.mxu0 %v5697
        %7990 = vmatprep.subr.bf16.mxu0 0
        %7991 = vmatpush1.bf16.msra.mxu0 %v5698
        %7992 = vmatprep.subr.bf16.mxu0 0
        %7993 = vmatpush1.bf16.msra.mxu0 %v5699
        %7994 = vmatprep.subr.bf16.mxu0 0
        %7995 = vmatpush1.bf16.msra.mxu0 %v5700
        %7996 = vmatprep.subr.bf16.mxu0 0
        %7997 = vmatpush1.bf16.msra.mxu0 %v5701
        %7998 = vmatprep.subr.bf16.mxu0 0
        %7999 = vmatpush1.bf16.msra.mxu0 %v5702
        %8000 = vmatprep.subr.bf16.mxu0 0
        %8001 = vmatpush1.bf16.msra.mxu0 %v5703
        %8002 = vmatprep.subr.bf16.mxu0 0
        %8003 = vmatpush1.bf16.msra.mxu0 %v5704
        %8004 = vmatprep.subr.bf16.mxu0 0
        %8005 = vmatpush1.bf16.msra.mxu0 %v5705
        %8006 = vmatprep.subr.bf16.mxu0 0
        %8007 = vmatpush1.bf16.msra.mxu0 %v5706
        %8008 = vmatprep.subr.bf16.mxu0 0
        %8009 = vmatpush1.bf16.msra.mxu0 %v5707
        %8010 = vmatprep.subr.bf16.mxu0 0
        %8011 = vmatpush1.bf16.msra.mxu0 %v5708
        %8012 = vmatprep.subr.bf16.mxu0 0
        %8013 = vmatpush1.bf16.msra.mxu0 %v5709
        %8014 = vmatprep.mubr.bf16.mxu0 %v472
        %8015 = vmatmul.mubr.bf16.gmra.mrb[0].mxu0 %v471
        %v8016 = vpop.f32.mrb[0].mxu0
        %v8017 = vadd.f32 %v7977, %v8016
        %v8018 = vpop.f32.mrb[0].mxu0
        %v8019 = vpop.f32.mrb[0].mxu0
        %v8020 = vpop.f32.mrb[0].mxu0
        %8021 = vdwg.mxu0
        %8022 = vmatprep.subr.bf16.mxu0 0
        %8023 = vmatpush1.bf16.msra.mxu0 %v5710
        %8024 = vmatprep.subr.bf16.mxu0 0
        %8025 = vmatpush1.bf16.msra.mxu0 %v5711
        %8026 = vmatprep.subr.bf16.mxu0 0
        %8027 = vmatpush1.bf16.msra.mxu0 %v5712
        %8028 = vmatprep.subr.bf16.mxu0 0
        %8029 = vmatpush1.bf16.msra.mxu0 %v5713
        %8030 = vmatprep.subr.bf16.mxu0 0
        %8031 = vmatpush1.bf16.msra.mxu0 %v5714
        %8032 = vmatprep.subr.bf16.mxu0 0
        %8033 = vmatpush1.bf16.msra.mxu0 %v5715
        %8034 = vmatprep.subr.bf16.mxu0 0
        %8035 = vmatpush1.bf16.msra.mxu0 %v5716
        %8036 = vmatprep.subr.bf16.mxu0 0
        %8037 = vmatpush1.bf16.msra.mxu0 %v5717
        %8038 = vmatprep.subr.bf16.mxu0 0
        %8039 = vmatpush1.bf16.msra.mxu0 %v5718
        %8040 = vmatprep.subr.bf16.mxu0 0
        %8041 = vmatpush1.bf16.msra.mxu0 %v5719
        %8042 = vmatprep.subr.bf16.mxu0 0
        %8043 = vmatpush1.bf16.msra.mxu0 %v5720
        %8044 = vmatprep.subr.bf16.mxu0 0
        %8045 = vmatpush1.bf16.msra.mxu0 %v5721
        %8046 = vmatprep.subr.bf16.mxu0 0
        %8047 = vmatpush1.bf16.msra.mxu0 %v5722
        %8048 = vmatprep.subr.bf16.mxu0 0
        %8049 = vmatpush1.bf16.msra.mxu0 %v5723
        %8050 = vmatprep.subr.bf16.mxu0 0
        %8051 = vmatpush1.bf16.msra.mxu0 %v5724
        %8052 = vmatprep.subr.bf16.mxu0 0
        %8053 = vmatpush1.bf16.msra.mxu0 %v5725
        %8054 = vmatprep.mubr.bf16.mxu0 %v474
        %8055 = vmatmul.mubr.bf16.gmra.mrb[0].mxu0 %v473
        %v8056 = vpop.f32.mrb[0].mxu0
        %v8057 = vadd.f32 %v8017, %v8056
        %v8058 = vpop.f32.mrb[0].mxu0
        %v8059 = vpop.f32.mrb[0].mxu0
        %v8060 = vpop.f32.mrb[0].mxu0
        %8061 = vdwg.mxu0
        %8062 = vmatprep.subr.bf16.mxu0 0
        %8063 = vmatpush1.bf16.msra.mxu0 %v5726
        %8064 = vmatprep.subr.bf16.mxu0 0
        %8065 = vmatpush1.bf16.msra.mxu0 %v5727
        %8066 = vmatprep.subr.bf16.mxu0 0
        %8067 = vmatpush1.bf16.msra.mxu0 %v5728
        %8068 = vmatprep.subr.bf16.mxu0 0
        %8069 = vmatpush1.bf16.msra.mxu0 %v5729
        %8070 = vmatprep.subr.bf16.mxu0 0
        %8071 = vmatpush1.bf16.msra.mxu0 %v5730
        %8072 = vmatprep.subr.bf16.mxu0 0
        %8073 = vmatpush1.bf16.msra.mxu0 %v5731
        %8074 = vmatprep.subr.bf16.mxu0 0
        %8075 = vmatpush1.bf16.msra.mxu0 %v5732
        %8076 = vmatprep.subr.bf16.mxu0 0
        %8077 = vmatpush1.bf16.msra.mxu0 %v5733
        %8078 = vmatprep.subr.bf16.mxu0 0
        %8079 = vmatpush1.bf16.msra.mxu0 %v5734
        %8080 = vmatprep.subr.bf16.mxu0 0
        %8081 = vmatpush1.bf16.msra.mxu0 %v5735
        %8082 = vmatprep.subr.bf16.mxu0 0
        %8083 = vmatpush1.bf16.msra.mxu0 %v5736
        %8084 = vmatprep.subr.bf16.mxu0 0
        %8085 = vmatpush1.bf16.msra.mxu0 %v5737
        %8086 = vmatprep.subr.bf16.mxu0 0
        %8087 = vmatpush1.bf16.msra.mxu0 %v5738
        %8088 = vmatprep.subr.bf16.mxu0 0
        %8089 = vmatpush1.bf16.msra.mxu0 %v5739
        %8090 = vmatprep.subr.bf16.mxu0 0
        %8091 = vmatpush1.bf16.msra.mxu0 %v5740
        %8092 = vmatprep.subr.bf16.mxu0 0
        %8093 = vmatpush1.bf16.msra.mxu0 %v5741
        %8094 = vmatprep.mubr.bf16.mxu0 %v476
        %8095 = vmatmul.mubr.bf16.gmra.mrb[0].mxu0 %v475
        %v8096 = vpop.f32.mrb[0].mxu0
        %v8097 = vadd.f32 %v8057, %v8096
        %v8098 = vpop.f32.mrb[0].mxu0
        %v8099 = vpop.f32.mrb[0].mxu0
        %v8100 = vpop.f32.mrb[0].mxu0
        %8101 = vdwg.mxu0
        %8102 = vmatprep.subr.bf16.mxu0 0
        %8103 = vmatpush1.bf16.msra.mxu0 %v5742
        %8104 = vmatprep.subr.bf16.mxu0 0
        %8105 = vmatpush1.bf16.msra.mxu0 %v5743
        %8106 = vmatprep.subr.bf16.mxu0 0
        %8107 = vmatpush1.bf16.msra.mxu0 %v5744
        %8108 = vmatprep.subr.bf16.mxu0 0
        %8109 = vmatpush1.bf16.msra.mxu0 %v5745
        %8110 = vmatprep.subr.bf16.mxu0 0
        %8111 = vmatpush1.bf16.msra.mxu0 %v5746
        %8112 = vmatprep.subr.bf16.mxu0 0
        %8113 = vmatpush1.bf16.msra.mxu0 %v5747
        %8114 = vmatprep.subr.bf16.mxu0 0
        %8115 = vmatpush1.bf16.msra.mxu0 %v5748
        %8116 = vmatprep.subr.bf16.mxu0 0
        %8117 = vmatpush1.bf16.msra.mxu0 %v5749
        %8118 = vmatprep.subr.bf16.mxu0 0
        %8119 = vmatpush1.bf16.msra.mxu0 %v5750
        %8120 = vmatprep.subr.bf16.mxu0 0
        %8121 = vmatpush1.bf16.msra.mxu0 %v5751
        %8122 = vmatprep.subr.bf16.mxu0 0
        %8123 = vmatpush1.bf16.msra.mxu0 %v5752
        %8124 = vmatprep.subr.bf16.mxu0 0
        %8125 = vmatpush1.bf16.msra.mxu0 %v5753
        %8126 = vmatprep.subr.bf16.mxu0 0
        %8127 = vmatpush1.bf16.msra.mxu0 %v5754
        %8128 = vmatprep.subr.bf16.mxu0 0
        %8129 = vmatpush1.bf16.msra.mxu0 %v5755
        %8130 = vmatprep.subr.bf16.mxu0 0
        %8131 = vmatpush1.bf16.msra.mxu0 %v5756
        %8132 = vmatprep.subr.bf16.mxu0 0
        %8133 = vmatpush1.bf16.msra.mxu0 %v5757
        %8134 = vmatprep.mubr.bf16.mxu0 %v478
        %8135 = vmatmul.mubr.bf16.gmra.mrb[0].mxu0 %v477
        %v8136 = vpop.f32.mrb[0].mxu0
        %v8137 = vadd.f32 %v8097, %v8136
        %v8138 = vpop.f32.mrb[0].mxu0
        %v8139 = vpop.f32.mrb[0].mxu0
        %v8140 = vpop.f32.mrb[0].mxu0
        %8141 = vdwg.mxu0
        %8142 = vmatprep.subr.bf16.mxu0 0
        %8143 = vmatpush1.bf16.msra.mxu0 %v5758
        %8144 = vmatprep.subr.bf16.mxu0 0
        %8145 = vmatpush1.bf16.msra.mxu0 %v5759
        %8146 = vmatprep.subr.bf16.mxu0 0
        %8147 = vmatpush1.bf16.msra.mxu0 %v5760
        %8148 = vmatprep.subr.bf16.mxu0 0
        %8149 = vmatpush1.bf16.msra.mxu0 %v5761
        %8150 = vmatprep.subr.bf16.mxu0 0
        %8151 = vmatpush1.bf16.msra.mxu0 %v5762
        %8152 = vmatprep.subr.bf16.mxu0 0
        %8153 = vmatpush1.bf16.msra.mxu0 %v5763
        %8154 = vmatprep.subr.bf16.mxu0 0
        %8155 = vmatpush1.bf16.msra.mxu0 %v5764
        %8156 = vmatprep.subr.bf16.mxu0 0
        %8157 = vmatpush1.bf16.msra.mxu0 %v5765
        %8158 = vmatprep.subr.bf16.mxu0 0
        %8159 = vmatpush1.bf16.msra.mxu0 %v5766
        %8160 = vmatprep.subr.bf16.mxu0 0
        %8161 = vmatpush1.bf16.msra.mxu0 %v5767
        %8162 = vmatprep.subr.bf16.mxu0 0
        %8163 = vmatpush1.bf16.msra.mxu0 %v5768
        %8164 = vmatprep.subr.bf16.mxu0 0
        %8165 = vmatpush1.bf16.msra.mxu0 %v5769
        %8166 = vmatprep.subr.bf16.mxu0 0
        %8167 = vmatpush1.bf16.msra.mxu0 %v5770
        %8168 = vmatprep.subr.bf16.mxu0 0
        %8169 = vmatpush1.bf16.msra.mxu0 %v5771
        %8170 = vmatprep.subr.bf16.mxu0 0
        %8171 = vmatpush1.bf16.msra.mxu0 %v5772
        %8172 = vmatprep.subr.bf16.mxu0 0
        %8173 = vmatpush1.bf16.msra.mxu0 %v5773
        %8174 = vmatprep.mubr.bf16.mxu0 %v480
        %8175 = vmatmul.mubr.bf16.gmra.mrb[0].mxu0 %v479
        %v8176 = vpop.f32.mrb[0].mxu0
        %v8177 = vadd.f32 %v8137, %v8176
        %v8178 = vpop.f32.mrb[0].mxu0
        %v8179 = vpop.f32.mrb[0].mxu0
        %v8180 = vpop.f32.mrb[0].mxu0
        %8181 = vdwg.mxu0
        %8182 = vmatprep.subr.bf16.mxu0 0
        %8183 = vmatpush1.bf16.msra.mxu0 %v5774
        %8184 = vmatprep.subr.bf16.mxu0 0
        %8185 = vmatpush1.bf16.msra.mxu0 %v5775
        %8186 = vmatprep.subr.bf16.mxu0 0
        %8187 = vmatpush1.bf16.msra.mxu0 %v5776
        %8188 = vmatprep.subr.bf16.mxu0 0
        %8189 = vmatpush1.bf16.msra.mxu0 %v5777
        %8190 = vmatprep.subr.bf16.mxu0 0
        %8191 = vmatpush1.bf16.msra.mxu0 %v5778
        %8192 = vmatprep.subr.bf16.mxu0 0
        %8193 = vmatpush1.bf16.msra.mxu0 %v5779
        %8194 = vmatprep.subr.bf16.mxu0 0
        %8195 = vmatpush1.bf16.msra.mxu0 %v5780
        %8196 = vmatprep.subr.bf16.mxu0 0
        %8197 = vmatpush1.bf16.msra.mxu0 %v5781
        %8198 = vmatprep.subr.bf16.mxu0 0
        %8199 = vmatpush1.bf16.msra.mxu0 %v5782
        %8200 = vmatprep.subr.bf16.mxu0 0
        %8201 = vmatpush1.bf16.msra.mxu0 %v5783
        %8202 = vmatprep.subr.bf16.mxu0 0
        %8203 = vmatpush1.bf16.msra.mxu0 %v5784
        %8204 = vmatprep.subr.bf16.mxu0 0
        %8205 = vmatpush1.bf16.msra.mxu0 %v5785
        %8206 = vmatprep.subr.bf16.mxu0 0
        %8207 = vmatpush1.bf16.msra.mxu0 %v5786
        %8208 = vmatprep.subr.bf16.mxu0 0
        %8209 = vmatpush1.bf16.msra.mxu0 %v5787
        %8210 = vmatprep.subr.bf16.mxu0 0
        %8211 = vmatpush1.bf16.msra.mxu0 %v5788
        %8212 = vmatprep.subr.bf16.mxu0 0
        %8213 = vmatpush1.bf16.msra.mxu0 %v5789
        %8214 = vmatprep.mubr.bf16.mxu0 %v482
        %8215 = vmatmul.mubr.bf16.gmra.mrb[0].mxu0 %v481
        %v8216 = vpop.f32.mrb[0].mxu0
        %v8217 = vadd.f32 %v8177, %v8216
        %v8218 = vpop.f32.mrb[0].mxu0
        %v8219 = vpop.f32.mrb[0].mxu0
        %v8220 = vpop.f32.mrb[0].mxu0
        %8221 = vdwg.mxu0
        %8222 = vmatprep.subr.bf16.mxu0 0
        %8223 = vmatpush1.bf16.msra.mxu0 %v5790
        %8224 = vmatprep.subr.bf16.mxu0 0
        %8225 = vmatpush1.bf16.msra.mxu0 %v5791
        %8226 = vmatprep.subr.bf16.mxu0 0
        %8227 = vmatpush1.bf16.msra.mxu0 %v5792
        %8228 = vmatprep.subr.bf16.mxu0 0
        %8229 = vmatpush1.bf16.msra.mxu0 %v5793
        %8230 = vmatprep.subr.bf16.mxu0 0
        %8231 = vmatpush1.bf16.msra.mxu0 %v5794
        %8232 = vmatprep.subr.bf16.mxu0 0
        %8233 = vmatpush1.bf16.msra.mxu0 %v5795
        %8234 = vmatprep.subr.bf16.mxu0 0
        %8235 = vmatpush1.bf16.msra.mxu0 %v5796
        %8236 = vmatprep.subr.bf16.mxu0 0
        %8237 = vmatpush1.bf16.msra.mxu0 %v5797
        %8238 = vmatprep.subr.bf16.mxu0 0
        %8239 = vmatpush1.bf16.msra.mxu0 %v5798
        %8240 = vmatprep.subr.bf16.mxu0 0
        %8241 = vmatpush1.bf16.msra.mxu0 %v5799
        %8242 = vmatprep.subr.bf16.mxu0 0
        %8243 = vmatpush1.bf16.msra.mxu0 %v5800
        %8244 = vmatprep.subr.bf16.mxu0 0
        %8245 = vmatpush1.bf16.msra.mxu0 %v5801
        %8246 = vmatprep.subr.bf16.mxu0 0
        %8247 = vmatpush1.bf16.msra.mxu0 %v5802
        %8248 = vmatprep.subr.bf16.mxu0 0
        %8249 = vmatpush1.bf16.msra.mxu0 %v5803
        %8250 = vmatprep.subr.bf16.mxu0 0
        %8251 = vmatpush1.bf16.msra.mxu0 %v5804
        %8252 = vmatprep.subr.bf16.mxu0 0
        %8253 = vmatpush1.bf16.msra.mxu0 %v5805
        %8254 = vmatprep.mubr.bf16.mxu0 %v484
        %8255 = vmatmul.mubr.bf16.gmra.mrb[0].mxu0 %v483
        %v8256 = vpop.f32.mrb[0].mxu0
        %v8257 = vadd.f32 %v8217, %v8256
        %v8258 = vpop.f32.mrb[0].mxu0
        %v8259 = vpop.f32.mrb[0].mxu0
        %v8260 = vpop.f32.mrb[0].mxu0
        %8261 = vdwg.mxu0
        %8262 = vmatprep.subr.bf16.mxu0 0
        %8263 = vmatpush1.bf16.msra.mxu0 %v5806
        %8264 = vmatprep.subr.bf16.mxu0 0
        %8265 = vmatpush1.bf16.msra.mxu0 %v5807
        %8266 = vmatprep.subr.bf16.mxu0 0
        %8267 = vmatpush1.bf16.msra.mxu0 %v5808
        %8268 = vmatprep.subr.bf16.mxu0 0
        %8269 = vmatpush1.bf16.msra.mxu0 %v5809
        %8270 = vmatprep.subr.bf16.mxu0 0
        %8271 = vmatpush1.bf16.msra.mxu0 %v5810
        %8272 = vmatprep.subr.bf16.mxu0 0
        %8273 = vmatpush1.bf16.msra.mxu0 %v5811
        %8274 = vmatprep.subr.bf16.mxu0 0
        %8275 = vmatpush1.bf16.msra.mxu0 %v5812
        %8276 = vmatprep.subr.bf16.mxu0 0
        %8277 = vmatpush1.bf16.msra.mxu0 %v5813
        %8278 = vmatprep.subr.bf16.mxu0 0
        %8279 = vmatpush1.bf16.msra.mxu0 %v5814
        %8280 = vmatprep.subr.bf16.mxu0 0
        %8281 = vmatpush1.bf16.msra.mxu0 %v5815
        %8282 = vmatprep.subr.bf16.mxu0 0
        %8283 = vmatpush1.bf16.msra.mxu0 %v5816
        %8284 = vmatprep.subr.bf16.mxu0 0
        %8285 = vmatpush1.bf16.msra.mxu0 %v5817
        %8286 = vmatprep.subr.bf16.mxu0 0
        %8287 = vmatpush1.bf16.msra.mxu0 %v5818
        %8288 = vmatprep.subr.bf16.mxu0 0
        %8289 = vmatpush1.bf16.msra.mxu0 %v5819
        %8290 = vmatprep.subr.bf16.mxu0 0
        %8291 = vmatpush1.bf16.msra.mxu0 %v5820
        %8292 = vmatprep.subr.bf16.mxu0 0
        %8293 = vmatpush1.bf16.msra.mxu0 %v5821
        %8294 = vmatprep.mubr.bf16.mxu0 %v486
        %8295 = vmatmul.mubr.bf16.gmra.mrb[0].mxu0 %v485
        %v8296 = vpop.f32.mrb[0].mxu0
        %v8297 = vadd.f32 %v8257, %v8296
        %v8298 = vpop.f32.mrb[0].mxu0
        %v8299 = vpop.f32.mrb[0].mxu0
        %v8300 = vpop.f32.mrb[0].mxu0
        %8301 = vdwg.mxu0
        %8302 = vmatprep.subr.bf16.mxu0 0
        %8303 = vmatpush1.bf16.msra.mxu0 %v5822
        %8304 = vmatprep.subr.bf16.mxu0 0
        %8305 = vmatpush1.bf16.msra.mxu0 %v5823
        %8306 = vmatprep.subr.bf16.mxu0 0
        %8307 = vmatpush1.bf16.msra.mxu0 %v5824
        %8308 = vmatprep.subr.bf16.mxu0 0
        %8309 = vmatpush1.bf16.msra.mxu0 %v5825
        %8310 = vmatprep.subr.bf16.mxu0 0
        %8311 = vmatpush1.bf16.msra.mxu0 %v5826
        %8312 = vmatprep.subr.bf16.mxu0 0
        %8313 = vmatpush1.bf16.msra.mxu0 %v5827
        %8314 = vmatprep.subr.bf16.mxu0 0
        %8315 = vmatpush1.bf16.msra.mxu0 %v5828
        %8316 = vmatprep.subr.bf16.mxu0 0
        %8317 = vmatpush1.bf16.msra.mxu0 %v5829
        %8318 = vmatprep.subr.bf16.mxu0 0
        %8319 = vmatpush1.bf16.msra.mxu0 %v5830
        %8320 = vmatprep.subr.bf16.mxu0 0
        %8321 = vmatpush1.bf16.msra.mxu0 %v5831
        %8322 = vmatprep.subr.bf16.mxu0 0
        %8323 = vmatpush1.bf16.msra.mxu0 %v5832
        %8324 = vmatprep.subr.bf16.mxu0 0
        %8325 = vmatpush1.bf16.msra.mxu0 %v5833
        %8326 = vmatprep.subr.bf16.mxu0 0
        %8327 = vmatpush1.bf16.msra.mxu0 %v5834
        %8328 = vmatprep.subr.bf16.mxu0 0
        %8329 = vmatpush1.bf16.msra.mxu0 %v5835
        %8330 = vmatprep.subr.bf16.mxu0 0
        %8331 = vmatpush1.bf16.msra.mxu0 %v5836
        %8332 = vmatprep.subr.bf16.mxu0 0
        %8333 = vmatpush1.bf16.msra.mxu0 %v5837
        %8334 = vmatprep.mubr.bf16.mxu0 %v488
        %8335 = vmatmul.mubr.bf16.gmra.mrb[0].mxu0 %v487
        %v8336 = vpop.f32.mrb[0].mxu0
        %v8337 = vadd.f32 %v8297, %v8336
        %v8338 = vpop.f32.mrb[0].mxu0
        %v8339 = vpop.f32.mrb[0].mxu0
        %v8340 = vpop.f32.mrb[0].mxu0
        %8341 = vdwg.mxu0
        %8342 = vmatprep.subr.bf16.mxu0 0
        %8343 = vmatpush1.bf16.msra.mxu0 %v5838
        %8344 = vmatprep.subr.bf16.mxu0 0
        %8345 = vmatpush1.bf16.msra.mxu0 %v5839
        %8346 = vmatprep.subr.bf16.mxu0 0
        %8347 = vmatpush1.bf16.msra.mxu0 %v5840
        %8348 = vmatprep.subr.bf16.mxu0 0
        %8349 = vmatpush1.bf16.msra.mxu0 %v5841
        %8350 = vmatprep.subr.bf16.mxu0 0
        %8351 = vmatpush1.bf16.msra.mxu0 %v5842
        %8352 = vmatprep.subr.bf16.mxu0 0
        %8353 = vmatpush1.bf16.msra.mxu0 %v5843
        %8354 = vmatprep.subr.bf16.mxu0 0
        %8355 = vmatpush1.bf16.msra.mxu0 %v5844
        %8356 = vmatprep.subr.bf16.mxu0 0
        %8357 = vmatpush1.bf16.msra.mxu0 %v5845
        %8358 = vmatprep.subr.bf16.mxu0 0
        %8359 = vmatpush1.bf16.msra.mxu0 %v5846
        %8360 = vmatprep.subr.bf16.mxu0 0
        %8361 = vmatpush1.bf16.msra.mxu0 %v5847
        %8362 = vmatprep.subr.bf16.mxu0 0
        %8363 = vmatpush1.bf16.msra.mxu0 %v5848
        %8364 = vmatprep.subr.bf16.mxu0 0
        %8365 = vmatpush1.bf16.msra.mxu0 %v5849
        %8366 = vmatprep.subr.bf16.mxu0 0
        %8367 = vmatpush1.bf16.msra.mxu0 %v5850
        %8368 = vmatprep.subr.bf16.mxu0 0
        %8369 = vmatpush1.bf16.msra.mxu0 %v5851
        %8370 = vmatprep.subr.bf16.mxu0 0
        %8371 = vmatpush1.bf16.msra.mxu0 %v5852
        %8372 = vmatprep.subr.bf16.mxu0 0
        %8373 = vmatpush1.bf16.msra.mxu0 %v5853
        %8374 = vmatprep.mubr.bf16.mxu0 %v490
        %8375 = vmatmul.mubr.bf16.gmra.mrb[0].mxu0 %v489
        %v8376 = vpop.f32.mrb[0].mxu0
        %v8377 = vadd.f32 %v8337, %v8376
        %v8378 = vpop.f32.mrb[0].mxu0
        %v8379 = vpop.f32.mrb[0].mxu0
        %v8380 = vpop.f32.mrb[0].mxu0
        %8381 = vdwg.mxu0
        %8382 = vmatprep.subr.bf16.mxu0 0
        %8383 = vmatpush1.bf16.msra.mxu0 %v5854
        %8384 = vmatprep.subr.bf16.mxu0 0
        %8385 = vmatpush1.bf16.msra.mxu0 %v5855
        %8386 = vmatprep.subr.bf16.mxu0 0
        %8387 = vmatpush1.bf16.msra.mxu0 %v5856
        %8388 = vmatprep.subr.bf16.mxu0 0
        %8389 = vmatpush1.bf16.msra.mxu0 %v5857
        %8390 = vmatprep.subr.bf16.mxu0 0
        %8391 = vmatpush1.bf16.msra.mxu0 %v5858
        %8392 = vmatprep.subr.bf16.mxu0 0
        %8393 = vmatpush1.bf16.msra.mxu0 %v5859
        %8394 = vmatprep.subr.bf16.mxu0 0
        %8395 = vmatpush1.bf16.msra.mxu0 %v5860
        %8396 = vmatprep.subr.bf16.mxu0 0
        %8397 = vmatpush1.bf16.msra.mxu0 %v5861
        %8398 = vmatprep.subr.bf16.mxu0 0
        %8399 = vmatpush1.bf16.msra.mxu0 %v5862
        %8400 = vmatprep.subr.bf16.mxu0 0
        %8401 = vmatpush1.bf16.msra.mxu0 %v5863
        %8402 = vmatprep.subr.bf16.mxu0 0
        %8403 = vmatpush1.bf16.msra.mxu0 %v5864
        %8404 = vmatprep.subr.bf16.mxu0 0
        %8405 = vmatpush1.bf16.msra.mxu0 %v5865
        %8406 = vmatprep.subr.bf16.mxu0 0
        %8407 = vmatpush1.bf16.msra.mxu0 %v5866
        %8408 = vmatprep.subr.bf16.mxu0 0
        %8409 = vmatpush1.bf16.msra.mxu0 %v5867
        %8410 = vmatprep.subr.bf16.mxu0 0
        %8411 = vmatpush1.bf16.msra.mxu0 %v5868
        %8412 = vmatprep.subr.bf16.mxu0 0
        %8413 = vmatpush1.bf16.msra.mxu0 %v5869
        %8414 = vmatprep.mubr.bf16.mxu0 %v492
        %8415 = vmatmul.mubr.bf16.gmra.mrb[0].mxu0 %v491
        %v8416 = vpop.f32.mrb[0].mxu0
        %v8417 = vadd.f32 %v8377, %v8416
        %v8418 = vpop.f32.mrb[0].mxu0
        %v8419 = vpop.f32.mrb[0].mxu0
        %v8420 = vpop.f32.mrb[0].mxu0
        %8421 = vdwg.mxu0
        %8422 = vmatprep.subr.bf16.mxu0 0
        %8423 = vmatpush1.bf16.msra.mxu0 %v5870
        %8424 = vmatprep.subr.bf16.mxu0 0
        %8425 = vmatpush1.bf16.msra.mxu0 %v5871
        %8426 = vmatprep.subr.bf16.mxu0 0
        %8427 = vmatpush1.bf16.msra.mxu0 %v5872
        %8428 = vmatprep.subr.bf16.mxu0 0
        %8429 = vmatpush1.bf16.msra.mxu0 %v5873
        %8430 = vmatprep.subr.bf16.mxu0 0
        %8431 = vmatpush1.bf16.msra.mxu0 %v5874
        %8432 = vmatprep.subr.bf16.mxu0 0
        %8433 = vmatpush1.bf16.msra.mxu0 %v5875
        %8434 = vmatprep.subr.bf16.mxu0 0
        %8435 = vmatpush1.bf16.msra.mxu0 %v5876
        %8436 = vmatprep.subr.bf16.mxu0 0
        %8437 = vmatpush1.bf16.msra.mxu0 %v5877
        %8438 = vmatprep.subr.bf16.mxu0 0
        %8439 = vmatpush1.bf16.msra.mxu0 %v5878
        %8440 = vmatprep.subr.bf16.mxu0 0
        %8441 = vmatpush1.bf16.msra.mxu0 %v5879
        %8442 = vmatprep.subr.bf16.mxu0 0
        %8443 = vmatpush1.bf16.msra.mxu0 %v5880
        %8444 = vmatprep.subr.bf16.mxu0 0
        %8445 = vmatpush1.bf16.msra.mxu0 %v5881
        %8446 = vmatprep.subr.bf16.mxu0 0
        %8447 = vmatpush1.bf16.msra.mxu0 %v5882
        %8448 = vmatprep.subr.bf16.mxu0 0
        %8449 = vmatpush1.bf16.msra.mxu0 %v5883
        %8450 = vmatprep.subr.bf16.mxu0 0
        %8451 = vmatpush1.bf16.msra.mxu0 %v5884
        %8452 = vmatprep.subr.bf16.mxu0 0
        %8453 = vmatpush1.bf16.msra.mxu0 %v5885
        %8454 = vmatprep.mubr.bf16.mxu0 %v494
        %8455 = vmatmul.mubr.bf16.gmra.mrb[0].mxu0 %v493
        %v8456 = vpop.f32.mrb[0].mxu0
        %v8457 = vadd.f32 %v8417, %v8456
        %v8458 = vpop.f32.mrb[0].mxu0
        %v8459 = vpop.f32.mrb[0].mxu0
        %v8460 = vpop.f32.mrb[0].mxu0
        %8461 = vdwg.mxu0
        %8462 = vmatprep.subr.bf16.mxu0 0
        %8463 = vmatpush1.bf16.msra.mxu0 %v5886
        %8464 = vmatprep.subr.bf16.mxu0 0
        %8465 = vmatpush1.bf16.msra.mxu0 %v5887
        %8466 = vmatprep.subr.bf16.mxu0 0
        %8467 = vmatpush1.bf16.msra.mxu0 %v5888
        %8468 = vmatprep.subr.bf16.mxu0 0
        %8469 = vmatpush1.bf16.msra.mxu0 %v5889
        %8470 = vmatprep.subr.bf16.mxu0 0
        %8471 = vmatpush1.bf16.msra.mxu0 %v5890
        %8472 = vmatprep.subr.bf16.mxu0 0
        %8473 = vmatpush1.bf16.msra.mxu0 %v5891
        %8474 = vmatprep.subr.bf16.mxu0 0
        %8475 = vmatpush1.bf16.msra.mxu0 %v5892
        %8476 = vmatprep.subr.bf16.mxu0 0
        %8477 = vmatpush1.bf16.msra.mxu0 %v5893
        %8478 = vmatprep.subr.bf16.mxu0 0
        %8479 = vmatpush1.bf16.msra.mxu0 %v5894
        %8480 = vmatprep.subr.bf16.mxu0 0
        %8481 = vmatpush1.bf16.msra.mxu0 %v5895
        %8482 = vmatprep.subr.bf16.mxu0 0
        %8483 = vmatpush1.bf16.msra.mxu0 %v5896
        %8484 = vmatprep.subr.bf16.mxu0 0
        %8485 = vmatpush1.bf16.msra.mxu0 %v5897
        %8486 = vmatprep.subr.bf16.mxu0 0
        %8487 = vmatpush1.bf16.msra.mxu0 %v5898
        %8488 = vmatprep.subr.bf16.mxu0 0
        %8489 = vmatpush1.bf16.msra.mxu0 %v5899
        %8490 = vmatprep.subr.bf16.mxu0 0
        %8491 = vmatpush1.bf16.msra.mxu0 %v5900
        %8492 = vmatprep.subr.bf16.mxu0 0
        %8493 = vmatpush1.bf16.msra.mxu0 %v5901
        %8494 = vmatprep.mubr.bf16.mxu0 %v496
        %8495 = vmatmul.mubr.bf16.gmra.mrb[0].mxu0 %v495
        %v8496 = vpop.f32.mrb[0].mxu0
        %v8497 = vadd.f32 %v8457, %v8496
        %v8498 = vpop.f32.mrb[0].mxu0
        %v8499 = vpop.f32.mrb[0].mxu0
        %v8500 = vpop.f32.mrb[0].mxu0
        %8501 = vdwg.mxu0
        %8502 = vmatprep.subr.bf16.mxu0 0
        %8503 = vmatpush1.bf16.msra.mxu0 %v5902
        %8504 = vmatprep.subr.bf16.mxu0 0
        %8505 = vmatpush1.bf16.msra.mxu0 %v5903
        %8506 = vmatprep.subr.bf16.mxu0 0
        %8507 = vmatpush1.bf16.msra.mxu0 %v5904
        %8508 = vmatprep.subr.bf16.mxu0 0
        %8509 = vmatpush1.bf16.msra.mxu0 %v5905
        %8510 = vmatprep.subr.bf16.mxu0 0
        %8511 = vmatpush1.bf16.msra.mxu0 %v5906
        %8512 = vmatprep.subr.bf16.mxu0 0
        %8513 = vmatpush1.bf16.msra.mxu0 %v5907
        %8514 = vmatprep.subr.bf16.mxu0 0
        %8515 = vmatpush1.bf16.msra.mxu0 %v5908
        %8516 = vmatprep.subr.bf16.mxu0 0
        %8517 = vmatpush1.bf16.msra.mxu0 %v5909
        %8518 = vmatprep.subr.bf16.mxu0 0
        %8519 = vmatpush1.bf16.msra.mxu0 %v5910
        %8520 = vmatprep.subr.bf16.mxu0 0
        %8521 = vmatpush1.bf16.msra.mxu0 %v5911
        %8522 = vmatprep.subr.bf16.mxu0 0
        %8523 = vmatpush1.bf16.msra.mxu0 %v5912
        %8524 = vmatprep.subr.bf16.mxu0 0
        %8525 = vmatpush1.bf16.msra.mxu0 %v5913
        %8526 = vmatprep.subr.bf16.mxu0 0
        %8527 = vmatpush1.bf16.msra.mxu0 %v5914
        %8528 = vmatprep.subr.bf16.mxu0 0
        %8529 = vmatpush1.bf16.msra.mxu0 %v5915
        %8530 = vmatprep.subr.bf16.mxu0 0
        %8531 = vmatpush1.bf16.msra.mxu0 %v5916
        %8532 = vmatprep.subr.bf16.mxu0 0
        %8533 = vmatpush1.bf16.msra.mxu0 %v5917
        %8534 = vmatprep.mubr.bf16.mxu0 %v498
        %8535 = vmatmul.mubr.bf16.gmra.mrb[0].mxu0 %v497
        %v8536 = vpop.f32.mrb[0].mxu0
        %v8537 = vadd.f32 %v8497, %v8536
        %v8538 = vpop.f32.mrb[0].mxu0
        %v8539 = vpop.f32.mrb[0].mxu0
        %v8540 = vpop.f32.mrb[0].mxu0
        %8541 = vdwg.mxu0
        %8542 = vmatprep.subr.bf16.mxu0 0
        %8543 = vmatpush1.bf16.msra.mxu0 %v5918
        %8544 = vmatprep.subr.bf16.mxu0 0
        %8545 = vmatpush1.bf16.msra.mxu0 %v5919
        %8546 = vmatprep.subr.bf16.mxu0 0
        %8547 = vmatpush1.bf16.msra.mxu0 %v5920
        %8548 = vmatprep.subr.bf16.mxu0 0
        %8549 = vmatpush1.bf16.msra.mxu0 %v5921
        %8550 = vmatprep.subr.bf16.mxu0 0
        %8551 = vmatpush1.bf16.msra.mxu0 %v5922
        %8552 = vmatprep.subr.bf16.mxu0 0
        %8553 = vmatpush1.bf16.msra.mxu0 %v5923
        %8554 = vmatprep.subr.bf16.mxu0 0
        %8555 = vmatpush1.bf16.msra.mxu0 %v5924
        %8556 = vmatprep.subr.bf16.mxu0 0
        %8557 = vmatpush1.bf16.msra.mxu0 %v5925
        %8558 = vmatprep.subr.bf16.mxu0 0
        %8559 = vmatpush1.bf16.msra.mxu0 %v5926
        %8560 = vmatprep.subr.bf16.mxu0 0
        %8561 = vmatpush1.bf16.msra.mxu0 %v5927
        %8562 = vmatprep.subr.bf16.mxu0 0
        %8563 = vmatpush1.bf16.msra.mxu0 %v5928
        %8564 = vmatprep.subr.bf16.mxu0 0
        %8565 = vmatpush1.bf16.msra.mxu0 %v5929
        %8566 = vmatprep.subr.bf16.mxu0 0
        %8567 = vmatpush1.bf16.msra.mxu0 %v5930
        %8568 = vmatprep.subr.bf16.mxu0 0
        %8569 = vmatpush1.bf16.msra.mxu0 %v5931
        %8570 = vmatprep.subr.bf16.mxu0 0
        %8571 = vmatpush1.bf16.msra.mxu0 %v5932
        %8572 = vmatprep.subr.bf16.mxu0 0
        %8573 = vmatpush1.bf16.msra.mxu0 %v5933
        %8574 = vmatprep.mubr.bf16.mxu0 %v500
        %8575 = vmatmul.mubr.bf16.gmra.mrb[0].mxu0 %v499
        %v8576 = vpop.f32.mrb[0].mxu0
        %v8577 = vadd.f32 %v8537, %v8576
        %v8578 = vpop.f32.mrb[0].mxu0
        %v8579 = vpop.f32.mrb[0].mxu0
        %v8580 = vpop.f32.mrb[0].mxu0
        %8581 = vdwg.mxu0
        %8582 = vmatprep.subr.bf16.mxu0 0
        %8583 = vmatpush1.bf16.msra.mxu0 %v5934
        %8584 = vmatprep.subr.bf16.mxu0 0
        %8585 = vmatpush1.bf16.msra.mxu0 %v5935
        %8586 = vmatprep.subr.bf16.mxu0 0
        %8587 = vmatpush1.bf16.msra.mxu0 %v5936
        %8588 = vmatprep.subr.bf16.mxu0 0
        %8589 = vmatpush1.bf16.msra.mxu0 %v5937
        %8590 = vmatprep.subr.bf16.mxu0 0
        %8591 = vmatpush1.bf16.msra.mxu0 %v5938
        %8592 = vmatprep.subr.bf16.mxu0 0
        %8593 = vmatpush1.bf16.msra.mxu0 %v5939
        %8594 = vmatprep.subr.bf16.mxu0 0
        %8595 = vmatpush1.bf16.msra.mxu0 %v5940
        %8596 = vmatprep.subr.bf16.mxu0 0
        %8597 = vmatpush1.bf16.msra.mxu0 %v5941
        %8598 = vmatprep.subr.bf16.mxu0 0
        %8599 = vmatpush1.bf16.msra.mxu0 %v5942
        %8600 = vmatprep.subr.bf16.mxu0 0
        %8601 = vmatpush1.bf16.msra.mxu0 %v5943
        %8602 = vmatprep.subr.bf16.mxu0 0
        %8603 = vmatpush1.bf16.msra.mxu0 %v5944
        %8604 = vmatprep.subr.bf16.mxu0 0
        %8605 = vmatpush1.bf16.msra.mxu0 %v5945
        %8606 = vmatprep.subr.bf16.mxu0 0
        %8607 = vmatpush1.bf16.msra.mxu0 %v5946
        %8608 = vmatprep.subr.bf16.mxu0 0
        %8609 = vmatpush1.bf16.msra.mxu0 %v5947
        %8610 = vmatprep.subr.bf16.mxu0 0
        %8611 = vmatpush1.bf16.msra.mxu0 %v5948
        %8612 = vmatprep.subr.bf16.mxu0 0
        %8613 = vmatpush1.bf16.msra.mxu0 %v5949
        %8614 = vmatprep.mubr.bf16.mxu0 %v502
        %8615 = vmatmul.mubr.bf16.gmra.mrb[0].mxu0 %v501
        %v8616 = vpop.f32.mrb[0].mxu0
        %v8617 = vadd.f32 %v8577, %v8616
        %v8618 = vpop.f32.mrb[0].mxu0
        %v8619 = vpop.f32.mrb[0].mxu0
        %v8620 = vpop.f32.mrb[0].mxu0
        %8621 = vdwg.mxu0
        %8622 = vmatprep.subr.bf16.mxu0 0
        %8623 = vmatpush1.bf16.msra.mxu0 %v5950
        %8624 = vmatprep.subr.bf16.mxu0 0
        %8625 = vmatpush1.bf16.msra.mxu0 %v5951
        %8626 = vmatprep.subr.bf16.mxu0 0
        %8627 = vmatpush1.bf16.msra.mxu0 %v5952
        %8628 = vmatprep.subr.bf16.mxu0 0
        %8629 = vmatpush1.bf16.msra.mxu0 %v5953
        %8630 = vmatprep.subr.bf16.mxu0 0
        %8631 = vmatpush1.bf16.msra.mxu0 %v5954
        %8632 = vmatprep.subr.bf16.mxu0 0
        %8633 = vmatpush1.bf16.msra.mxu0 %v5955
        %8634 = vmatprep.subr.bf16.mxu0 0
        %8635 = vmatpush1.bf16.msra.mxu0 %v5956
        %8636 = vmatprep.subr.bf16.mxu0 0
        %8637 = vmatpush1.bf16.msra.mxu0 %v5957
        %8638 = vmatprep.subr.bf16.mxu0 0
        %8639 = vmatpush1.bf16.msra.mxu0 %v5958
        %8640 = vmatprep.subr.bf16.mxu0 0
        %8641 = vmatpush1.bf16.msra.mxu0 %v5959
        %8642 = vmatprep.subr.bf16.mxu0 0
        %8643 = vmatpush1.bf16.msra.mxu0 %v5960
        %8644 = vmatprep.subr.bf16.mxu0 0
        %8645 = vmatpush1.bf16.msra.mxu0 %v5961
        %8646 = vmatprep.subr.bf16.mxu0 0
        %8647 = vmatpush1.bf16.msra.mxu0 %v5962
        %8648 = vmatprep.subr.bf16.mxu0 0
        %8649 = vmatpush1.bf16.msra.mxu0 %v5963
        %8650 = vmatprep.subr.bf16.mxu0 0
        %8651 = vmatpush1.bf16.msra.mxu0 %v5964
        %8652 = vmatprep.subr.bf16.mxu0 0
        %8653 = vmatpush1.bf16.msra.mxu0 %v5965
        %8654 = vmatprep.mubr.bf16.mxu0 %v504
        %8655 = vmatmul.mubr.bf16.gmra.mrb[0].mxu0 %v503
        %v8656 = vpop.f32.mrb[0].mxu0
        %v8657 = vadd.f32 %v8617, %v8656
        %v8658 = vpop.f32.mrb[0].mxu0
        %v8659 = vpop.f32.mrb[0].mxu0
        %v8660 = vpop.f32.mrb[0].mxu0
        %8661 = vdwg.mxu0
        %8662 = vmatprep.subr.bf16.mxu0 0
        %8663 = vmatpush1.bf16.msra.mxu0 %v5966
        %8664 = vmatprep.subr.bf16.mxu0 0
        %8665 = vmatpush1.bf16.msra.mxu0 %v5967
        %8666 = vmatprep.subr.bf16.mxu0 0
        %8667 = vmatpush1.bf16.msra.mxu0 %v5968
        %8668 = vmatprep.subr.bf16.mxu0 0
        %8669 = vmatpush1.bf16.msra.mxu0 %v5969
        %8670 = vmatprep.subr.bf16.mxu0 0
        %8671 = vmatpush1.bf16.msra.mxu0 %v5970
        %8672 = vmatprep.subr.bf16.mxu0 0
        %8673 = vmatpush1.bf16.msra.mxu0 %v5971
        %8674 = vmatprep.subr.bf16.mxu0 0
        %8675 = vmatpush1.bf16.msra.mxu0 %v5972
        %8676 = vmatprep.subr.bf16.mxu0 0
        %8677 = vmatpush1.bf16.msra.mxu0 %v5973
        %8678 = vmatprep.subr.bf16.mxu0 0
        %8679 = vmatpush1.bf16.msra.mxu0 %v5974
        %8680 = vmatprep.subr.bf16.mxu0 0
        %8681 = vmatpush1.bf16.msra.mxu0 %v5975
        %8682 = vmatprep.subr.bf16.mxu0 0
        %8683 = vmatpush1.bf16.msra.mxu0 %v5976
        %8684 = vmatprep.subr.bf16.mxu0 0
        %8685 = vmatpush1.bf16.msra.mxu0 %v5977
        %8686 = vmatprep.subr.bf16.mxu0 0
        %8687 = vmatpush1.bf16.msra.mxu0 %v5978
        %8688 = vmatprep.subr.bf16.mxu0 0
        %8689 = vmatpush1.bf16.msra.mxu0 %v5979
        %8690 = vmatprep.subr.bf16.mxu0 0
        %8691 = vmatpush1.bf16.msra.mxu0 %v5980
        %8692 = vmatprep.subr.bf16.mxu0 0
        %8693 = vmatpush1.bf16.msra.mxu0 %v5981
        %8694 = vmatprep.mubr.bf16.mxu0 %v506
        %8695 = vmatmul.mubr.bf16.gmra.mrb[0].mxu0 %v505
        %v8696 = vpop.f32.mrb[0].mxu0
        %v8697 = vadd.f32 %v8657, %v8696
        %v8698 = vpop.f32.mrb[0].mxu0
        %v8699 = vpop.f32.mrb[0].mxu0
        %v8700 = vpop.f32.mrb[0].mxu0
        %8701 = vdwg.mxu0
        %8702 = vmatprep.subr.bf16.mxu0 0
        %8703 = vmatpush1.bf16.msra.mxu0 %v5982
        %8704 = vmatprep.subr.bf16.mxu0 0
        %8705 = vmatpush1.bf16.msra.mxu0 %v5983
        %8706 = vmatprep.subr.bf16.mxu0 0
        %8707 = vmatpush1.bf16.msra.mxu0 %v5984
        %8708 = vmatprep.subr.bf16.mxu0 0
        %8709 = vmatpush1.bf16.msra.mxu0 %v5985
        %8710 = vmatprep.subr.bf16.mxu0 0
        %8711 = vmatpush1.bf16.msra.mxu0 %v5986
        %8712 = vmatprep.subr.bf16.mxu0 0
        %8713 = vmatpush1.bf16.msra.mxu0 %v5987
        %8714 = vmatprep.subr.bf16.mxu0 0
        %8715 = vmatpush1.bf16.msra.mxu0 %v5988
        %8716 = vmatprep.subr.bf16.mxu0 0
        %8717 = vmatpush1.bf16.msra.mxu0 %v5989
        %8718 = vmatprep.subr.bf16.mxu0 0
        %8719 = vmatpush1.bf16.msra.mxu0 %v5990
        %8720 = vmatprep.subr.bf16.mxu0 0
        %8721 = vmatpush1.bf16.msra.mxu0 %v5991
        %8722 = vmatprep.subr.bf16.mxu0 0
        %8723 = vmatpush1.bf16.msra.mxu0 %v5992
        %8724 = vmatprep.subr.bf16.mxu0 0
        %8725 = vmatpush1.bf16.msra.mxu0 %v5993
        %8726 = vmatprep.subr.bf16.mxu0 0
        %8727 = vmatpush1.bf16.msra.mxu0 %v5994
        %8728 = vmatprep.subr.bf16.mxu0 0
        %8729 = vmatpush1.bf16.msra.mxu0 %v5995
        %8730 = vmatprep.subr.bf16.mxu0 0
        %8731 = vmatpush1.bf16.msra.mxu0 %v5996
        %8732 = vmatprep.subr.bf16.mxu0 0
        %8733 = vmatpush1.bf16.msra.mxu0 %v5997
        %8734 = vmatprep.mubr.bf16.mxu0 %v508
        %8735 = vmatmul.mubr.bf16.gmra.mrb[0].mxu0 %v507
        %v8736 = vpop.f32.mrb[0].mxu0
        %v8737 = vadd.f32 %v8697, %v8736
        %v8738 = vpop.f32.mrb[0].mxu0
        %v8739 = vpop.f32.mrb[0].mxu0
        %v8740 = vpop.f32.mrb[0].mxu0
        %8741 = vdwg.mxu0
        %v8742 = vadd.f32 %v509, %v8737
        %vm8743 = vcmask 519168
        %8744 = vst.msk [vmem:[#allocation2] sm:$0xf] %vm8743, %v8742
        %p8745 = scmp.eq.s32.totalorder %s16, 2
        // Predicated region
        $region41: #{model_forward.1} parent=35 // pred_check
          %p8746 = pneg %p8745
        $region42: #{model_forward.1} parent=35 // pred_check_branch
          %8748 = sbr.rel (%p8746) target = $region44
        $region43: #{model_forward.1} parent=35 // pred_region
          %v8749 = vld [vmem:[%s2] sm:$0xff]
          %v8750 = vld [vmem:[%s2 + $0x8] sm:$0xff]
          %v8751 = vld [vmem:[%s2 + $0x10] sm:$0x7]
          %v8752 = vld [vmem:[#allocation2] sm:$0xf]
          %v8753 = vsel %vm8743, %v8752, 0.0
          %v8754 = vrot.slane %v8753, 4
          %v8755 = vadd.f32 %v8753, %v8754
          %v8756 = vrot.slane %v8755, 2
          %v8757 = vadd.f32 %v8755, %v8756
          %v8758 = vrot.slane %v8757, 1
          %v8759 = vadd.f32 %v8757, %v8758
          %v8760 = vrcp.pop 4.0
          %v8761 = vmul.f32 %v8759, %v8760
          %v8762 = vmul.f32 %v8752, %v8752
          %v8763 = vsel %vm8743, %v8762, 0.0
          %v8764 = vrot.slane %v8763, 4
          %v8765 = vadd.f32 %v8763, %v8764
          %v8766 = vrot.slane %v8765, 2
          %v8767 = vadd.f32 %v8765, %v8766
          %v8768 = vrot.slane %v8767, 1
          %v8769 = vadd.f32 %v8767, %v8768
          %v8770 = vmul.f32 %v8769, %v8760
          %v8771 = vmul.f32 %v8761, %v8761
          %v8772 = vsub.f32 %v8770, %v8771
          %v8773 = vmax.f32 %v8772, 0.0
          %v8774 = vadd.f32 %v8773, 1e-05
          %v8775 = vrsqrt.pop %v8774
          %v8776 = vmul.f32 %v8749, %v8775
          %v8777 = vlaneseq
          %v8778 = vshrl.u32 %v8777, 7
          %v8779 = vsub.s32 0, %v8778
          %v8780 = vrot.slane %v8776, %v8779
          %v8781 = vmul.f32 %v8752, %v8780
          %v8782 = vmul.f32 %v8761, %v8776
          %v8784 = vrot.slane %v8782, 7
          %v8786 = vsub.f32 %v8749, %v8784
          %v8787 = vlaneseq
          %v8788 = vshrl.u32 %v8787, 7
          %v8789 = vsub.s32 1, %v8788
          %v8790 = vrot.slane %v8786, %v8789
          %v8791 = vadd.f32 %v8781, %v8790
          %v8792 = vmax.f32 %v8791, 0.0
          %v8793 = vld [vmem:[%s3] sm:$0xff]
          %v8794 = vld [vmem:[%s3 + $0x10] sm:$0xff]
          %v8795 = vld [vmem:[%s3 + $0x20] sm:$0xff]
          %v8796 = vld [vmem:[%s3 + $0x30] sm:$0xff]
          %v8797 = vld [vmem:[%s3 + $0x40] sm:$0xff]
          %v8798 = vld [vmem:[%s3 + $0x50] sm:$0xff]
          %v8799 = vld [vmem:[%s3 + $0x60] sm:$0xff]
          %v8800 = vld [vmem:[%s3 + $0x70] sm:$0xff]
          %vm8801 = vcmask 523264
          %v8803 = vsel %vm8801, %v8792, 0
          %8805 = vmatprep.subr.mxu0 0.0
          %8806 = vmatpush1.msra.mxu0 %v8793
          %8807 = vmatprep.subr.mxu0 0.0
          %8808 = vmatpush1.msra.mxu0 %v8794
          %8809 = vmatprep.subr.mxu0 0.0
          %8810 = vmatpush1.msra.mxu0 %v8795
          %8811 = vmatprep.subr.mxu0 0.0
          %8812 = vmatpush1.msra.mxu0 %v8796
          %8813 = vmatprep.subr.mxu0 0.0
          %8814 = vmatpush1.msra.mxu0 %v8797
          %8815 = vmatprep.subr.mxu0 0.0
          %8816 = vmatpush1.msra.mxu0 %v8798
          %8817 = vmatprep.subr.mxu0 0.0
          %8818 = vmatpush1.msra.mxu0 %v8799
          %8819 = vmatprep.subr.mxu0 0.0
          %8820 = vmatpush1.msra.mxu0 %v8800
          %8821 = vmatprep.subr.mxu0 0.0
          %8822 = vmatpush1.msra.mxu0 0.0
          %8823 = vmatprep.subr.mxu0 0.0
          %8824 = vmatpush1.msra.mxu0 0.0
          %8825 = vmatprep.subr.mxu0 0.0
          %8826 = vmatpush1.msra.mxu0 0.0
          %8827 = vmatprep.subr.mxu0 0.0
          %8828 = vmatpush1.msra.mxu0 0.0
          %8829 = vmatprep.subr.mxu0 0.0
          %8830 = vmatpush1.msra.mxu0 0.0
          %8831 = vmatprep.subr.mxu0 0.0
          %8832 = vmatpush1.msra.mxu0 0.0
          %8833 = vmatprep.subr.mxu0 0.0
          %8834 = vmatpush1.msra.mxu0 0.0
          %8835 = vmatprep.subr.mxu0 0.0
          %8836 = vmatpush1.msra.mxu0 0.0
          %8837 = vmatprep.subr.mxu0 0.0
          %8838 = vmatpush1.msra.mxu0 0.0
          %8839 = vmatprep.subr.mxu0 0.0
          %8840 = vmatpush1.msra.mxu0 0.0
          %8841 = vmatprep.subr.mxu0 0.0
          %8842 = vmatpush1.msra.mxu0 0.0
          %8843 = vmatprep.subr.mxu0 0.0
          %8844 = vmatpush1.msra.mxu0 0.0
          %8845 = vmatprep.subr.mxu0 0.0
          %8846 = vmatpush1.msra.mxu0 0.0
          %8847 = vmatprep.subr.mxu0 0.0
          %8848 = vmatpush1.msra.mxu0 0.0
          %8849 = vmatprep.subr.mxu0 0.0
          %8850 = vmatpush1.msra.mxu0 0.0
          %8851 = vmatprep.subr.mxu0 0.0
          %8852 = vmatpush1.msra.mxu0 0.0
          %8853 = vmatprep.subr.mxu0 0.0
          %8854 = vmatpush1.msra.mxu0 0.0
          %8855 = vmatprep.subr.mxu0 0.0
          %8856 = vmatpush1.msra.mxu0 0.0
          %8857 = vmatprep.subr.mxu0 0.0
          %8858 = vmatpush1.msra.mxu0 0.0
          %8859 = vmatprep.subr.mxu0 0.0
          %8860 = vmatpush1.msra.mxu0 0.0
          %8861 = vmatprep.subr.mxu0 0.0
          %8862 = vmatpush1.msra.mxu0 0.0
          %8863 = vmatprep.subr.mxu0 0.0
          %8864 = vmatpush1.msra.mxu0 0.0
          %8865 = vmatprep.subr.mxu0 0.0
          %8866 = vmatpush1.msra.mxu0 0.0
          %8867 = vmatprep.subr.mxu0 0.0
          %8868 = vmatpush1.msra.mxu0 0.0
          %8869 = vmatprep.mubr.f32.mxu0 0.0
          %8870 = vmatmul.mubr.f32.gmra.mrb[0].mxu0 %v8803
          %v8871 = vpop.f32.mrb[0].mxu0
          %v8872 = vadd.f32 0.0, %v8871
          %v8873 = vpop.f32.mrb[0].mxu0
          %8874 = vdwg.mxu0
          %v8875 = vsel %vm8743, %v8872, 0.0
          %v8876 = vrot.slane %v8875, 4
          %v8877 = vadd.f32 %v8875, %v8876
          %v8878 = vrot.slane %v8877, 2
          %v8879 = vadd.f32 %v8877, %v8878
          %v8880 = vrot.slane %v8879, 1
          %v8881 = vadd.f32 %v8879, %v8880
          %v8882 = vmul.f32 %v8881, %v8760
          %v8883 = vmul.f32 %v8872, %v8872
          %v8884 = vsel %vm8743, %v8883, 0.0
          %v8885 = vrot.slane %v8884, 4
          %v8886 = vadd.f32 %v8884, %v8885
          %v8887 = vrot.slane %v8886, 2
          %v8888 = vadd.f32 %v8886, %v8887
          %v8889 = vrot.slane %v8888, 1
          %v8890 = vadd.f32 %v8888, %v8889
          %v8891 = vmul.f32 %v8890, %v8760
          %v8892 = vmul.f32 %v8882, %v8882
          %v8893 = vsub.f32 %v8891, %v8892
          %v8894 = vmax.f32 %v8893, 0.0
          %v8895 = vadd.f32 %v8894, 1e-05
          %v8896 = vrsqrt.pop %v8895
          %v8897 = vmul.f32 %v8749, %v8896
          %v8898 = vlaneseq
          %v8899 = vshrl.u32 %v8898, 7
          %v8900 = vsub.s32 2, %v8899
          %v8901 = vrot.slane %v8897, %v8900
          %v8902 = vmul.f32 %v8872, %v8901
          %v8903 = vmul.f32 %v8882, %v8897
          %v8905 = vrot.slane %v8903, 7
          %v8907 = vsub.f32 %v8749, %v8905
          %v8908 = vlaneseq
          %v8909 = vshrl.u32 %v8908, 7
          %v8910 = vsub.s32 3, %v8909
          %v8911 = vrot.slane %v8907, %v8910
          %v8912 = vadd.f32 %v8902, %v8911
          %v8913 = vmax.f32 %v8912, 0.0
          %v8915 = vsel %vm8801, %v8913, 0
          %8917 = vmatprep.subr.mxu0 0.0
          %8918 = vmatpush1.msra.mxu0 %v8793
          %8919 = vmatprep.subr.mxu0 0.0
          %8920 = vmatpush1.msra.mxu0 %v8794
          %8921 = vmatprep.subr.mxu0 0.0
          %8922 = vmatpush1.msra.mxu0 %v8795
          %8923 = vmatprep.subr.mxu0 0.0
          %8924 = vmatpush1.msra.mxu0 %v8796
          %8925 = vmatprep.subr.mxu0 0.0
          %8926 = vmatpush1.msra.mxu0 %v8797
          %8927 = vmatprep.subr.mxu0 0.0
          %8928 = vmatpush1.msra.mxu0 %v8798
          %8929 = vmatprep.subr.mxu0 0.0
          %8930 = vmatpush1.msra.mxu0 %v8799
          %8931 = vmatprep.subr.mxu0 0.0
          %8932 = vmatpush1.msra.mxu0 %v8800
          %8933 = vmatprep.subr.mxu0 0.0
          %8934 = vmatpush1.msra.mxu0 0.0
          %8935 = vmatprep.subr.mxu0 0.0
          %8936 = vmatpush1.msra.mxu0 0.0
          %8937 = vmatprep.subr.mxu0 0.0
          %8938 = vmatpush1.msra.mxu0 0.0
          %8939 = vmatprep.subr.mxu0 0.0
          %8940 = vmatpush1.msra.mxu0 0.0
          %8941 = vmatprep.subr.mxu0 0.0
          %8942 = vmatpush1.msra.mxu0 0.0
          %8943 = vmatprep.subr.mxu0 0.0
          %8944 = vmatpush1.msra.mxu0 0.0
          %8945 = vmatprep.subr.mxu0 0.0
          %8946 = vmatpush1.msra.mxu0 0.0
          %8947 = vmatprep.subr.mxu0 0.0
          %8948 = vmatpush1.msra.mxu0 0.0
          %8949 = vmatprep.subr.mxu0 0.0
          %8950 = vmatpush1.msra.mxu0 0.0
          %8951 = vmatprep.subr.mxu0 0.0
          %8952 = vmatpush1.msra.mxu0 0.0
          %8953 = vmatprep.subr.mxu0 0.0
          %8954 = vmatpush1.msra.mxu0 0.0
          %8955 = vmatprep.subr.mxu0 0.0
          %8956 = vmatpush1.msra.mxu0 0.0
          %8957 = vmatprep.subr.mxu0 0.0
          %8958 = vmatpush1.msra.mxu0 0.0
          %8959 = vmatprep.subr.mxu0 0.0
          %8960 = vmatpush1.msra.mxu0 0.0
          %8961 = vmatprep.subr.mxu0 0.0
          %8962 = vmatpush1.msra.mxu0 0.0
          %8963 = vmatprep.subr.mxu0 0.0
          %8964 = vmatpush1.msra.mxu0 0.0
          %8965 = vmatprep.subr.mxu0 0.0
          %8966 = vmatpush1.msra.mxu0 0.0
          %8967 = vmatprep.subr.mxu0 0.0
          %8968 = vmatpush1.msra.mxu0 0.0
          %8969 = vmatprep.subr.mxu0 0.0
          %8970 = vmatpush1.msra.mxu0 0.0
          %8971 = vmatprep.subr.mxu0 0.0
          %8972 = vmatpush1.msra.mxu0 0.0
          %8973 = vmatprep.subr.mxu0 0.0
          %8974 = vmatpush1.msra.mxu0 0.0
          %8975 = vmatprep.subr.mxu0 0.0
          %8976 = vmatpush1.msra.mxu0 0.0
          %8977 = vmatprep.subr.mxu0 0.0
          %8978 = vmatpush1.msra.mxu0 0.0
          %8979 = vmatprep.subr.mxu0 0.0
          %8980 = vmatpush1.msra.mxu0 0.0
          %8981 = vmatprep.mubr.f32.mxu0 0.0
          %8982 = vmatmul.mubr.f32.gmra.mrb[0].mxu0 %v8915
          %v8983 = vpop.f32.mrb[0].mxu0
          %v8984 = vadd.f32 0.0, %v8983
          %v8985 = vpop.f32.mrb[0].mxu0
          %8986 = vdwg.mxu0
          %v8987 = vsel %vm8743, %v8984, 0.0
          %v8988 = vrot.slane %v8987, 4
          %v8989 = vadd.f32 %v8987, %v8988
          %v8990 = vrot.slane %v8989, 2
          %v8991 = vadd.f32 %v8989, %v8990
          %v8992 = vrot.slane %v8991, 1
          %v8993 = vadd.f32 %v8991, %v8992
          %v8994 = vmul.f32 %v8993, %v8760
          %v8995 = vmul.f32 %v8984, %v8984
          %v8996 = vsel %vm8743, %v8995, 0.0
          %v8997 = vrot.slane %v8996, 4
          %v8998 = vadd.f32 %v8996, %v8997
          %v8999 = vrot.slane %v8998, 2
          %v9000 = vadd.f32 %v8998, %v8999
          %v9001 = vrot.slane %v9000, 1
          %v9002 = vadd.f32 %v9000, %v9001
          %v9003 = vmul.f32 %v9002, %v8760
          %v9004 = vmul.f32 %v8994, %v8994
          %v9005 = vsub.f32 %v9003, %v9004
          %v9006 = vmax.f32 %v9005, 0.0
          %v9007 = vadd.f32 %v9006, 1e-05
          %v9008 = vrsqrt.pop %v9007
          %v9009 = vmul.f32 %v8749, %v9008
          %v9010 = vlaneseq
          %v9011 = vshrl.u32 %v9010, 7
          %v9012 = vsub.s32 2, %v9011
          %v9013 = vrot.slane %v9009, %v9012
          %v9014 = vmul.f32 %v8984, %v9013
          %v9015 = vmul.f32 %v8994, %v9009
          %v9017 = vrot.slane %v9015, 7
          %v9019 = vsub.f32 %v8749, %v9017
          %v9020 = vlaneseq
          %v9021 = vshrl.u32 %v9020, 7
          %v9022 = vsub.s32 3, %v9021
          %v9023 = vrot.slane %v9019, %v9022
          %v9024 = vadd.f32 %v9014, %v9023
          %v9025 = vmax.f32 %v9024, 0.0
          %v9026 = vld [vmem:[%s3 + $0x80] sm:$0xff]
          %v9027 = vld [vmem:[%s3 + $0x90] sm:$0xff]
          %v9028 = vld [vmem:[%s3 + $0xa0] sm:$0xff]
          %v9029 = vld [vmem:[%s3 + $0xb0] sm:$0xff]
          %v9030 = vld [vmem:[%s3 + $0xc0] sm:$0xff]
          %v9031 = vld [vmem:[%s3 + $0xd0] sm:$0xff]
          %v9032 = vld [vmem:[%s3 + $0xe0] sm:$0xff]
          %v9033 = vld [vmem:[%s3 + $0xf0] sm:$0xff]
          %v9035 = vsel %vm8801, %v9025, 0
          %9037 = vmatprep.subr.mxu0 0.0
          %9038 = vmatpush1.msra.mxu0 %v9026
          %9039 = vmatprep.subr.mxu0 0.0
          %9040 = vmatpush1.msra.mxu0 %v9027
          %9041 = vmatprep.subr.mxu0 0.0
          %9042 = vmatpush1.msra.mxu0 %v9028
          %9043 = vmatprep.subr.mxu0 0.0
          %9044 = vmatpush1.msra.mxu0 %v9029
          %9045 = vmatprep.subr.mxu0 0.0
          %9046 = vmatpush1.msra.mxu0 %v9030
          %9047 = vmatprep.subr.mxu0 0.0
          %9048 = vmatpush1.msra.mxu0 %v9031
          %9049 = vmatprep.subr.mxu0 0.0
          %9050 = vmatpush1.msra.mxu0 %v9032
          %9051 = vmatprep.subr.mxu0 0.0
          %9052 = vmatpush1.msra.mxu0 %v9033
          %9053 = vmatprep.subr.mxu0 0.0
          %9054 = vmatpush1.msra.mxu0 0.0
          %9055 = vmatprep.subr.mxu0 0.0
          %9056 = vmatpush1.msra.mxu0 0.0
          %9057 = vmatprep.subr.mxu0 0.0
          %9058 = vmatpush1.msra.mxu0 0.0
          %9059 = vmatprep.subr.mxu0 0.0
          %9060 = vmatpush1.msra.mxu0 0.0
          %9061 = vmatprep.subr.mxu0 0.0
          %9062 = vmatpush1.msra.mxu0 0.0
          %9063 = vmatprep.subr.mxu0 0.0
          %9064 = vmatpush1.msra.mxu0 0.0
          %9065 = vmatprep.subr.mxu0 0.0
          %9066 = vmatpush1.msra.mxu0 0.0
          %9067 = vmatprep.subr.mxu0 0.0
          %9068 = vmatpush1.msra.mxu0 0.0
          %9069 = vmatprep.subr.mxu0 0.0
          %9070 = vmatpush1.msra.mxu0 0.0
          %9071 = vmatprep.subr.mxu0 0.0
          %9072 = vmatpush1.msra.mxu0 0.0
          %9073 = vmatprep.subr.mxu0 0.0
          %9074 = vmatpush1.msra.mxu0 0.0
          %9075 = vmatprep.subr.mxu0 0.0
          %9076 = vmatpush1.msra.mxu0 0.0
          %9077 = vmatprep.subr.mxu0 0.0
          %9078 = vmatpush1.msra.mxu0 0.0
          %9079 = vmatprep.subr.mxu0 0.0
          %9080 = vmatpush1.msra.mxu0 0.0
          %9081 = vmatprep.subr.mxu0 0.0
          %9082 = vmatpush1.msra.mxu0 0.0
          %9083 = vmatprep.subr.mxu0 0.0
          %9084 = vmatpush1.msra.mxu0 0.0
          %9085 = vmatprep.subr.mxu0 0.0
          %9086 = vmatpush1.msra.mxu0 0.0
          %9087 = vmatprep.subr.mxu0 0.0
          %9088 = vmatpush1.msra.mxu0 0.0
          %9089 = vmatprep.subr.mxu0 0.0
          %9090 = vmatpush1.msra.mxu0 0.0
          %9091 = vmatprep.subr.mxu0 0.0
          %9092 = vmatpush1.msra.mxu0 0.0
          %9093 = vmatprep.subr.mxu0 0.0
          %9094 = vmatpush1.msra.mxu0 0.0
          %9095 = vmatprep.subr.mxu0 0.0
          %9096 = vmatpush1.msra.mxu0 0.0
          %9097 = vmatprep.subr.mxu0 0.0
          %9098 = vmatpush1.msra.mxu0 0.0
          %9099 = vmatprep.subr.mxu0 0.0
          %9100 = vmatpush1.msra.mxu0 0.0
          %9101 = vmatprep.mubr.f32.mxu0 0.0
          %9102 = vmatmul.mubr.f32.gmra.mrb[0].mxu0 %v9035
          %v9103 = vpop.f32.mrb[0].mxu0
          %v9104 = vadd.f32 0.0, %v9103
          %v9105 = vpop.f32.mrb[0].mxu0
          %9106 = vdwg.mxu0
          %vm9107 = vcmask 1043456
          %v9108 = vsel %vm9107, %v9104, 0.0
          %v9109 = vrot.slane %v9108, 4
          %v9110 = vadd.f32 %v9108, %v9109
          %v9111 = vrot.slane %v9110, 2
          %v9112 = vadd.f32 %v9110, %v9111
          %v9113 = vrot.slane %v9112, 1
          %v9114 = vadd.f32 %v9112, %v9113
          %v9115 = vmul.f32 %v9114, %v8760
          %v9116 = vmul.f32 %v9104, %v9104
          %v9117 = vsel %vm9107, %v9116, 0.0
          %v9118 = vrot.slane %v9117, 4
          %v9119 = vadd.f32 %v9117, %v9118
          %v9120 = vrot.slane %v9119, 2
          %v9121 = vadd.f32 %v9119, %v9120
          %v9122 = vrot.slane %v9121, 1
          %v9123 = vadd.f32 %v9121, %v9122
          %v9124 = vmul.f32 %v9123, %v8760
          %v9125 = vmul.f32 %v9115, %v9115
          %v9126 = vsub.f32 %v9124, %v9125
          %v9127 = vmax.f32 %v9126, 0.0
          %v9128 = vadd.f32 %v9127, 1e-05
          %v9129 = vrsqrt.pop %v9128
          %v9130 = vmul.f32 %v8749, %v9129
          %v9131 = vlaneseq
          %v9132 = vshrl.u32 %v9131, 7
          %v9133 = vsub.s32 4, %v9132
          %v9134 = vrot.slane %v9130, %v9133
          %v9135 = vmul.f32 %v9104, %v9134
          %v9136 = vmul.f32 %v9115, %v9130
          %v9138 = vrot.slane %v9136, 7
          %v9140 = vsub.f32 %v8749, %v9138
          %v9141 = vlaneseq
          %v9142 = vshrl.u32 %v9141, 7
          %v9143 = vsub.s32 5, %v9142
          %v9144 = vrot.slane %v9140, %v9143
          %v9145 = vadd.f32 %v9135, %v9144
          %v9146 = vmax.f32 %v9145, 0.0
          %v9147 = vld [vmem:[%s3 + $0x100] sm:$0xff]
          %v9148 = vld [vmem:[%s3 + $0x108] sm:$0xff]
          %v9149 = vld [vmem:[%s3 + $0x110] sm:$0xff]
          %v9150 = vld [vmem:[%s3 + $0x118] sm:$0xff]
          %v9151 = vld [vmem:[%s3 + $0x120] sm:$0xff]
          %v9152 = vld [vmem:[%s3 + $0x128] sm:$0xff]
          %v9153 = vld [vmem:[%s3 + $0x130] sm:$0xff]
          %v9154 = vld [vmem:[%s3 + $0x138] sm:$0xff]
          %v9155 = vld [vmem:[%s3 + $0x140] sm:$0xff]
          %v9156 = vld [vmem:[%s3 + $0x148] sm:$0xff]
          %v9157 = vld [vmem:[%s3 + $0x150] sm:$0xff]
          %v9158 = vld [vmem:[%s3 + $0x158] sm:$0xff]
          %v9159 = vld [vmem:[%s3 + $0x160] sm:$0xff]
          %v9160 = vld [vmem:[%s3 + $0x168] sm:$0xff]
          %v9161 = vld [vmem:[%s3 + $0x170] sm:$0xff]
          %v9162 = vld [vmem:[%s3 + $0x178] sm:$0xff]
          %v9163 = vld [vmem:[%s3 + $0x180] sm:$0xff]
          %v9164 = vld [vmem:[%s3 + $0x188] sm:$0xff]
          %v9165 = vld [vmem:[%s3 + $0x190] sm:$0xff]
          %v9166 = vld [vmem:[%s3 + $0x198] sm:$0xff]
          %v9167 = vld [vmem:[%s3 + $0x1a0] sm:$0xff]
          %v9168 = vld [vmem:[%s3 + $0x1a8] sm:$0xff]
          %v9169 = vld [vmem:[%s3 + $0x1b0] sm:$0xff]
          %v9170 = vld [vmem:[%s3 + $0x1b8] sm:$0xff]
          %v9171 = vld [vmem:[%s3 + $0x1c0] sm:$0xff]
          %v9172 = vld [vmem:[%s3 + $0x1c8] sm:$0xff]
          %v9173 = vld [vmem:[%s3 + $0x1d0] sm:$0xff]
          %v9174 = vld [vmem:[%s3 + $0x1d8] sm:$0xff]
          %v9175 = vld [vmem:[%s3 + $0x1e0] sm:$0xff]
          %v9176 = vld [vmem:[%s3 + $0x1e8] sm:$0xff]
          %v9177 = vld [vmem:[%s3 + $0x1f0] sm:$0xff]
          %v9178 = vld [vmem:[%s3 + $0x1f8] sm:$0xff]
          %9179 = vmatprep.subr.mxu0 %v9148
          %9180 = vmatpush1.msra.mxu0 %v9147
          %9181 = vmatprep.subr.mxu0 %v9150
          %9182 = vmatpush1.msra.mxu0 %v9149
          %9183 = vmatprep.subr.mxu0 %v9152
          %9184 = vmatpush1.msra.mxu0 %v9151
          %9185 = vmatprep.subr.mxu0 %v9154
          %9186 = vmatpush1.msra.mxu0 %v9153
          %9187 = vmatprep.subr.mxu0 %v9156
          %9188 = vmatpush1.msra.mxu0 %v9155
          %9189 = vmatprep.subr.mxu0 %v9158
          %9190 = vmatpush1.msra.mxu0 %v9157
          %9191 = vmatprep.subr.mxu0 %v9160
          %9192 = vmatpush1.msra.mxu0 %v9159
          %9193 = vmatprep.subr.mxu0 %v9162
          %9194 = vmatpush1.msra.mxu0 %v9161
          %9195 = vmatprep.subr.mxu0 %v9164
          %9196 = vmatpush1.msra.mxu0 %v9163
          %9197 = vmatprep.subr.mxu0 %v9166
          %9198 = vmatpush1.msra.mxu0 %v9165
          %9199 = vmatprep.subr.mxu0 %v9168
          %9200 = vmatpush1.msra.mxu0 %v9167
          %9201 = vmatprep.subr.mxu0 %v9170
          %9202 = vmatpush1.msra.mxu0 %v9169
          %9203 = vmatprep.subr.mxu0 %v9172
          %9204 = vmatpush1.msra.mxu0 %v9171
          %9205 = vmatprep.subr.mxu0 %v9174
          %9206 = vmatpush1.msra.mxu0 %v9173
          %9207 = vmatprep.subr.mxu0 %v9176
          %9208 = vmatpush1.msra.mxu0 %v9175
          %9209 = vmatprep.subr.mxu0 %v9178
          %9210 = vmatpush1.msra.mxu0 %v9177
          %9211 = vmatprep.subr.mxu0 0.0
          %9212 = vmatpush1.msra.mxu0 0.0
          %9213 = vmatprep.subr.mxu0 0.0
          %9214 = vmatpush1.msra.mxu0 0.0
          %9215 = vmatprep.subr.mxu0 0.0
          %9216 = vmatpush1.msra.mxu0 0.0
          %9217 = vmatprep.subr.mxu0 0.0
          %9218 = vmatpush1.msra.mxu0 0.0
          %9219 = vmatprep.subr.mxu0 0.0
          %9220 = vmatpush1.msra.mxu0 0.0
          %9221 = vmatprep.subr.mxu0 0.0
          %9222 = vmatpush1.msra.mxu0 0.0
          %9223 = vmatprep.subr.mxu0 0.0
          %9224 = vmatpush1.msra.mxu0 0.0
          %9225 = vmatprep.subr.mxu0 0.0
          %9226 = vmatpush1.msra.mxu0 0.0
          %9227 = vmatprep.subr.mxu0 0.0
          %9228 = vmatpush1.msra.mxu0 0.0
          %9229 = vmatprep.subr.mxu0 0.0
          %9230 = vmatpush1.msra.mxu0 0.0
          %9231 = vmatprep.subr.mxu0 0.0
          %9232 = vmatpush1.msra.mxu0 0.0
          %9233 = vmatprep.subr.mxu0 0.0
          %9234 = vmatpush1.msra.mxu0 0.0
          %9235 = vmatprep.subr.mxu0 0.0
          %9236 = vmatpush1.msra.mxu0 0.0
          %9237 = vmatprep.subr.mxu0 0.0
          %9238 = vmatpush1.msra.mxu0 0.0
          %9239 = vmatprep.subr.mxu0 0.0
          %9240 = vmatpush1.msra.mxu0 0.0
          %9241 = vmatprep.subr.mxu0 0.0
          %9242 = vmatpush1.msra.mxu0 0.0
          %9243 = vmatprep.mubr.f32.mxu0 0.0
          %9244 = vmatmul.mubr.f32.gmra.mrb[0].mxu0 %v9146
          %v9245 = vpop.f32.mrb[0].mxu0
          %v9246 = vadd.f32 0.0, %v9245
          %v9247 = vpop.f32.mrb[0].mxu0
          %v9248 = vadd.f32 0.0, %v9247
          %9249 = vdwg.mxu0
          %v9250 = vsel %vm9107, %v9246, 0.0
          %v9251 = vrot.slane %v9250, 4
          %v9252 = vadd.f32 %v9250, %v9251
          %v9253 = vrot.slane %v9252, 2
          %v9254 = vadd.f32 %v9252, %v9253
          %v9255 = vrot.slane %v9254, 1
          %v9256 = vadd.f32 %v9254, %v9255
          %v9257 = vsel %vm9107, %v9248, 0.0
          %v9258 = vrot.slane %v9257, 4
          %v9259 = vadd.f32 %v9257, %v9258
          %v9260 = vrot.slane %v9259, 2
          %v9261 = vadd.f32 %v9259, %v9260
          %v9262 = vrot.slane %v9261, 1
          %v9263 = vadd.f32 %v9261, %v9262
          %v9264 = vmul.f32 %v9256, %v8760
          %v9265 = vmul.f32 %v9263, %v8760
          %v9266 = vmul.f32 %v9246, %v9246
          %v9267 = vmul.f32 %v9248, %v9248
          %v9268 = vsel %vm9107, %v9266, 0.0
          %v9269 = vrot.slane %v9268, 4
          %v9270 = vadd.f32 %v9268, %v9269
          %v9271 = vrot.slane %v9270, 2
          %v9272 = vadd.f32 %v9270, %v9271
          %v9273 = vrot.slane %v9272, 1
          %v9274 = vadd.f32 %v9272, %v9273
          %v9275 = vsel %vm9107, %v9267, 0.0
          %v9276 = vrot.slane %v9275, 4
          %v9277 = vadd.f32 %v9275, %v9276
          %v9278 = vrot.slane %v9277, 2
          %v9279 = vadd.f32 %v9277, %v9278
          %v9280 = vrot.slane %v9279, 1
          %v9281 = vadd.f32 %v9279, %v9280
          %v9282 = vmul.f32 %v9274, %v8760
          %v9283 = vmul.f32 %v9281, %v8760
          %v9284 = vmul.f32 %v9264, %v9264
          %v9285 = vmul.f32 %v9265, %v9265
          %v9286 = vsub.f32 %v9282, %v9284
          %v9287 = vsub.f32 %v9283, %v9285
          %v9288 = vmax.f32 %v9286, 0.0
          %v9289 = vmax.f32 %v9287, 0.0
          %v9290 = vadd.f32 %v9288, 1e-05
          %v9291 = vadd.f32 %v9289, 1e-05
          %v9292 = vrsqrt.pop %v9290
          %v9293 = vrsqrt.pop %v9291
          %v9294 = vmul.f32 %v8749, %v9292
          %v9295 = vmul.f32 %v8750, %v9293
          %v9296 = vlaneseq
          %v9297 = vshrl.u32 %v9296, 7
          %v9298 = vsub.s32 6, %v9297
          %v9299 = vrot.slane %v9294, %v9298
          %v9300 = vlaneseq
          %v9301 = vshrl.u32 %v9300, 7
          %v9302 = vsub.s32 6, %v9301
          %v9303 = vrot.slane %v9295, %v9302
          %v9304 = vmul.f32 %v9246, %v9299
          %v9305 = vmul.f32 %v9248, %v9303
          %v9306 = vmul.f32 %v9264, %v9294
          %v9307 = vmul.f32 %v9265, %v9295
          %v9310 = vrot.slane %v9306, 7
          %v9311 = vrot.slane %v9307, 7
          %v9314 = vsub.f32 %v8749, %v9310
          %v9315 = vsub.f32 %v8750, %v9311
          %v9316 = vlaneseq
          %v9317 = vshrl.u32 %v9316, 7
          %v9318 = vsub.s32 7, %v9317
          %v9319 = vrot.slane %v9314, %v9318
          %v9320 = vlaneseq
          %v9321 = vshrl.u32 %v9320, 7
          %v9322 = vsub.s32 7, %v9321
          %v9323 = vrot.slane %v9315, %v9322
          %v9324 = vadd.f32 %v9304, %v9319
          %v9325 = vadd.f32 %v9305, %v9323
          %v9326 = vmax.f32 %v9324, 0.0
          %v9327 = vmax.f32 %v9325, 0.0
          %v9328 = vld [vmem:[%s3 + $0x200] sm:$0xff]
          %v9329 = vld [vmem:[%s3 + $0x210] sm:$0xff]
          %v9330 = vld [vmem:[%s3 + $0x220] sm:$0xff]
          %v9331 = vld [vmem:[%s3 + $0x230] sm:$0xff]
          %v9332 = vld [vmem:[%s3 + $0x240] sm:$0xff]
          %v9333 = vld [vmem:[%s3 + $0x250] sm:$0xff]
          %v9334 = vld [vmem:[%s3 + $0x260] sm:$0xff]
          %v9335 = vld [vmem:[%s3 + $0x270] sm:$0xff]
          %v9336 = vld [vmem:[%s3 + $0x280] sm:$0xff]
          %v9337 = vld [vmem:[%s3 + $0x290] sm:$0xff]
          %v9338 = vld [vmem:[%s3 + $0x2a0] sm:$0xff]
          %v9339 = vld [vmem:[%s3 + $0x2b0] sm:$0xff]
          %v9340 = vld [vmem:[%s3 + $0x2c0] sm:$0xff]
          %v9341 = vld [vmem:[%s3 + $0x2d0] sm:$0xff]
          %v9342 = vld [vmem:[%s3 + $0x2e0] sm:$0xff]
          %v9343 = vld [vmem:[%s3 + $0x2f0] sm:$0xff]
          %v9344 = vld [vmem:[%s3 + $0x300] sm:$0xff]
          %v9345 = vld [vmem:[%s3 + $0x310] sm:$0xff]
          %v9346 = vld [vmem:[%s3 + $0x320] sm:$0xff]
          %v9347 = vld [vmem:[%s3 + $0x330] sm:$0xff]
          %v9348 = vld [vmem:[%s3 + $0x340] sm:$0xff]
          %v9349 = vld [vmem:[%s3 + $0x350] sm:$0xff]
          %v9350 = vld [vmem:[%s3 + $0x360] sm:$0xff]
          %v9351 = vld [vmem:[%s3 + $0x370] sm:$0xff]
          %v9352 = vld [vmem:[%s3 + $0x380] sm:$0xff]
          %v9353 = vld [vmem:[%s3 + $0x390] sm:$0xff]
          %v9354 = vld [vmem:[%s3 + $0x3a0] sm:$0xff]
          %v9355 = vld [vmem:[%s3 + $0x3b0] sm:$0xff]
          %v9356 = vld [vmem:[%s3 + $0x3c0] sm:$0xff]
          %v9357 = vld [vmem:[%s3 + $0x3d0] sm:$0xff]
          %v9358 = vld [vmem:[%s3 + $0x3e0] sm:$0xff]
          %v9359 = vld [vmem:[%s3 + $0x3f0] sm:$0xff]
          %9360 = vmatprep.subr.mxu0 0.0
          %9361 = vmatpush1.msra.mxu0 %v9328
          %9362 = vmatprep.subr.mxu0 0.0
          %9363 = vmatpush1.msra.mxu0 %v9329
          %9364 = vmatprep.subr.mxu0 0.0
          %9365 = vmatpush1.msra.mxu0 %v9330
          %9366 = vmatprep.subr.mxu0 0.0
          %9367 = vmatpush1.msra.mxu0 %v9331
          %9368 = vmatprep.subr.mxu0 0.0
          %9369 = vmatpush1.msra.mxu0 %v9332
          %9370 = vmatprep.subr.mxu0 0.0
          %9371 = vmatpush1.msra.mxu0 %v9333
          %9372 = vmatprep.subr.mxu0 0.0
          %9373 = vmatpush1.msra.mxu0 %v9334
          %9374 = vmatprep.subr.mxu0 0.0
          %9375 = vmatpush1.msra.mxu0 %v9335
          %9376 = vmatprep.subr.mxu0 0.0
          %9377 = vmatpush1.msra.mxu0 %v9336
          %9378 = vmatprep.subr.mxu0 0.0
          %9379 = vmatpush1.msra.mxu0 %v9337
          %9380 = vmatprep.subr.mxu0 0.0
          %9381 = vmatpush1.msra.mxu0 %v9338
          %9382 = vmatprep.subr.mxu0 0.0
          %9383 = vmatpush1.msra.mxu0 %v9339
          %9384 = vmatprep.subr.mxu0 0.0
          %9385 = vmatpush1.msra.mxu0 %v9340
          %9386 = vmatprep.subr.mxu0 0.0
          %9387 = vmatpush1.msra.mxu0 %v9341
          %9388 = vmatprep.subr.mxu0 0.0
          %9389 = vmatpush1.msra.mxu0 %v9342
          %9390 = vmatprep.subr.mxu0 0.0
          %9391 = vmatpush1.msra.mxu0 %v9343
          %9392 = vmatprep.subr.mxu0 0.0
          %9393 = vmatpush1.msra.mxu0 %v9344
          %9394 = vmatprep.subr.mxu0 0.0
          %9395 = vmatpush1.msra.mxu0 %v9345
          %9396 = vmatprep.subr.mxu0 0.0
          %9397 = vmatpush1.msra.mxu0 %v9346
          %9398 = vmatprep.subr.mxu0 0.0
          %9399 = vmatpush1.msra.mxu0 %v9347
          %9400 = vmatprep.subr.mxu0 0.0
          %9401 = vmatpush1.msra.mxu0 %v9348
          %9402 = vmatprep.subr.mxu0 0.0
          %9403 = vmatpush1.msra.mxu0 %v9349
          %9404 = vmatprep.subr.mxu0 0.0
          %9405 = vmatpush1.msra.mxu0 %v9350
          %9406 = vmatprep.subr.mxu0 0.0
          %9407 = vmatpush1.msra.mxu0 %v9351
          %9408 = vmatprep.subr.mxu0 0.0
          %9409 = vmatpush1.msra.mxu0 %v9352
          %9410 = vmatprep.subr.mxu0 0.0
          %9411 = vmatpush1.msra.mxu0 %v9353
          %9412 = vmatprep.subr.mxu0 0.0
          %9413 = vmatpush1.msra.mxu0 %v9354
          %9414 = vmatprep.subr.mxu0 0.0
          %9415 = vmatpush1.msra.mxu0 %v9355
          %9416 = vmatprep.subr.mxu0 0.0
          %9417 = vmatpush1.msra.mxu0 %v9356
          %9418 = vmatprep.subr.mxu0 0.0
          %9419 = vmatpush1.msra.mxu0 %v9357
          %9420 = vmatprep.subr.mxu0 0.0
          %9421 = vmatpush1.msra.mxu0 %v9358
          %9422 = vmatprep.subr.mxu0 0.0
          %9423 = vmatpush1.msra.mxu0 %v9359
          %9424 = vmatprep.mubr.f32.mxu0 %v9327
          %9425 = vmatmul.mubr.f32.gmra.mrb[0].mxu0 %v9326
          %v9426 = vpop.f32.mrb[0].mxu0
          %v9427 = vadd.f32 0.0, %v9426
          %v9428 = vpop.f32.mrb[0].mxu0
          %9429 = vdwg.mxu0
          %v9430 = vsel %vm9107, %v9427, 0.0
          %v9431 = vrot.slane %v9430, 4
          %v9432 = vadd.f32 %v9430, %v9431
          %v9433 = vrot.slane %v9432, 2
          %v9434 = vadd.f32 %v9432, %v9433
          %v9435 = vrot.slane %v9434, 1
          %v9436 = vadd.f32 %v9434, %v9435
          %v9437 = vmul.f32 %v9436, %v8760
          %v9438 = vmul.f32 %v9427, %v9427
          %v9439 = vsel %vm9107, %v9438, 0.0
          %v9440 = vrot.slane %v9439, 4
          %v9441 = vadd.f32 %v9439, %v9440
          %v9442 = vrot.slane %v9441, 2
          %v9443 = vadd.f32 %v9441, %v9442
          %v9444 = vrot.slane %v9443, 1
          %v9445 = vadd.f32 %v9443, %v9444
          %v9446 = vmul.f32 %v9445, %v8760
          %v9447 = vmul.f32 %v9437, %v9437
          %v9448 = vsub.f32 %v9446, %v9447
          %v9449 = vmax.f32 %v9448, 0.0
          %v9450 = vadd.f32 %v9449, 1e-05
          %v9451 = vrsqrt.pop %v9450
          %v9452 = vmul.f32 %v8751, %v9451
          %v9453 = vlaneseq
          %v9454 = vshrl.u32 %v9453, 7
          %v9455 = vsub.s32 0, %v9454
          %v9456 = vrot.slane %v9452, %v9455
          %v9457 = vmul.f32 %v9427, %v9456
          %v9458 = vmul.f32 %v9437, %v9452
          %v9460 = vrot.slane %v9458, 7
          %v9462 = vsub.f32 %v8751, %v9460
          %v9463 = vlaneseq
          %v9464 = vshrl.u32 %v9463, 7
          %v9465 = vsub.s32 1, %v9464
          %v9466 = vrot.slane %v9462, %v9465
          %v9467 = vadd.f32 %v9457, %v9466
          %v9468 = vmax.f32 %v9467, 0.0
          %v9469 = vld [vmem:[%s3 + $0x400] sm:$0xff]
          %v9470 = vld [vmem:[%s3 + $0x410] sm:$0xff]
          %v9471 = vld [vmem:[%s3 + $0x420] sm:$0xff]
          %v9472 = vld [vmem:[%s3 + $0x430] sm:$0xff]
          %v9473 = vld [vmem:[%s3 + $0x440] sm:$0xff]
          %v9474 = vld [vmem:[%s3 + $0x450] sm:$0xff]
          %v9475 = vld [vmem:[%s3 + $0x460] sm:$0xff]
          %v9476 = vld [vmem:[%s3 + $0x470] sm:$0xff]
          %v9477 = vld [vmem:[%s3 + $0x480] sm:$0xff]
          %v9478 = vld [vmem:[%s3 + $0x490] sm:$0xff]
          %v9479 = vld [vmem:[%s3 + $0x4a0] sm:$0xff]
          %v9480 = vld [vmem:[%s3 + $0x4b0] sm:$0xff]
          %v9481 = vld [vmem:[%s3 + $0x4c0] sm:$0xff]
          %v9482 = vld [vmem:[%s3 + $0x4d0] sm:$0xff]
          %v9483 = vld [vmem:[%s3 + $0x4e0] sm:$0xff]
          %v9484 = vld [vmem:[%s3 + $0x4f0] sm:$0xff]
          %v9485 = vlaneseq
          %v9486 = vshrl.u32 %v9485, 7
          %v9487 = vsub.s32 2, %v9486
          %v9488 = vrot.slane %v8751, %v9487
          %9489 = vmatprep.subr.mxu0 0.0
          %9490 = vmatpush1.msra.mxu0 %v9469
          %9491 = vmatprep.subr.mxu0 0.0
          %9492 = vmatpush1.msra.mxu0 %v9470
          %9493 = vmatprep.subr.mxu0 0.0
          %9494 = vmatpush1.msra.mxu0 %v9471
          %9495 = vmatprep.subr.mxu0 0.0
          %9496 = vmatpush1.msra.mxu0 %v9472
          %9497 = vmatprep.subr.mxu0 0.0
          %9498 = vmatpush1.msra.mxu0 %v9473
          %9499 = vmatprep.subr.mxu0 0.0
          %9500 = vmatpush1.msra.mxu0 %v9474
          %9501 = vmatprep.subr.mxu0 0.0
          %9502 = vmatpush1.msra.mxu0 %v9475
          %9503 = vmatprep.subr.mxu0 0.0
          %9504 = vmatpush1.msra.mxu0 %v9476
          %9505 = vmatprep.subr.mxu0 0.0
          %9506 = vmatpush1.msra.mxu0 %v9477
          %9507 = vmatprep.subr.mxu0 0.0
          %9508 = vmatpush1.msra.mxu0 %v9478
          %9509 = vmatprep.subr.mxu0 0.0
          %9510 = vmatpush1.msra.mxu0 %v9479
          %9511 = vmatprep.subr.mxu0 0.0
          %9512 = vmatpush1.msra.mxu0 %v9480
          %9513 = vmatprep.subr.mxu0 0.0
          %9514 = vmatpush1.msra.mxu0 %v9481
          %9515 = vmatprep.subr.mxu0 0.0
          %9516 = vmatpush1.msra.mxu0 %v9482
          %9517 = vmatprep.subr.mxu0 0.0
          %9518 = vmatpush1.msra.mxu0 %v9483
          %9519 = vmatprep.subr.mxu0 0.0
          %9520 = vmatpush1.msra.mxu0 %v9484
          %9521 = vmatprep.subr.mxu0 0.0
          %9522 = vmatpush1.msra.mxu0 0.0
          %9523 = vmatprep.subr.mxu0 0.0
          %9524 = vmatpush1.msra.mxu0 0.0
          %9525 = vmatprep.subr.mxu0 0.0
          %9526 = vmatpush1.msra.mxu0 0.0
          %9527 = vmatprep.subr.mxu0 0.0
          %9528 = vmatpush1.msra.mxu0 0.0
          %9529 = vmatprep.subr.mxu0 0.0
          %9530 = vmatpush1.msra.mxu0 0.0
          %9531 = vmatprep.subr.mxu0 0.0
          %9532 = vmatpush1.msra.mxu0 0.0
          %9533 = vmatprep.subr.mxu0 0.0
          %9534 = vmatpush1.msra.mxu0 0.0
          %9535 = vmatprep.subr.mxu0 0.0
          %9536 = vmatpush1.msra.mxu0 0.0
          %9537 = vmatprep.subr.mxu0 0.0
          %9538 = vmatpush1.msra.mxu0 0.0
          %9539 = vmatprep.subr.mxu0 0.0
          %9540 = vmatpush1.msra.mxu0 0.0
          %9541 = vmatprep.subr.mxu0 0.0
          %9542 = vmatpush1.msra.mxu0 0.0
          %9543 = vmatprep.subr.mxu0 0.0
          %9544 = vmatpush1.msra.mxu0 0.0
          %9545 = vmatprep.subr.mxu0 0.0
          %9546 = vmatpush1.msra.mxu0 0.0
          %9547 = vmatprep.subr.mxu0 0.0
          %9548 = vmatpush1.msra.mxu0 0.0
          %9549 = vmatprep.subr.mxu0 0.0
          %9550 = vmatpush1.msra.mxu0 0.0
          %9551 = vmatprep.subr.mxu0 0.0
          %9552 = vmatpush1.msra.mxu0 0.0
          %9553 = vmatprep.mubr.f32.mxu0 0.0
          %9554 = vmatmul.mubr.f32.gmra.mrb[0].mxu0 %v9468
          %v9555 = vpop.f32.mrb[0].mxu0
          %v9556 = vadd.f32 %v9488, %v9555
          %v9557 = vpop.f32.mrb[0].mxu0
          %9558 = vdwg.mxu0
          %vm9559 = vcmask 76800
          %9560 = vst.msk [vmem:[#allocation3] sm:$0xf] %vm9559, %v9556
        $region44: #{model_forward.1} parent=35 // pred_fallthru
          _
        // Predicated region
        $region45: #{model_forward.1} parent=35 // pred_check
          %p9561 = pneg %p123
        $region46: #{model_forward.1} parent=35 // pred_check_branch
          %9563 = sbr.rel (%p9561) target = $region48
        $region47: #{model_forward.1} parent=35 // pred_region
          %s9565 = ssub.s32 64, 64
          %9566 = vsyncadd [#allocation4], %s9565
          %s9568 = sshll.u32 [#allocation3], 4
          %s9569 = int_to_ptr.vmem [resolvable:$true] %s9568
          %9571 = dma.vmem_to_hbm [thread:$0]  %s9569, 64, %s4, [#allocation4]
        $region48: #{model_forward.1} parent=35 // pred_fallthru
          _
        // Predicated region
        $region49: #{model_forward.1} parent=35 // pred_check
          %p9572 = pneg %p123
        $region50: #{model_forward.1} parent=35 // pred_check_branch
          %9574 = sbr.rel (%p9572) target = $region52
        $region51: #{model_forward.1} parent=35 // pred_region
          %9575 = dma.done [#allocation4], 64
        $region52: #{model_forward.1} parent=35 // pred_fallthru
          _
      $region36: #{model_forward.1} parent=5 // pred_fallthru
        _
      %p9576 = scmp.le.s32.totalorder 2, %s11
      // Predicated region
      $region53: #{model_forward.1} parent=5 // pred_check
        %p9577 = pneg %p9576
      $region54: #{model_forward.1} parent=5 // pred_check_branch
        %9579 = sbr.rel (%p9577) target = $region56
      $region55: #{model_forward.1} parent=5 // pred_region
        %s9580 = ssub.s32 %s11, 2
      $region56: #{model_forward.1} parent=5 // pred_fallthru
        _
    $region6: #{model_forward.1} parent=1 // loop_footer
      %s15 = sadd.s32 1, %s11
    $region7: #{model_forward.1} parent=1 // loop_footer_branch
      %10 = sbr.rel target = $region3
    $region8: #{model_forward.1} parent=1 // loop_exit
      _
    %9581 = vsyncpa [#allocation4], 1
    %s9582 = scalar_lea.sflag [#allocation4], 1
    %9583 = vsyncpa %s9582, 1

</llo_original>
